<compile_context>
chip_gen: v7x
topology: tpu7x:2x2x1
jax: 0.10.0
libtpu: 0.0.40
codegen_flags: <defaults>
</compile_context>

<pallas_src>
import functools

import jax
import jax.numpy as jnp
from jax import lax
from jax.experimental import pallas as pl
from jax.experimental.pallas import tpu as pltpu


def gat_kernel(x_ref, ea_ref, mask_ref,
               wf_ref, bf_ref, wfe_ref, bfe_ref, we_ref,
               wlr_ref, blr_ref, att_ref, bconv_ref,
               o_ref, *, n_nodes, heads, out_ch, n_layers):
    N, H, C = n_nodes, heads, out_ch
    HC = H * C
    f32 = jnp.float32

    x = x_ref[0]            # [N, F]
    ea = ea_ref[0]          # [N*N, 2]
    mask0 = mask_ref[0]     # [N, N]  (no self loops)

    ii = lax.broadcasted_iota(jnp.int32, (N, N), 0)
    jj = lax.broadcasted_iota(jnp.int32, (N, N), 1)
    eye = (ii == jj).astype(f32)
    mask = jnp.minimum(mask0 + eye, 1.0)          # adjacency incl. self loops

    # ---- hoisted, layer-invariant broadcasts (JAX does not CSE broadcast_in_dim)
    blr_b = jnp.broadcast_to(blr_ref[...], (N, 2 * HC))      # fused lin_l/lin_r bias
    bconv_b = jnp.broadcast_to(bconv_ref[...], (N, C))       # conv bias
    att_b = jnp.broadcast_to(att_ref[...].reshape(1, 1, HC), (N, N, HC))

    # ---- node encoder: h = relu(x @ Wf + bf)   (weights already [K, M])
    h = jnp.maximum(
        jnp.dot(x, wf_ref[...], preferred_element_type=f32) + bf_ref[...], 0.0)

    # ---- edge encoder + GATv2 lin_edge projection (layer-invariant, heads in lanes)
    e_fe = jnp.maximum(
        jnp.dot(ea, wfe_ref[...], preferred_element_type=f32) + bfe_ref[...], 0.0)
    e_proj = jnp.dot(e_fe, we_ref[...], preferred_element_type=f32)   # [N*N, HC]
    e3 = e_proj.reshape(N, N, HC) * mask0[:, :, None]                 # zero non-edges
    deg = jnp.sum(mask0, axis=1, keepdims=True)                       # in-degree per dst
    inv_deg = pl.reciprocal(jnp.maximum(deg, 1.0), approx=True)
    self_fill = jnp.sum(e3, axis=1) * inv_deg                         # mean of incoming
    e3 = e3 + eye[:, :, None] * self_fill[:, None, :]                 # 'mean' self-loop fill

    inv_h = f32(1.0 / H)

    def gat_layer(h):
        # fused lin_l / lin_r: one lane-dense [N, 2*HC] matmul
        xlr = jnp.dot(h, wlr_ref[...], preferred_element_type=f32) + blr_b
        xl = xlr[:, :HC]            # source side (aggregated values)
        xr = xlr[:, HC:]            # target side

        # message + leaky_relu once for all heads (heads packed in lanes)
        m = xr[:, None, :] + xl[None, :, :] + e3                      # [N, N, HC]
        m = jnp.where(m > 0, m, 0.2 * m)
        p = m * att_b

        w_cols, xl_rows = [], []
        for hh in range(H):
            s = jnp.sum(p[:, :, hh * C:(hh + 1) * C], axis=-1)        # [N, N]
            s = s - jnp.max(s, axis=-1, keepdims=True)                # raw row max (safe)
            ew = jnp.exp(s) * mask                                    # zero non-edges
            denom = jnp.sum(ew, axis=-1, keepdims=True)               # >0 (self loop)
            w_cols.append(ew * pl.reciprocal(denom, approx=True))
            xl_rows.append(xl[:, hh * C:(hh + 1) * C])

        # fused per-head aggregation: one [N, H*N] x [H*N, C] dot == sum over heads
        w_all = jnp.concatenate(w_cols, axis=-1)                      # [N, H*N]
        xl_all = jnp.concatenate(xl_rows, axis=0)                     # [H*N, C]
        out = jnp.dot(w_all, xl_all, preferred_element_type=f32)      # [N, C]
        return jnp.maximum(out * inv_h + bconv_b, 0.0)                # head-mean + bias + relu

    for _ in range(n_layers):
        h = gat_layer(h)

    o_ref[0] = h


def gat_forward(xb, eab, mask0b, p, *, heads, n_layers=3):
    """xb: [B,N,F], eab: [B,N*N,2], mask0b: [B,N,N]."""
    B, N, _ = xb.shape
    H = heads
    C = p["att"].shape[1]
    HC = H * C

    # wrapper-side one-time weight re-layout / fusion (trace-time, folded by XLA)
    wf_t = p["wf"].T                                            # [F, D]
    wfe_t = p["wfe"].T                                          # [2, EDGE_DIM]
    we_t = p["we"].T                                            # [EDGE_DIM, HC]
    w_lr = jnp.concatenate([p["wl"].T, p["wr"].T], axis=1)      # [D, 2*HC]
    b_lr = jnp.concatenate([p["bl"], p["br"]], axis=1)          # [1, 2*HC]
    att_flat = p["att"].reshape(1, HC)                          # [1, HC]

    args = (xb, eab, mask0b,
            wf_t, p["bf"], wfe_t, p["bfe"], we_t,
            w_lr, b_lr, att_flat, p["bconv"])

    def batch_spec(shape):
        nd = len(shape)
        return pl.BlockSpec((1,) + tuple(shape[1:]),
                            lambda b, _nd=nd: (b,) + (0,) * (_nd - 1))

    def const_spec(shape):
        nd = len(shape)
        return pl.BlockSpec(tuple(shape), lambda b, _nd=nd: (0,) * _nd)

    in_specs = ([batch_spec(xb.shape), batch_spec(eab.shape), batch_spec(mask0b.shape)]
                + [const_spec(a.shape) for a in args[3:]])

    kernel = functools.partial(gat_kernel, n_nodes=N, heads=H, out_ch=C,
                               n_layers=n_layers)
    return pl.pallas_call(
        kernel,
        out_shape=jax.ShapeDtypeStruct((B, N, C), jnp.float32),
        grid=(B,),
        in_specs=in_specs,
        out_specs=pl.BlockSpec((1, N, C), lambda b: (b, 0, 0)),
        compiler_params=pltpu.CompilerParams(dimension_semantics=("parallel",)),
    )(*args)


def gat_reference_single(x, ea_flat, mask0, p, *, heads, n_layers=3):
    """Plain-JAX mirror of the original dense GATv2 math (verification only)."""
    N = x.shape[0]
    H = heads
    C = p["att"].shape[1]
    eye = jnp.eye(N, dtype=jnp.float32)
    mask = jnp.minimum(mask0 + eye, 1.0)
    h = jax.nn.relu(x @ p["wf"].T + p["bf"])
    e_fe = jax.nn.relu(ea_flat @ p["wfe"].T + p["bfe"])
    e_proj = e_fe @ p["we"].T
    deg = jnp.sum(mask0, axis=1, keepdims=True)
    inv_deg = 1.0 / jnp.maximum(deg, 1.0)
    e_heads = []
    for hh in range(H):
        e_h = e_proj[:, hh * C:(hh + 1) * C].reshape(N, N, C) * mask0[:, :, None]
        self_h = jnp.sum(e_h, axis=1) * inv_deg
        e_heads.append(e_h + eye[:, :, None] * self_h[:, None, :])
    for _ in range(n_layers):
        xl = h @ p["wl"].T + p["bl"]
        xr = h @ p["wr"].T + p["br"]
        out = jnp.zeros((N, C), jnp.float32)
        for hh in range(H):
            xl_h = xl[:, hh * C:(hh + 1) * C]
            xr_h = xr[:, hh * C:(hh + 1) * C]
            m = xr_h[:, None, :] + xl_h[None, :, :] + e_heads[hh]
            m = jnp.where(m > 0, m, 0.2 * m)
            s = jnp.sum(m * p["att"][hh:hh + 1, :], axis=-1)
            s = jnp.where(mask > 0, s, -1e30)
            s = s - jnp.max(s, axis=1, keepdims=True)
            w = jnp.exp(s) * mask
            w = w / jnp.maximum(jnp.sum(w, axis=1, keepdims=True), 1e-16)
            out = out + w @ xl_h
        h = jax.nn.relu(out / H + p["bconv"])
    return h


if __name__ == "__main__":
    B, N, F, D, H = 2, 16, 4, 32, 2     # graphs, nodes, node feats, embedding_size, heads
    C = D                               # GATv2 out_channels == embedding_size
    E = 48
    EDGE_DIM = 20

    keys = jax.random.split(jax.random.PRNGKey(0), 32)

    xs, eas, masks = [], [], []
    for b in range(B):
        kx, ks, ko, ke = keys[4 * b], keys[4 * b + 1], keys[4 * b + 2], keys[4 * b + 3]
        x = jax.random.normal(kx, (N, F), jnp.float32)
        src = jax.random.randint(ks, (E,), 0, N)
        off = jax.random.randint(ko, (E,), 1, N)
        dst = (src + off) % N           # guarantees no self loops
        edge_attr_raw = jax.random.normal(ke, (E, 2), jnp.float32)
        mask0 = jnp.zeros((N, N), jnp.float32).at[dst, src].set(1.0)
        ea_dense = jnp.zeros((N, N, 2), jnp.float32).at[dst, src].set(edge_attr_raw)
        xs.append(x)
        eas.append(ea_dense.reshape(N * N, 2))
        masks.append(mask0)
    xb = jnp.stack(xs)                  # [B, N, F]
    eab = jnp.stack(eas)                # [B, N*N, 2]
    maskb = jnp.stack(masks)            # [B, N, N]

    def init(k, shape, scale=0.2):
        return scale * jax.random.normal(k, shape, jnp.float32)

    pk = keys[20:]
    params = dict(
        wf=init(pk[0], (D, F)),           bf=init(pk[1], (1, D)),
        wfe=init(pk[2], (EDGE_DIM, 2)),   bfe=init(pk[3], (1, EDGE_DIM)),
        we=init(pk[4], (H * C, EDGE_DIM)),
        wl=init(pk[5], (H * C, D)),       bl=init(pk[6], (1, H * C)),
        wr=init(pk[7], (H * C, D)),       br=init(pk[8], (1, H * C)),
        att=init(pk[9], (H, C)),
        bconv=init(pk[10], (1, C)),
    )

    out = gat_forward(xb, eab, maskb, params, heads=H, n_layers=3)
    out = jax.block_until_ready(out)

    ref = jnp.stack([
        gat_reference_single(xb[b], eab[b], maskb[b], params, heads=H, n_layers=3)
        for b in range(B)
    ])
    ref = jax.block_until_ready(ref)

    assert out.shape == (B, N, C)
    assert bool(jnp.all(jnp.isfinite(out)))
    max_diff = float(jnp.max(jnp.abs(out - ref)))
    assert bool(jnp.allclose(out, ref, atol=5e-2, rtol=5e-2)), \
        f"max abs diff {max_diff}"
    print("KERNEL_OK")
</pallas_src>

<mosaic_0001>
module attributes {stable_mosaic.version = 11 : i64} {
  func.func @gat_kernel(%arg0: i32, %arg1: memref<1x16x4xf32, #tpu.memory_space<vmem>>, %arg2: memref<1x256x2xf32, #tpu.memory_space<vmem>>, %arg3: memref<1x16x16xf32, #tpu.memory_space<vmem>>, %arg4: memref<4x32xf32, #tpu.memory_space<vmem>>, %arg5: memref<1x32xf32, #tpu.memory_space<vmem>>, %arg6: memref<2x20xf32, #tpu.memory_space<vmem>>, %arg7: memref<1x20xf32, #tpu.memory_space<vmem>>, %arg8: memref<20x64xf32, #tpu.memory_space<vmem>>, %arg9: memref<32x128xf32, #tpu.memory_space<vmem>>, %arg10: memref<1x128xf32, #tpu.memory_space<vmem>>, %arg11: memref<1x64xf32, #tpu.memory_space<vmem>>, %arg12: memref<1x32xf32, #tpu.memory_space<vmem>>, %arg13: memref<1x16x32xf32, #tpu.memory_space<vmem>>) attributes {dimension_semantics = [#tpu.dimension_semantics<parallel>], iteration_bounds = array<i64: 2>, scalar_prefetch = 0 : i64, scratch_operands = 0 : i64, tpu.core_type = #tpu.core_type<tc>, window_params = [{transform_indices = @transform_0, window_bounds = array<i64: 1, 16, 4>}, {transform_indices = @transform_1, window_bounds = array<i64: 1, 256, 2>}, {transform_indices = @transform_2, window_bounds = array<i64: 1, 16, 16>}, {pipeline_mode = #tpu.pipeline_mode<synchronous>, transform_indices = @transform_3, window_bounds = array<i64: 4, 32>}, {pipeline_mode = #tpu.pipeline_mode<synchronous>, transform_indices = @transform_4, window_bounds = array<i64: 1, 32>}, {pipeline_mode = #tpu.pipeline_mode<synchronous>, transform_indices = @transform_5, window_bounds = array<i64: 2, 20>}, {pipeline_mode = #tpu.pipeline_mode<synchronous>, transform_indices = @transform_6, window_bounds = array<i64: 1, 20>}, {pipeline_mode = #tpu.pipeline_mode<synchronous>, transform_indices = @transform_7, window_bounds = array<i64: 20, 64>}, {pipeline_mode = #tpu.pipeline_mode<synchronous>, transform_indices = @transform_8, window_bounds = array<i64: 32, 128>}, {pipeline_mode = #tpu.pipeline_mode<synchronous>, transform_indices = @transform_9, window_bounds = array<i64: 1, 128>}, {pipeline_mode = #tpu.pipeline_mode<synchronous>, transform_indices = @transform_10, window_bounds = array<i64: 1, 64>}, {pipeline_mode = #tpu.pipeline_mode<synchronous>, transform_indices = @transform_11, window_bounds = array<i64: 1, 32>}, {transform_indices = @transform_12, window_bounds = array<i64: 1, 16, 32>}]} {
    %c0 = arith.constant 0 : index
    %c0_0 = arith.constant 0 : index
    %c0_1 = arith.constant 0 : index
    %0 = vector.load %arg1[%c0, %c0_0, %c0_1] : memref<1x16x4xf32, #tpu.memory_space<vmem>>, vector<1x16x4xf32>
    %1 = vector.shape_cast %0 : vector<1x16x4xf32> to vector<16x4xf32>
    %c0_2 = arith.constant 0 : index
    %c0_3 = arith.constant 0 : index
    %c0_4 = arith.constant 0 : index
    %2 = vector.load %arg2[%c0_2, %c0_3, %c0_4] : memref<1x256x2xf32, #tpu.memory_space<vmem>>, vector<1x256x2xf32>
    %3 = vector.shape_cast %2 : vector<1x256x2xf32> to vector<256x2xf32>
    %c0_5 = arith.constant 0 : index
    %c0_6 = arith.constant 0 : index
    %c0_7 = arith.constant 0 : index
    %4 = vector.load %arg3[%c0_5, %c0_6, %c0_7] : memref<1x16x16xf32, #tpu.memory_space<vmem>>, vector<1x16x16xf32>
    %5 = vector.shape_cast %4 : vector<1x16x16xf32> to vector<16x16xf32>
    %6 = tpu.iota {dimensions = array<i32: 0>} : vector<16x16xi32>
    %7 = tpu.iota {dimensions = array<i32: 1>} : vector<16x16xi32>
    %8 = arith.cmpi eq, %6, %7 : vector<16x16xi32>
    %9 = arith.extui %8 : vector<16x16xi1> to vector<16x16xi32>
    %10 = arith.sitofp %9 : vector<16x16xi32> to vector<16x16xf32>
    %11 = arith.addf %5, %10 : vector<16x16xf32>
    %cst = arith.constant 1.000000e+00 : f32
    %12 = vector.broadcast %cst : f32 to vector<16x16xf32>
    %13 = arith.minimumf %11, %12 : vector<16x16xf32>
    %c0_8 = arith.constant 0 : index
    %c0_9 = arith.constant 0 : index
    %14 = vector.load %arg10[%c0_8, %c0_9] : memref<1x128xf32, #tpu.memory_space<vmem>>, vector<1x128xf32>
    %15 = vector.shape_cast %14 : vector<1x128xf32> to vector<1x128xf32>
    %16 = vector.broadcast %15 : vector<1x128xf32> to vector<16x128xf32>
    %c0_10 = arith.constant 0 : index
    %c0_11 = arith.constant 0 : index
    %17 = vector.load %arg12[%c0_10, %c0_11] : memref<1x32xf32, #tpu.memory_space<vmem>>, vector<1x32xf32>
    %18 = vector.shape_cast %17 : vector<1x32xf32> to vector<1x32xf32>
    %19 = vector.broadcast %18 : vector<1x32xf32> to vector<16x32xf32>
    %c0_12 = arith.constant 0 : index
    %c0_13 = arith.constant 0 : index
    %20 = vector.load %arg11[%c0_12, %c0_13] : memref<1x64xf32, #tpu.memory_space<vmem>>, vector<1x64xf32>
    %21 = vector.shape_cast %20 : vector<1x64xf32> to vector<1x1x64xf32>
    %22 = vector.shape_cast %21 : vector<1x1x64xf32> to vector<1x1x64xf32>
    %23 = vector.broadcast %22 : vector<1x1x64xf32> to vector<16x16x64xf32>
    %c0_14 = arith.constant 0 : index
    %c0_15 = arith.constant 0 : index
    %24 = vector.load %arg4[%c0_14, %c0_15] : memref<4x32xf32, #tpu.memory_space<vmem>>, vector<4x32xf32>
    %cst_16 = arith.constant dense<0.000000e+00> : vector<16x32xf32>
    %25 = tpu.matmul %1, %24, %cst_16 {dimension_numbers = #tpu.dot_dimension_numbers<[1], [0], [0], [1], [0, 0, 1, 1], [], []>} : vector<16x4xf32>, vector<4x32xf32>, vector<16x32xf32> -> vector<16x32xf32>
    %c0_17 = arith.constant 0 : index
    %c0_18 = arith.constant 0 : index
    %26 = vector.load %arg5[%c0_17, %c0_18] : memref<1x32xf32, #tpu.memory_space<vmem>>, vector<1x32xf32>
    %27 = vector.broadcast %26 : vector<1x32xf32> to vector<16x32xf32>
    %28 = arith.addf %25, %27 : vector<16x32xf32>
    %cst_19 = arith.constant 0.000000e+00 : f32
    %29 = vector.broadcast %cst_19 : f32 to vector<16x32xf32>
    %30 = arith.maximumf %28, %29 : vector<16x32xf32>
    %c0_20 = arith.constant 0 : index
    %c0_21 = arith.constant 0 : index
    %31 = vector.load %arg6[%c0_20, %c0_21] : memref<2x20xf32, #tpu.memory_space<vmem>>, vector<2x20xf32>
    %cst_22 = arith.constant dense<0.000000e+00> : vector<256x20xf32>
    %32 = tpu.matmul %3, %31, %cst_22 {dimension_numbers = #tpu.dot_dimension_numbers<[1], [0], [0], [1], [0, 0, 1, 1], [], []>} : vector<256x2xf32>, vector<2x20xf32>, vector<256x20xf32> -> vector<256x20xf32>
    %c0_23 = arith.constant 0 : index
    %c0_24 = arith.constant 0 : index
    %33 = vector.load %arg7[%c0_23, %c0_24] : memref<1x20xf32, #tpu.memory_space<vmem>>, vector<1x20xf32>
    %34 = vector.broadcast %33 : vector<1x20xf32> to vector<256x20xf32>
    %35 = arith.addf %32, %34 : vector<256x20xf32>
    %cst_25 = arith.constant 0.000000e+00 : f32
    %36 = vector.broadcast %cst_25 : f32 to vector<256x20xf32>
    %37 = arith.maximumf %35, %36 : vector<256x20xf32>
    %c0_26 = arith.constant 0 : index
    %c0_27 = arith.constant 0 : index
    %38 = vector.load %arg8[%c0_26, %c0_27] : memref<20x64xf32, #tpu.memory_space<vmem>>, vector<20x64xf32>
    %cst_28 = arith.constant dense<0.000000e+00> : vector<256x64xf32>
    %39 = tpu.matmul %37, %38, %cst_28 {dimension_numbers = #tpu.dot_dimension_numbers<[1], [0], [0], [1], [0, 0, 1, 1], [], []>} : vector<256x20xf32>, vector<20x64xf32>, vector<256x64xf32> -> vector<256x64xf32>
    %40 = vector.shape_cast %39 : vector<256x64xf32> to vector<16x16x64xf32>
    %41 = vector.shape_cast %5 : vector<16x16xf32> to vector<16x16x1xf32>
    %42 = vector.broadcast %41 : vector<16x16x1xf32> to vector<16x16x64xf32>
    %43 = arith.mulf %40, %42 : vector<16x16x64xf32>
    %cst_29 = arith.constant dense<0.000000e+00> : vector<16xf32>
    %44 = vector.multi_reduction <add>, %5, %cst_29 [1] : vector<16x16xf32> to vector<16xf32>
    %45 = vector.shape_cast %44 : vector<16xf32> to vector<16x1xf32>
    %cst_30 = arith.constant 1.000000e+00 : f32
    %46 = vector.broadcast %cst_30 : f32 to vector<16x1xf32>
    %47 = arith.maximumf %45, %46 : vector<16x1xf32>
    %48 = tpu.reciprocal %47 {approx = true} : vector<16x1xf32> -> vector<16x1xf32>
    %cst_31 = arith.constant dense<0.000000e+00> : vector<16x64xf32>
    %49 = vector.multi_reduction <add>, %43, %cst_31 [1] : vector<16x16x64xf32> to vector<16x64xf32>
    %50 = vector.broadcast %48 : vector<16x1xf32> to vector<16x64xf32>
    %51 = arith.mulf %49, %50 : vector<16x64xf32>
    %52 = vector.shape_cast %10 : vector<16x16xf32> to vector<16x16x1xf32>
    %53 = vector.shape_cast %51 : vector<16x64xf32> to vector<16x1x64xf32>
    %54 = vector.broadcast %52 : vector<16x16x1xf32> to vector<16x16x64xf32>
    %55 = vector.broadcast %53 : vector<16x1x64xf32> to vector<16x16x64xf32>
    %56 = arith.mulf %54, %55 : vector<16x16x64xf32>
    %57 = arith.addf %43, %56 : vector<16x16x64xf32>
    %c0_32 = arith.constant 0 : index
    %c0_33 = arith.constant 0 : index
    %58 = vector.load %arg9[%c0_32, %c0_33] : memref<32x128xf32, #tpu.memory_space<vmem>>, vector<32x128xf32>
    %cst_34 = arith.constant dense<0.000000e+00> : vector<16x128xf32>
    %59 = tpu.matmul %30, %58, %cst_34 {dimension_numbers = #tpu.dot_dimension_numbers<[1], [0], [0], [1], [0, 0, 1, 1], [], []>} : vector<16x32xf32>, vector<32x128xf32>, vector<16x128xf32> -> vector<16x128xf32>
    %60 = arith.addf %59, %16 : vector<16x128xf32>
    %61 = vector.extract_strided_slice %60 {offsets = [0, 0], sizes = [16, 64], strides = [1, 1]} : vector<16x128xf32> to vector<16x64xf32>
    %62 = vector.extract_strided_slice %60 {offsets = [0, 64], sizes = [16, 64], strides = [1, 1]} : vector<16x128xf32> to vector<16x64xf32>
    %63 = vector.shape_cast %62 : vector<16x64xf32> to vector<16x1x64xf32>
    %64 = vector.shape_cast %61 : vector<16x64xf32> to vector<1x16x64xf32>
    %65 = vector.broadcast %63 : vector<16x1x64xf32> to vector<16x16x64xf32>
    %66 = vector.broadcast %64 : vector<1x16x64xf32> to vector<16x16x64xf32>
    %67 = arith.addf %65, %66 : vector<16x16x64xf32>
    %68 = arith.addf %67, %57 : vector<16x16x64xf32>
    %cst_35 = arith.constant 0.000000e+00 : f32
    %69 = vector.broadcast %cst_35 : f32 to vector<16x16x64xf32>
    %70 = arith.cmpf ogt, %68, %69 : vector<16x16x64xf32>
    %cst_36 = arith.constant 2.000000e-01 : f32
    %71 = vector.broadcast %cst_36 : f32 to vector<16x16x64xf32>
    %72 = arith.mulf %71, %68 : vector<16x16x64xf32>
    %73 = arith.select %70, %68, %72 : vector<16x16x64xi1>, vector<16x16x64xf32>
    %74 = arith.mulf %73, %23 : vector<16x16x64xf32>
    %75 = vector.extract_strided_slice %74 {offsets = [0, 0, 0], sizes = [16, 16, 32], strides = [1, 1, 1]} : vector<16x16x64xf32> to vector<16x16x32xf32>
    %cst_37 = arith.constant dense<0.000000e+00> : vector<16x16xf32>
    %76 = vector.multi_reduction <add>, %75, %cst_37 [2] : vector<16x16x32xf32> to vector<16x16xf32>
    %cst_38 = arith.constant dense<0xFF800000> : vector<16xf32>
    %77 = vector.multi_reduction <maximumf>, %76, %cst_38 [1] : vector<16x16xf32> to vector<16xf32>
    %78 = vector.shape_cast %77 : vector<16xf32> to vector<16x1xf32>
    %79 = vector.broadcast %78 : vector<16x1xf32> to vector<16x16xf32>
    %80 = arith.subf %76, %79 : vector<16x16xf32>
    %81 = math.exp %80 : vector<16x16xf32>
    %82 = arith.mulf %81, %13 : vector<16x16xf32>
    %cst_39 = arith.constant dense<0.000000e+00> : vector<16xf32>
    %83 = vector.multi_reduction <add>, %82, %cst_39 [1] : vector<16x16xf32> to vector<16xf32>
    %84 = vector.shape_cast %83 : vector<16xf32> to vector<16x1xf32>
    %85 = tpu.reciprocal %84 {approx = true} : vector<16x1xf32> -> vector<16x1xf32>
    %86 = vector.broadcast %85 : vector<16x1xf32> to vector<16x16xf32>
    %87 = arith.mulf %82, %86 : vector<16x16xf32>
    %88 = vector.extract_strided_slice %61 {offsets = [0, 0], sizes = [16, 32], strides = [1, 1]} : vector<16x64xf32> to vector<16x32xf32>
    %89 = vector.extract_strided_slice %74 {offsets = [0, 0, 32], sizes = [16, 16, 32], strides = [1, 1, 1]} : vector<16x16x64xf32> to vector<16x16x32xf32>
    %cst_40 = arith.constant dense<0.000000e+00> : vector<16x16xf32>
    %90 = vector.multi_reduction <add>, %89, %cst_40 [2] : vector<16x16x32xf32> to vector<16x16xf32>
    %cst_41 = arith.constant dense<0xFF800000> : vector<16xf32>
    %91 = vector.multi_reduction <maximumf>, %90, %cst_41 [1] : vector<16x16xf32> to vector<16xf32>
    %92 = vector.shape_cast %91 : vector<16xf32> to vector<16x1xf32>
    %93 = vector.broadcast %92 : vector<16x1xf32> to vector<16x16xf32>
    %94 = arith.subf %90, %93 : vector<16x16xf32>
    %95 = math.exp %94 : vector<16x16xf32>
    %96 = arith.mulf %95, %13 : vector<16x16xf32>
    %cst_42 = arith.constant dense<0.000000e+00> : vector<16xf32>
    %97 = vector.multi_reduction <add>, %96, %cst_42 [1] : vector<16x16xf32> to vector<16xf32>
    %98 = vector.shape_cast %97 : vector<16xf32> to vector<16x1xf32>
    %99 = tpu.reciprocal %98 {approx = true} : vector<16x1xf32> -> vector<16x1xf32>
    %100 = vector.broadcast %99 : vector<16x1xf32> to vector<16x16xf32>
    %101 = arith.mulf %96, %100 : vector<16x16xf32>
    %102 = vector.extract_strided_slice %61 {offsets = [0, 32], sizes = [16, 32], strides = [1, 1]} : vector<16x64xf32> to vector<16x32xf32>
    %103 = tpu.concatenate %87, %101 in 1 : vector<16x16xf32>, vector<16x16xf32> -> vector<16x32xf32>
    %104 = tpu.concatenate %88, %102 in 0 : vector<16x32xf32>, vector<16x32xf32> -> vector<32x32xf32>
    %cst_43 = arith.constant dense<0.000000e+00> : vector<16x32xf32>
    %105 = tpu.matmul %103, %104, %cst_43 {dimension_numbers = #tpu.dot_dimension_numbers<[1], [0], [0], [1], [0, 0, 1, 1], [], []>} : vector<16x32xf32>, vector<32x32xf32>, vector<16x32xf32> -> vector<16x32xf32>
    %cst_44 = arith.constant 5.000000e-01 : f32
    %106 = vector.broadcast %cst_44 : f32 to vector<16x32xf32>
    %107 = arith.mulf %105, %106 : vector<16x32xf32>
    %108 = arith.addf %107, %19 : vector<16x32xf32>
    %cst_45 = arith.constant 0.000000e+00 : f32
    %109 = vector.broadcast %cst_45 : f32 to vector<16x32xf32>
    %110 = arith.maximumf %108, %109 : vector<16x32xf32>
    %c0_46 = arith.constant 0 : index
    %c0_47 = arith.constant 0 : index
    %111 = vector.load %arg9[%c0_46, %c0_47] : memref<32x128xf32, #tpu.memory_space<vmem>>, vector<32x128xf32>
    %cst_48 = arith.constant dense<0.000000e+00> : vector<16x128xf32>
    %112 = tpu.matmul %110, %111, %cst_48 {dimension_numbers = #tpu.dot_dimension_numbers<[1], [0], [0], [1], [0, 0, 1, 1], [], []>} : vector<16x32xf32>, vector<32x128xf32>, vector<16x128xf32> -> vector<16x128xf32>
    %113 = arith.addf %112, %16 : vector<16x128xf32>
    %114 = vector.extract_strided_slice %113 {offsets = [0, 0], sizes = [16, 64], strides = [1, 1]} : vector<16x128xf32> to vector<16x64xf32>
    %115 = vector.extract_strided_slice %113 {offsets = [0, 64], sizes = [16, 64], strides = [1, 1]} : vector<16x128xf32> to vector<16x64xf32>
    %116 = vector.shape_cast %115 : vector<16x64xf32> to vector<16x1x64xf32>
    %117 = vector.shape_cast %114 : vector<16x64xf32> to vector<1x16x64xf32>
    %118 = vector.broadcast %116 : vector<16x1x64xf32> to vector<16x16x64xf32>
    %119 = vector.broadcast %117 : vector<1x16x64xf32> to vector<16x16x64xf32>
    %120 = arith.addf %118, %119 : vector<16x16x64xf32>
    %121 = arith.addf %120, %57 : vector<16x16x64xf32>
    %cst_49 = arith.constant 0.000000e+00 : f32
    %122 = vector.broadcast %cst_49 : f32 to vector<16x16x64xf32>
    %123 = arith.cmpf ogt, %121, %122 : vector<16x16x64xf32>
    %cst_50 = arith.constant 2.000000e-01 : f32
    %124 = vector.broadcast %cst_50 : f32 to vector<16x16x64xf32>
    %125 = arith.mulf %124, %121 : vector<16x16x64xf32>
    %126 = arith.select %123, %121, %125 : vector<16x16x64xi1>, vector<16x16x64xf32>
    %127 = arith.mulf %126, %23 : vector<16x16x64xf32>
    %128 = vector.extract_strided_slice %127 {offsets = [0, 0, 0], sizes = [16, 16, 32], strides = [1, 1, 1]} : vector<16x16x64xf32> to vector<16x16x32xf32>
    %cst_51 = arith.constant dense<0.000000e+00> : vector<16x16xf32>
    %129 = vector.multi_reduction <add>, %128, %cst_51 [2] : vector<16x16x32xf32> to vector<16x16xf32>
    %cst_52 = arith.constant dense<0xFF800000> : vector<16xf32>
    %130 = vector.multi_reduction <maximumf>, %129, %cst_52 [1] : vector<16x16xf32> to vector<16xf32>
    %131 = vector.shape_cast %130 : vector<16xf32> to vector<16x1xf32>
    %132 = vector.broadcast %131 : vector<16x1xf32> to vector<16x16xf32>
    %133 = arith.subf %129, %132 : vector<16x16xf32>
    %134 = math.exp %133 : vector<16x16xf32>
    %135 = arith.mulf %134, %13 : vector<16x16xf32>
    %cst_53 = arith.constant dense<0.000000e+00> : vector<16xf32>
    %136 = vector.multi_reduction <add>, %135, %cst_53 [1] : vector<16x16xf32> to vector<16xf32>
    %137 = vector.shape_cast %136 : vector<16xf32> to vector<16x1xf32>
    %138 = tpu.reciprocal %137 {approx = true} : vector<16x1xf32> -> vector<16x1xf32>
    %139 = vector.broadcast %138 : vector<16x1xf32> to vector<16x16xf32>
    %140 = arith.mulf %135, %139 : vector<16x16xf32>
    %141 = vector.extract_strided_slice %114 {offsets = [0, 0], sizes = [16, 32], strides = [1, 1]} : vector<16x64xf32> to vector<16x32xf32>
    %142 = vector.extract_strided_slice %127 {offsets = [0, 0, 32], sizes = [16, 16, 32], strides = [1, 1, 1]} : vector<16x16x64xf32> to vector<16x16x32xf32>
    %cst_54 = arith.constant dense<0.000000e+00> : vector<16x16xf32>
    %143 = vector.multi_reduction <add>, %142, %cst_54 [2] : vector<16x16x32xf32> to vector<16x16xf32>
    %cst_55 = arith.constant dense<0xFF800000> : vector<16xf32>
    %144 = vector.multi_reduction <maximumf>, %143, %cst_55 [1] : vector<16x16xf32> to vector<16xf32>
    %145 = vector.shape_cast %144 : vector<16xf32> to vector<16x1xf32>
    %146 = vector.broadcast %145 : vector<16x1xf32> to vector<16x16xf32>
    %147 = arith.subf %143, %146 : vector<16x16xf32>
    %148 = math.exp %147 : vector<16x16xf32>
    %149 = arith.mulf %148, %13 : vector<16x16xf32>
    %cst_56 = arith.constant dense<0.000000e+00> : vector<16xf32>
    %150 = vector.multi_reduction <add>, %149, %cst_56 [1] : vector<16x16xf32> to vector<16xf32>
    %151 = vector.shape_cast %150 : vector<16xf32> to vector<16x1xf32>
    %152 = tpu.reciprocal %151 {approx = true} : vector<16x1xf32> -> vector<16x1xf32>
    %153 = vector.broadcast %152 : vector<16x1xf32> to vector<16x16xf32>
    %154 = arith.mulf %149, %153 : vector<16x16xf32>
    %155 = vector.extract_strided_slice %114 {offsets = [0, 32], sizes = [16, 32], strides = [1, 1]} : vector<16x64xf32> to vector<16x32xf32>
    %156 = tpu.concatenate %140, %154 in 1 : vector<16x16xf32>, vector<16x16xf32> -> vector<16x32xf32>
    %157 = tpu.concatenate %141, %155 in 0 : vector<16x32xf32>, vector<16x32xf32> -> vector<32x32xf32>
    %cst_57 = arith.constant dense<0.000000e+00> : vector<16x32xf32>
    %158 = tpu.matmul %156, %157, %cst_57 {dimension_numbers = #tpu.dot_dimension_numbers<[1], [0], [0], [1], [0, 0, 1, 1], [], []>} : vector<16x32xf32>, vector<32x32xf32>, vector<16x32xf32> -> vector<16x32xf32>
    %cst_58 = arith.constant 5.000000e-01 : f32
    %159 = vector.broadcast %cst_58 : f32 to vector<16x32xf32>
    %160 = arith.mulf %158, %159 : vector<16x32xf32>
    %161 = arith.addf %160, %19 : vector<16x32xf32>
    %cst_59 = arith.constant 0.000000e+00 : f32
    %162 = vector.broadcast %cst_59 : f32 to vector<16x32xf32>
    %163 = arith.maximumf %161, %162 : vector<16x32xf32>
    %c0_60 = arith.constant 0 : index
    %c0_61 = arith.constant 0 : index
    %164 = vector.load %arg9[%c0_60, %c0_61] : memref<32x128xf32, #tpu.memory_space<vmem>>, vector<32x128xf32>
    %cst_62 = arith.constant dense<0.000000e+00> : vector<16x128xf32>
    %165 = tpu.matmul %163, %164, %cst_62 {dimension_numbers = #tpu.dot_dimension_numbers<[1], [0], [0], [1], [0, 0, 1, 1], [], []>} : vector<16x32xf32>, vector<32x128xf32>, vector<16x128xf32> -> vector<16x128xf32>
    %166 = arith.addf %165, %16 : vector<16x128xf32>
    %167 = vector.extract_strided_slice %166 {offsets = [0, 0], sizes = [16, 64], strides = [1, 1]} : vector<16x128xf32> to vector<16x64xf32>
    %168 = vector.extract_strided_slice %166 {offsets = [0, 64], sizes = [16, 64], strides = [1, 1]} : vector<16x128xf32> to vector<16x64xf32>
    %169 = vector.shape_cast %168 : vector<16x64xf32> to vector<16x1x64xf32>
    %170 = vector.shape_cast %167 : vector<16x64xf32> to vector<1x16x64xf32>
    %171 = vector.broadcast %169 : vector<16x1x64xf32> to vector<16x16x64xf32>
    %172 = vector.broadcast %170 : vector<1x16x64xf32> to vector<16x16x64xf32>
    %173 = arith.addf %171, %172 : vector<16x16x64xf32>
    %174 = arith.addf %173, %57 : vector<16x16x64xf32>
    %cst_63 = arith.constant 0.000000e+00 : f32
    %175 = vector.broadcast %cst_63 : f32 to vector<16x16x64xf32>
    %176 = arith.cmpf ogt, %174, %175 : vector<16x16x64xf32>
    %cst_64 = arith.constant 2.000000e-01 : f32
    %177 = vector.broadcast %cst_64 : f32 to vector<16x16x64xf32>
    %178 = arith.mulf %177, %174 : vector<16x16x64xf32>
    %179 = arith.select %176, %174, %178 : vector<16x16x64xi1>, vector<16x16x64xf32>
    %180 = arith.mulf %179, %23 : vector<16x16x64xf32>
    %181 = vector.extract_strided_slice %180 {offsets = [0, 0, 0], sizes = [16, 16, 32], strides = [1, 1, 1]} : vector<16x16x64xf32> to vector<16x16x32xf32>
    %cst_65 = arith.constant dense<0.000000e+00> : vector<16x16xf32>
    %182 = vector.multi_reduction <add>, %181, %cst_65 [2] : vector<16x16x32xf32> to vector<16x16xf32>
    %cst_66 = arith.constant dense<0xFF800000> : vector<16xf32>
    %183 = vector.multi_reduction <maximumf>, %182, %cst_66 [1] : vector<16x16xf32> to vector<16xf32>
    %184 = vector.shape_cast %183 : vector<16xf32> to vector<16x1xf32>
    %185 = vector.broadcast %184 : vector<16x1xf32> to vector<16x16xf32>
    %186 = arith.subf %182, %185 : vector<16x16xf32>
    %187 = math.exp %186 : vector<16x16xf32>
    %188 = arith.mulf %187, %13 : vector<16x16xf32>
    %cst_67 = arith.constant dense<0.000000e+00> : vector<16xf32>
    %189 = vector.multi_reduction <add>, %188, %cst_67 [1] : vector<16x16xf32> to vector<16xf32>
    %190 = vector.shape_cast %189 : vector<16xf32> to vector<16x1xf32>
    %191 = tpu.reciprocal %190 {approx = true} : vector<16x1xf32> -> vector<16x1xf32>
    %192 = vector.broadcast %191 : vector<16x1xf32> to vector<16x16xf32>
    %193 = arith.mulf %188, %192 : vector<16x16xf32>
    %194 = vector.extract_strided_slice %167 {offsets = [0, 0], sizes = [16, 32], strides = [1, 1]} : vector<16x64xf32> to vector<16x32xf32>
    %195 = vector.extract_strided_slice %180 {offsets = [0, 0, 32], sizes = [16, 16, 32], strides = [1, 1, 1]} : vector<16x16x64xf32> to vector<16x16x32xf32>
    %cst_68 = arith.constant dense<0.000000e+00> : vector<16x16xf32>
    %196 = vector.multi_reduction <add>, %195, %cst_68 [2] : vector<16x16x32xf32> to vector<16x16xf32>
    %cst_69 = arith.constant dense<0xFF800000> : vector<16xf32>
    %197 = vector.multi_reduction <maximumf>, %196, %cst_69 [1] : vector<16x16xf32> to vector<16xf32>
    %198 = vector.shape_cast %197 : vector<16xf32> to vector<16x1xf32>
    %199 = vector.broadcast %198 : vector<16x1xf32> to vector<16x16xf32>
    %200 = arith.subf %196, %199 : vector<16x16xf32>
    %201 = math.exp %200 : vector<16x16xf32>
    %202 = arith.mulf %201, %13 : vector<16x16xf32>
    %cst_70 = arith.constant dense<0.000000e+00> : vector<16xf32>
    %203 = vector.multi_reduction <add>, %202, %cst_70 [1] : vector<16x16xf32> to vector<16xf32>
    %204 = vector.shape_cast %203 : vector<16xf32> to vector<16x1xf32>
    %205 = tpu.reciprocal %204 {approx = true} : vector<16x1xf32> -> vector<16x1xf32>
    %206 = vector.broadcast %205 : vector<16x1xf32> to vector<16x16xf32>
    %207 = arith.mulf %202, %206 : vector<16x16xf32>
    %208 = vector.extract_strided_slice %167 {offsets = [0, 32], sizes = [16, 32], strides = [1, 1]} : vector<16x64xf32> to vector<16x32xf32>
    %209 = tpu.concatenate %193, %207 in 1 : vector<16x16xf32>, vector<16x16xf32> -> vector<16x32xf32>
    %210 = tpu.concatenate %194, %208 in 0 : vector<16x32xf32>, vector<16x32xf32> -> vector<32x32xf32>
    %cst_71 = arith.constant dense<0.000000e+00> : vector<16x32xf32>
    %211 = tpu.matmul %209, %210, %cst_71 {dimension_numbers = #tpu.dot_dimension_numbers<[1], [0], [0], [1], [0, 0, 1, 1], [], []>} : vector<16x32xf32>, vector<32x32xf32>, vector<16x32xf32> -> vector<16x32xf32>
    %cst_72 = arith.constant 5.000000e-01 : f32
    %212 = vector.broadcast %cst_72 : f32 to vector<16x32xf32>
    %213 = arith.mulf %211, %212 : vector<16x32xf32>
    %214 = arith.addf %213, %19 : vector<16x32xf32>
    %cst_73 = arith.constant 0.000000e+00 : f32
    %215 = vector.broadcast %cst_73 : f32 to vector<16x32xf32>
    %216 = arith.maximumf %214, %215 : vector<16x32xf32>
    %c0_74 = arith.constant 0 : index
    %c0_75 = arith.constant 0 : index
    %c0_76 = arith.constant 0 : index
    %217 = vector.load %arg13[%c0_74, %c0_75, %c0_76] : memref<1x16x32xf32, #tpu.memory_space<vmem>>, vector<1x16x32xf32>
    %218 = vector.shape_cast %217 : vector<1x16x32xf32> to vector<16x32xf32>
    %219 = vector.shape_cast %216 : vector<16x32xf32> to vector<1x16x32xf32>
    tpu.vector_store %arg13[%c0_74, %c0_75, %c0_76], %219 {strides = array<i32>} : memref<1x16x32xf32, #tpu.memory_space<vmem>>, vector<1x16x32xf32>,
    return
  }
  func.func @transform_0(%arg0: i32) -> (i32, i32, i32) {
    %c0_i32 = arith.constant 0 : i32
    %c0_i32_0 = arith.constant 0 : i32
    %c0_i32_1 = arith.constant 0 : i32
    return %arg0, %c0_i32, %c0_i32_0 : i32, i32, i32
  }
  func.func @transform_1(%arg0: i32) -> (i32, i32, i32) {
    %c0_i32 = arith.constant 0 : i32
    %c0_i32_0 = arith.constant 0 : i32
    %c0_i32_1 = arith.constant 0 : i32
    return %arg0, %c0_i32, %c0_i32_0 : i32, i32, i32
  }
  func.func @transform_2(%arg0: i32) -> (i32, i32, i32) {
    %c0_i32 = arith.constant 0 : i32
    %c0_i32_0 = arith.constant 0 : i32
    %c0_i32_1 = arith.constant 0 : i32
    return %arg0, %c0_i32, %c0_i32_0 : i32, i32, i32
  }
  func.func @transform_3(%arg0: i32) -> (i32, i32) {
    %c0_i32 = arith.constant 0 : i32
    %c0_i32_0 = arith.constant 0 : i32
    %c0_i32_1 = arith.constant 0 : i32
    return %c0_i32, %c0_i32_0 : i32, i32
  }
  func.func @transform_4(%arg0: i32) -> (i32, i32) {
    %c0_i32 = arith.constant 0 : i32
    %c0_i32_0 = arith.constant 0 : i32
    %c0_i32_1 = arith.constant 0 : i32
    return %c0_i32, %c0_i32_0 : i32, i32
  }
  func.func @transform_5(%arg0: i32) -> (i32, i32) {
    %c0_i32 = arith.constant 0 : i32
    %c0_i32_0 = arith.constant 0 : i32
    %c0_i32_1 = arith.constant 0 : i32
    return %c0_i32, %c0_i32_0 : i32, i32
  }
  func.func @transform_6(%arg0: i32) -> (i32, i32) {
    %c0_i32 = arith.constant 0 : i32
    %c0_i32_0 = arith.constant 0 : i32
    %c0_i32_1 = arith.constant 0 : i32
    return %c0_i32, %c0_i32_0 : i32, i32
  }
  func.func @transform_7(%arg0: i32) -> (i32, i32) {
    %c0_i32 = arith.constant 0 : i32
    %c0_i32_0 = arith.constant 0 : i32
    %c0_i32_1 = arith.constant 0 : i32
    return %c0_i32, %c0_i32_0 : i32, i32
  }
  func.func @transform_8(%arg0: i32) -> (i32, i32) {
    %c0_i32 = arith.constant 0 : i32
    %c0_i32_0 = arith.constant 0 : i32
    %c0_i32_1 = arith.constant 0 : i32
    return %c0_i32, %c0_i32_0 : i32, i32
  }
  func.func @transform_9(%arg0: i32) -> (i32, i32) {
    %c0_i32 = arith.constant 0 : i32
    %c0_i32_0 = arith.constant 0 : i32
    %c0_i32_1 = arith.constant 0 : i32
    return %c0_i32, %c0_i32_0 : i32, i32
  }
  func.func @transform_10(%arg0: i32) -> (i32, i32) {
    %c0_i32 = arith.constant 0 : i32
    %c0_i32_0 = arith.constant 0 : i32
    %c0_i32_1 = arith.constant 0 : i32
    return %c0_i32, %c0_i32_0 : i32, i32
  }
  func.func @transform_11(%arg0: i32) -> (i32, i32) {
    %c0_i32 = arith.constant 0 : i32
    %c0_i32_0 = arith.constant 0 : i32
    %c0_i32_1 = arith.constant 0 : i32
    return %c0_i32, %c0_i32_0 : i32, i32
  }
  func.func @transform_12(%arg0: i32) -> (i32, i32, i32) {
    %c0_i32 = arith.constant 0 : i32
    %c0_i32_0 = arith.constant 0 : i32
    %c0_i32_1 = arith.constant 0 : i32
    return %arg0, %c0_i32, %c0_i32_0 : i32, i32, i32
  }
}

</mosaic_0001>

<llo_original>
// kernel: tpu_custom_call.1
$region0: #{tpu_custom_call.1}
  #allocation0 [shape = 'u32[]', space=smem, size = 0x4, offset = 0x4, fixed_abs, tag = 'smem constant byte address 0x4 - core index']
  #allocation1 [shape = 'u32[144,128]{1,0:T(1,128)}', space=vmem, size = 0x12000, scoped, tag = 'internal scratch']
  %s0 = inlined_call_operand.vmem [shape: f32[2,16,4], index: 0, kind: input, shape index: {}]
  %s1 = inlined_call_operand.vmem [shape: f32[2,256,2], index: 1, kind: input, shape index: {}]
  %s2 = inlined_call_operand.vmem [shape: f32[2,16,16], index: 2, kind: input, shape index: {}]
  %s3 = inlined_call_operand.vmem [shape: f32[4,32], index: 3, kind: input, shape index: {}]
  %s4 = inlined_call_operand.vmem [shape: f32[1,32], index: 4, kind: input, shape index: {}]
  %s5 = inlined_call_operand.vmem [shape: f32[2,20], index: 5, kind: input, shape index: {}]
  %s6 = inlined_call_operand.vmem [shape: f32[1,20], index: 6, kind: input, shape index: {}]
  %s7 = inlined_call_operand.vmem [shape: f32[20,64], index: 7, kind: input, shape index: {}]
  %s8 = inlined_call_operand.vmem [shape: f32[32,128], index: 8, kind: input, shape index: {}]
  %s9 = inlined_call_operand.vmem [shape: f32[1,128], index: 9, kind: input, shape index: {}]
  %s10 = inlined_call_operand.vmem [shape: f32[1,64], index: 10, kind: input, shape index: {}]
  %s11 = inlined_call_operand.vmem [shape: f32[1,32], index: 11, kind: input, shape index: {}]
  %s12 = inlined_call_operand.hbm [shape: f32[2,16,32], index: 12, kind: output, shape index: {}]
  %s13 = sld [smem:[#allocation0]]
  $region81: #{tpu_custom_call.1} parent=0
    _
  %s15 = ssub.s32 1, %s13
  %s16 = scalar_select 0, %s15, %s13
  $region1: #{tpu_custom_call.1} parent=0
    #allocation2 [shape = 'u8[16384]{0}', space=vmem, size = 0x4000, scoped, tag = 'output window, operand 0']
    #allocation3 [shape = 's32[2]{0}', space=sflag, size = 0x8, scoped, tag = 'scoped memory for tpu_custom_call.1']
    %17 = vsyncpa [#allocation3], 0
    %s18 = scalar_lea.sflag [#allocation3], 1
    %19 = vsyncpa %s18, 0
    loop: start=0, step=1, limit=4
    $region2: #{tpu_custom_call.1} parent=1 // loop_pre_header
      _
    $region3: #{tpu_custom_call.1} parent=1 // loop_header
      %s21 = sphi 0, %s25
      %p22 = scmp.ge.s32.totalorder %s21, 4
      %s31 = sphi 0, %s33
      %s34 = sphi 0, %s31
      %s35 = sphi 0, %s34
      %s51 = sphi 0, %s35
      %s57 = sphi 0, %s59
      %s60 = sphi 0, %s57
      %s61 = sphi 0, %s60
      %s77 = sphi 0, %s61
      %s83 = sphi 0, %s85
      %s86 = sphi 0, %s83
      %s87 = sphi 0, %s86
      %s103 = sphi 0, %s87
      %s107 = sphi 0, %s107
      %s109 = sphi 0, %s107
      %s110 = sphi 0, %s109
      %s124 = sphi 0, %s110
      %s128 = sphi 0, %s128
      %s130 = sphi 0, %s128
      %s131 = sphi 0, %s130
      %s145 = sphi 0, %s131
      %s149 = sphi 0, %s149
      %s151 = sphi 0, %s149
      %s152 = sphi 0, %s151
      %s166 = sphi 0, %s152
      %s170 = sphi 0, %s170
      %s172 = sphi 0, %s170
      %s173 = sphi 0, %s172
      %s187 = sphi 0, %s173
      %s191 = sphi 0, %s191
      %s193 = sphi 0, %s191
      %s194 = sphi 0, %s193
      %s208 = sphi 0, %s194
      %s212 = sphi 0, %s212
      %s214 = sphi 0, %s212
      %s215 = sphi 0, %s214
      %s229 = sphi 0, %s215
      %s233 = sphi 0, %s233
      %s235 = sphi 0, %s233
      %s236 = sphi 0, %s235
      %s250 = sphi 0, %s236
      %s254 = sphi 0, %s254
      %s256 = sphi 0, %s254
      %s257 = sphi 0, %s256
      %s271 = sphi 0, %s257
      %s275 = sphi 0, %s275
      %s277 = sphi 0, %s275
      %s278 = sphi 0, %s277
      %s292 = sphi 0, %s278
      %s298 = sphi 0, %s300
      %s301 = sphi 0, %s298
      %s302 = sphi 0, %s301
      %s318 = sphi 0, %s302
    $region4: #{tpu_custom_call.1} parent=1 // loop_header_branch
      %24 = sbr.rel (%p22) target = $region8
    $region5: #{tpu_custom_call.1} parent=1 // loop_body
      %s26 = ssub.s32 %s21, 1
      %s27 = ssub.s32 %s21, 2
      %s28 = sadd.s32 %s21, 1
      %s29 = ssub.s32 %s21, %s28
      %p30 = scmp.eq.s32.totalorder %s29, 0
      %s32 = sadd.s32 %s31, 1
      %s33 = scalar_select %p30, %s31, %s32
      %p36 = pneg %p30
      %p37 = scmp.eq.s32.totalorder %s21, 1
      %p38 = por %p36, %p37
      %p39 = scmp.ne.s32.totalorder %s31, %s34
      %p40 = scmp.eq.s32.totalorder %s21, 0
      %p41 = por %p39, %p40
      %p42 = scmp.ne.s32.totalorder %s31, %s34
      %p43 = scmp.eq.s32.totalorder %s26, 1
      %p44 = por %p42, %p43
      %p45 = scmp.ne.s32.totalorder %s34, %s35
      %p46 = scmp.eq.s32.totalorder %s26, 0
      %p47 = por %p45, %p46
      %p48 = scmp.ne.s32.totalorder %s34, %s35
      %p49 = scmp.eq.s32.totalorder %s27, 1
      %p50 = por %p48, %p49
      %p52 = scmp.ne.s32.totalorder %s35, %s51
      %p53 = scmp.eq.s32.totalorder %s27, 0
      %p54 = por %p52, %p53
      %s55 = ssub.s32 %s21, %s28
      %p56 = scmp.eq.s32.totalorder %s55, 0
      %s58 = sadd.s32 %s57, 1
      %s59 = scalar_select %p56, %s57, %s58
      %p62 = pneg %p56
      %p63 = scmp.eq.s32.totalorder %s21, 1
      %p64 = por %p62, %p63
      %p65 = scmp.ne.s32.totalorder %s57, %s60
      %p66 = scmp.eq.s32.totalorder %s21, 0
      %p67 = por %p65, %p66
      %p68 = scmp.ne.s32.totalorder %s57, %s60
      %p69 = scmp.eq.s32.totalorder %s26, 1
      %p70 = por %p68, %p69
      %p71 = scmp.ne.s32.totalorder %s60, %s61
      %p72 = scmp.eq.s32.totalorder %s26, 0
      %p73 = por %p71, %p72
      %p74 = scmp.ne.s32.totalorder %s60, %s61
      %p75 = scmp.eq.s32.totalorder %s27, 1
      %p76 = por %p74, %p75
      %p78 = scmp.ne.s32.totalorder %s61, %s77
      %p79 = scmp.eq.s32.totalorder %s27, 0
      %p80 = por %p78, %p79
      %s81 = ssub.s32 %s21, %s28
      %p82 = scmp.eq.s32.totalorder %s81, 0
      %s84 = sadd.s32 %s83, 1
      %s85 = scalar_select %p82, %s83, %s84
      %p88 = pneg %p82
      %p89 = scmp.eq.s32.totalorder %s21, 1
      %p90 = por %p88, %p89
      %p91 = scmp.ne.s32.totalorder %s83, %s86
      %p92 = scmp.eq.s32.totalorder %s21, 0
      %p93 = por %p91, %p92
      %p94 = scmp.ne.s32.totalorder %s83, %s86
      %p95 = scmp.eq.s32.totalorder %s26, 1
      %p96 = por %p94, %p95
      %p97 = scmp.ne.s32.totalorder %s86, %s87
      %p98 = scmp.eq.s32.totalorder %s26, 0
      %p99 = por %p97, %p98
      %p100 = scmp.ne.s32.totalorder %s86, %s87
      %p101 = scmp.eq.s32.totalorder %s27, 1
      %p102 = por %p100, %p101
      %p104 = scmp.ne.s32.totalorder %s87, %s103
      %p105 = scmp.eq.s32.totalorder %s27, 0
      %p106 = por %p104, %p105
      %s108 = sadd.s32 %s107, 1
      %p111 = scmp.eq.s32.totalorder %s21, 1
      %p112 = scmp.ne.s32.totalorder %s107, %s109
      %p113 = scmp.eq.s32.totalorder %s21, 0
      %p114 = por %p112, %p113
      %p115 = scmp.ne.s32.totalorder %s107, %s109
      %p116 = scmp.eq.s32.totalorder %s26, 1
      %p117 = por %p115, %p116
      %p118 = scmp.ne.s32.totalorder %s109, %s110
      %p119 = scmp.eq.s32.totalorder %s26, 0
      %p120 = por %p118, %p119
      %p121 = scmp.ne.s32.totalorder %s109, %s110
      %p122 = scmp.eq.s32.totalorder %s27, 1
      %p123 = por %p121, %p122
      %p125 = scmp.ne.s32.totalorder %s110, %s124
      %p126 = scmp.eq.s32.totalorder %s27, 0
      %p127 = por %p125, %p126
      %s129 = sadd.s32 %s128, 1
      %p132 = scmp.eq.s32.totalorder %s21, 1
      %p133 = scmp.ne.s32.totalorder %s128, %s130
      %p134 = scmp.eq.s32.totalorder %s21, 0
      %p135 = por %p133, %p134
      %p136 = scmp.ne.s32.totalorder %s128, %s130
      %p137 = scmp.eq.s32.totalorder %s26, 1
      %p138 = por %p136, %p137
      %p139 = scmp.ne.s32.totalorder %s130, %s131
      %p140 = scmp.eq.s32.totalorder %s26, 0
      %p141 = por %p139, %p140
      %p142 = scmp.ne.s32.totalorder %s130, %s131
      %p143 = scmp.eq.s32.totalorder %s27, 1
      %p144 = por %p142, %p143
      %p146 = scmp.ne.s32.totalorder %s131, %s145
      %p147 = scmp.eq.s32.totalorder %s27, 0
      %p148 = por %p146, %p147
      %s150 = sadd.s32 %s149, 1
      %p153 = scmp.eq.s32.totalorder %s21, 1
      %p154 = scmp.ne.s32.totalorder %s149, %s151
      %p155 = scmp.eq.s32.totalorder %s21, 0
      %p156 = por %p154, %p155
      %p157 = scmp.ne.s32.totalorder %s149, %s151
      %p158 = scmp.eq.s32.totalorder %s26, 1
      %p159 = por %p157, %p158
      %p160 = scmp.ne.s32.totalorder %s151, %s152
      %p161 = scmp.eq.s32.totalorder %s26, 0
      %p162 = por %p160, %p161
      %p163 = scmp.ne.s32.totalorder %s151, %s152
      %p164 = scmp.eq.s32.totalorder %s27, 1
      %p165 = por %p163, %p164
      %p167 = scmp.ne.s32.totalorder %s152, %s166
      %p168 = scmp.eq.s32.totalorder %s27, 0
      %p169 = por %p167, %p168
      %s171 = sadd.s32 %s170, 1
      %p174 = scmp.eq.s32.totalorder %s21, 1
      %p175 = scmp.ne.s32.totalorder %s170, %s172
      %p176 = scmp.eq.s32.totalorder %s21, 0
      %p177 = por %p175, %p176
      %p178 = scmp.ne.s32.totalorder %s170, %s172
      %p179 = scmp.eq.s32.totalorder %s26, 1
      %p180 = por %p178, %p179
      %p181 = scmp.ne.s32.totalorder %s172, %s173
      %p182 = scmp.eq.s32.totalorder %s26, 0
      %p183 = por %p181, %p182
      %p184 = scmp.ne.s32.totalorder %s172, %s173
      %p185 = scmp.eq.s32.totalorder %s27, 1
      %p186 = por %p184, %p185
      %p188 = scmp.ne.s32.totalorder %s173, %s187
      %p189 = scmp.eq.s32.totalorder %s27, 0
      %p190 = por %p188, %p189
      %s192 = sadd.s32 %s191, 1
      %p195 = scmp.eq.s32.totalorder %s21, 1
      %p196 = scmp.ne.s32.totalorder %s191, %s193
      %p197 = scmp.eq.s32.totalorder %s21, 0
      %p198 = por %p196, %p197
      %p199 = scmp.ne.s32.totalorder %s191, %s193
      %p200 = scmp.eq.s32.totalorder %s26, 1
      %p201 = por %p199, %p200
      %p202 = scmp.ne.s32.totalorder %s193, %s194
      %p203 = scmp.eq.s32.totalorder %s26, 0
      %p204 = por %p202, %p203
      %p205 = scmp.ne.s32.totalorder %s193, %s194
      %p206 = scmp.eq.s32.totalorder %s27, 1
      %p207 = por %p205, %p206
      %p209 = scmp.ne.s32.totalorder %s194, %s208
      %p210 = scmp.eq.s32.totalorder %s27, 0
      %p211 = por %p209, %p210
      %s213 = sadd.s32 %s212, 1
      %p216 = scmp.eq.s32.totalorder %s21, 1
      %p217 = scmp.ne.s32.totalorder %s212, %s214
      %p218 = scmp.eq.s32.totalorder %s21, 0
      %p219 = por %p217, %p218
      %p220 = scmp.ne.s32.totalorder %s212, %s214
      %p221 = scmp.eq.s32.totalorder %s26, 1
      %p222 = por %p220, %p221
      %p223 = scmp.ne.s32.totalorder %s214, %s215
      %p224 = scmp.eq.s32.totalorder %s26, 0
      %p225 = por %p223, %p224
      %p226 = scmp.ne.s32.totalorder %s214, %s215
      %p227 = scmp.eq.s32.totalorder %s27, 1
      %p228 = por %p226, %p227
      %p230 = scmp.ne.s32.totalorder %s215, %s229
      %p231 = scmp.eq.s32.totalorder %s27, 0
      %p232 = por %p230, %p231
      %s234 = sadd.s32 %s233, 1
      %p237 = scmp.eq.s32.totalorder %s21, 1
      %p238 = scmp.ne.s32.totalorder %s233, %s235
      %p239 = scmp.eq.s32.totalorder %s21, 0
      %p240 = por %p238, %p239
      %p241 = scmp.ne.s32.totalorder %s233, %s235
      %p242 = scmp.eq.s32.totalorder %s26, 1
      %p243 = por %p241, %p242
      %p244 = scmp.ne.s32.totalorder %s235, %s236
      %p245 = scmp.eq.s32.totalorder %s26, 0
      %p246 = por %p244, %p245
      %p247 = scmp.ne.s32.totalorder %s235, %s236
      %p248 = scmp.eq.s32.totalorder %s27, 1
      %p249 = por %p247, %p248
      %p251 = scmp.ne.s32.totalorder %s236, %s250
      %p252 = scmp.eq.s32.totalorder %s27, 0
      %p253 = por %p251, %p252
      %s255 = sadd.s32 %s254, 1
      %p258 = scmp.eq.s32.totalorder %s21, 1
      %p259 = scmp.ne.s32.totalorder %s254, %s256
      %p260 = scmp.eq.s32.totalorder %s21, 0
      %p261 = por %p259, %p260
      %p262 = scmp.ne.s32.totalorder %s254, %s256
      %p263 = scmp.eq.s32.totalorder %s26, 1
      %p264 = por %p262, %p263
      %p265 = scmp.ne.s32.totalorder %s256, %s257
      %p266 = scmp.eq.s32.totalorder %s26, 0
      %p267 = por %p265, %p266
      %p268 = scmp.ne.s32.totalorder %s256, %s257
      %p269 = scmp.eq.s32.totalorder %s27, 1
      %p270 = por %p268, %p269
      %p272 = scmp.ne.s32.totalorder %s257, %s271
      %p273 = scmp.eq.s32.totalorder %s27, 0
      %p274 = por %p272, %p273
      %s276 = sadd.s32 %s275, 1
      %p279 = scmp.eq.s32.totalorder %s21, 1
      %p280 = scmp.ne.s32.totalorder %s275, %s277
      %p281 = scmp.eq.s32.totalorder %s21, 0
      %p282 = por %p280, %p281
      %p283 = scmp.ne.s32.totalorder %s275, %s277
      %p284 = scmp.eq.s32.totalorder %s26, 1
      %p285 = por %p283, %p284
      %p286 = scmp.ne.s32.totalorder %s277, %s278
      %p287 = scmp.eq.s32.totalorder %s26, 0
      %p288 = por %p286, %p287
      %p289 = scmp.ne.s32.totalorder %s277, %s278
      %p290 = scmp.eq.s32.totalorder %s27, 1
      %p291 = por %p289, %p290
      %p293 = scmp.ne.s32.totalorder %s278, %s292
      %p294 = scmp.eq.s32.totalorder %s27, 0
      %p295 = por %p293, %p294
      %s296 = ssub.s32 %s21, %s28
      %p297 = scmp.eq.s32.totalorder %s296, 0
      %s299 = sadd.s32 %s298, 1
      %s300 = scalar_select %p297, %s298, %s299
      %p303 = pneg %p297
      %p304 = scmp.eq.s32.totalorder %s21, 1
      %p305 = por %p303, %p304
      %p306 = scmp.ne.s32.totalorder %s298, %s301
      %p307 = scmp.eq.s32.totalorder %s21, 0
      %p308 = por %p306, %p307
      %p309 = scmp.ne.s32.totalorder %s298, %s301
      %p310 = scmp.eq.s32.totalorder %s26, 1
      %p311 = por %p309, %p310
      %p312 = scmp.ne.s32.totalorder %s301, %s302
      %p313 = scmp.eq.s32.totalorder %s26, 0
      %p314 = por %p312, %p313
      %p315 = scmp.ne.s32.totalorder %s301, %s302
      %p316 = scmp.eq.s32.totalorder %s27, 1
      %p317 = por %p315, %p316
      %p319 = scmp.ne.s32.totalorder %s302, %s318
      %p320 = scmp.eq.s32.totalorder %s27, 0
      %p321 = por %p319, %p320
      %p322 = scmp.le.s32.totalorder 1, %s21
      %p323 = scmp.lt.s32.totalorder %s21, 3
      %p324 = pnand %p322, %p323
      %p325 = pneg %p324
      // Predicated region
      $region9: #{tpu_custom_call.1} parent=5 // pred_check
        _
      $region10: #{tpu_custom_call.1} parent=5 // pred_check_branch
        %327 = sbr.rel (%p324) target = $region12
      $region11: #{tpu_custom_call.1} parent=5 // pred_region
        %s328 = ssub.s32 %s21, 1
        // Predicated region
        $region13: #{tpu_custom_call.1} parent=11 // pred_check
          %p329 = pneg %p120
        $region14: #{tpu_custom_call.1} parent=11 // pred_check_branch
          %331 = sbr.rel (%p329) target = $region16
        $region15: #{tpu_custom_call.1} parent=11 // pred_region
          _
        $region16: #{tpu_custom_call.1} parent=11 // pred_fallthru
          _
        // Predicated region
        $region17: #{tpu_custom_call.1} parent=11 // pred_check
          %p332 = pneg %p141
        $region18: #{tpu_custom_call.1} parent=11 // pred_check_branch
          %334 = sbr.rel (%p332) target = $region20
        $region19: #{tpu_custom_call.1} parent=11 // pred_region
          _
        $region20: #{tpu_custom_call.1} parent=11 // pred_fallthru
          _
        // Predicated region
        $region21: #{tpu_custom_call.1} parent=11 // pred_check
          %p335 = pneg %p162
        $region22: #{tpu_custom_call.1} parent=11 // pred_check_branch
          %337 = sbr.rel (%p335) target = $region24
        $region23: #{tpu_custom_call.1} parent=11 // pred_region
          _
        $region24: #{tpu_custom_call.1} parent=11 // pred_fallthru
          _
        // Predicated region
        $region25: #{tpu_custom_call.1} parent=11 // pred_check
          %p338 = pneg %p183
        $region26: #{tpu_custom_call.1} parent=11 // pred_check_branch
          %340 = sbr.rel (%p338) target = $region28
        $region27: #{tpu_custom_call.1} parent=11 // pred_region
          _
        $region28: #{tpu_custom_call.1} parent=11 // pred_fallthru
          _
        // Predicated region
        $region29: #{tpu_custom_call.1} parent=11 // pred_check
          %p341 = pneg %p204
        $region30: #{tpu_custom_call.1} parent=11 // pred_check_branch
          %343 = sbr.rel (%p341) target = $region32
        $region31: #{tpu_custom_call.1} parent=11 // pred_region
          _
        $region32: #{tpu_custom_call.1} parent=11 // pred_fallthru
          _
        // Predicated region
        $region33: #{tpu_custom_call.1} parent=11 // pred_check
          %p344 = pneg %p225
        $region34: #{tpu_custom_call.1} parent=11 // pred_check_branch
          %346 = sbr.rel (%p344) target = $region36
        $region35: #{tpu_custom_call.1} parent=11 // pred_region
          _
        $region36: #{tpu_custom_call.1} parent=11 // pred_fallthru
          _
        // Predicated region
        $region37: #{tpu_custom_call.1} parent=11 // pred_check
          %p347 = pneg %p246
        $region38: #{tpu_custom_call.1} parent=11 // pred_check_branch
          %349 = sbr.rel (%p347) target = $region40
        $region39: #{tpu_custom_call.1} parent=11 // pred_region
          _
        $region40: #{tpu_custom_call.1} parent=11 // pred_fallthru
          _
        // Predicated region
        $region41: #{tpu_custom_call.1} parent=11 // pred_check
          %p350 = pneg %p267
        $region42: #{tpu_custom_call.1} parent=11 // pred_check_branch
          %352 = sbr.rel (%p350) target = $region44
        $region43: #{tpu_custom_call.1} parent=11 // pred_region
          _
        $region44: #{tpu_custom_call.1} parent=11 // pred_fallthru
          _
        // Predicated region
        $region45: #{tpu_custom_call.1} parent=11 // pred_check
          %p353 = pneg %p288
        $region46: #{tpu_custom_call.1} parent=11 // pred_check_branch
          %355 = sbr.rel (%p353) target = $region48
        $region47: #{tpu_custom_call.1} parent=11 // pred_region
          _
        $region48: #{tpu_custom_call.1} parent=11 // pred_fallthru
          _
      $region12: #{tpu_custom_call.1} parent=5 // pred_fallthru
        _
      %p356 = scmp.lt.s32.totalorder %s21, 2
      // Predicated region
      $region49: #{tpu_custom_call.1} parent=5 // pred_check
        %p357 = pneg %p356
      $region50: #{tpu_custom_call.1} parent=5 // pred_check_branch
        %359 = sbr.rel (%p357) target = $region52
      $region51: #{tpu_custom_call.1} parent=5 // pred_region
        // Predicated region
        $region53: #{tpu_custom_call.1} parent=51 // pred_check
          %p360 = pneg %p41
        $region54: #{tpu_custom_call.1} parent=51 // pred_check_branch
          %362 = sbr.rel (%p360) target = $region56
        $region55: #{tpu_custom_call.1} parent=51 // pred_region
          %p363 = scmp.lt.s32.totalorder %s21, 1
          %s364 = scalar_select %p363, %s21, 1
          %s365 = smul.addr %s364, 2
          %s366 = smul.addr %s365, 8
          %s367 = scalar_lea.vmem %s0, %s366
        $region56: #{tpu_custom_call.1} parent=51 // pred_fallthru
          _
        // Predicated region
        $region57: #{tpu_custom_call.1} parent=51 // pred_check
          %p368 = pneg %p67
        $region58: #{tpu_custom_call.1} parent=51 // pred_check_branch
          %370 = sbr.rel (%p368) target = $region60
        $region59: #{tpu_custom_call.1} parent=51 // pred_region
          %p371 = scmp.lt.s32.totalorder %s21, 1
          %s372 = scalar_select %p371, %s21, 1
          %s373 = smul.addr %s372, 32
          %s374 = smul.addr %s373, 8
          %s375 = scalar_lea.vmem %s1, %s374
        $region60: #{tpu_custom_call.1} parent=51 // pred_fallthru
          _
        // Predicated region
        $region61: #{tpu_custom_call.1} parent=51 // pred_check
          %p376 = pneg %p93
        $region62: #{tpu_custom_call.1} parent=51 // pred_check_branch
          %378 = sbr.rel (%p376) target = $region64
        $region63: #{tpu_custom_call.1} parent=51 // pred_region
          %p379 = scmp.lt.s32.totalorder %s21, 1
          %s380 = scalar_select %p379, %s21, 1
          %s381 = smul.addr %s380, 2
          %s382 = smul.addr %s381, 8
          %s383 = scalar_lea.vmem %s2, %s382
        $region64: #{tpu_custom_call.1} parent=51 // pred_fallthru
          _
      $region52: #{tpu_custom_call.1} parent=5 // pred_fallthru
        _
      %p384 = scmp.le.s32.totalorder 1, %s21
      %p385 = scmp.lt.s32.totalorder %s21, 3
      %p386 = pnand %p384, %p385
      %p387 = pneg %p386
      // Predicated region
      $region65: #{tpu_custom_call.1} parent=5 // pred_check
        _
      $region66: #{tpu_custom_call.1} parent=5 // pred_check_branch
        %389 = sbr.rel (%p386) target = $region68
      $region67: #{tpu_custom_call.1} parent=5 // pred_region
        %s390 = ssub.s32 %s21, 1
        %p391 = scmp.lt.s32.totalorder %s26, 1
        %s392 = scalar_select %p391, %s26, 1
        %s393 = smul.addr %s392, 2
        %s394 = smul.addr %s393, 8
        %s395 = scalar_lea.vmem %s0, %s394
        %p396 = pneg %p47
        %p397 = pneg %p44
        %p398 = scmp.lt.s32.totalorder %s26, 1
        %s399 = scalar_select %p398, %s26, 1
        %s400 = smul.addr %s399, 32
        %s401 = smul.addr %s400, 8
        %s402 = scalar_lea.vmem %s1, %s401
        %p403 = pneg %p73
        %p404 = pneg %p70
        %p405 = scmp.lt.s32.totalorder %s26, 1
        %s406 = scalar_select %p405, %s26, 1
        %s407 = smul.addr %s406, 2
        %s408 = smul.addr %s407, 8
        %s409 = scalar_lea.vmem %s2, %s408
        %p410 = pneg %p99
        %p411 = pneg %p96
        %p412 = pneg %p120
        %p413 = pneg %p117
        %p414 = pneg %p141
        %p415 = pneg %p138
        %p416 = pneg %p162
        %p417 = pneg %p159
        %p418 = pneg %p183
        %p419 = pneg %p180
        %p420 = pneg %p204
        %p421 = pneg %p201
        %p422 = pneg %p225
        %p423 = pneg %p222
        %p424 = pneg %p246
        %p425 = pneg %p243
        %p426 = pneg %p267
        %p427 = pneg %p264
        %p428 = pneg %p288
        %p429 = pneg %p285
        %p430 = pneg %p314
        %p431 = pneg %p311
        %s432 = sand.u32 %s301, 1
        %s433 = scalar_lea.sflag [#allocation3], %s432
        %s434 = sand.u32 %s301, 1
        %s435 = smul.addr %s434, 16
        %s436 = scalar_lea.vmem [#allocation2], %s435
        %p437 = scmp.lt.s32.totalorder %s26, 1
        %s438 = scalar_select %p437, %s26, 1
        %s439 = smul.addr %s438, 2
        %s440 = smul.addr %s439, 8
        %s441 = scalar_lea.vmem %s0, %s440
        %p442 = scmp.lt.s32.totalorder %s26, 1
        %s443 = scalar_select %p442, %s26, 1
        %s444 = smul.addr %s443, 32
        %s445 = smul.addr %s444, 8
        %s446 = scalar_lea.vmem %s1, %s445
        %p447 = scmp.lt.s32.totalorder %s26, 1
        %s448 = scalar_select %p447, %s26, 1
        %s449 = smul.addr %s448, 2
        %s450 = smul.addr %s449, 8
        %s451 = scalar_lea.vmem %s2, %s450
        %v452 = vld [vmem:[%s441] sm:$0xff]
        %v453 = vld [vmem:[%s441 + $0x8] sm:$0xff]
        %v454 = vld [vmem:[%s446] sm:$0xff]
        %v455 = vld [vmem:[%s446 + $0x8] sm:$0xff]
        %v456 = vld [vmem:[%s446 + $0x10] sm:$0xff]
        %v457 = vld [vmem:[%s446 + $0x18] sm:$0xff]
        %v458 = vld [vmem:[%s446 + $0x20] sm:$0xff]
        %v459 = vld [vmem:[%s446 + $0x28] sm:$0xff]
        %v460 = vld [vmem:[%s446 + $0x30] sm:$0xff]
        %v461 = vld [vmem:[%s446 + $0x38] sm:$0xff]
        %v462 = vld [vmem:[%s446 + $0x40] sm:$0xff]
        %v463 = vld [vmem:[%s446 + $0x48] sm:$0xff]
        %v464 = vld [vmem:[%s446 + $0x50] sm:$0xff]
        %v465 = vld [vmem:[%s446 + $0x58] sm:$0xff]
        %v466 = vld [vmem:[%s446 + $0x60] sm:$0xff]
        %v467 = vld [vmem:[%s446 + $0x68] sm:$0xff]
        %v468 = vld [vmem:[%s446 + $0x70] sm:$0xff]
        %v469 = vld [vmem:[%s446 + $0x78] sm:$0xff]
        %v470 = vld [vmem:[%s446 + $0x80] sm:$0xff]
        %v471 = vld [vmem:[%s446 + $0x88] sm:$0xff]
        %v472 = vld [vmem:[%s446 + $0x90] sm:$0xff]
        %v473 = vld [vmem:[%s446 + $0x98] sm:$0xff]
        %v474 = vld [vmem:[%s446 + $0xa0] sm:$0xff]
        %v475 = vld [vmem:[%s446 + $0xa8] sm:$0xff]
        %v476 = vld [vmem:[%s446 + $0xb0] sm:$0xff]
        %v477 = vld [vmem:[%s446 + $0xb8] sm:$0xff]
        %v478 = vld [vmem:[%s446 + $0xc0] sm:$0xff]
        %v479 = vld [vmem:[%s446 + $0xc8] sm:$0xff]
        %v480 = vld [vmem:[%s446 + $0xd0] sm:$0xff]
        %v481 = vld [vmem:[%s446 + $0xd8] sm:$0xff]
        %v482 = vld [vmem:[%s446 + $0xe0] sm:$0xff]
        %v483 = vld [vmem:[%s446 + $0xe8] sm:$0xff]
        %v484 = vld [vmem:[%s446 + $0xf0] sm:$0xff]
        %v485 = vld [vmem:[%s446 + $0xf8] sm:$0xff]
        %v486 = vld [vmem:[%s451] sm:$0xff]
        %v487 = vld [vmem:[%s451 + $0x8] sm:$0xff]
        %v488 = vlaneseq
        %v489 = vshrl.u32 %v488, 7
        %v490 = vadd.s32 %v489, 8
        %v491 = vlaneseq
        %v492 = vand.u32 %v491, 127
        %vm493 = vcmp.eq.s32.totalorder %v489, %v492
        %vm494 = vcmp.eq.s32.totalorder %v490, %v492
        %v495 = vsel %vm493, 1, 0
        %v496 = vsel %vm494, 1, 0
        %v497 = vcvt.s32.f32 %v495
        %v498 = vcvt.s32.f32 %v496
        %v499 = vadd.f32 %v486, %v497
        %v500 = vadd.f32 %v487, %v498
        %v501 = vmin.f32 %v499, 1.0
        %v502 = vmin.f32 %v500, 1.0
        %v503 = vld [vmem:[%s9] sm:$0x1]
        %v505 = vlaneseq
        %v506 = vshrl.u32 %v505, 7
        %v507 = vsub.s32 0, %v506
        %v508 = vrot.slane %v503, %v507
        %v510 = vld [vmem:[%s11] sm:$0x1]
        %v512 = vlaneseq
        %v513 = vshrl.u32 %v512, 7
        %v514 = vsub.s32 0, %v513
        %v515 = vrot.slane %v510, %v514
        %v517 = vld [vmem:[%s10] sm:$0x1]
        %v519 = vlaneseq
        %v520 = vshrl.u32 %v519, 7
        %v521 = vsub.s32 0, %v520
        %v522 = vrot.slane %v517, %v521
        %v523 = vld [vmem:[%s3] sm:$0xf]
        %v524 = vld [vmem:[%s4] sm:$0x1]
        %v526 = vlaneseq
        %v527 = vshrl.u32 %v526, 7
        %v528 = vsub.s32 0, %v527
        %v529 = vrot.slane %v524, %v528
        %vm531 = vcmask 31744
        %v533 = vsel %vm531, %v452, 0
        %v536 = vsel %vm531, %v453, 0
        %vm538 = vcmask 1043456
        %v540 = vsel %vm538, %v523, 0
        %542 = vmatprep.subr.mxu0 0.0
        %543 = vmatpush1.msra.mxu0 %v540
        %544 = vmatprep.subr.mxu0 0.0
        %545 = vmatpush1.msra.mxu0 0.0
        %546 = vmatprep.subr.mxu0 0.0
        %547 = vmatpush1.msra.mxu0 0.0
        %548 = vmatprep.subr.mxu0 0.0
        %549 = vmatpush1.msra.mxu0 0.0
        %550 = vmatprep.subr.mxu0 0.0
        %551 = vmatpush1.msra.mxu0 0.0
        %552 = vmatprep.subr.mxu0 0.0
        %553 = vmatpush1.msra.mxu0 0.0
        %554 = vmatprep.subr.mxu0 0.0
        %555 = vmatpush1.msra.mxu0 0.0
        %556 = vmatprep.subr.mxu0 0.0
        %557 = vmatpush1.msra.mxu0 0.0
        %558 = vmatprep.subr.mxu0 0.0
        %559 = vmatpush1.msra.mxu0 0.0
        %560 = vmatprep.subr.mxu0 0.0
        %561 = vmatpush1.msra.mxu0 0.0
        %562 = vmatprep.subr.mxu0 0.0
        %563 = vmatpush1.msra.mxu0 0.0
        %564 = vmatprep.subr.mxu0 0.0
        %565 = vmatpush1.msra.mxu0 0.0
        %566 = vmatprep.subr.mxu0 0.0
        %567 = vmatpush1.msra.mxu0 0.0
        %568 = vmatprep.subr.mxu0 0.0
        %569 = vmatpush1.msra.mxu0 0.0
        %570 = vmatprep.subr.mxu0 0.0
        %571 = vmatpush1.msra.mxu0 0.0
        %572 = vmatprep.subr.mxu0 0.0
        %573 = vmatpush1.msra.mxu0 0.0
        %574 = vmatprep.subr.mxu0 0.0
        %575 = vmatpush1.msra.mxu0 0.0
        %576 = vmatprep.subr.mxu0 0.0
        %577 = vmatpush1.msra.mxu0 0.0
        %578 = vmatprep.subr.mxu0 0.0
        %579 = vmatpush1.msra.mxu0 0.0
        %580 = vmatprep.subr.mxu0 0.0
        %581 = vmatpush1.msra.mxu0 0.0
        %582 = vmatprep.subr.mxu0 0.0
        %583 = vmatpush1.msra.mxu0 0.0
        %584 = vmatprep.subr.mxu0 0.0
        %585 = vmatpush1.msra.mxu0 0.0
        %586 = vmatprep.subr.mxu0 0.0
        %587 = vmatpush1.msra.mxu0 0.0
        %588 = vmatprep.subr.mxu0 0.0
        %589 = vmatpush1.msra.mxu0 0.0
        %590 = vmatprep.subr.mxu0 0.0
        %591 = vmatpush1.msra.mxu0 0.0
        %592 = vmatprep.subr.mxu0 0.0
        %593 = vmatpush1.msra.mxu0 0.0
        %594 = vmatprep.subr.mxu0 0.0
        %595 = vmatpush1.msra.mxu0 0.0
        %596 = vmatprep.subr.mxu0 0.0
        %597 = vmatpush1.msra.mxu0 0.0
        %598 = vmatprep.subr.mxu0 0.0
        %599 = vmatpush1.msra.mxu0 0.0
        %600 = vmatprep.subr.mxu0 0.0
        %601 = vmatpush1.msra.mxu0 0.0
        %602 = vmatprep.subr.mxu0 0.0
        %603 = vmatpush1.msra.mxu0 0.0
        %604 = vmatprep.subr.mxu0 0.0
        %605 = vmatpush1.msra.mxu0 0.0
        %606 = vmatprep.mubr.f32.mxu0 0.0
        %607 = vmatmul.mubr.f32.gmra.mrb[0].mxu0 %v533
        %v608 = vpop.f32.mrb[0].mxu0
        %v609 = vadd.f32 %v529, %v608
        %v610 = vpop.f32.mrb[0].mxu0
        %611 = vmatprep.mubr.f32.mxu0 0.0
        %612 = vmatmul.mubr.f32.gmra.mrb[0].mxu0 %v536
        %v613 = vpop.f32.mrb[0].mxu0
        %v614 = vadd.f32 %v529, %v613
        %v615 = vpop.f32.mrb[0].mxu0
        %616 = vdwg.mxu0
        %v617 = vmax.f32 %v609, 0.0
        %v618 = vmax.f32 %v614, 0.0
        %v619 = vld [vmem:[%s5] sm:$0x3]
        %v620 = vld [vmem:[%s6] sm:$0x1]
        %v622 = vlaneseq
        %v623 = vshrl.u32 %v622, 7
        %v624 = vsub.s32 0, %v623
        %v625 = vrot.slane %v620, %v624
        %vm627 = vcmask 15360
        %v629 = vsel %vm627, %v454, 0
        %v632 = vsel %vm627, %v455, 0
        %v635 = vsel %vm627, %v456, 0
        %v638 = vsel %vm627, %v457, 0
        %v641 = vsel %vm627, %v458, 0
        %v644 = vsel %vm627, %v459, 0
        %v647 = vsel %vm627, %v460, 0
        %v650 = vsel %vm627, %v461, 0
        %v653 = vsel %vm627, %v462, 0
        %v656 = vsel %vm627, %v463, 0
        %v659 = vsel %vm627, %v464, 0
        %v662 = vsel %vm627, %v465, 0
        %v665 = vsel %vm627, %v466, 0
        %v668 = vsel %vm627, %v467, 0
        %v671 = vsel %vm627, %v468, 0
        %v674 = vsel %vm627, %v469, 0
        %v677 = vsel %vm627, %v470, 0
        %v680 = vsel %vm627, %v471, 0
        %v683 = vsel %vm627, %v472, 0
        %v686 = vsel %vm627, %v473, 0
        %v689 = vsel %vm627, %v474, 0
        %v692 = vsel %vm627, %v475, 0
        %v695 = vsel %vm627, %v476, 0
        %v698 = vsel %vm627, %v477, 0
        %v701 = vsel %vm627, %v478, 0
        %v704 = vsel %vm627, %v479, 0
        %v707 = vsel %vm627, %v480, 0
        %v710 = vsel %vm627, %v481, 0
        %v713 = vsel %vm627, %v482, 0
        %v716 = vsel %vm627, %v483, 0
        %v719 = vsel %vm627, %v484, 0
        %v722 = vsel %vm627, %v485, 0
        %vm724 = vcmask 1041408
        %v726 = vsel %vm724, %v619, 0
        %728 = vmatprep.subr.mxu0 0.0
        %729 = vmatpush1.msra.mxu0 %v726
        %730 = vmatprep.subr.mxu0 0.0
        %731 = vmatpush1.msra.mxu0 0.0
        %732 = vmatprep.subr.mxu0 0.0
        %733 = vmatpush1.msra.mxu0 0.0
        %734 = vmatprep.subr.mxu0 0.0
        %735 = vmatpush1.msra.mxu0 0.0
        %736 = vmatprep.subr.mxu0 0.0
        %737 = vmatpush1.msra.mxu0 0.0
        %738 = vmatprep.subr.mxu0 0.0
        %739 = vmatpush1.msra.mxu0 0.0
        %740 = vmatprep.subr.mxu0 0.0
        %741 = vmatpush1.msra.mxu0 0.0
        %742 = vmatprep.subr.mxu0 0.0
        %743 = vmatpush1.msra.mxu0 0.0
        %744 = vmatprep.subr.mxu0 0.0
        %745 = vmatpush1.msra.mxu0 0.0
        %746 = vmatprep.subr.mxu0 0.0
        %747 = vmatpush1.msra.mxu0 0.0
        %748 = vmatprep.subr.mxu0 0.0
        %749 = vmatpush1.msra.mxu0 0.0
        %750 = vmatprep.subr.mxu0 0.0
        %751 = vmatpush1.msra.mxu0 0.0
        %752 = vmatprep.subr.mxu0 0.0
        %753 = vmatpush1.msra.mxu0 0.0
        %754 = vmatprep.subr.mxu0 0.0
        %755 = vmatpush1.msra.mxu0 0.0
        %756 = vmatprep.subr.mxu0 0.0
        %757 = vmatpush1.msra.mxu0 0.0
        %758 = vmatprep.subr.mxu0 0.0
        %759 = vmatpush1.msra.mxu0 0.0
        %760 = vmatprep.subr.mxu0 0.0
        %761 = vmatpush1.msra.mxu0 0.0
        %762 = vmatprep.subr.mxu0 0.0
        %763 = vmatpush1.msra.mxu0 0.0
        %764 = vmatprep.subr.mxu0 0.0
        %765 = vmatpush1.msra.mxu0 0.0
        %766 = vmatprep.subr.mxu0 0.0
        %767 = vmatpush1.msra.mxu0 0.0
        %768 = vmatprep.subr.mxu0 0.0
        %769 = vmatpush1.msra.mxu0 0.0
        %770 = vmatprep.subr.mxu0 0.0
        %771 = vmatpush1.msra.mxu0 0.0
        %772 = vmatprep.subr.mxu0 0.0
        %773 = vmatpush1.msra.mxu0 0.0
        %774 = vmatprep.subr.mxu0 0.0
        %775 = vmatpush1.msra.mxu0 0.0
        %776 = vmatprep.subr.mxu0 0.0
        %777 = vmatpush1.msra.mxu0 0.0
        %778 = vmatprep.subr.mxu0 0.0
        %779 = vmatpush1.msra.mxu0 0.0
        %780 = vmatprep.subr.mxu0 0.0
        %781 = vmatpush1.msra.mxu0 0.0
        %782 = vmatprep.subr.mxu0 0.0
        %783 = vmatpush1.msra.mxu0 0.0
        %784 = vmatprep.subr.mxu0 0.0
        %785 = vmatpush1.msra.mxu0 0.0
        %786 = vmatprep.subr.mxu0 0.0
        %787 = vmatpush1.msra.mxu0 0.0
        %788 = vmatprep.subr.mxu0 0.0
        %789 = vmatpush1.msra.mxu0 0.0
        %790 = vmatprep.subr.mxu0 0.0
        %791 = vmatpush1.msra.mxu0 0.0
        %792 = vmatprep.mubr.f32.mxu0 0.0
        %793 = vmatmul.mubr.f32.gmra.mrb[0].mxu0 %v629
        %v794 = vpop.f32.mrb[0].mxu0
        %v795 = vadd.f32 %v625, %v794
        %v796 = vpop.f32.mrb[0].mxu0
        %797 = vmatprep.mubr.f32.mxu0 0.0
        %798 = vmatmul.mubr.f32.gmra.mrb[0].mxu0 %v632
        %v799 = vpop.f32.mrb[0].mxu0
        %v800 = vadd.f32 %v625, %v799
        %v801 = vpop.f32.mrb[0].mxu0
        %802 = vmatprep.mubr.f32.mxu0 0.0
        %803 = vmatmul.mubr.f32.gmra.mrb[0].mxu0 %v635
        %v804 = vpop.f32.mrb[0].mxu0
        %v805 = vadd.f32 %v625, %v804
        %v806 = vpop.f32.mrb[0].mxu0
        %807 = vmatprep.mubr.f32.mxu0 0.0
        %808 = vmatmul.mubr.f32.gmra.mrb[0].mxu0 %v638
        %v809 = vpop.f32.mrb[0].mxu0
        %v810 = vadd.f32 %v625, %v809
        %v811 = vpop.f32.mrb[0].mxu0
        %812 = vmatprep.mubr.f32.mxu0 0.0
        %813 = vmatmul.mubr.f32.gmra.mrb[0].mxu0 %v641
        %v814 = vpop.f32.mrb[0].mxu0
        %v815 = vadd.f32 %v625, %v814
        %v816 = vpop.f32.mrb[0].mxu0
        %817 = vmatprep.mubr.f32.mxu0 0.0
        %818 = vmatmul.mubr.f32.gmra.mrb[0].mxu0 %v644
        %v819 = vpop.f32.mrb[0].mxu0
        %v820 = vadd.f32 %v625, %v819
        %v821 = vpop.f32.mrb[0].mxu0
        %822 = vmatprep.mubr.f32.mxu0 0.0
        %823 = vmatmul.mubr.f32.gmra.mrb[0].mxu0 %v647
        %v824 = vpop.f32.mrb[0].mxu0
        %v825 = vadd.f32 %v625, %v824
        %v826 = vpop.f32.mrb[0].mxu0
        %827 = vmatprep.mubr.f32.mxu0 0.0
        %828 = vmatmul.mubr.f32.gmra.mrb[0].mxu0 %v650
        %v829 = vpop.f32.mrb[0].mxu0
        %v830 = vadd.f32 %v625, %v829
        %v831 = vpop.f32.mrb[0].mxu0
        %832 = vmatprep.mubr.f32.mxu0 0.0
        %833 = vmatmul.mubr.f32.gmra.mrb[0].mxu0 %v653
        %v834 = vpop.f32.mrb[0].mxu0
        %v835 = vadd.f32 %v625, %v834
        %v836 = vpop.f32.mrb[0].mxu0
        %837 = vmatprep.mubr.f32.mxu0 0.0
        %838 = vmatmul.mubr.f32.gmra.mrb[0].mxu0 %v656
        %v839 = vpop.f32.mrb[0].mxu0
        %v840 = vadd.f32 %v625, %v839
        %v841 = vpop.f32.mrb[0].mxu0
        %842 = vmatprep.mubr.f32.mxu0 0.0
        %843 = vmatmul.mubr.f32.gmra.mrb[0].mxu0 %v659
        %v844 = vpop.f32.mrb[0].mxu0
        %v845 = vadd.f32 %v625, %v844
        %v846 = vpop.f32.mrb[0].mxu0
        %847 = vmatprep.mubr.f32.mxu0 0.0
        %848 = vmatmul.mubr.f32.gmra.mrb[0].mxu0 %v662
        %v849 = vpop.f32.mrb[0].mxu0
        %v850 = vadd.f32 %v625, %v849
        %v851 = vpop.f32.mrb[0].mxu0
        %852 = vmatprep.mubr.f32.mxu0 0.0
        %853 = vmatmul.mubr.f32.gmra.mrb[0].mxu0 %v665
        %v854 = vpop.f32.mrb[0].mxu0
        %v855 = vadd.f32 %v625, %v854
        %v856 = vpop.f32.mrb[0].mxu0
        %857 = vmatprep.mubr.f32.mxu0 0.0
        %858 = vmatmul.mubr.f32.gmra.mrb[0].mxu0 %v668
        %v859 = vpop.f32.mrb[0].mxu0
        %v860 = vadd.f32 %v625, %v859
        %v861 = vpop.f32.mrb[0].mxu0
        %862 = vmatprep.mubr.f32.mxu0 0.0
        %863 = vmatmul.mubr.f32.gmra.mrb[0].mxu0 %v671
        %v864 = vpop.f32.mrb[0].mxu0
        %v865 = vadd.f32 %v625, %v864
        %v866 = vpop.f32.mrb[0].mxu0
        %867 = vmatprep.mubr.f32.mxu0 0.0
        %868 = vmatmul.mubr.f32.gmra.mrb[0].mxu0 %v674
        %v869 = vpop.f32.mrb[0].mxu0
        %v870 = vadd.f32 %v625, %v869
        %v871 = vpop.f32.mrb[0].mxu0
        %872 = vmatprep.mubr.f32.mxu0 0.0
        %873 = vmatmul.mubr.f32.gmra.mrb[0].mxu0 %v677
        %v874 = vpop.f32.mrb[0].mxu0
        %v875 = vadd.f32 %v625, %v874
        %v876 = vpop.f32.mrb[0].mxu0
        %877 = vmatprep.mubr.f32.mxu0 0.0
        %878 = vmatmul.mubr.f32.gmra.mrb[0].mxu0 %v680
        %v879 = vpop.f32.mrb[0].mxu0
        %v880 = vadd.f32 %v625, %v879
        %v881 = vpop.f32.mrb[0].mxu0
        %882 = vmatprep.mubr.f32.mxu0 0.0
        %883 = vmatmul.mubr.f32.gmra.mrb[0].mxu0 %v683
        %v884 = vpop.f32.mrb[0].mxu0
        %v885 = vadd.f32 %v625, %v884
        %v886 = vpop.f32.mrb[0].mxu0
        %887 = vmatprep.mubr.f32.mxu0 0.0
        %888 = vmatmul.mubr.f32.gmra.mrb[0].mxu0 %v686
        %v889 = vpop.f32.mrb[0].mxu0
        %v890 = vadd.f32 %v625, %v889
        %v891 = vpop.f32.mrb[0].mxu0
        %892 = vmatprep.mubr.f32.mxu0 0.0
        %893 = vmatmul.mubr.f32.gmra.mrb[0].mxu0 %v689
        %v894 = vpop.f32.mrb[0].mxu0
        %v895 = vadd.f32 %v625, %v894
        %v896 = vpop.f32.mrb[0].mxu0
        %897 = vmatprep.mubr.f32.mxu0 0.0
        %898 = vmatmul.mubr.f32.gmra.mrb[0].mxu0 %v692
        %v899 = vpop.f32.mrb[0].mxu0
        %v900 = vadd.f32 %v625, %v899
        %v901 = vpop.f32.mrb[0].mxu0
        %902 = vmatprep.mubr.f32.mxu0 0.0
        %903 = vmatmul.mubr.f32.gmra.mrb[0].mxu0 %v695
        %v904 = vpop.f32.mrb[0].mxu0
        %v905 = vadd.f32 %v625, %v904
        %v906 = vpop.f32.mrb[0].mxu0
        %907 = vmatprep.mubr.f32.mxu0 0.0
        %908 = vmatmul.mubr.f32.gmra.mrb[0].mxu0 %v698
        %v909 = vpop.f32.mrb[0].mxu0
        %v910 = vadd.f32 %v625, %v909
        %v911 = vpop.f32.mrb[0].mxu0
        %912 = vmatprep.mubr.f32.mxu0 0.0
        %913 = vmatmul.mubr.f32.gmra.mrb[0].mxu0 %v701
        %v914 = vpop.f32.mrb[0].mxu0
        %v915 = vadd.f32 %v625, %v914
        %v916 = vpop.f32.mrb[0].mxu0
        %917 = vmatprep.mubr.f32.mxu0 0.0
        %918 = vmatmul.mubr.f32.gmra.mrb[0].mxu0 %v704
        %v919 = vpop.f32.mrb[0].mxu0
        %v920 = vadd.f32 %v625, %v919
        %v921 = vpop.f32.mrb[0].mxu0
        %922 = vmatprep.mubr.f32.mxu0 0.0
        %923 = vmatmul.mubr.f32.gmra.mrb[0].mxu0 %v707
        %v924 = vpop.f32.mrb[0].mxu0
        %v925 = vadd.f32 %v625, %v924
        %v926 = vpop.f32.mrb[0].mxu0
        %927 = vmatprep.mubr.f32.mxu0 0.0
        %928 = vmatmul.mubr.f32.gmra.mrb[0].mxu0 %v710
        %v929 = vpop.f32.mrb[0].mxu0
        %v930 = vadd.f32 %v625, %v929
        %v931 = vpop.f32.mrb[0].mxu0
        %932 = vmatprep.mubr.f32.mxu0 0.0
        %933 = vmatmul.mubr.f32.gmra.mrb[0].mxu0 %v713
        %v934 = vpop.f32.mrb[0].mxu0
        %v935 = vadd.f32 %v625, %v934
        %v936 = vpop.f32.mrb[0].mxu0
        %937 = vmatprep.mubr.f32.mxu0 0.0
        %938 = vmatmul.mubr.f32.gmra.mrb[0].mxu0 %v716
        %v939 = vpop.f32.mrb[0].mxu0
        %v940 = vadd.f32 %v625, %v939
        %v941 = vpop.f32.mrb[0].mxu0
        %942 = vmatprep.mubr.f32.mxu0 0.0
        %943 = vmatmul.mubr.f32.gmra.mrb[0].mxu0 %v719
        %v944 = vpop.f32.mrb[0].mxu0
        %v945 = vadd.f32 %v625, %v944
        %v946 = vpop.f32.mrb[0].mxu0
        %947 = vmatprep.mubr.f32.mxu0 0.0
        %948 = vmatmul.mubr.f32.gmra.mrb[0].mxu0 %v722
        %v949 = vpop.f32.mrb[0].mxu0
        %v950 = vadd.f32 %v625, %v949
        %v951 = vpop.f32.mrb[0].mxu0
        %952 = vdwg.mxu0
        %v953 = vmax.f32 %v795, 0.0
        %v954 = vmax.f32 %v800, 0.0
        %v955 = vmax.f32 %v805, 0.0
        %v956 = vmax.f32 %v810, 0.0
        %v957 = vmax.f32 %v815, 0.0
        %v958 = vmax.f32 %v820, 0.0
        %v959 = vmax.f32 %v825, 0.0
        %v960 = vmax.f32 %v830, 0.0
        %v961 = vmax.f32 %v835, 0.0
        %v962 = vmax.f32 %v840, 0.0
        %v963 = vmax.f32 %v845, 0.0
        %v964 = vmax.f32 %v850, 0.0
        %v965 = vmax.f32 %v855, 0.0
        %v966 = vmax.f32 %v860, 0.0
        %v967 = vmax.f32 %v865, 0.0
        %v968 = vmax.f32 %v870, 0.0
        %v969 = vmax.f32 %v875, 0.0
        %v970 = vmax.f32 %v880, 0.0
        %v971 = vmax.f32 %v885, 0.0
        %v972 = vmax.f32 %v890, 0.0
        %v973 = vmax.f32 %v895, 0.0
        %v974 = vmax.f32 %v900, 0.0
        %v975 = vmax.f32 %v905, 0.0
        %v976 = vmax.f32 %v910, 0.0
        %v977 = vmax.f32 %v915, 0.0
        %v978 = vmax.f32 %v920, 0.0
        %v979 = vmax.f32 %v925, 0.0
        %v980 = vmax.f32 %v930, 0.0
        %v981 = vmax.f32 %v935, 0.0
        %v982 = vmax.f32 %v940, 0.0
        %v983 = vmax.f32 %v945, 0.0
        %v984 = vmax.f32 %v950, 0.0
        %v985 = vld [vmem:[%s7] sm:$0xff]
        %v986 = vld [vmem:[%s7 + $0x8] sm:$0xff]
        %v987 = vld [vmem:[%s7 + $0x10] sm:$0xf]
        %vm988 = vcmask 162816
        %v990 = vsel %vm988, %v953, 0
        %v993 = vsel %vm988, %v954, 0
        %v996 = vsel %vm988, %v955, 0
        %v999 = vsel %vm988, %v956, 0
        %v1002 = vsel %vm988, %v957, 0
        %v1005 = vsel %vm988, %v958, 0
        %v1008 = vsel %vm988, %v959, 0
        %v1011 = vsel %vm988, %v960, 0
        %v1014 = vsel %vm988, %v961, 0
        %v1017 = vsel %vm988, %v962, 0
        %v1020 = vsel %vm988, %v963, 0
        %v1023 = vsel %vm988, %v964, 0
        %v1026 = vsel %vm988, %v965, 0
        %v1029 = vsel %vm988, %v966, 0
        %v1032 = vsel %vm988, %v967, 0
        %v1035 = vsel %vm988, %v968, 0
        %v1038 = vsel %vm988, %v969, 0
        %v1041 = vsel %vm988, %v970, 0
        %v1044 = vsel %vm988, %v971, 0
        %v1047 = vsel %vm988, %v972, 0
        %v1050 = vsel %vm988, %v973, 0
        %v1053 = vsel %vm988, %v974, 0
        %v1056 = vsel %vm988, %v975, 0
        %v1059 = vsel %vm988, %v976, 0
        %v1062 = vsel %vm988, %v977, 0
        %v1065 = vsel %vm988, %v978, 0
        %v1068 = vsel %vm988, %v979, 0
        %v1071 = vsel %vm988, %v980, 0
        %v1074 = vsel %vm988, %v981, 0
        %v1077 = vsel %vm988, %v982, 0
        %v1080 = vsel %vm988, %v983, 0
        %v1083 = vsel %vm988, %v984, 0
        %v1086 = vsel %vm538, %v987, 0
        %1088 = vmatprep.subr.mxu0 0.0
        %1089 = vmatpush1.msra.mxu0 %v985
        %1090 = vmatprep.subr.mxu0 0.0
        %1091 = vmatpush1.msra.mxu0 %v986
        %1092 = vmatprep.subr.mxu0 0.0
        %1093 = vmatpush1.msra.mxu0 %v1086
        %1094 = vmatprep.subr.mxu0 0.0
        %1095 = vmatpush1.msra.mxu0 0.0
        %1096 = vmatprep.subr.mxu0 0.0
        %1097 = vmatpush1.msra.mxu0 0.0
        %1098 = vmatprep.subr.mxu0 0.0
        %1099 = vmatpush1.msra.mxu0 0.0
        %1100 = vmatprep.subr.mxu0 0.0
        %1101 = vmatpush1.msra.mxu0 0.0
        %1102 = vmatprep.subr.mxu0 0.0
        %1103 = vmatpush1.msra.mxu0 0.0
        %1104 = vmatprep.subr.mxu0 0.0
        %1105 = vmatpush1.msra.mxu0 0.0
        %1106 = vmatprep.subr.mxu0 0.0
        %1107 = vmatpush1.msra.mxu0 0.0
        %1108 = vmatprep.subr.mxu0 0.0
        %1109 = vmatpush1.msra.mxu0 0.0
        %1110 = vmatprep.subr.mxu0 0.0
        %1111 = vmatpush1.msra.mxu0 0.0
        %1112 = vmatprep.subr.mxu0 0.0
        %1113 = vmatpush1.msra.mxu0 0.0
        %1114 = vmatprep.subr.mxu0 0.0
        %1115 = vmatpush1.msra.mxu0 0.0
        %1116 = vmatprep.subr.mxu0 0.0
        %1117 = vmatpush1.msra.mxu0 0.0
        %1118 = vmatprep.subr.mxu0 0.0
        %1119 = vmatpush1.msra.mxu0 0.0
        %1120 = vmatprep.subr.mxu0 0.0
        %1121 = vmatpush1.msra.mxu0 0.0
        %1122 = vmatprep.subr.mxu0 0.0
        %1123 = vmatpush1.msra.mxu0 0.0
        %1124 = vmatprep.subr.mxu0 0.0
        %1125 = vmatpush1.msra.mxu0 0.0
        %1126 = vmatprep.subr.mxu0 0.0
        %1127 = vmatpush1.msra.mxu0 0.0
        %1128 = vmatprep.subr.mxu0 0.0
        %1129 = vmatpush1.msra.mxu0 0.0
        %1130 = vmatprep.subr.mxu0 0.0
        %1131 = vmatpush1.msra.mxu0 0.0
        %1132 = vmatprep.subr.mxu0 0.0
        %1133 = vmatpush1.msra.mxu0 0.0
        %1134 = vmatprep.subr.mxu0 0.0
        %1135 = vmatpush1.msra.mxu0 0.0
        %1136 = vmatprep.subr.mxu0 0.0
        %1137 = vmatpush1.msra.mxu0 0.0
        %1138 = vmatprep.subr.mxu0 0.0
        %1139 = vmatpush1.msra.mxu0 0.0
        %1140 = vmatprep.subr.mxu0 0.0
        %1141 = vmatpush1.msra.mxu0 0.0
        %1142 = vmatprep.subr.mxu0 0.0
        %1143 = vmatpush1.msra.mxu0 0.0
        %1144 = vmatprep.subr.mxu0 0.0
        %1145 = vmatpush1.msra.mxu0 0.0
        %1146 = vmatprep.subr.mxu0 0.0
        %1147 = vmatpush1.msra.mxu0 0.0
        %1148 = vmatprep.subr.mxu0 0.0
        %1149 = vmatpush1.msra.mxu0 0.0
        %1150 = vmatprep.subr.mxu0 0.0
        %1151 = vmatpush1.msra.mxu0 0.0
        %1152 = vmatprep.mubr.f32.mxu0 0.0
        %1153 = vmatmul.mubr.f32.gmra.mrb[0].mxu0 %v990
        %v1154 = vpop.f32.mrb[0].mxu0
        %v1155 = vadd.f32 0.0, %v1154
        %v1156 = vpop.f32.mrb[0].mxu0
        %1157 = vmatprep.mubr.f32.mxu0 0.0
        %1158 = vmatmul.mubr.f32.gmra.mrb[0].mxu0 %v993
        %v1159 = vpop.f32.mrb[0].mxu0
        %v1160 = vadd.f32 0.0, %v1159
        %v1161 = vpop.f32.mrb[0].mxu0
        %1162 = vmatprep.mubr.f32.mxu0 0.0
        %1163 = vmatmul.mubr.f32.gmra.mrb[0].mxu0 %v996
        %v1164 = vpop.f32.mrb[0].mxu0
        %v1165 = vadd.f32 0.0, %v1164
        %v1166 = vpop.f32.mrb[0].mxu0
        %1167 = vmatprep.mubr.f32.mxu0 0.0
        %1168 = vmatmul.mubr.f32.gmra.mrb[0].mxu0 %v999
        %v1169 = vpop.f32.mrb[0].mxu0
        %v1170 = vadd.f32 0.0, %v1169
        %v1171 = vpop.f32.mrb[0].mxu0
        %1172 = vmatprep.mubr.f32.mxu0 0.0
        %1173 = vmatmul.mubr.f32.gmra.mrb[0].mxu0 %v1002
        %v1174 = vpop.f32.mrb[0].mxu0
        %v1175 = vadd.f32 0.0, %v1174
        %v1176 = vpop.f32.mrb[0].mxu0
        %1177 = vmatprep.mubr.f32.mxu0 0.0
        %1178 = vmatmul.mubr.f32.gmra.mrb[0].mxu0 %v1005
        %v1179 = vpop.f32.mrb[0].mxu0
        %v1180 = vadd.f32 0.0, %v1179
        %v1181 = vpop.f32.mrb[0].mxu0
        %1182 = vmatprep.mubr.f32.mxu0 0.0
        %1183 = vmatmul.mubr.f32.gmra.mrb[0].mxu0 %v1008
        %v1184 = vpop.f32.mrb[0].mxu0
        %v1185 = vadd.f32 0.0, %v1184
        %v1186 = vpop.f32.mrb[0].mxu0
        %1187 = vmatprep.mubr.f32.mxu0 0.0
        %1188 = vmatmul.mubr.f32.gmra.mrb[0].mxu0 %v1011
        %v1189 = vpop.f32.mrb[0].mxu0
        %v1190 = vadd.f32 0.0, %v1189
        %v1191 = vpop.f32.mrb[0].mxu0
        %1192 = vmatprep.mubr.f32.mxu0 0.0
        %1193 = vmatmul.mubr.f32.gmra.mrb[0].mxu0 %v1014
        %v1194 = vpop.f32.mrb[0].mxu0
        %v1195 = vadd.f32 0.0, %v1194
        %v1196 = vpop.f32.mrb[0].mxu0
        %1197 = vmatprep.mubr.f32.mxu0 0.0
        %1198 = vmatmul.mubr.f32.gmra.mrb[0].mxu0 %v1017
        %v1199 = vpop.f32.mrb[0].mxu0
        %v1200 = vadd.f32 0.0, %v1199
        %v1201 = vpop.f32.mrb[0].mxu0
        %1202 = vmatprep.mubr.f32.mxu0 0.0
        %1203 = vmatmul.mubr.f32.gmra.mrb[0].mxu0 %v1020
        %v1204 = vpop.f32.mrb[0].mxu0
        %v1205 = vadd.f32 0.0, %v1204
        %v1206 = vpop.f32.mrb[0].mxu0
        %1207 = vmatprep.mubr.f32.mxu0 0.0
        %1208 = vmatmul.mubr.f32.gmra.mrb[0].mxu0 %v1023
        %v1209 = vpop.f32.mrb[0].mxu0
        %v1210 = vadd.f32 0.0, %v1209
        %v1211 = vpop.f32.mrb[0].mxu0
        %1212 = vmatprep.mubr.f32.mxu0 0.0
        %1213 = vmatmul.mubr.f32.gmra.mrb[0].mxu0 %v1026
        %v1214 = vpop.f32.mrb[0].mxu0
        %v1215 = vadd.f32 0.0, %v1214
        %v1216 = vpop.f32.mrb[0].mxu0
        %1217 = vmatprep.mubr.f32.mxu0 0.0
        %1218 = vmatmul.mubr.f32.gmra.mrb[0].mxu0 %v1029
        %v1219 = vpop.f32.mrb[0].mxu0
        %v1220 = vadd.f32 0.0, %v1219
        %v1221 = vpop.f32.mrb[0].mxu0
        %1222 = vmatprep.mubr.f32.mxu0 0.0
        %1223 = vmatmul.mubr.f32.gmra.mrb[0].mxu0 %v1032
        %v1224 = vpop.f32.mrb[0].mxu0
        %v1225 = vadd.f32 0.0, %v1224
        %v1226 = vpop.f32.mrb[0].mxu0
        %1227 = vmatprep.mubr.f32.mxu0 0.0
        %1228 = vmatmul.mubr.f32.gmra.mrb[0].mxu0 %v1035
        %v1229 = vpop.f32.mrb[0].mxu0
        %v1230 = vadd.f32 0.0, %v1229
        %v1231 = vpop.f32.mrb[0].mxu0
        %1232 = vmatprep.mubr.f32.mxu0 0.0
        %1233 = vmatmul.mubr.f32.gmra.mrb[0].mxu0 %v1038
        %v1234 = vpop.f32.mrb[0].mxu0
        %v1235 = vadd.f32 0.0, %v1234
        %v1236 = vpop.f32.mrb[0].mxu0
        %1237 = vmatprep.mubr.f32.mxu0 0.0
        %1238 = vmatmul.mubr.f32.gmra.mrb[0].mxu0 %v1041
        %v1239 = vpop.f32.mrb[0].mxu0
        %v1240 = vadd.f32 0.0, %v1239
        %v1241 = vpop.f32.mrb[0].mxu0
        %1242 = vmatprep.mubr.f32.mxu0 0.0
        %1243 = vmatmul.mubr.f32.gmra.mrb[0].mxu0 %v1044
        %v1244 = vpop.f32.mrb[0].mxu0
        %v1245 = vadd.f32 0.0, %v1244
        %v1246 = vpop.f32.mrb[0].mxu0
        %1247 = vmatprep.mubr.f32.mxu0 0.0
        %1248 = vmatmul.mubr.f32.gmra.mrb[0].mxu0 %v1047
        %v1249 = vpop.f32.mrb[0].mxu0
        %v1250 = vadd.f32 0.0, %v1249
        %v1251 = vpop.f32.mrb[0].mxu0
        %1252 = vmatprep.mubr.f32.mxu0 0.0
        %1253 = vmatmul.mubr.f32.gmra.mrb[0].mxu0 %v1050
        %v1254 = vpop.f32.mrb[0].mxu0
        %v1255 = vadd.f32 0.0, %v1254
        %v1256 = vpop.f32.mrb[0].mxu0
        %1257 = vmatprep.mubr.f32.mxu0 0.0
        %1258 = vmatmul.mubr.f32.gmra.mrb[0].mxu0 %v1053
        %v1259 = vpop.f32.mrb[0].mxu0
        %v1260 = vadd.f32 0.0, %v1259
        %v1261 = vpop.f32.mrb[0].mxu0
        %1262 = vmatprep.mubr.f32.mxu0 0.0
        %1263 = vmatmul.mubr.f32.gmra.mrb[0].mxu0 %v1056
        %v1264 = vpop.f32.mrb[0].mxu0
        %v1265 = vadd.f32 0.0, %v1264
        %v1266 = vpop.f32.mrb[0].mxu0
        %1267 = vmatprep.mubr.f32.mxu0 0.0
        %1268 = vmatmul.mubr.f32.gmra.mrb[0].mxu0 %v1059
        %v1269 = vpop.f32.mrb[0].mxu0
        %v1270 = vadd.f32 0.0, %v1269
        %v1271 = vpop.f32.mrb[0].mxu0
        %1272 = vmatprep.mubr.f32.mxu0 0.0
        %1273 = vmatmul.mubr.f32.gmra.mrb[0].mxu0 %v1062
        %v1274 = vpop.f32.mrb[0].mxu0
        %v1275 = vadd.f32 0.0, %v1274
        %v1276 = vpop.f32.mrb[0].mxu0
        %1277 = vmatprep.mubr.f32.mxu0 0.0
        %1278 = vmatmul.mubr.f32.gmra.mrb[0].mxu0 %v1065
        %v1279 = vpop.f32.mrb[0].mxu0
        %v1280 = vadd.f32 0.0, %v1279
        %v1281 = vpop.f32.mrb[0].mxu0
        %1282 = vmatprep.mubr.f32.mxu0 0.0
        %1283 = vmatmul.mubr.f32.gmra.mrb[0].mxu0 %v1068
        %v1284 = vpop.f32.mrb[0].mxu0
        %v1285 = vadd.f32 0.0, %v1284
        %v1286 = vpop.f32.mrb[0].mxu0
        %1287 = vmatprep.mubr.f32.mxu0 0.0
        %1288 = vmatmul.mubr.f32.gmra.mrb[0].mxu0 %v1071
        %v1289 = vpop.f32.mrb[0].mxu0
        %v1290 = vadd.f32 0.0, %v1289
        %v1291 = vpop.f32.mrb[0].mxu0
        %1292 = vmatprep.mubr.f32.mxu0 0.0
        %1293 = vmatmul.mubr.f32.gmra.mrb[0].mxu0 %v1074
        %v1294 = vpop.f32.mrb[0].mxu0
        %v1295 = vadd.f32 0.0, %v1294
        %v1296 = vpop.f32.mrb[0].mxu0
        %1297 = vmatprep.mubr.f32.mxu0 0.0
        %1298 = vmatmul.mubr.f32.gmra.mrb[0].mxu0 %v1077
        %v1299 = vpop.f32.mrb[0].mxu0
        %v1300 = vadd.f32 0.0, %v1299
        %v1301 = vpop.f32.mrb[0].mxu0
        %1302 = vmatprep.mubr.f32.mxu0 0.0
        %1303 = vmatmul.mubr.f32.gmra.mrb[0].mxu0 %v1080
        %v1304 = vpop.f32.mrb[0].mxu0
        %v1305 = vadd.f32 0.0, %v1304
        %v1306 = vpop.f32.mrb[0].mxu0
        %1307 = vmatprep.mubr.f32.mxu0 0.0
        %1308 = vmatmul.mubr.f32.gmra.mrb[0].mxu0 %v1083
        %v1309 = vpop.f32.mrb[0].mxu0
        %v1310 = vadd.f32 0.0, %v1309
        %v1311 = vpop.f32.mrb[0].mxu0
        %1312 = vdwg.mxu0
        %v1313 = vlaneseq
        %v1314 = vshrl.u32 %v1313, 7
        %v1315 = vsub.s32 0, %v1314
        %v1316 = vrot.slane %v486, %v1315
        %1318 = vbcast.lane.b32.xlu0 %v1316, 256
        %v1319 = vpop.permute.xlu0 %1318
        %s1321 = sor.u32 256, 8
        %1322 = vbcast.lane.b32.xlu0 %v1316, %s1321
        %v1323 = vpop.permute.xlu0 %1322
        %v1324 = vlaneseq
        %v1325 = vshrl.u32 %v1324, 7
        %v1326 = vsub.s32 1, %v1325
        %v1327 = vrot.slane %v486, %v1326
        %1329 = vbcast.lane.b32.xlu0 %v1327, 256
        %v1330 = vpop.permute.xlu0 %1329
        %s1332 = sor.u32 256, 8
        %1333 = vbcast.lane.b32.xlu0 %v1327, %s1332
        %v1334 = vpop.permute.xlu0 %1333
        %v1335 = vlaneseq
        %v1336 = vshrl.u32 %v1335, 7
        %v1337 = vsub.s32 2, %v1336
        %v1338 = vrot.slane %v486, %v1337
        %1340 = vbcast.lane.b32.xlu0 %v1338, 256
        %v1341 = vpop.permute.xlu0 %1340
        %s1343 = sor.u32 256, 8
        %1344 = vbcast.lane.b32.xlu0 %v1338, %s1343
        %v1345 = vpop.permute.xlu0 %1344
        %v1346 = vlaneseq
        %v1347 = vshrl.u32 %v1346, 7
        %v1348 = vsub.s32 3, %v1347
        %v1349 = vrot.slane %v486, %v1348
        %1351 = vbcast.lane.b32.xlu0 %v1349, 256
        %v1352 = vpop.permute.xlu0 %1351
        %s1354 = sor.u32 256, 8
        %1355 = vbcast.lane.b32.xlu0 %v1349, %s1354
        %v1356 = vpop.permute.xlu0 %1355
        %v1357 = vlaneseq
        %v1358 = vshrl.u32 %v1357, 7
        %v1359 = vsub.s32 4, %v1358
        %v1360 = vrot.slane %v486, %v1359
        %1362 = vbcast.lane.b32.xlu0 %v1360, 256
        %v1363 = vpop.permute.xlu0 %1362
        %s1365 = sor.u32 256, 8
        %1366 = vbcast.lane.b32.xlu0 %v1360, %s1365
        %v1367 = vpop.permute.xlu0 %1366
        %v1368 = vlaneseq
        %v1369 = vshrl.u32 %v1368, 7
        %v1370 = vsub.s32 5, %v1369
        %v1371 = vrot.slane %v486, %v1370
        %1373 = vbcast.lane.b32.xlu0 %v1371, 256
        %v1374 = vpop.permute.xlu0 %1373
        %s1376 = sor.u32 256, 8
        %1377 = vbcast.lane.b32.xlu0 %v1371, %s1376
        %v1378 = vpop.permute.xlu0 %1377
        %v1379 = vlaneseq
        %v1380 = vshrl.u32 %v1379, 7
        %v1381 = vsub.s32 6, %v1380
        %v1382 = vrot.slane %v486, %v1381
        %1384 = vbcast.lane.b32.xlu0 %v1382, 256
        %v1385 = vpop.permute.xlu0 %1384
        %s1387 = sor.u32 256, 8
        %1388 = vbcast.lane.b32.xlu0 %v1382, %s1387
        %v1389 = vpop.permute.xlu0 %1388
        %v1390 = vlaneseq
        %v1391 = vshrl.u32 %v1390, 7
        %v1392 = vsub.s32 7, %v1391
        %v1393 = vrot.slane %v486, %v1392
        %1395 = vbcast.lane.b32.xlu0 %v1393, 256
        %v1396 = vpop.permute.xlu0 %1395
        %s1398 = sor.u32 256, 8
        %1399 = vbcast.lane.b32.xlu0 %v1393, %s1398
        %v1400 = vpop.permute.xlu0 %1399
        %v1401 = vlaneseq
        %v1402 = vshrl.u32 %v1401, 7
        %v1403 = vsub.s32 0, %v1402
        %v1404 = vrot.slane %v487, %v1403
        %1406 = vbcast.lane.b32.xlu0 %v1404, 256
        %v1407 = vpop.permute.xlu0 %1406
        %s1409 = sor.u32 256, 8
        %1410 = vbcast.lane.b32.xlu0 %v1404, %s1409
        %v1411 = vpop.permute.xlu0 %1410
        %v1412 = vlaneseq
        %v1413 = vshrl.u32 %v1412, 7
        %v1414 = vsub.s32 1, %v1413
        %v1415 = vrot.slane %v487, %v1414
        %1417 = vbcast.lane.b32.xlu0 %v1415, 256
        %v1418 = vpop.permute.xlu0 %1417
        %s1420 = sor.u32 256, 8
        %1421 = vbcast.lane.b32.xlu0 %v1415, %s1420
        %v1422 = vpop.permute.xlu0 %1421
        %v1423 = vlaneseq
        %v1424 = vshrl.u32 %v1423, 7
        %v1425 = vsub.s32 2, %v1424
        %v1426 = vrot.slane %v487, %v1425
        %1428 = vbcast.lane.b32.xlu0 %v1426, 256
        %v1429 = vpop.permute.xlu0 %1428
        %s1431 = sor.u32 256, 8
        %1432 = vbcast.lane.b32.xlu0 %v1426, %s1431
        %v1433 = vpop.permute.xlu0 %1432
        %v1434 = vlaneseq
        %v1435 = vshrl.u32 %v1434, 7
        %v1436 = vsub.s32 3, %v1435
        %v1437 = vrot.slane %v487, %v1436
        %1439 = vbcast.lane.b32.xlu0 %v1437, 256
        %v1440 = vpop.permute.xlu0 %1439
        %s1442 = sor.u32 256, 8
        %1443 = vbcast.lane.b32.xlu0 %v1437, %s1442
        %v1444 = vpop.permute.xlu0 %1443
        %v1445 = vlaneseq
        %v1446 = vshrl.u32 %v1445, 7
        %v1447 = vsub.s32 4, %v1446
        %v1448 = vrot.slane %v487, %v1447
        %1450 = vbcast.lane.b32.xlu0 %v1448, 256
        %v1451 = vpop.permute.xlu0 %1450
        %s1453 = sor.u32 256, 8
        %1454 = vbcast.lane.b32.xlu0 %v1448, %s1453
        %v1455 = vpop.permute.xlu0 %1454
        %v1456 = vlaneseq
        %v1457 = vshrl.u32 %v1456, 7
        %v1458 = vsub.s32 5, %v1457
        %v1459 = vrot.slane %v487, %v1458
        %1461 = vbcast.lane.b32.xlu0 %v1459, 256
        %v1462 = vpop.permute.xlu0 %1461
        %s1464 = sor.u32 256, 8
        %1465 = vbcast.lane.b32.xlu0 %v1459, %s1464
        %v1466 = vpop.permute.xlu0 %1465
        %v1467 = vlaneseq
        %v1468 = vshrl.u32 %v1467, 7
        %v1469 = vsub.s32 6, %v1468
        %v1470 = vrot.slane %v487, %v1469
        %1472 = vbcast.lane.b32.xlu0 %v1470, 256
        %v1473 = vpop.permute.xlu0 %1472
        %s1475 = sor.u32 256, 8
        %1476 = vbcast.lane.b32.xlu0 %v1470, %s1475
        %v1477 = vpop.permute.xlu0 %1476
        %v1478 = vlaneseq
        %v1479 = vshrl.u32 %v1478, 7
        %v1480 = vsub.s32 7, %v1479
        %v1481 = vrot.slane %v487, %v1480
        %1483 = vbcast.lane.b32.xlu0 %v1481, 256
        %v1484 = vpop.permute.xlu0 %1483
        %s1486 = sor.u32 256, 8
        %1487 = vbcast.lane.b32.xlu0 %v1481, %s1486
        %v1488 = vpop.permute.xlu0 %1487
        %v1489 = vmul.f32 %v1155, %v1319
        %v1490 = vmul.f32 %v1160, %v1323
        %v1491 = vmul.f32 %v1165, %v1330
        %v1492 = vmul.f32 %v1170, %v1334
        %v1493 = vmul.f32 %v1175, %v1341
        %v1494 = vmul.f32 %v1180, %v1345
        %v1495 = vmul.f32 %v1185, %v1352
        %v1496 = vmul.f32 %v1190, %v1356
        %v1497 = vmul.f32 %v1195, %v1363
        %v1498 = vmul.f32 %v1200, %v1367
        %v1499 = vmul.f32 %v1205, %v1374
        %v1500 = vmul.f32 %v1210, %v1378
        %v1501 = vmul.f32 %v1215, %v1385
        %v1502 = vmul.f32 %v1220, %v1389
        %v1503 = vmul.f32 %v1225, %v1396
        %v1504 = vmul.f32 %v1230, %v1400
        %v1505 = vmul.f32 %v1235, %v1407
        %v1506 = vmul.f32 %v1240, %v1411
        %v1507 = vmul.f32 %v1245, %v1418
        %v1508 = vmul.f32 %v1250, %v1422
        %v1509 = vmul.f32 %v1255, %v1429
        %v1510 = vmul.f32 %v1260, %v1433
        %v1511 = vmul.f32 %v1265, %v1440
        %v1512 = vmul.f32 %v1270, %v1444
        %v1513 = vmul.f32 %v1275, %v1451
        %v1514 = vmul.f32 %v1280, %v1455
        %v1515 = vmul.f32 %v1285, %v1462
        %v1516 = vmul.f32 %v1290, %v1466
        %v1517 = vmul.f32 %v1295, %v1473
        %v1518 = vmul.f32 %v1300, %v1477
        %v1519 = vmul.f32 %v1305, %v1484
        %v1520 = vmul.f32 %v1310, %v1488
        %vm1521 = vcmask 130048
        %v1522 = vsel %vm1521, %v486, 0.0
        %1523 = vadd.xlane.f32.xlu0 %v1522
        %v1524 = vpop.xlane.xlu0 %1523
        %v1525 = vsel %vm1521, %v487, 0.0
        %1526 = vadd.xlane.f32.xlu0 %v1525
        %v1527 = vpop.xlane.xlu0 %1526
        %v1528 = vmax.f32 %v1524, 1.0
        %v1529 = vmax.f32 %v1527, 1.0
        %v1530 = vrcp.pop %v1528
        %v1531 = vrcp.pop %v1529
        %vm1532 = vcmask 523264
        %v1533 = vsel %vm1532, %v1489, 0.0
        %v1534 = vsel %vm1532, %v1490, 0.0
        %v1535 = vadd.f32 %v1533, %v1534
        %v1536 = vrot.slane %v1535, 4
        %v1537 = vadd.f32 %v1535, %v1536
        %v1538 = vrot.slane %v1537, 2
        %v1539 = vadd.f32 %v1537, %v1538
        %v1540 = vrot.slane %v1539, 1
        %v1541 = vadd.f32 %v1539, %v1540
        %v1542 = vsel %vm1532, %v1491, 0.0
        %v1543 = vsel %vm1532, %v1492, 0.0
        %v1544 = vadd.f32 %v1542, %v1543
        %v1545 = vrot.slane %v1544, 4
        %v1546 = vadd.f32 %v1544, %v1545
        %v1547 = vrot.slane %v1546, 2
        %v1548 = vadd.f32 %v1546, %v1547
        %v1549 = vrot.slane %v1548, 1
        %v1550 = vadd.f32 %v1548, %v1549
        %v1551 = vsel %vm1532, %v1493, 0.0
        %v1552 = vsel %vm1532, %v1494, 0.0
        %v1553 = vadd.f32 %v1551, %v1552
        %v1554 = vrot.slane %v1553, 4
        %v1555 = vadd.f32 %v1553, %v1554
        %v1556 = vrot.slane %v1555, 2
        %v1557 = vadd.f32 %v1555, %v1556
        %v1558 = vrot.slane %v1557, 1
        %v1559 = vadd.f32 %v1557, %v1558
        %v1560 = vsel %vm1532, %v1495, 0.0
        %v1561 = vsel %vm1532, %v1496, 0.0
        %v1562 = vadd.f32 %v1560, %v1561
        %v1563 = vrot.slane %v1562, 4
        %v1564 = vadd.f32 %v1562, %v1563
        %v1565 = vrot.slane %v1564, 2
        %v1566 = vadd.f32 %v1564, %v1565
        %v1567 = vrot.slane %v1566, 1
        %v1568 = vadd.f32 %v1566, %v1567
        %v1569 = vsel %vm1532, %v1497, 0.0
        %v1570 = vsel %vm1532, %v1498, 0.0
        %v1571 = vadd.f32 %v1569, %v1570
        %v1572 = vrot.slane %v1571, 4
        %v1573 = vadd.f32 %v1571, %v1572
        %v1574 = vrot.slane %v1573, 2
        %v1575 = vadd.f32 %v1573, %v1574
        %v1576 = vrot.slane %v1575, 1
        %v1577 = vadd.f32 %v1575, %v1576
        %v1578 = vsel %vm1532, %v1499, 0.0
        %v1579 = vsel %vm1532, %v1500, 0.0
        %v1580 = vadd.f32 %v1578, %v1579
        %v1581 = vrot.slane %v1580, 4
        %v1582 = vadd.f32 %v1580, %v1581
        %v1583 = vrot.slane %v1582, 2
        %v1584 = vadd.f32 %v1582, %v1583
        %v1585 = vrot.slane %v1584, 1
        %v1586 = vadd.f32 %v1584, %v1585
        %v1587 = vsel %vm1532, %v1501, 0.0
        %v1588 = vsel %vm1532, %v1502, 0.0
        %v1589 = vadd.f32 %v1587, %v1588
        %v1590 = vrot.slane %v1589, 4
        %v1591 = vadd.f32 %v1589, %v1590
        %v1592 = vrot.slane %v1591, 2
        %v1593 = vadd.f32 %v1591, %v1592
        %v1594 = vrot.slane %v1593, 1
        %v1595 = vadd.f32 %v1593, %v1594
        %v1596 = vsel %vm1532, %v1503, 0.0
        %v1597 = vsel %vm1532, %v1504, 0.0
        %v1598 = vadd.f32 %v1596, %v1597
        %v1599 = vrot.slane %v1598, 4
        %v1600 = vadd.f32 %v1598, %v1599
        %v1601 = vrot.slane %v1600, 2
        %v1602 = vadd.f32 %v1600, %v1601
        %v1603 = vrot.slane %v1602, 1
        %v1604 = vadd.f32 %v1602, %v1603
        %v1605 = vsel %vm1532, %v1505, 0.0
        %v1606 = vsel %vm1532, %v1506, 0.0
        %v1607 = vadd.f32 %v1605, %v1606
        %v1608 = vrot.slane %v1607, 4
        %v1609 = vadd.f32 %v1607, %v1608
        %v1610 = vrot.slane %v1609, 2
        %v1611 = vadd.f32 %v1609, %v1610
        %v1612 = vrot.slane %v1611, 1
        %v1613 = vadd.f32 %v1611, %v1612
        %v1614 = vsel %vm1532, %v1507, 0.0
        %v1615 = vsel %vm1532, %v1508, 0.0
        %v1616 = vadd.f32 %v1614, %v1615
        %v1617 = vrot.slane %v1616, 4
        %v1618 = vadd.f32 %v1616, %v1617
        %v1619 = vrot.slane %v1618, 2
        %v1620 = vadd.f32 %v1618, %v1619
        %v1621 = vrot.slane %v1620, 1
        %v1622 = vadd.f32 %v1620, %v1621
        %v1623 = vsel %vm1532, %v1509, 0.0
        %v1624 = vsel %vm1532, %v1510, 0.0
        %v1625 = vadd.f32 %v1623, %v1624
        %v1626 = vrot.slane %v1625, 4
        %v1627 = vadd.f32 %v1625, %v1626
        %v1628 = vrot.slane %v1627, 2
        %v1629 = vadd.f32 %v1627, %v1628
        %v1630 = vrot.slane %v1629, 1
        %v1631 = vadd.f32 %v1629, %v1630
        %v1632 = vsel %vm1532, %v1511, 0.0
        %v1633 = vsel %vm1532, %v1512, 0.0
        %v1634 = vadd.f32 %v1632, %v1633
        %v1635 = vrot.slane %v1634, 4
        %v1636 = vadd.f32 %v1634, %v1635
        %v1637 = vrot.slane %v1636, 2
        %v1638 = vadd.f32 %v1636, %v1637
        %v1639 = vrot.slane %v1638, 1
        %v1640 = vadd.f32 %v1638, %v1639
        %v1641 = vsel %vm1532, %v1513, 0.0
        %v1642 = vsel %vm1532, %v1514, 0.0
        %v1643 = vadd.f32 %v1641, %v1642
        %v1644 = vrot.slane %v1643, 4
        %v1645 = vadd.f32 %v1643, %v1644
        %v1646 = vrot.slane %v1645, 2
        %v1647 = vadd.f32 %v1645, %v1646
        %v1648 = vrot.slane %v1647, 1
        %v1649 = vadd.f32 %v1647, %v1648
        %v1650 = vsel %vm1532, %v1515, 0.0
        %v1651 = vsel %vm1532, %v1516, 0.0
        %v1652 = vadd.f32 %v1650, %v1651
        %v1653 = vrot.slane %v1652, 4
        %v1654 = vadd.f32 %v1652, %v1653
        %v1655 = vrot.slane %v1654, 2
        %v1656 = vadd.f32 %v1654, %v1655
        %v1657 = vrot.slane %v1656, 1
        %v1658 = vadd.f32 %v1656, %v1657
        %v1659 = vsel %vm1532, %v1517, 0.0
        %v1660 = vsel %vm1532, %v1518, 0.0
        %v1661 = vadd.f32 %v1659, %v1660
        %v1662 = vrot.slane %v1661, 4
        %v1663 = vadd.f32 %v1661, %v1662
        %v1664 = vrot.slane %v1663, 2
        %v1665 = vadd.f32 %v1663, %v1664
        %v1666 = vrot.slane %v1665, 1
        %v1667 = vadd.f32 %v1665, %v1666
        %v1668 = vsel %vm1532, %v1519, 0.0
        %v1669 = vsel %vm1532, %v1520, 0.0
        %v1670 = vadd.f32 %v1668, %v1669
        %v1671 = vrot.slane %v1670, 4
        %v1672 = vadd.f32 %v1670, %v1671
        %v1673 = vrot.slane %v1672, 2
        %v1674 = vadd.f32 %v1672, %v1673
        %v1675 = vrot.slane %v1674, 1
        %v1676 = vadd.f32 %v1674, %v1675
        %v1679 = vrot.slane %v1530, 1
        %v1680 = vrot.slane %v1530, 2
        %v1681 = vrot.slane %v1530, 3
        %v1682 = vrot.slane %v1530, 4
        %v1683 = vrot.slane %v1530, 5
        %v1684 = vrot.slane %v1530, 6
        %v1685 = vrot.slane %v1530, 7
        %v1686 = vrot.slane %v1531, 1
        %v1687 = vrot.slane %v1531, 2
        %v1688 = vrot.slane %v1531, 3
        %v1689 = vrot.slane %v1531, 4
        %v1690 = vrot.slane %v1531, 5
        %v1691 = vrot.slane %v1531, 6
        %v1692 = vrot.slane %v1531, 7
        %v1709 = vmul.f32 %v1541, %v1530
        %v1710 = vmul.f32 %v1550, %v1679
        %v1711 = vmul.f32 %v1559, %v1680
        %v1712 = vmul.f32 %v1568, %v1681
        %v1713 = vmul.f32 %v1577, %v1682
        %v1714 = vmul.f32 %v1586, %v1683
        %v1715 = vmul.f32 %v1595, %v1684
        %v1716 = vmul.f32 %v1604, %v1685
        %v1717 = vmul.f32 %v1613, %v1531
        %v1718 = vmul.f32 %v1622, %v1686
        %v1719 = vmul.f32 %v1631, %v1687
        %v1720 = vmul.f32 %v1640, %v1688
        %v1721 = vmul.f32 %v1649, %v1689
        %v1722 = vmul.f32 %v1658, %v1690
        %v1723 = vmul.f32 %v1667, %v1691
        %v1724 = vmul.f32 %v1676, %v1692
        %v1725 = vlaneseq
        %v1726 = vshrl.u32 %v1725, 7
        %v1727 = vsub.s32 0, %v1726
        %v1728 = vrot.slane %v497, %v1727
        %1730 = vbcast.lane.b32.xlu0 %v1728, 256
        %v1731 = vpop.permute.xlu0 %1730
        %s1733 = sor.u32 256, 8
        %1734 = vbcast.lane.b32.xlu0 %v1728, %s1733
        %v1735 = vpop.permute.xlu0 %1734
        %v1736 = vlaneseq
        %v1737 = vshrl.u32 %v1736, 7
        %v1738 = vsub.s32 1, %v1737
        %v1739 = vrot.slane %v497, %v1738
        %1741 = vbcast.lane.b32.xlu0 %v1739, 256
        %v1742 = vpop.permute.xlu0 %1741
        %s1744 = sor.u32 256, 8
        %1745 = vbcast.lane.b32.xlu0 %v1739, %s1744
        %v1746 = vpop.permute.xlu0 %1745
        %v1747 = vlaneseq
        %v1748 = vshrl.u32 %v1747, 7
        %v1749 = vsub.s32 2, %v1748
        %v1750 = vrot.slane %v497, %v1749
        %1752 = vbcast.lane.b32.xlu0 %v1750, 256
        %v1753 = vpop.permute.xlu0 %1752
        %s1755 = sor.u32 256, 8
        %1756 = vbcast.lane.b32.xlu0 %v1750, %s1755
        %v1757 = vpop.permute.xlu0 %1756
        %v1758 = vlaneseq
        %v1759 = vshrl.u32 %v1758, 7
        %v1760 = vsub.s32 3, %v1759
        %v1761 = vrot.slane %v497, %v1760
        %1763 = vbcast.lane.b32.xlu0 %v1761, 256
        %v1764 = vpop.permute.xlu0 %1763
        %s1766 = sor.u32 256, 8
        %1767 = vbcast.lane.b32.xlu0 %v1761, %s1766
        %v1768 = vpop.permute.xlu0 %1767
        %v1769 = vlaneseq
        %v1770 = vshrl.u32 %v1769, 7
        %v1771 = vsub.s32 4, %v1770
        %v1772 = vrot.slane %v497, %v1771
        %1774 = vbcast.lane.b32.xlu0 %v1772, 256
        %v1775 = vpop.permute.xlu0 %1774
        %s1777 = sor.u32 256, 8
        %1778 = vbcast.lane.b32.xlu0 %v1772, %s1777
        %v1779 = vpop.permute.xlu0 %1778
        %v1780 = vlaneseq
        %v1781 = vshrl.u32 %v1780, 7
        %v1782 = vsub.s32 5, %v1781
        %v1783 = vrot.slane %v497, %v1782
        %1785 = vbcast.lane.b32.xlu0 %v1783, 256
        %v1786 = vpop.permute.xlu0 %1785
        %s1788 = sor.u32 256, 8
        %1789 = vbcast.lane.b32.xlu0 %v1783, %s1788
        %v1790 = vpop.permute.xlu0 %1789
        %v1791 = vlaneseq
        %v1792 = vshrl.u32 %v1791, 7
        %v1793 = vsub.s32 6, %v1792
        %v1794 = vrot.slane %v497, %v1793
        %1796 = vbcast.lane.b32.xlu0 %v1794, 256
        %v1797 = vpop.permute.xlu0 %1796
        %s1799 = sor.u32 256, 8
        %1800 = vbcast.lane.b32.xlu0 %v1794, %s1799
        %v1801 = vpop.permute.xlu0 %1800
        %v1802 = vlaneseq
        %v1803 = vshrl.u32 %v1802, 7
        %v1804 = vsub.s32 7, %v1803
        %v1805 = vrot.slane %v497, %v1804
        %1807 = vbcast.lane.b32.xlu0 %v1805, 256
        %v1808 = vpop.permute.xlu0 %1807
        %s1810 = sor.u32 256, 8
        %1811 = vbcast.lane.b32.xlu0 %v1805, %s1810
        %v1812 = vpop.permute.xlu0 %1811
        %v1813 = vlaneseq
        %v1814 = vshrl.u32 %v1813, 7
        %v1815 = vsub.s32 0, %v1814
        %v1816 = vrot.slane %v498, %v1815
        %1818 = vbcast.lane.b32.xlu0 %v1816, 256
        %v1819 = vpop.permute.xlu0 %1818
        %s1821 = sor.u32 256, 8
        %1822 = vbcast.lane.b32.xlu0 %v1816, %s1821
        %v1823 = vpop.permute.xlu0 %1822
        %v1824 = vlaneseq
        %v1825 = vshrl.u32 %v1824, 7
        %v1826 = vsub.s32 1, %v1825
        %v1827 = vrot.slane %v498, %v1826
        %1829 = vbcast.lane.b32.xlu0 %v1827, 256
        %v1830 = vpop.permute.xlu0 %1829
        %s1832 = sor.u32 256, 8
        %1833 = vbcast.lane.b32.xlu0 %v1827, %s1832
        %v1834 = vpop.permute.xlu0 %1833
        %v1835 = vlaneseq
        %v1836 = vshrl.u32 %v1835, 7
        %v1837 = vsub.s32 2, %v1836
        %v1838 = vrot.slane %v498, %v1837
        %1840 = vbcast.lane.b32.xlu0 %v1838, 256
        %v1841 = vpop.permute.xlu0 %1840
        %s1843 = sor.u32 256, 8
        %1844 = vbcast.lane.b32.xlu0 %v1838, %s1843
        %v1845 = vpop.permute.xlu0 %1844
        %v1846 = vlaneseq
        %v1847 = vshrl.u32 %v1846, 7
        %v1848 = vsub.s32 3, %v1847
        %v1849 = vrot.slane %v498, %v1848
        %1851 = vbcast.lane.b32.xlu0 %v1849, 256
        %v1852 = vpop.permute.xlu0 %1851
        %s1854 = sor.u32 256, 8
        %1855 = vbcast.lane.b32.xlu0 %v1849, %s1854
        %v1856 = vpop.permute.xlu0 %1855
        %v1857 = vlaneseq
        %v1858 = vshrl.u32 %v1857, 7
        %v1859 = vsub.s32 4, %v1858
        %v1860 = vrot.slane %v498, %v1859
        %1862 = vbcast.lane.b32.xlu0 %v1860, 256
        %v1863 = vpop.permute.xlu0 %1862
        %s1865 = sor.u32 256, 8
        %1866 = vbcast.lane.b32.xlu0 %v1860, %s1865
        %v1867 = vpop.permute.xlu0 %1866
        %v1868 = vlaneseq
        %v1869 = vshrl.u32 %v1868, 7
        %v1870 = vsub.s32 5, %v1869
        %v1871 = vrot.slane %v498, %v1870
        %1873 = vbcast.lane.b32.xlu0 %v1871, 256
        %v1874 = vpop.permute.xlu0 %1873
        %s1876 = sor.u32 256, 8
        %1877 = vbcast.lane.b32.xlu0 %v1871, %s1876
        %v1878 = vpop.permute.xlu0 %1877
        %v1879 = vlaneseq
        %v1880 = vshrl.u32 %v1879, 7
        %v1881 = vsub.s32 6, %v1880
        %v1882 = vrot.slane %v498, %v1881
        %1884 = vbcast.lane.b32.xlu0 %v1882, 256
        %v1885 = vpop.permute.xlu0 %1884
        %s1887 = sor.u32 256, 8
        %1888 = vbcast.lane.b32.xlu0 %v1882, %s1887
        %v1889 = vpop.permute.xlu0 %1888
        %v1890 = vlaneseq
        %v1891 = vshrl.u32 %v1890, 7
        %v1892 = vsub.s32 7, %v1891
        %v1893 = vrot.slane %v498, %v1892
        %1895 = vbcast.lane.b32.xlu0 %v1893, 256
        %v1896 = vpop.permute.xlu0 %1895
        %s1898 = sor.u32 256, 8
        %1899 = vbcast.lane.b32.xlu0 %v1893, %s1898
        %v1900 = vpop.permute.xlu0 %1899
        %v1901 = vlaneseq
        %v1902 = vshrl.u32 %v1901, 7
        %v1903 = vsub.s32 0, %v1902
        %v1904 = vrot.slane %v1709, %v1903
        %v1905 = vlaneseq
        %v1906 = vshrl.u32 %v1905, 7
        %v1907 = vsub.s32 0, %v1906
        %v1908 = vrot.slane %v1710, %v1907
        %v1909 = vlaneseq
        %v1910 = vshrl.u32 %v1909, 7
        %v1911 = vsub.s32 0, %v1910
        %v1912 = vrot.slane %v1711, %v1911
        %v1913 = vlaneseq
        %v1914 = vshrl.u32 %v1913, 7
        %v1915 = vsub.s32 0, %v1914
        %v1916 = vrot.slane %v1712, %v1915
        %v1917 = vlaneseq
        %v1918 = vshrl.u32 %v1917, 7
        %v1919 = vsub.s32 0, %v1918
        %v1920 = vrot.slane %v1713, %v1919
        %v1921 = vlaneseq
        %v1922 = vshrl.u32 %v1921, 7
        %v1923 = vsub.s32 0, %v1922
        %v1924 = vrot.slane %v1714, %v1923
        %v1925 = vlaneseq
        %v1926 = vshrl.u32 %v1925, 7
        %v1927 = vsub.s32 0, %v1926
        %v1928 = vrot.slane %v1715, %v1927
        %v1929 = vlaneseq
        %v1930 = vshrl.u32 %v1929, 7
        %v1931 = vsub.s32 0, %v1930
        %v1932 = vrot.slane %v1716, %v1931
        %v1933 = vlaneseq
        %v1934 = vshrl.u32 %v1933, 7
        %v1935 = vsub.s32 0, %v1934
        %v1936 = vrot.slane %v1717, %v1935
        %v1937 = vlaneseq
        %v1938 = vshrl.u32 %v1937, 7
        %v1939 = vsub.s32 0, %v1938
        %v1940 = vrot.slane %v1718, %v1939
        %v1941 = vlaneseq
        %v1942 = vshrl.u32 %v1941, 7
        %v1943 = vsub.s32 0, %v1942
        %v1944 = vrot.slane %v1719, %v1943
        %v1945 = vlaneseq
        %v1946 = vshrl.u32 %v1945, 7
        %v1947 = vsub.s32 0, %v1946
        %v1948 = vrot.slane %v1720, %v1947
        %v1949 = vlaneseq
        %v1950 = vshrl.u32 %v1949, 7
        %v1951 = vsub.s32 0, %v1950
        %v1952 = vrot.slane %v1721, %v1951
        %v1953 = vlaneseq
        %v1954 = vshrl.u32 %v1953, 7
        %v1955 = vsub.s32 0, %v1954
        %v1956 = vrot.slane %v1722, %v1955
        %v1957 = vlaneseq
        %v1958 = vshrl.u32 %v1957, 7
        %v1959 = vsub.s32 0, %v1958
        %v1960 = vrot.slane %v1723, %v1959
        %v1961 = vlaneseq
        %v1962 = vshrl.u32 %v1961, 7
        %v1963 = vsub.s32 0, %v1962
        %v1964 = vrot.slane %v1724, %v1963
        %v1965 = vmul.f32 %v1731, %v1904
        %v1966 = vmul.f32 %v1735, %v1904
        %v1967 = vmul.f32 %v1742, %v1908
        %v1968 = vmul.f32 %v1746, %v1908
        %v1969 = vmul.f32 %v1753, %v1912
        %v1970 = vmul.f32 %v1757, %v1912
        %v1971 = vmul.f32 %v1764, %v1916
        %v1972 = vmul.f32 %v1768, %v1916
        %v1973 = vmul.f32 %v1775, %v1920
        %v1974 = vmul.f32 %v1779, %v1920
        %v1975 = vmul.f32 %v1786, %v1924
        %v1976 = vmul.f32 %v1790, %v1924
        %v1977 = vmul.f32 %v1797, %v1928
        %v1978 = vmul.f32 %v1801, %v1928
        %v1979 = vmul.f32 %v1808, %v1932
        %v1980 = vmul.f32 %v1812, %v1932
        %v1981 = vmul.f32 %v1819, %v1936
        %v1982 = vmul.f32 %v1823, %v1936
        %v1983 = vmul.f32 %v1830, %v1940
        %v1984 = vmul.f32 %v1834, %v1940
        %v1985 = vmul.f32 %v1841, %v1944
        %v1986 = vmul.f32 %v1845, %v1944
        %v1987 = vmul.f32 %v1852, %v1948
        %v1988 = vmul.f32 %v1856, %v1948
        %v1989 = vmul.f32 %v1863, %v1952
        %v1990 = vmul.f32 %v1867, %v1952
        %v1991 = vmul.f32 %v1874, %v1956
        %v1992 = vmul.f32 %v1878, %v1956
        %v1993 = vmul.f32 %v1885, %v1960
        %v1994 = vmul.f32 %v1889, %v1960
        %v1995 = vmul.f32 %v1896, %v1964
        %v1996 = vmul.f32 %v1900, %v1964
        %v1997 = vadd.f32 %v1489, %v1965
        %v1998 = vadd.f32 %v1490, %v1966
        %v1999 = vadd.f32 %v1491, %v1967
        %v2000 = vadd.f32 %v1492, %v1968
        %v2001 = vadd.f32 %v1493, %v1969
        %v2002 = vadd.f32 %v1494, %v1970
        %v2003 = vadd.f32 %v1495, %v1971
        %v2004 = vadd.f32 %v1496, %v1972
        %v2005 = vadd.f32 %v1497, %v1973
        %v2006 = vadd.f32 %v1498, %v1974
        %v2007 = vadd.f32 %v1499, %v1975
        %v2008 = vadd.f32 %v1500, %v1976
        %v2009 = vadd.f32 %v1501, %v1977
        %v2010 = vadd.f32 %v1502, %v1978
        %v2011 = vadd.f32 %v1503, %v1979
        %v2012 = vadd.f32 %v1504, %v1980
        %v2013 = vadd.f32 %v1505, %v1981
        %v2014 = vadd.f32 %v1506, %v1982
        %v2015 = vadd.f32 %v1507, %v1983
        %v2016 = vadd.f32 %v1508, %v1984
        %v2017 = vadd.f32 %v1509, %v1985
        %v2018 = vadd.f32 %v1510, %v1986
        %v2019 = vadd.f32 %v1511, %v1987
        %v2020 = vadd.f32 %v1512, %v1988
        %v2021 = vadd.f32 %v1513, %v1989
        %v2022 = vadd.f32 %v1514, %v1990
        %v2023 = vadd.f32 %v1515, %v1991
        %v2024 = vadd.f32 %v1516, %v1992
        %v2025 = vadd.f32 %v1517, %v1993
        %v2026 = vadd.f32 %v1518, %v1994
        %v2027 = vadd.f32 %v1519, %v1995
        %v2028 = vadd.f32 %v1520, %v1996
        %v2029 = vld [vmem:[%s8] sm:$0xff]
        %v2030 = vld [vmem:[%s8 + $0x8] sm:$0xff]
        %v2031 = vld [vmem:[%s8 + $0x10] sm:$0xff]
        %v2032 = vld [vmem:[%s8 + $0x18] sm:$0xff]
        %vm2033 = vcmask 261120
        %v2035 = vsel %vm2033, %v617, 0
        %v2038 = vsel %vm2033, %v618, 0
        %2040 = vmatprep.subr.mxu0 0.0
        %2041 = vmatpush1.msra.mxu0 %v2029
        %2042 = vmatprep.subr.mxu0 0.0
        %2043 = vmatpush1.msra.mxu0 %v2030
        %2044 = vmatprep.subr.mxu0 0.0
        %2045 = vmatpush1.msra.mxu0 %v2031
        %2046 = vmatprep.subr.mxu0 0.0
        %2047 = vmatpush1.msra.mxu0 %v2032
        %2048 = vmatprep.subr.mxu0 0.0
        %2049 = vmatpush1.msra.mxu0 0.0
        %2050 = vmatprep.subr.mxu0 0.0
        %2051 = vmatpush1.msra.mxu0 0.0
        %2052 = vmatprep.subr.mxu0 0.0
        %2053 = vmatpush1.msra.mxu0 0.0
        %2054 = vmatprep.subr.mxu0 0.0
        %2055 = vmatpush1.msra.mxu0 0.0
        %2056 = vmatprep.subr.mxu0 0.0
        %2057 = vmatpush1.msra.mxu0 0.0
        %2058 = vmatprep.subr.mxu0 0.0
        %2059 = vmatpush1.msra.mxu0 0.0
        %2060 = vmatprep.subr.mxu0 0.0
        %2061 = vmatpush1.msra.mxu0 0.0
        %2062 = vmatprep.subr.mxu0 0.0
        %2063 = vmatpush1.msra.mxu0 0.0
        %2064 = vmatprep.subr.mxu0 0.0
        %2065 = vmatpush1.msra.mxu0 0.0
        %2066 = vmatprep.subr.mxu0 0.0
        %2067 = vmatpush1.msra.mxu0 0.0
        %2068 = vmatprep.subr.mxu0 0.0
        %2069 = vmatpush1.msra.mxu0 0.0
        %2070 = vmatprep.subr.mxu0 0.0
        %2071 = vmatpush1.msra.mxu0 0.0
        %2072 = vmatprep.subr.mxu0 0.0
        %2073 = vmatpush1.msra.mxu0 0.0
        %2074 = vmatprep.subr.mxu0 0.0
        %2075 = vmatpush1.msra.mxu0 0.0
        %2076 = vmatprep.subr.mxu0 0.0
        %2077 = vmatpush1.msra.mxu0 0.0
        %2078 = vmatprep.subr.mxu0 0.0
        %2079 = vmatpush1.msra.mxu0 0.0
        %2080 = vmatprep.subr.mxu0 0.0
        %2081 = vmatpush1.msra.mxu0 0.0
        %2082 = vmatprep.subr.mxu0 0.0
        %2083 = vmatpush1.msra.mxu0 0.0
        %2084 = vmatprep.subr.mxu0 0.0
        %2085 = vmatpush1.msra.mxu0 0.0
        %2086 = vmatprep.subr.mxu0 0.0
        %2087 = vmatpush1.msra.mxu0 0.0
        %2088 = vmatprep.subr.mxu0 0.0
        %2089 = vmatpush1.msra.mxu0 0.0
        %2090 = vmatprep.subr.mxu0 0.0
        %2091 = vmatpush1.msra.mxu0 0.0
        %2092 = vmatprep.subr.mxu0 0.0
        %2093 = vmatpush1.msra.mxu0 0.0
        %2094 = vmatprep.subr.mxu0 0.0
        %2095 = vmatpush1.msra.mxu0 0.0
        %2096 = vmatprep.subr.mxu0 0.0
        %2097 = vmatpush1.msra.mxu0 0.0
        %2098 = vmatprep.subr.mxu0 0.0
        %2099 = vmatpush1.msra.mxu0 0.0
        %2100 = vmatprep.subr.mxu0 0.0
        %2101 = vmatpush1.msra.mxu0 0.0
        %2102 = vmatprep.subr.mxu0 0.0
        %2103 = vmatpush1.msra.mxu0 0.0
        %2104 = vmatprep.mubr.f32.mxu0 0.0
        %2105 = vmatmul.mubr.f32.gmra.mrb[0].mxu0 %v2035
        %v2106 = vpop.f32.mrb[0].mxu0
        %v2107 = vadd.f32 %v508, %v2106
        %v2108 = vpop.f32.mrb[0].mxu0
        %2109 = vmatprep.mubr.f32.mxu0 0.0
        %2110 = vmatmul.mubr.f32.gmra.mrb[0].mxu0 %v2038
        %v2111 = vpop.f32.mrb[0].mxu0
        %v2112 = vadd.f32 %v508, %v2111
        %v2113 = vpop.f32.mrb[0].mxu0
        %2114 = vdwg.mxu0
        %v2117 = vcombine.high %v2107, %v2107
        %v2119 = vunpack.c.l.s4 1966171168
        %v2120 = vunpack.c.0.s8 %v2119
        %v2121 = vlaneseq
        %v2122 = vshrl.u32 %v2121, 7
        %v2123 = vsub.s32 %v2120, %v2122
        %v2124 = vrot.slane %v2107, %v2123
        %v2126 = vunpack.c.l.s4 1966171168
        %v2127 = vunpack.c.0.s8 %v2126
        %v2128 = vlaneseq
        %v2129 = vshrl.u32 %v2128, 7
        %v2130 = vsub.s32 %v2127, %v2129
        %v2131 = vrot.slane %v2117, %v2130
        %v2132 = vcombine.high %v2124, %v2124
        %v2133 = vcombine.high %v2131, %v2131
        %v2135 = vunpack.c.l.s4 1966171168
        %v2136 = vunpack.c.0.s8 %v2135
        %v2137 = vlaneseq
        %v2138 = vshrl.u32 %v2137, 7
        %v2139 = vsub.s32 %v2136, %v2138
        %v2140 = vrot.slane %v2124, %v2139
        %v2142 = vunpack.c.l.s4 1966171168
        %v2143 = vunpack.c.0.s8 %v2142
        %v2144 = vlaneseq
        %v2145 = vshrl.u32 %v2144, 7
        %v2146 = vsub.s32 %v2143, %v2145
        %v2147 = vrot.slane %v2131, %v2146
        %v2149 = vunpack.c.l.s4 1966171168
        %v2150 = vunpack.c.0.s8 %v2149
        %v2151 = vlaneseq
        %v2152 = vshrl.u32 %v2151, 7
        %v2153 = vsub.s32 %v2150, %v2152
        %v2154 = vrot.slane %v2132, %v2153
        %v2156 = vunpack.c.l.s4 1966171168
        %v2157 = vunpack.c.0.s8 %v2156
        %v2158 = vlaneseq
        %v2159 = vshrl.u32 %v2158, 7
        %v2160 = vsub.s32 %v2157, %v2159
        %v2161 = vrot.slane %v2133, %v2160
        %v2162 = vcombine.high %v2140, %v2140
        %v2163 = vcombine.high %v2147, %v2147
        %v2164 = vcombine.high %v2154, %v2154
        %v2165 = vcombine.high %v2161, %v2161
        %v2166 = vcombine.high %v2112, %v2112
        %v2168 = vunpack.c.l.s4 1966171168
        %v2169 = vunpack.c.0.s8 %v2168
        %v2170 = vlaneseq
        %v2171 = vshrl.u32 %v2170, 7
        %v2172 = vsub.s32 %v2169, %v2171
        %v2173 = vrot.slane %v2112, %v2172
        %v2175 = vunpack.c.l.s4 1966171168
        %v2176 = vunpack.c.0.s8 %v2175
        %v2177 = vlaneseq
        %v2178 = vshrl.u32 %v2177, 7
        %v2179 = vsub.s32 %v2176, %v2178
        %v2180 = vrot.slane %v2166, %v2179
        %v2181 = vcombine.high %v2173, %v2173
        %v2182 = vcombine.high %v2180, %v2180
        %v2184 = vunpack.c.l.s4 1966171168
        %v2185 = vunpack.c.0.s8 %v2184
        %v2186 = vlaneseq
        %v2187 = vshrl.u32 %v2186, 7
        %v2188 = vsub.s32 %v2185, %v2187
        %v2189 = vrot.slane %v2173, %v2188
        %v2191 = vunpack.c.l.s4 1966171168
        %v2192 = vunpack.c.0.s8 %v2191
        %v2193 = vlaneseq
        %v2194 = vshrl.u32 %v2193, 7
        %v2195 = vsub.s32 %v2192, %v2194
        %v2196 = vrot.slane %v2180, %v2195
        %v2198 = vunpack.c.l.s4 1966171168
        %v2199 = vunpack.c.0.s8 %v2198
        %v2200 = vlaneseq
        %v2201 = vshrl.u32 %v2200, 7
        %v2202 = vsub.s32 %v2199, %v2201
        %v2203 = vrot.slane %v2181, %v2202
        %v2205 = vunpack.c.l.s4 1966171168
        %v2206 = vunpack.c.0.s8 %v2205
        %v2207 = vlaneseq
        %v2208 = vshrl.u32 %v2207, 7
        %v2209 = vsub.s32 %v2206, %v2208
        %v2210 = vrot.slane %v2182, %v2209
        %v2211 = vcombine.high %v2189, %v2189
        %v2212 = vcombine.high %v2196, %v2196
        %v2213 = vcombine.high %v2203, %v2203
        %v2214 = vcombine.high %v2210, %v2210
        %v2215 = vlaneseq
        %v2216 = vshrl.u32 %v2215, 7
        %v2217 = vsub.s32 0, %v2216
        %v2218 = vrot.slane %v2140, %v2217
        %v2219 = vlaneseq
        %v2220 = vshrl.u32 %v2219, 7
        %v2221 = vsub.s32 0, %v2220
        %v2222 = vrot.slane %v2154, %v2221
        %v2223 = vlaneseq
        %v2224 = vshrl.u32 %v2223, 7
        %v2225 = vsub.s32 0, %v2224
        %v2226 = vrot.slane %v2162, %v2225
        %v2227 = vlaneseq
        %v2228 = vshrl.u32 %v2227, 7
        %v2229 = vsub.s32 0, %v2228
        %v2230 = vrot.slane %v2164, %v2229
        %v2231 = vlaneseq
        %v2232 = vshrl.u32 %v2231, 7
        %v2233 = vsub.s32 0, %v2232
        %v2234 = vrot.slane %v2147, %v2233
        %v2235 = vlaneseq
        %v2236 = vshrl.u32 %v2235, 7
        %v2237 = vsub.s32 0, %v2236
        %v2238 = vrot.slane %v2161, %v2237
        %v2239 = vlaneseq
        %v2240 = vshrl.u32 %v2239, 7
        %v2241 = vsub.s32 0, %v2240
        %v2242 = vrot.slane %v2163, %v2241
        %v2243 = vlaneseq
        %v2244 = vshrl.u32 %v2243, 7
        %v2245 = vsub.s32 0, %v2244
        %v2246 = vrot.slane %v2165, %v2245
        %v2247 = vlaneseq
        %v2248 = vshrl.u32 %v2247, 7
        %v2249 = vsub.s32 0, %v2248
        %v2250 = vrot.slane %v2189, %v2249
        %v2251 = vlaneseq
        %v2252 = vshrl.u32 %v2251, 7
        %v2253 = vsub.s32 0, %v2252
        %v2254 = vrot.slane %v2203, %v2253
        %v2255 = vlaneseq
        %v2256 = vshrl.u32 %v2255, 7
        %v2257 = vsub.s32 0, %v2256
        %v2258 = vrot.slane %v2211, %v2257
        %v2259 = vlaneseq
        %v2260 = vshrl.u32 %v2259, 7
        %v2261 = vsub.s32 0, %v2260
        %v2262 = vrot.slane %v2213, %v2261
        %v2263 = vlaneseq
        %v2264 = vshrl.u32 %v2263, 7
        %v2265 = vsub.s32 0, %v2264
        %v2266 = vrot.slane %v2196, %v2265
        %v2267 = vlaneseq
        %v2268 = vshrl.u32 %v2267, 7
        %v2269 = vsub.s32 0, %v2268
        %v2270 = vrot.slane %v2210, %v2269
        %v2271 = vlaneseq
        %v2272 = vshrl.u32 %v2271, 7
        %v2273 = vsub.s32 0, %v2272
        %v2274 = vrot.slane %v2212, %v2273
        %v2275 = vlaneseq
        %v2276 = vshrl.u32 %v2275, 7
        %v2277 = vsub.s32 0, %v2276
        %v2278 = vrot.slane %v2214, %v2277
        %2295 = vrot.lane.b32.xlu0 %v2107, 64
        %v2296 = vpop.permute.xlu0 %2295
        %2297 = vrot.lane.b32.xlu0 %v2112, 64
        %v2298 = vpop.permute.xlu0 %2297
        %v2301 = vadd.f32 %v2218, %v2296
        %v2302 = vadd.f32 %v2218, %v2298
        %v2303 = vadd.f32 %v2222, %v2296
        %v2304 = vadd.f32 %v2222, %v2298
        %v2305 = vadd.f32 %v2226, %v2296
        %v2306 = vadd.f32 %v2226, %v2298
        %v2307 = vadd.f32 %v2230, %v2296
        %v2308 = vadd.f32 %v2230, %v2298
        %v2309 = vadd.f32 %v2234, %v2296
        %v2310 = vadd.f32 %v2234, %v2298
        %v2311 = vadd.f32 %v2238, %v2296
        %v2312 = vadd.f32 %v2238, %v2298
        %v2313 = vadd.f32 %v2242, %v2296
        %v2314 = vadd.f32 %v2242, %v2298
        %v2315 = vadd.f32 %v2246, %v2296
        %v2316 = vadd.f32 %v2246, %v2298
        %v2317 = vadd.f32 %v2250, %v2296
        %v2318 = vadd.f32 %v2250, %v2298
        %v2319 = vadd.f32 %v2254, %v2296
        %v2320 = vadd.f32 %v2254, %v2298
        %v2321 = vadd.f32 %v2258, %v2296
        %v2322 = vadd.f32 %v2258, %v2298
        %v2323 = vadd.f32 %v2262, %v2296
        %v2324 = vadd.f32 %v2262, %v2298
        %v2325 = vadd.f32 %v2266, %v2296
        %v2326 = vadd.f32 %v2266, %v2298
        %v2327 = vadd.f32 %v2270, %v2296
        %v2328 = vadd.f32 %v2270, %v2298
        %v2329 = vadd.f32 %v2274, %v2296
        %v2330 = vadd.f32 %v2274, %v2298
        %v2331 = vadd.f32 %v2278, %v2296
        %v2332 = vadd.f32 %v2278, %v2298
        %2365 = vrot.lane.b32.xlu0 %v1997, 64
        %v2366 = vpop.permute.xlu0 %2365
        %2367 = vrot.lane.b32.xlu0 %v1998, 64
        %v2368 = vpop.permute.xlu0 %2367
        %2369 = vrot.lane.b32.xlu0 %v1999, 64
        %v2370 = vpop.permute.xlu0 %2369
        %2371 = vrot.lane.b32.xlu0 %v2000, 64
        %v2372 = vpop.permute.xlu0 %2371
        %2373 = vrot.lane.b32.xlu0 %v2001, 64
        %v2374 = vpop.permute.xlu0 %2373
        %2375 = vrot.lane.b32.xlu0 %v2002, 64
        %v2376 = vpop.permute.xlu0 %2375
        %2377 = vrot.lane.b32.xlu0 %v2003, 64
        %v2378 = vpop.permute.xlu0 %2377
        %2379 = vrot.lane.b32.xlu0 %v2004, 64
        %v2380 = vpop.permute.xlu0 %2379
        %2381 = vrot.lane.b32.xlu0 %v2005, 64
        %v2382 = vpop.permute.xlu0 %2381
        %2383 = vrot.lane.b32.xlu0 %v2006, 64
        %v2384 = vpop.permute.xlu0 %2383
        %2385 = vrot.lane.b32.xlu0 %v2007, 64
        %v2386 = vpop.permute.xlu0 %2385
        %2387 = vrot.lane.b32.xlu0 %v2008, 64
        %v2388 = vpop.permute.xlu0 %2387
        %2389 = vrot.lane.b32.xlu0 %v2009, 64
        %v2390 = vpop.permute.xlu0 %2389
        %2391 = vrot.lane.b32.xlu0 %v2010, 64
        %v2392 = vpop.permute.xlu0 %2391
        %2393 = vrot.lane.b32.xlu0 %v2011, 64
        %v2394 = vpop.permute.xlu0 %2393
        %2395 = vrot.lane.b32.xlu0 %v2012, 64
        %v2396 = vpop.permute.xlu0 %2395
        %2397 = vrot.lane.b32.xlu0 %v2013, 64
        %v2398 = vpop.permute.xlu0 %2397
        %2399 = vrot.lane.b32.xlu0 %v2014, 64
        %v2400 = vpop.permute.xlu0 %2399
        %2401 = vrot.lane.b32.xlu0 %v2015, 64
        %v2402 = vpop.permute.xlu0 %2401
        %2403 = vrot.lane.b32.xlu0 %v2016, 64
        %v2404 = vpop.permute.xlu0 %2403
        %2405 = vrot.lane.b32.xlu0 %v2017, 64
        %v2406 = vpop.permute.xlu0 %2405
        %2407 = vrot.lane.b32.xlu0 %v2018, 64
        %v2408 = vpop.permute.xlu0 %2407
        %2409 = vrot.lane.b32.xlu0 %v2019, 64
        %v2410 = vpop.permute.xlu0 %2409
        %2411 = vrot.lane.b32.xlu0 %v2020, 64
        %v2412 = vpop.permute.xlu0 %2411
        %2413 = vrot.lane.b32.xlu0 %v2021, 64
        %v2414 = vpop.permute.xlu0 %2413
        %2415 = vrot.lane.b32.xlu0 %v2022, 64
        %v2416 = vpop.permute.xlu0 %2415
        %2417 = vrot.lane.b32.xlu0 %v2023, 64
        %v2418 = vpop.permute.xlu0 %2417
        %2419 = vrot.lane.b32.xlu0 %v2024, 64
        %v2420 = vpop.permute.xlu0 %2419
        %2421 = vrot.lane.b32.xlu0 %v2025, 64
        %v2422 = vpop.permute.xlu0 %2421
        %2423 = vrot.lane.b32.xlu0 %v2026, 64
        %v2424 = vpop.permute.xlu0 %2423
        %2425 = vrot.lane.b32.xlu0 %v2027, 64
        %v2426 = vpop.permute.xlu0 %2425
        %2427 = vrot.lane.b32.xlu0 %v2028, 64
        %v2428 = vpop.permute.xlu0 %2427
        %v2461 = vadd.f32 %v2301, %v2366
        %v2462 = vadd.f32 %v2302, %v2368
        %v2463 = vadd.f32 %v2303, %v2370
        %v2464 = vadd.f32 %v2304, %v2372
        %v2465 = vadd.f32 %v2305, %v2374
        %v2466 = vadd.f32 %v2306, %v2376
        %v2467 = vadd.f32 %v2307, %v2378
        %v2468 = vadd.f32 %v2308, %v2380
        %v2469 = vadd.f32 %v2309, %v2382
        %v2470 = vadd.f32 %v2310, %v2384
        %v2471 = vadd.f32 %v2311, %v2386
        %v2472 = vadd.f32 %v2312, %v2388
        %v2473 = vadd.f32 %v2313, %v2390
        %v2474 = vadd.f32 %v2314, %v2392
        %v2475 = vadd.f32 %v2315, %v2394
        %v2476 = vadd.f32 %v2316, %v2396
        %v2477 = vadd.f32 %v2317, %v2398
        %v2478 = vadd.f32 %v2318, %v2400
        %v2479 = vadd.f32 %v2319, %v2402
        %v2480 = vadd.f32 %v2320, %v2404
        %v2481 = vadd.f32 %v2321, %v2406
        %v2482 = vadd.f32 %v2322, %v2408
        %v2483 = vadd.f32 %v2323, %v2410
        %v2484 = vadd.f32 %v2324, %v2412
        %v2485 = vadd.f32 %v2325, %v2414
        %v2486 = vadd.f32 %v2326, %v2416
        %v2487 = vadd.f32 %v2327, %v2418
        %v2488 = vadd.f32 %v2328, %v2420
        %v2489 = vadd.f32 %v2329, %v2422
        %v2490 = vadd.f32 %v2330, %v2424
        %v2491 = vadd.f32 %v2331, %v2426
        %v2492 = vadd.f32 %v2332, %v2428
        %vm2493 = vcmp.gt.f32.partialorder %v2461, 0.0
        %vm2494 = vcmp.gt.f32.partialorder %v2462, 0.0
        %vm2495 = vcmp.gt.f32.partialorder %v2463, 0.0
        %vm2496 = vcmp.gt.f32.partialorder %v2464, 0.0
        %vm2497 = vcmp.gt.f32.partialorder %v2465, 0.0
        %vm2498 = vcmp.gt.f32.partialorder %v2466, 0.0
        %vm2499 = vcmp.gt.f32.partialorder %v2467, 0.0
        %vm2500 = vcmp.gt.f32.partialorder %v2468, 0.0
        %vm2501 = vcmp.gt.f32.partialorder %v2469, 0.0
        %vm2502 = vcmp.gt.f32.partialorder %v2470, 0.0
        %vm2503 = vcmp.gt.f32.partialorder %v2471, 0.0
        %vm2504 = vcmp.gt.f32.partialorder %v2472, 0.0
        %vm2505 = vcmp.gt.f32.partialorder %v2473, 0.0
        %vm2506 = vcmp.gt.f32.partialorder %v2474, 0.0
        %vm2507 = vcmp.gt.f32.partialorder %v2475, 0.0
        %vm2508 = vcmp.gt.f32.partialorder %v2476, 0.0
        %vm2509 = vcmp.gt.f32.partialorder %v2477, 0.0
        %vm2510 = vcmp.gt.f32.partialorder %v2478, 0.0
        %vm2511 = vcmp.gt.f32.partialorder %v2479, 0.0
        %vm2512 = vcmp.gt.f32.partialorder %v2480, 0.0
        %vm2513 = vcmp.gt.f32.partialorder %v2481, 0.0
        %vm2514 = vcmp.gt.f32.partialorder %v2482, 0.0
        %vm2515 = vcmp.gt.f32.partialorder %v2483, 0.0
        %vm2516 = vcmp.gt.f32.partialorder %v2484, 0.0
        %vm2517 = vcmp.gt.f32.partialorder %v2485, 0.0
        %vm2518 = vcmp.gt.f32.partialorder %v2486, 0.0
        %vm2519 = vcmp.gt.f32.partialorder %v2487, 0.0
        %vm2520 = vcmp.gt.f32.partialorder %v2488, 0.0
        %vm2521 = vcmp.gt.f32.partialorder %v2489, 0.0
        %vm2522 = vcmp.gt.f32.partialorder %v2490, 0.0
        %vm2523 = vcmp.gt.f32.partialorder %v2491, 0.0
        %vm2524 = vcmp.gt.f32.partialorder %v2492, 0.0
        %v2525 = vmul.f32 %v2461, 0.2
        %v2526 = vmul.f32 %v2462, 0.2
        %v2527 = vmul.f32 %v2463, 0.2
        %v2528 = vmul.f32 %v2464, 0.2
        %v2529 = vmul.f32 %v2465, 0.2
        %v2530 = vmul.f32 %v2466, 0.2
        %v2531 = vmul.f32 %v2467, 0.2
        %v2532 = vmul.f32 %v2468, 0.2
        %v2533 = vmul.f32 %v2469, 0.2
        %v2534 = vmul.f32 %v2470, 0.2
        %v2535 = vmul.f32 %v2471, 0.2
        %v2536 = vmul.f32 %v2472, 0.2
        %v2537 = vmul.f32 %v2473, 0.2
        %v2538 = vmul.f32 %v2474, 0.2
        %v2539 = vmul.f32 %v2475, 0.2
        %v2540 = vmul.f32 %v2476, 0.2
        %v2541 = vmul.f32 %v2477, 0.2
        %v2542 = vmul.f32 %v2478, 0.2
        %v2543 = vmul.f32 %v2479, 0.2
        %v2544 = vmul.f32 %v2480, 0.2
        %v2545 = vmul.f32 %v2481, 0.2
        %v2546 = vmul.f32 %v2482, 0.2
        %v2547 = vmul.f32 %v2483, 0.2
        %v2548 = vmul.f32 %v2484, 0.2
        %v2549 = vmul.f32 %v2485, 0.2
        %v2550 = vmul.f32 %v2486, 0.2
        %v2551 = vmul.f32 %v2487, 0.2
        %v2552 = vmul.f32 %v2488, 0.2
        %v2553 = vmul.f32 %v2489, 0.2
        %v2554 = vmul.f32 %v2490, 0.2
        %v2555 = vmul.f32 %v2491, 0.2
        %v2556 = vmul.f32 %v2492, 0.2
        %v2557 = vsel %vm2493, %v2461, %v2525
        %v2558 = vsel %vm2494, %v2462, %v2526
        %v2559 = vsel %vm2495, %v2463, %v2527
        %v2560 = vsel %vm2496, %v2464, %v2528
        %v2561 = vsel %vm2497, %v2465, %v2529
        %v2562 = vsel %vm2498, %v2466, %v2530
        %v2563 = vsel %vm2499, %v2467, %v2531
        %v2564 = vsel %vm2500, %v2468, %v2532
        %v2565 = vsel %vm2501, %v2469, %v2533
        %v2566 = vsel %vm2502, %v2470, %v2534
        %v2567 = vsel %vm2503, %v2471, %v2535
        %v2568 = vsel %vm2504, %v2472, %v2536
        %v2569 = vsel %vm2505, %v2473, %v2537
        %v2570 = vsel %vm2506, %v2474, %v2538
        %v2571 = vsel %vm2507, %v2475, %v2539
        %v2572 = vsel %vm2508, %v2476, %v2540
        %v2573 = vsel %vm2509, %v2477, %v2541
        %v2574 = vsel %vm2510, %v2478, %v2542
        %v2575 = vsel %vm2511, %v2479, %v2543
        %v2576 = vsel %vm2512, %v2480, %v2544
        %v2577 = vsel %vm2513, %v2481, %v2545
        %v2578 = vsel %vm2514, %v2482, %v2546
        %v2579 = vsel %vm2515, %v2483, %v2547
        %v2580 = vsel %vm2516, %v2484, %v2548
        %v2581 = vsel %vm2517, %v2485, %v2549
        %v2582 = vsel %vm2518, %v2486, %v2550
        %v2583 = vsel %vm2519, %v2487, %v2551
        %v2584 = vsel %vm2520, %v2488, %v2552
        %v2585 = vsel %vm2521, %v2489, %v2553
        %v2586 = vsel %vm2522, %v2490, %v2554
        %v2587 = vsel %vm2523, %v2491, %v2555
        %v2588 = vsel %vm2524, %v2492, %v2556
        %2589 = vrot.lane.b32.xlu0 %v522, 64
        %v2590 = vpop.permute.xlu0 %2589
        %v2592 = vmul.f32 %v2557, %v2590
        %v2593 = vmul.f32 %v2558, %v2590
        %v2594 = vmul.f32 %v2559, %v2590
        %v2595 = vmul.f32 %v2560, %v2590
        %v2596 = vmul.f32 %v2561, %v2590
        %v2597 = vmul.f32 %v2562, %v2590
        %v2598 = vmul.f32 %v2563, %v2590
        %v2599 = vmul.f32 %v2564, %v2590
        %v2600 = vmul.f32 %v2565, %v2590
        %v2601 = vmul.f32 %v2566, %v2590
        %v2602 = vmul.f32 %v2567, %v2590
        %v2603 = vmul.f32 %v2568, %v2590
        %v2604 = vmul.f32 %v2569, %v2590
        %v2605 = vmul.f32 %v2570, %v2590
        %v2606 = vmul.f32 %v2571, %v2590
        %v2607 = vmul.f32 %v2572, %v2590
        %v2608 = vmul.f32 %v2573, %v2590
        %v2609 = vmul.f32 %v2574, %v2590
        %v2610 = vmul.f32 %v2575, %v2590
        %v2611 = vmul.f32 %v2576, %v2590
        %v2612 = vmul.f32 %v2577, %v2590
        %v2613 = vmul.f32 %v2578, %v2590
        %v2614 = vmul.f32 %v2579, %v2590
        %v2615 = vmul.f32 %v2580, %v2590
        %v2616 = vmul.f32 %v2581, %v2590
        %v2617 = vmul.f32 %v2582, %v2590
        %v2618 = vmul.f32 %v2583, %v2590
        %v2619 = vmul.f32 %v2584, %v2590
        %v2620 = vmul.f32 %v2585, %v2590
        %v2621 = vmul.f32 %v2586, %v2590
        %v2622 = vmul.f32 %v2587, %v2590
        %v2623 = vmul.f32 %v2588, %v2590
        %2656 = vrot.lane.b32.xlu0 %v2592, 64
        %v2657 = vpop.permute.xlu0 %2656
        %2658 = vrot.lane.b32.xlu0 %v2593, 64
        %v2659 = vpop.permute.xlu0 %2658
        %2660 = vrot.lane.b32.xlu0 %v2594, 64
        %v2661 = vpop.permute.xlu0 %2660
        %2662 = vrot.lane.b32.xlu0 %v2595, 64
        %v2663 = vpop.permute.xlu0 %2662
        %2664 = vrot.lane.b32.xlu0 %v2596, 64
        %v2665 = vpop.permute.xlu0 %2664
        %2666 = vrot.lane.b32.xlu0 %v2597, 64
        %v2667 = vpop.permute.xlu0 %2666
        %2668 = vrot.lane.b32.xlu0 %v2598, 64
        %v2669 = vpop.permute.xlu0 %2668
        %2670 = vrot.lane.b32.xlu0 %v2599, 64
        %v2671 = vpop.permute.xlu0 %2670
        %2672 = vrot.lane.b32.xlu0 %v2600, 64
        %v2673 = vpop.permute.xlu0 %2672
        %2674 = vrot.lane.b32.xlu0 %v2601, 64
        %v2675 = vpop.permute.xlu0 %2674
        %2676 = vrot.lane.b32.xlu0 %v2602, 64
        %v2677 = vpop.permute.xlu0 %2676
        %2678 = vrot.lane.b32.xlu0 %v2603, 64
        %v2679 = vpop.permute.xlu0 %2678
        %2680 = vrot.lane.b32.xlu0 %v2604, 64
        %v2681 = vpop.permute.xlu0 %2680
        %2682 = vrot.lane.b32.xlu0 %v2605, 64
        %v2683 = vpop.permute.xlu0 %2682
        %2684 = vrot.lane.b32.xlu0 %v2606, 64
        %v2685 = vpop.permute.xlu0 %2684
        %2686 = vrot.lane.b32.xlu0 %v2607, 64
        %v2687 = vpop.permute.xlu0 %2686
        %2688 = vrot.lane.b32.xlu0 %v2608, 64
        %v2689 = vpop.permute.xlu0 %2688
        %2690 = vrot.lane.b32.xlu0 %v2609, 64
        %v2691 = vpop.permute.xlu0 %2690
        %2692 = vrot.lane.b32.xlu0 %v2610, 64
        %v2693 = vpop.permute.xlu0 %2692
        %2694 = vrot.lane.b32.xlu0 %v2611, 64
        %v2695 = vpop.permute.xlu0 %2694
        %2696 = vrot.lane.b32.xlu0 %v2612, 64
        %v2697 = vpop.permute.xlu0 %2696
        %2698 = vrot.lane.b32.xlu0 %v2613, 64
        %v2699 = vpop.permute.xlu0 %2698
        %2700 = vrot.lane.b32.xlu0 %v2614, 64
        %v2701 = vpop.permute.xlu0 %2700
        %2702 = vrot.lane.b32.xlu0 %v2615, 64
        %v2703 = vpop.permute.xlu0 %2702
        %2704 = vrot.lane.b32.xlu0 %v2616, 64
        %v2705 = vpop.permute.xlu0 %2704
        %2706 = vrot.lane.b32.xlu0 %v2617, 64
        %v2707 = vpop.permute.xlu0 %2706
        %2708 = vrot.lane.b32.xlu0 %v2618, 64
        %v2709 = vpop.permute.xlu0 %2708
        %2710 = vrot.lane.b32.xlu0 %v2619, 64
        %v2711 = vpop.permute.xlu0 %2710
        %2712 = vrot.lane.b32.xlu0 %v2620, 64
        %v2713 = vpop.permute.xlu0 %2712
        %2714 = vrot.lane.b32.xlu0 %v2621, 64
        %v2715 = vpop.permute.xlu0 %2714
        %2716 = vrot.lane.b32.xlu0 %v2622, 64
        %v2717 = vpop.permute.xlu0 %2716
        %2718 = vrot.lane.b32.xlu0 %v2623, 64
        %v2719 = vpop.permute.xlu0 %2718
        %v2752 = vsel %vm2033, %v2657, 0.0
        %2753 = vadd.xlane.f32.xlu0 %v2752
        %v2754 = vpop.xlane.xlu0 %2753
        %v2755 = vsel %vm2033, %v2659, 0.0
        %2756 = vadd.xlane.f32.xlu0 %v2755
        %v2757 = vpop.xlane.xlu0 %2756
        %v2758 = vsel %vm2033, %v2661, 0.0
        %2759 = vadd.xlane.f32.xlu0 %v2758
        %v2760 = vpop.xlane.xlu0 %2759
        %v2761 = vsel %vm2033, %v2663, 0.0
        %2762 = vadd.xlane.f32.xlu0 %v2761
        %v2763 = vpop.xlane.xlu0 %2762
        %v2764 = vsel %vm2033, %v2665, 0.0
        %2765 = vadd.xlane.f32.xlu0 %v2764
        %v2766 = vpop.xlane.xlu0 %2765
        %v2767 = vsel %vm2033, %v2667, 0.0
        %2768 = vadd.xlane.f32.xlu0 %v2767
        %v2769 = vpop.xlane.xlu0 %2768
        %v2770 = vsel %vm2033, %v2669, 0.0
        %2771 = vadd.xlane.f32.xlu0 %v2770
        %v2772 = vpop.xlane.xlu0 %2771
        %v2773 = vsel %vm2033, %v2671, 0.0
        %2774 = vadd.xlane.f32.xlu0 %v2773
        %v2775 = vpop.xlane.xlu0 %2774
        %v2776 = vsel %vm2033, %v2673, 0.0
        %2777 = vadd.xlane.f32.xlu0 %v2776
        %v2778 = vpop.xlane.xlu0 %2777
        %v2779 = vsel %vm2033, %v2675, 0.0
        %2780 = vadd.xlane.f32.xlu0 %v2779
        %v2781 = vpop.xlane.xlu0 %2780
        %v2782 = vsel %vm2033, %v2677, 0.0
        %2783 = vadd.xlane.f32.xlu0 %v2782
        %v2784 = vpop.xlane.xlu0 %2783
        %v2785 = vsel %vm2033, %v2679, 0.0
        %2786 = vadd.xlane.f32.xlu0 %v2785
        %v2787 = vpop.xlane.xlu0 %2786
        %v2788 = vsel %vm2033, %v2681, 0.0
        %2789 = vadd.xlane.f32.xlu0 %v2788
        %v2790 = vpop.xlane.xlu0 %2789
        %v2791 = vsel %vm2033, %v2683, 0.0
        %2792 = vadd.xlane.f32.xlu0 %v2791
        %v2793 = vpop.xlane.xlu0 %2792
        %v2794 = vsel %vm2033, %v2685, 0.0
        %2795 = vadd.xlane.f32.xlu0 %v2794
        %v2796 = vpop.xlane.xlu0 %2795
        %v2797 = vsel %vm2033, %v2687, 0.0
        %2798 = vadd.xlane.f32.xlu0 %v2797
        %v2799 = vpop.xlane.xlu0 %2798
        %v2800 = vsel %vm2033, %v2689, 0.0
        %2801 = vadd.xlane.f32.xlu0 %v2800
        %v2802 = vpop.xlane.xlu0 %2801
        %v2803 = vsel %vm2033, %v2691, 0.0
        %2804 = vadd.xlane.f32.xlu0 %v2803
        %v2805 = vpop.xlane.xlu0 %2804
        %v2806 = vsel %vm2033, %v2693, 0.0
        %2807 = vadd.xlane.f32.xlu0 %v2806
        %v2808 = vpop.xlane.xlu0 %2807
        %v2809 = vsel %vm2033, %v2695, 0.0
        %2810 = vadd.xlane.f32.xlu0 %v2809
        %v2811 = vpop.xlane.xlu0 %2810
        %v2812 = vsel %vm2033, %v2697, 0.0
        %2813 = vadd.xlane.f32.xlu0 %v2812
        %v2814 = vpop.xlane.xlu0 %2813
        %v2815 = vsel %vm2033, %v2699, 0.0
        %2816 = vadd.xlane.f32.xlu0 %v2815
        %v2817 = vpop.xlane.xlu0 %2816
        %v2818 = vsel %vm2033, %v2701, 0.0
        %2819 = vadd.xlane.f32.xlu0 %v2818
        %v2820 = vpop.xlane.xlu0 %2819
        %v2821 = vsel %vm2033, %v2703, 0.0
        %2822 = vadd.xlane.f32.xlu0 %v2821
        %v2823 = vpop.xlane.xlu0 %2822
        %v2824 = vsel %vm2033, %v2705, 0.0
        %2825 = vadd.xlane.f32.xlu0 %v2824
        %v2826 = vpop.xlane.xlu0 %2825
        %v2827 = vsel %vm2033, %v2707, 0.0
        %2828 = vadd.xlane.f32.xlu0 %v2827
        %v2829 = vpop.xlane.xlu0 %2828
        %v2830 = vsel %vm2033, %v2709, 0.0
        %2831 = vadd.xlane.f32.xlu0 %v2830
        %v2832 = vpop.xlane.xlu0 %2831
        %v2833 = vsel %vm2033, %v2711, 0.0
        %2834 = vadd.xlane.f32.xlu0 %v2833
        %v2835 = vpop.xlane.xlu0 %2834
        %v2836 = vsel %vm2033, %v2713, 0.0
        %2837 = vadd.xlane.f32.xlu0 %v2836
        %v2838 = vpop.xlane.xlu0 %2837
        %v2839 = vsel %vm2033, %v2715, 0.0
        %2840 = vadd.xlane.f32.xlu0 %v2839
        %v2841 = vpop.xlane.xlu0 %2840
        %v2842 = vsel %vm2033, %v2717, 0.0
        %2843 = vadd.xlane.f32.xlu0 %v2842
        %v2844 = vpop.xlane.xlu0 %2843
        %v2845 = vsel %vm2033, %v2719, 0.0
        %2846 = vadd.xlane.f32.xlu0 %v2845
        %v2847 = vpop.xlane.xlu0 %2846
        %v2880 = vlaneseq
        %v2881 = vshrl.u32 %v2880, 7
        %v2882 = vsub.s32 %v492, %v2881
        %v2883 = vrot.slane %v2754, %v2882
        %v2884 = vadd.s32 %v492, 4294967288
        %v2885 = vlaneseq
        %v2886 = vshrl.u32 %v2885, 7
        %v2887 = vsub.s32 %v2884, %v2886
        %v2888 = vrot.slane %v2757, %v2887
        %vm2889 = vcmask 130112
        %v2890 = vsel %vm2889, %v2888, %v2883
        %v2891 = vlaneseq
        %v2892 = vshrl.u32 %v2891, 7
        %v2893 = vsub.s32 %v492, %v2892
        %v2894 = vrot.slane %v2760, %v2893
        %v2895 = vlaneseq
        %v2896 = vshrl.u32 %v2895, 7
        %v2897 = vsub.s32 %v2884, %v2896
        %v2898 = vrot.slane %v2763, %v2897
        %v2899 = vsel %vm2889, %v2898, %v2894
        %v2900 = vlaneseq
        %v2901 = vshrl.u32 %v2900, 7
        %v2902 = vsub.s32 %v492, %v2901
        %v2903 = vrot.slane %v2766, %v2902
        %v2904 = vlaneseq
        %v2905 = vshrl.u32 %v2904, 7
        %v2906 = vsub.s32 %v2884, %v2905
        %v2907 = vrot.slane %v2769, %v2906
        %v2908 = vsel %vm2889, %v2907, %v2903
        %v2909 = vlaneseq
        %v2910 = vshrl.u32 %v2909, 7
        %v2911 = vsub.s32 %v492, %v2910
        %v2912 = vrot.slane %v2772, %v2911
        %v2913 = vlaneseq
        %v2914 = vshrl.u32 %v2913, 7
        %v2915 = vsub.s32 %v2884, %v2914
        %v2916 = vrot.slane %v2775, %v2915
        %v2917 = vsel %vm2889, %v2916, %v2912
        %v2918 = vlaneseq
        %v2919 = vshrl.u32 %v2918, 7
        %v2920 = vsub.s32 %v492, %v2919
        %v2921 = vrot.slane %v2778, %v2920
        %v2922 = vlaneseq
        %v2923 = vshrl.u32 %v2922, 7
        %v2924 = vsub.s32 %v2884, %v2923
        %v2925 = vrot.slane %v2781, %v2924
        %v2926 = vsel %vm2889, %v2925, %v2921
        %v2927 = vlaneseq
        %v2928 = vshrl.u32 %v2927, 7
        %v2929 = vsub.s32 %v492, %v2928
        %v2930 = vrot.slane %v2784, %v2929
        %v2931 = vlaneseq
        %v2932 = vshrl.u32 %v2931, 7
        %v2933 = vsub.s32 %v2884, %v2932
        %v2934 = vrot.slane %v2787, %v2933
        %v2935 = vsel %vm2889, %v2934, %v2930
        %v2936 = vlaneseq
        %v2937 = vshrl.u32 %v2936, 7
        %v2938 = vsub.s32 %v492, %v2937
        %v2939 = vrot.slane %v2790, %v2938
        %v2940 = vlaneseq
        %v2941 = vshrl.u32 %v2940, 7
        %v2942 = vsub.s32 %v2884, %v2941
        %v2943 = vrot.slane %v2793, %v2942
        %v2944 = vsel %vm2889, %v2943, %v2939
        %v2945 = vlaneseq
        %v2946 = vshrl.u32 %v2945, 7
        %v2947 = vsub.s32 %v492, %v2946
        %v2948 = vrot.slane %v2796, %v2947
        %v2949 = vlaneseq
        %v2950 = vshrl.u32 %v2949, 7
        %v2951 = vsub.s32 %v2884, %v2950
        %v2952 = vrot.slane %v2799, %v2951
        %v2953 = vsel %vm2889, %v2952, %v2948
        %v2954 = vlaneseq
        %v2955 = vshrl.u32 %v2954, 7
        %v2956 = vsub.s32 %v492, %v2955
        %v2957 = vrot.slane %v2802, %v2956
        %v2958 = vlaneseq
        %v2959 = vshrl.u32 %v2958, 7
        %v2960 = vsub.s32 %v2884, %v2959
        %v2961 = vrot.slane %v2805, %v2960
        %v2962 = vsel %vm2889, %v2961, %v2957
        %v2963 = vlaneseq
        %v2964 = vshrl.u32 %v2963, 7
        %v2965 = vsub.s32 %v492, %v2964
        %v2966 = vrot.slane %v2808, %v2965
        %v2967 = vlaneseq
        %v2968 = vshrl.u32 %v2967, 7
        %v2969 = vsub.s32 %v2884, %v2968
        %v2970 = vrot.slane %v2811, %v2969
        %v2971 = vsel %vm2889, %v2970, %v2966
        %v2972 = vlaneseq
        %v2973 = vshrl.u32 %v2972, 7
        %v2974 = vsub.s32 %v492, %v2973
        %v2975 = vrot.slane %v2814, %v2974
        %v2976 = vlaneseq
        %v2977 = vshrl.u32 %v2976, 7
        %v2978 = vsub.s32 %v2884, %v2977
        %v2979 = vrot.slane %v2817, %v2978
        %v2980 = vsel %vm2889, %v2979, %v2975
        %v2981 = vlaneseq
        %v2982 = vshrl.u32 %v2981, 7
        %v2983 = vsub.s32 %v492, %v2982
        %v2984 = vrot.slane %v2820, %v2983
        %v2985 = vlaneseq
        %v2986 = vshrl.u32 %v2985, 7
        %v2987 = vsub.s32 %v2884, %v2986
        %v2988 = vrot.slane %v2823, %v2987
        %v2989 = vsel %vm2889, %v2988, %v2984
        %v2990 = vlaneseq
        %v2991 = vshrl.u32 %v2990, 7
        %v2992 = vsub.s32 %v492, %v2991
        %v2993 = vrot.slane %v2826, %v2992
        %v2994 = vlaneseq
        %v2995 = vshrl.u32 %v2994, 7
        %v2996 = vsub.s32 %v2884, %v2995
        %v2997 = vrot.slane %v2829, %v2996
        %v2998 = vsel %vm2889, %v2997, %v2993
        %v2999 = vlaneseq
        %v3000 = vshrl.u32 %v2999, 7
        %v3001 = vsub.s32 %v492, %v3000
        %v3002 = vrot.slane %v2832, %v3001
        %v3003 = vlaneseq
        %v3004 = vshrl.u32 %v3003, 7
        %v3005 = vsub.s32 %v2884, %v3004
        %v3006 = vrot.slane %v2835, %v3005
        %v3007 = vsel %vm2889, %v3006, %v3002
        %v3008 = vlaneseq
        %v3009 = vshrl.u32 %v3008, 7
        %v3010 = vsub.s32 %v492, %v3009
        %v3011 = vrot.slane %v2838, %v3010
        %v3012 = vlaneseq
        %v3013 = vshrl.u32 %v3012, 7
        %v3014 = vsub.s32 %v2884, %v3013
        %v3015 = vrot.slane %v2841, %v3014
        %v3016 = vsel %vm2889, %v3015, %v3011
        %v3017 = vlaneseq
        %v3018 = vshrl.u32 %v3017, 7
        %v3019 = vsub.s32 %v492, %v3018
        %v3020 = vrot.slane %v2844, %v3019
        %v3021 = vlaneseq
        %v3022 = vshrl.u32 %v3021, 7
        %v3023 = vsub.s32 %v2884, %v3022
        %v3024 = vrot.slane %v2847, %v3023
        %v3025 = vsel %vm2889, %v3024, %v3020
        %vm3026 = vcmask 1041409
        %v3027 = vsel %vm3026, %v2899, %v2890
        %vm3028 = vcmask 1042434
        %v3029 = vsel %vm3028, %v2908, %v3027
        %vm3030 = vcmask 1043459
        %v3031 = vsel %vm3030, %v2917, %v3029
        %vm3032 = vcmask 1044484
        %v3033 = vsel %vm3032, %v2926, %v3031
        %vm3034 = vcmask 1045509
        %v3035 = vsel %vm3034, %v2935, %v3033
        %vm3036 = vcmask 1046534
        %v3037 = vsel %vm3036, %v2944, %v3035
        %vm3038 = vcmask 1047559
        %v3039 = vsel %vm3038, %v2953, %v3037
        %v3040 = vsel %vm3026, %v2971, %v2962
        %v3041 = vsel %vm3028, %v2980, %v3040
        %v3042 = vsel %vm3030, %v2989, %v3041
        %v3043 = vsel %vm3032, %v2998, %v3042
        %v3044 = vsel %vm3034, %v3007, %v3043
        %v3045 = vsel %vm3036, %v3016, %v3044
        %v3046 = vsel %vm3038, %v3025, %v3045
        %v3049 = vsel %vm1521, %v3039, -inf
        %3050 = vmax.xlane.f32.xlu0 %v3049
        %v3051 = vpop.xlane.xlu0 %3050
        %v3052 = vsel %vm1521, %v3046, -inf
        %3053 = vmax.xlane.f32.xlu0 %v3052
        %v3054 = vpop.xlane.xlu0 %3053
        %v3057 = vlaneseq
        %v3058 = vshrl.u32 %v3057, 7
        %v3059 = vsub.s32 0, %v3058
        %v3060 = vrot.slane %v3051, %v3059
        %v3061 = vlaneseq
        %v3062 = vshrl.u32 %v3061, 7
        %v3063 = vsub.s32 1, %v3062
        %v3064 = vrot.slane %v3051, %v3063
        %v3065 = vlaneseq
        %v3066 = vshrl.u32 %v3065, 7
        %v3067 = vsub.s32 2, %v3066
        %v3068 = vrot.slane %v3051, %v3067
        %v3069 = vlaneseq
        %v3070 = vshrl.u32 %v3069, 7
        %v3071 = vsub.s32 3, %v3070
        %v3072 = vrot.slane %v3051, %v3071
        %v3073 = vlaneseq
        %v3074 = vshrl.u32 %v3073, 7
        %v3075 = vsub.s32 4, %v3074
        %v3076 = vrot.slane %v3051, %v3075
        %v3077 = vlaneseq
        %v3078 = vshrl.u32 %v3077, 7
        %v3079 = vsub.s32 5, %v3078
        %v3080 = vrot.slane %v3051, %v3079
        %v3081 = vlaneseq
        %v3082 = vshrl.u32 %v3081, 7
        %v3083 = vsub.s32 6, %v3082
        %v3084 = vrot.slane %v3051, %v3083
        %v3085 = vlaneseq
        %v3086 = vshrl.u32 %v3085, 7
        %v3087 = vsub.s32 7, %v3086
        %v3088 = vrot.slane %v3051, %v3087
        %v3089 = vlaneseq
        %v3090 = vshrl.u32 %v3089, 7
        %v3091 = vsub.s32 0, %v3090
        %v3092 = vrot.slane %v3054, %v3091
        %v3093 = vlaneseq
        %v3094 = vshrl.u32 %v3093, 7
        %v3095 = vsub.s32 1, %v3094
        %v3096 = vrot.slane %v3054, %v3095
        %v3097 = vlaneseq
        %v3098 = vshrl.u32 %v3097, 7
        %v3099 = vsub.s32 2, %v3098
        %v3100 = vrot.slane %v3054, %v3099
        %v3101 = vlaneseq
        %v3102 = vshrl.u32 %v3101, 7
        %v3103 = vsub.s32 3, %v3102
        %v3104 = vrot.slane %v3054, %v3103
        %v3105 = vlaneseq
        %v3106 = vshrl.u32 %v3105, 7
        %v3107 = vsub.s32 4, %v3106
        %v3108 = vrot.slane %v3054, %v3107
        %v3109 = vlaneseq
        %v3110 = vshrl.u32 %v3109, 7
        %v3111 = vsub.s32 5, %v3110
        %v3112 = vrot.slane %v3054, %v3111
        %v3113 = vlaneseq
        %v3114 = vshrl.u32 %v3113, 7
        %v3115 = vsub.s32 6, %v3114
        %v3116 = vrot.slane %v3054, %v3115
        %v3117 = vlaneseq
        %v3118 = vshrl.u32 %v3117, 7
        %v3119 = vsub.s32 7, %v3118
        %v3120 = vrot.slane %v3054, %v3119
        %v3137 = vsub.f32 %v2754, %v3060
        %v3138 = vsub.f32 %v2757, %v3060
        %v3139 = vsub.f32 %v2760, %v3064
        %v3140 = vsub.f32 %v2763, %v3064
        %v3141 = vsub.f32 %v2766, %v3068
        %v3142 = vsub.f32 %v2769, %v3068
        %v3143 = vsub.f32 %v2772, %v3072
        %v3144 = vsub.f32 %v2775, %v3072
        %v3145 = vsub.f32 %v2778, %v3076
        %v3146 = vsub.f32 %v2781, %v3076
        %v3147 = vsub.f32 %v2784, %v3080
        %v3148 = vsub.f32 %v2787, %v3080
        %v3149 = vsub.f32 %v2790, %v3084
        %v3150 = vsub.f32 %v2793, %v3084
        %v3151 = vsub.f32 %v2796, %v3088
        %v3152 = vsub.f32 %v2799, %v3088
        %v3153 = vsub.f32 %v2802, %v3092
        %v3154 = vsub.f32 %v2805, %v3092
        %v3155 = vsub.f32 %v2808, %v3096
        %v3156 = vsub.f32 %v2811, %v3096
        %v3157 = vsub.f32 %v2814, %v3100
        %v3158 = vsub.f32 %v2817, %v3100
        %v3159 = vsub.f32 %v2820, %v3104
        %v3160 = vsub.f32 %v2823, %v3104
        %v3161 = vsub.f32 %v2826, %v3108
        %v3162 = vsub.f32 %v2829, %v3108
        %v3163 = vsub.f32 %v2832, %v3112
        %v3164 = vsub.f32 %v2835, %v3112
        %v3165 = vsub.f32 %v2838, %v3116
        %v3166 = vsub.f32 %v2841, %v3116
        %v3167 = vsub.f32 %v2844, %v3120
        %v3168 = vsub.f32 %v2847, %v3120
        %v3169 = vmul.f32 %v3137, 1.442695
        %v3170 = vpow.pop %v3169
        %v3171 = vmul.f32 %v3138, 1.442695
        %v3172 = vpow.pop %v3171
        %v3173 = vmul.f32 %v3139, 1.442695
        %v3174 = vpow.pop %v3173
        %v3175 = vmul.f32 %v3140, 1.442695
        %v3176 = vpow.pop %v3175
        %v3177 = vmul.f32 %v3141, 1.442695
        %v3178 = vpow.pop %v3177
        %v3179 = vmul.f32 %v3142, 1.442695
        %v3180 = vpow.pop %v3179
        %v3181 = vmul.f32 %v3143, 1.442695
        %v3182 = vpow.pop %v3181
        %v3183 = vmul.f32 %v3144, 1.442695
        %v3184 = vpow.pop %v3183
        %v3185 = vmul.f32 %v3145, 1.442695
        %v3186 = vpow.pop %v3185
        %v3187 = vmul.f32 %v3146, 1.442695
        %v3188 = vpow.pop %v3187
        %v3189 = vmul.f32 %v3147, 1.442695
        %v3190 = vpow.pop %v3189
        %v3191 = vmul.f32 %v3148, 1.442695
        %v3192 = vpow.pop %v3191
        %v3193 = vmul.f32 %v3149, 1.442695
        %v3194 = vpow.pop %v3193
        %v3195 = vmul.f32 %v3150, 1.442695
        %v3196 = vpow.pop %v3195
        %v3197 = vmul.f32 %v3151, 1.442695
        %v3198 = vpow.pop %v3197
        %v3199 = vmul.f32 %v3152, 1.442695
        %v3200 = vpow.pop %v3199
        %v3201 = vmul.f32 %v3153, 1.442695
        %v3202 = vpow.pop %v3201
        %v3203 = vmul.f32 %v3154, 1.442695
        %v3204 = vpow.pop %v3203
        %v3205 = vmul.f32 %v3155, 1.442695
        %v3206 = vpow.pop %v3205
        %v3207 = vmul.f32 %v3156, 1.442695
        %v3208 = vpow.pop %v3207
        %v3209 = vmul.f32 %v3157, 1.442695
        %v3210 = vpow.pop %v3209
        %v3211 = vmul.f32 %v3158, 1.442695
        %v3212 = vpow.pop %v3211
        %v3213 = vmul.f32 %v3159, 1.442695
        %v3214 = vpow.pop %v3213
        %v3215 = vmul.f32 %v3160, 1.442695
        %v3216 = vpow.pop %v3215
        %v3217 = vmul.f32 %v3161, 1.442695
        %v3218 = vpow.pop %v3217
        %v3219 = vmul.f32 %v3162, 1.442695
        %v3220 = vpow.pop %v3219
        %v3221 = vmul.f32 %v3163, 1.442695
        %v3222 = vpow.pop %v3221
        %v3223 = vmul.f32 %v3164, 1.442695
        %v3224 = vpow.pop %v3223
        %v3225 = vmul.f32 %v3165, 1.442695
        %v3226 = vpow.pop %v3225
        %v3227 = vmul.f32 %v3166, 1.442695
        %v3228 = vpow.pop %v3227
        %v3229 = vmul.f32 %v3167, 1.442695
        %v3230 = vpow.pop %v3229
        %v3231 = vmul.f32 %v3168, 1.442695
        %v3232 = vpow.pop %v3231
        %v3235 = vlaneseq
        %v3236 = vshrl.u32 %v3235, 7
        %v3237 = vsub.s32 0, %v3236
        %v3238 = vrot.slane %v501, %v3237
        %3240 = vbcast.lane.b32.xlu0 %v3238, 256
        %v3241 = vpop.permute.xlu0 %3240
        %s3243 = sor.u32 256, 8
        %3244 = vbcast.lane.b32.xlu0 %v3238, %s3243
        %v3245 = vpop.permute.xlu0 %3244
        %v3246 = vlaneseq
        %v3247 = vshrl.u32 %v3246, 7
        %v3248 = vsub.s32 1, %v3247
        %v3249 = vrot.slane %v501, %v3248
        %3251 = vbcast.lane.b32.xlu0 %v3249, 256
        %v3252 = vpop.permute.xlu0 %3251
        %s3254 = sor.u32 256, 8
        %3255 = vbcast.lane.b32.xlu0 %v3249, %s3254
        %v3256 = vpop.permute.xlu0 %3255
        %v3257 = vlaneseq
        %v3258 = vshrl.u32 %v3257, 7
        %v3259 = vsub.s32 2, %v3258
        %v3260 = vrot.slane %v501, %v3259
        %3262 = vbcast.lane.b32.xlu0 %v3260, 256
        %v3263 = vpop.permute.xlu0 %3262
        %s3265 = sor.u32 256, 8
        %3266 = vbcast.lane.b32.xlu0 %v3260, %s3265
        %v3267 = vpop.permute.xlu0 %3266
        %v3268 = vlaneseq
        %v3269 = vshrl.u32 %v3268, 7
        %v3270 = vsub.s32 3, %v3269
        %v3271 = vrot.slane %v501, %v3270
        %3273 = vbcast.lane.b32.xlu0 %v3271, 256
        %v3274 = vpop.permute.xlu0 %3273
        %s3276 = sor.u32 256, 8
        %3277 = vbcast.lane.b32.xlu0 %v3271, %s3276
        %v3278 = vpop.permute.xlu0 %3277
        %v3279 = vlaneseq
        %v3280 = vshrl.u32 %v3279, 7
        %v3281 = vsub.s32 4, %v3280
        %v3282 = vrot.slane %v501, %v3281
        %3284 = vbcast.lane.b32.xlu0 %v3282, 256
        %v3285 = vpop.permute.xlu0 %3284
        %s3287 = sor.u32 256, 8
        %3288 = vbcast.lane.b32.xlu0 %v3282, %s3287
        %v3289 = vpop.permute.xlu0 %3288
        %v3290 = vlaneseq
        %v3291 = vshrl.u32 %v3290, 7
        %v3292 = vsub.s32 5, %v3291
        %v3293 = vrot.slane %v501, %v3292
        %3295 = vbcast.lane.b32.xlu0 %v3293, 256
        %v3296 = vpop.permute.xlu0 %3295
        %s3298 = sor.u32 256, 8
        %3299 = vbcast.lane.b32.xlu0 %v3293, %s3298
        %v3300 = vpop.permute.xlu0 %3299
        %v3301 = vlaneseq
        %v3302 = vshrl.u32 %v3301, 7
        %v3303 = vsub.s32 6, %v3302
        %v3304 = vrot.slane %v501, %v3303
        %3306 = vbcast.lane.b32.xlu0 %v3304, 256
        %v3307 = vpop.permute.xlu0 %3306
        %s3309 = sor.u32 256, 8
        %3310 = vbcast.lane.b32.xlu0 %v3304, %s3309
        %v3311 = vpop.permute.xlu0 %3310
        %v3312 = vlaneseq
        %v3313 = vshrl.u32 %v3312, 7
        %v3314 = vsub.s32 7, %v3313
        %v3315 = vrot.slane %v501, %v3314
        %3317 = vbcast.lane.b32.xlu0 %v3315, 256
        %v3318 = vpop.permute.xlu0 %3317
        %s3320 = sor.u32 256, 8
        %3321 = vbcast.lane.b32.xlu0 %v3315, %s3320
        %v3322 = vpop.permute.xlu0 %3321
        %v3323 = vlaneseq
        %v3324 = vshrl.u32 %v3323, 7
        %v3325 = vsub.s32 0, %v3324
        %v3326 = vrot.slane %v502, %v3325
        %3328 = vbcast.lane.b32.xlu0 %v3326, 256
        %v3329 = vpop.permute.xlu0 %3328
        %s3331 = sor.u32 256, 8
        %3332 = vbcast.lane.b32.xlu0 %v3326, %s3331
        %v3333 = vpop.permute.xlu0 %3332
        %v3334 = vlaneseq
        %v3335 = vshrl.u32 %v3334, 7
        %v3336 = vsub.s32 1, %v3335
        %v3337 = vrot.slane %v502, %v3336
        %3339 = vbcast.lane.b32.xlu0 %v3337, 256
        %v3340 = vpop.permute.xlu0 %3339
        %s3342 = sor.u32 256, 8
        %3343 = vbcast.lane.b32.xlu0 %v3337, %s3342
        %v3344 = vpop.permute.xlu0 %3343
        %v3345 = vlaneseq
        %v3346 = vshrl.u32 %v3345, 7
        %v3347 = vsub.s32 2, %v3346
        %v3348 = vrot.slane %v502, %v3347
        %3350 = vbcast.lane.b32.xlu0 %v3348, 256
        %v3351 = vpop.permute.xlu0 %3350
        %s3353 = sor.u32 256, 8
        %3354 = vbcast.lane.b32.xlu0 %v3348, %s3353
        %v3355 = vpop.permute.xlu0 %3354
        %v3356 = vlaneseq
        %v3357 = vshrl.u32 %v3356, 7
        %v3358 = vsub.s32 3, %v3357
        %v3359 = vrot.slane %v502, %v3358
        %3361 = vbcast.lane.b32.xlu0 %v3359, 256
        %v3362 = vpop.permute.xlu0 %3361
        %s3364 = sor.u32 256, 8
        %3365 = vbcast.lane.b32.xlu0 %v3359, %s3364
        %v3366 = vpop.permute.xlu0 %3365
        %v3367 = vlaneseq
        %v3368 = vshrl.u32 %v3367, 7
        %v3369 = vsub.s32 4, %v3368
        %v3370 = vrot.slane %v502, %v3369
        %3372 = vbcast.lane.b32.xlu0 %v3370, 256
        %v3373 = vpop.permute.xlu0 %3372
        %s3375 = sor.u32 256, 8
        %3376 = vbcast.lane.b32.xlu0 %v3370, %s3375
        %v3377 = vpop.permute.xlu0 %3376
        %v3378 = vlaneseq
        %v3379 = vshrl.u32 %v3378, 7
        %v3380 = vsub.s32 5, %v3379
        %v3381 = vrot.slane %v502, %v3380
        %3383 = vbcast.lane.b32.xlu0 %v3381, 256
        %v3384 = vpop.permute.xlu0 %3383
        %s3386 = sor.u32 256, 8
        %3387 = vbcast.lane.b32.xlu0 %v3381, %s3386
        %v3388 = vpop.permute.xlu0 %3387
        %v3389 = vlaneseq
        %v3390 = vshrl.u32 %v3389, 7
        %v3391 = vsub.s32 6, %v3390
        %v3392 = vrot.slane %v502, %v3391
        %3394 = vbcast.lane.b32.xlu0 %v3392, 256
        %v3395 = vpop.permute.xlu0 %3394
        %s3397 = sor.u32 256, 8
        %3398 = vbcast.lane.b32.xlu0 %v3392, %s3397
        %v3399 = vpop.permute.xlu0 %3398
        %v3400 = vlaneseq
        %v3401 = vshrl.u32 %v3400, 7
        %v3402 = vsub.s32 7, %v3401
        %v3403 = vrot.slane %v502, %v3402
        %3405 = vbcast.lane.b32.xlu0 %v3403, 256
        %v3406 = vpop.permute.xlu0 %3405
        %s3408 = sor.u32 256, 8
        %3409 = vbcast.lane.b32.xlu0 %v3403, %s3408
        %v3410 = vpop.permute.xlu0 %3409
        %v3443 = vmul.f32 %v3170, %v3241
        %v3444 = vmul.f32 %v3172, %v3245
        %v3445 = vmul.f32 %v3174, %v3252
        %v3446 = vmul.f32 %v3176, %v3256
        %v3447 = vmul.f32 %v3178, %v3263
        %v3448 = vmul.f32 %v3180, %v3267
        %v3449 = vmul.f32 %v3182, %v3274
        %v3450 = vmul.f32 %v3184, %v3278
        %v3451 = vmul.f32 %v3186, %v3285
        %v3452 = vmul.f32 %v3188, %v3289
        %v3453 = vmul.f32 %v3190, %v3296
        %v3454 = vmul.f32 %v3192, %v3300
        %v3455 = vmul.f32 %v3194, %v3307
        %v3456 = vmul.f32 %v3196, %v3311
        %v3457 = vmul.f32 %v3198, %v3318
        %v3458 = vmul.f32 %v3200, %v3322
        %v3459 = vmul.f32 %v3202, %v3329
        %v3460 = vmul.f32 %v3204, %v3333
        %v3461 = vmul.f32 %v3206, %v3340
        %v3462 = vmul.f32 %v3208, %v3344
        %v3463 = vmul.f32 %v3210, %v3351
        %v3464 = vmul.f32 %v3212, %v3355
        %v3465 = vmul.f32 %v3214, %v3362
        %v3466 = vmul.f32 %v3216, %v3366
        %v3467 = vmul.f32 %v3218, %v3373
        %v3468 = vmul.f32 %v3220, %v3377
        %v3469 = vmul.f32 %v3222, %v3384
        %v3470 = vmul.f32 %v3224, %v3388
        %v3471 = vmul.f32 %v3226, %v3395
        %v3472 = vmul.f32 %v3228, %v3399
        %v3473 = vmul.f32 %v3230, %v3406
        %v3474 = vmul.f32 %v3232, %v3410
        %3507 = vset.pattern.permute.xlu0 0
        %3508 = vperm.xlu0 %3507, %v3443
        %v3509 = vpop.permute.xlu0 %3508
        %3510 = vset.pattern.permute.xlu0 0
        %3511 = vperm.xlu0 %3510, %v3444
        %v3512 = vpop.permute.xlu0 %3511
        %3513 = vset.pattern.permute.xlu0 0
        %3514 = vperm.xlu0 %3513, %v3445
        %v3515 = vpop.permute.xlu0 %3514
        %3516 = vset.pattern.permute.xlu0 0
        %3517 = vperm.xlu0 %3516, %v3446
        %v3518 = vpop.permute.xlu0 %3517
        %3519 = vset.pattern.permute.xlu0 0
        %3520 = vperm.xlu0 %3519, %v3447
        %v3521 = vpop.permute.xlu0 %3520
        %3522 = vset.pattern.permute.xlu0 0
        %3523 = vperm.xlu0 %3522, %v3448
        %v3524 = vpop.permute.xlu0 %3523
        %3525 = vset.pattern.permute.xlu0 0
        %3526 = vperm.xlu0 %3525, %v3449
        %v3527 = vpop.permute.xlu0 %3526
        %3528 = vset.pattern.permute.xlu0 0
        %3529 = vperm.xlu0 %3528, %v3450
        %v3530 = vpop.permute.xlu0 %3529
        %3531 = vset.pattern.permute.xlu0 0
        %3532 = vperm.xlu0 %3531, %v3451
        %v3533 = vpop.permute.xlu0 %3532
        %3534 = vset.pattern.permute.xlu0 0
        %3535 = vperm.xlu0 %3534, %v3452
        %v3536 = vpop.permute.xlu0 %3535
        %3537 = vset.pattern.permute.xlu0 0
        %3538 = vperm.xlu0 %3537, %v3453
        %v3539 = vpop.permute.xlu0 %3538
        %3540 = vset.pattern.permute.xlu0 0
        %3541 = vperm.xlu0 %3540, %v3454
        %v3542 = vpop.permute.xlu0 %3541
        %3543 = vset.pattern.permute.xlu0 0
        %3544 = vperm.xlu0 %3543, %v3455
        %v3545 = vpop.permute.xlu0 %3544
        %3546 = vset.pattern.permute.xlu0 0
        %3547 = vperm.xlu0 %3546, %v3456
        %v3548 = vpop.permute.xlu0 %3547
        %3549 = vset.pattern.permute.xlu0 0
        %3550 = vperm.xlu0 %3549, %v3457
        %v3551 = vpop.permute.xlu0 %3550
        %3552 = vset.pattern.permute.xlu0 0
        %3553 = vperm.xlu0 %3552, %v3458
        %v3554 = vpop.permute.xlu0 %3553
        %3555 = vset.pattern.permute.xlu0 0
        %3556 = vperm.xlu0 %3555, %v3459
        %v3557 = vpop.permute.xlu0 %3556
        %3558 = vset.pattern.permute.xlu0 0
        %3559 = vperm.xlu0 %3558, %v3460
        %v3560 = vpop.permute.xlu0 %3559
        %3561 = vset.pattern.permute.xlu0 0
        %3562 = vperm.xlu0 %3561, %v3461
        %v3563 = vpop.permute.xlu0 %3562
        %3564 = vset.pattern.permute.xlu0 0
        %3565 = vperm.xlu0 %3564, %v3462
        %v3566 = vpop.permute.xlu0 %3565
        %3567 = vset.pattern.permute.xlu0 0
        %3568 = vperm.xlu0 %3567, %v3463
        %v3569 = vpop.permute.xlu0 %3568
        %3570 = vset.pattern.permute.xlu0 0
        %3571 = vperm.xlu0 %3570, %v3464
        %v3572 = vpop.permute.xlu0 %3571
        %3573 = vset.pattern.permute.xlu0 0
        %3574 = vperm.xlu0 %3573, %v3465
        %v3575 = vpop.permute.xlu0 %3574
        %3576 = vset.pattern.permute.xlu0 0
        %3577 = vperm.xlu0 %3576, %v3466
        %v3578 = vpop.permute.xlu0 %3577
        %3579 = vset.pattern.permute.xlu0 0
        %3580 = vperm.xlu0 %3579, %v3467
        %v3581 = vpop.permute.xlu0 %3580
        %3582 = vset.pattern.permute.xlu0 0
        %3583 = vperm.xlu0 %3582, %v3468
        %v3584 = vpop.permute.xlu0 %3583
        %3585 = vset.pattern.permute.xlu0 0
        %3586 = vperm.xlu0 %3585, %v3469
        %v3587 = vpop.permute.xlu0 %3586
        %3588 = vset.pattern.permute.xlu0 0
        %3589 = vperm.xlu0 %3588, %v3470
        %v3590 = vpop.permute.xlu0 %3589
        %3591 = vset.pattern.permute.xlu0 0
        %3592 = vperm.xlu0 %3591, %v3471
        %v3593 = vpop.permute.xlu0 %3592
        %3594 = vset.pattern.permute.xlu0 0
        %3595 = vperm.xlu0 %3594, %v3472
        %v3596 = vpop.permute.xlu0 %3595
        %3597 = vset.pattern.permute.xlu0 0
        %3598 = vperm.xlu0 %3597, %v3473
        %v3599 = vpop.permute.xlu0 %3598
        %3600 = vset.pattern.permute.xlu0 0
        %3601 = vperm.xlu0 %3600, %v3474
        %v3602 = vpop.permute.xlu0 %3601
        %v3603 = vlaneseq
        %v3604 = vshrl.u32 %v3603, 7
        %v3605 = vsub.s32 %v492, %v3604
        %v3606 = vrot.slane %v3509, %v3605
        %v3607 = vlaneseq
        %v3608 = vshrl.u32 %v3607, 7
        %v3609 = vsub.s32 %v2884, %v3608
        %v3610 = vrot.slane %v3512, %v3609
        %v3611 = vsel %vm2889, %v3610, %v3606
        %v3612 = vlaneseq
        %v3613 = vshrl.u32 %v3612, 7
        %v3614 = vsub.s32 %v492, %v3613
        %v3615 = vrot.slane %v3515, %v3614
        %v3616 = vlaneseq
        %v3617 = vshrl.u32 %v3616, 7
        %v3618 = vsub.s32 %v2884, %v3617
        %v3619 = vrot.slane %v3518, %v3618
        %v3620 = vsel %vm2889, %v3619, %v3615
        %v3621 = vlaneseq
        %v3622 = vshrl.u32 %v3621, 7
        %v3623 = vsub.s32 %v492, %v3622
        %v3624 = vrot.slane %v3521, %v3623
        %v3625 = vlaneseq
        %v3626 = vshrl.u32 %v3625, 7
        %v3627 = vsub.s32 %v2884, %v3626
        %v3628 = vrot.slane %v3524, %v3627
        %v3629 = vsel %vm2889, %v3628, %v3624
        %v3630 = vlaneseq
        %v3631 = vshrl.u32 %v3630, 7
        %v3632 = vsub.s32 %v492, %v3631
        %v3633 = vrot.slane %v3527, %v3632
        %v3634 = vlaneseq
        %v3635 = vshrl.u32 %v3634, 7
        %v3636 = vsub.s32 %v2884, %v3635
        %v3637 = vrot.slane %v3530, %v3636
        %v3638 = vsel %vm2889, %v3637, %v3633
        %v3639 = vlaneseq
        %v3640 = vshrl.u32 %v3639, 7
        %v3641 = vsub.s32 %v492, %v3640
        %v3642 = vrot.slane %v3533, %v3641
        %v3643 = vlaneseq
        %v3644 = vshrl.u32 %v3643, 7
        %v3645 = vsub.s32 %v2884, %v3644
        %v3646 = vrot.slane %v3536, %v3645
        %v3647 = vsel %vm2889, %v3646, %v3642
        %v3648 = vlaneseq
        %v3649 = vshrl.u32 %v3648, 7
        %v3650 = vsub.s32 %v492, %v3649
        %v3651 = vrot.slane %v3539, %v3650
        %v3652 = vlaneseq
        %v3653 = vshrl.u32 %v3652, 7
        %v3654 = vsub.s32 %v2884, %v3653
        %v3655 = vrot.slane %v3542, %v3654
        %v3656 = vsel %vm2889, %v3655, %v3651
        %v3657 = vlaneseq
        %v3658 = vshrl.u32 %v3657, 7
        %v3659 = vsub.s32 %v492, %v3658
        %v3660 = vrot.slane %v3545, %v3659
        %v3661 = vlaneseq
        %v3662 = vshrl.u32 %v3661, 7
        %v3663 = vsub.s32 %v2884, %v3662
        %v3664 = vrot.slane %v3548, %v3663
        %v3665 = vsel %vm2889, %v3664, %v3660
        %v3666 = vlaneseq
        %v3667 = vshrl.u32 %v3666, 7
        %v3668 = vsub.s32 %v492, %v3667
        %v3669 = vrot.slane %v3551, %v3668
        %v3670 = vlaneseq
        %v3671 = vshrl.u32 %v3670, 7
        %v3672 = vsub.s32 %v2884, %v3671
        %v3673 = vrot.slane %v3554, %v3672
        %v3674 = vsel %vm2889, %v3673, %v3669
        %v3675 = vlaneseq
        %v3676 = vshrl.u32 %v3675, 7
        %v3677 = vsub.s32 %v492, %v3676
        %v3678 = vrot.slane %v3557, %v3677
        %v3679 = vlaneseq
        %v3680 = vshrl.u32 %v3679, 7
        %v3681 = vsub.s32 %v2884, %v3680
        %v3682 = vrot.slane %v3560, %v3681
        %v3683 = vsel %vm2889, %v3682, %v3678
        %v3684 = vlaneseq
        %v3685 = vshrl.u32 %v3684, 7
        %v3686 = vsub.s32 %v492, %v3685
        %v3687 = vrot.slane %v3563, %v3686
        %v3688 = vlaneseq
        %v3689 = vshrl.u32 %v3688, 7
        %v3690 = vsub.s32 %v2884, %v3689
        %v3691 = vrot.slane %v3566, %v3690
        %v3692 = vsel %vm2889, %v3691, %v3687
        %v3693 = vlaneseq
        %v3694 = vshrl.u32 %v3693, 7
        %v3695 = vsub.s32 %v492, %v3694
        %v3696 = vrot.slane %v3569, %v3695
        %v3697 = vlaneseq
        %v3698 = vshrl.u32 %v3697, 7
        %v3699 = vsub.s32 %v2884, %v3698
        %v3700 = vrot.slane %v3572, %v3699
        %v3701 = vsel %vm2889, %v3700, %v3696
        %v3702 = vlaneseq
        %v3703 = vshrl.u32 %v3702, 7
        %v3704 = vsub.s32 %v492, %v3703
        %v3705 = vrot.slane %v3575, %v3704
        %v3706 = vlaneseq
        %v3707 = vshrl.u32 %v3706, 7
        %v3708 = vsub.s32 %v2884, %v3707
        %v3709 = vrot.slane %v3578, %v3708
        %v3710 = vsel %vm2889, %v3709, %v3705
        %v3711 = vlaneseq
        %v3712 = vshrl.u32 %v3711, 7
        %v3713 = vsub.s32 %v492, %v3712
        %v3714 = vrot.slane %v3581, %v3713
        %v3715 = vlaneseq
        %v3716 = vshrl.u32 %v3715, 7
        %v3717 = vsub.s32 %v2884, %v3716
        %v3718 = vrot.slane %v3584, %v3717
        %v3719 = vsel %vm2889, %v3718, %v3714
        %v3720 = vlaneseq
        %v3721 = vshrl.u32 %v3720, 7
        %v3722 = vsub.s32 %v492, %v3721
        %v3723 = vrot.slane %v3587, %v3722
        %v3724 = vlaneseq
        %v3725 = vshrl.u32 %v3724, 7
        %v3726 = vsub.s32 %v2884, %v3725
        %v3727 = vrot.slane %v3590, %v3726
        %v3728 = vsel %vm2889, %v3727, %v3723
        %v3729 = vlaneseq
        %v3730 = vshrl.u32 %v3729, 7
        %v3731 = vsub.s32 %v492, %v3730
        %v3732 = vrot.slane %v3593, %v3731
        %v3733 = vlaneseq
        %v3734 = vshrl.u32 %v3733, 7
        %v3735 = vsub.s32 %v2884, %v3734
        %v3736 = vrot.slane %v3596, %v3735
        %v3737 = vsel %vm2889, %v3736, %v3732
        %v3738 = vlaneseq
        %v3739 = vshrl.u32 %v3738, 7
        %v3740 = vsub.s32 %v492, %v3739
        %v3741 = vrot.slane %v3599, %v3740
        %v3742 = vlaneseq
        %v3743 = vshrl.u32 %v3742, 7
        %v3744 = vsub.s32 %v2884, %v3743
        %v3745 = vrot.slane %v3602, %v3744
        %v3746 = vsel %vm2889, %v3745, %v3741
        %v3747 = vsel %vm3026, %v3620, %v3611
        %v3748 = vsel %vm3028, %v3629, %v3747
        %v3749 = vsel %vm3030, %v3638, %v3748
        %v3750 = vsel %vm3032, %v3647, %v3749
        %v3751 = vsel %vm3034, %v3656, %v3750
        %v3752 = vsel %vm3036, %v3665, %v3751
        %v3753 = vsel %vm3038, %v3674, %v3752
        %v3754 = vsel %vm3026, %v3692, %v3683
        %v3755 = vsel %vm3028, %v3701, %v3754
        %v3756 = vsel %vm3030, %v3710, %v3755
        %v3757 = vsel %vm3032, %v3719, %v3756
        %v3758 = vsel %vm3034, %v3728, %v3757
        %v3759 = vsel %vm3036, %v3737, %v3758
        %v3760 = vsel %vm3038, %v3746, %v3759
        %v3763 = vsel %vm1521, %v3753, 0.0
        %3764 = vadd.xlane.f32.xlu0 %v3763
        %v3765 = vpop.xlane.xlu0 %3764
        %v3766 = vsel %vm1521, %v3760, 0.0
        %3767 = vadd.xlane.f32.xlu0 %v3766
        %v3768 = vpop.xlane.xlu0 %3767
        %v3769 = vrcp.pop %v3765
        %v3770 = vrcp.pop %v3768
        %v3773 = vlaneseq
        %v3774 = vshrl.u32 %v3773, 7
        %v3775 = vsub.s32 0, %v3774
        %v3776 = vrot.slane %v3769, %v3775
        %v3777 = vlaneseq
        %v3778 = vshrl.u32 %v3777, 7
        %v3779 = vsub.s32 1, %v3778
        %v3780 = vrot.slane %v3769, %v3779
        %v3781 = vlaneseq
        %v3782 = vshrl.u32 %v3781, 7
        %v3783 = vsub.s32 2, %v3782
        %v3784 = vrot.slane %v3769, %v3783
        %v3785 = vlaneseq
        %v3786 = vshrl.u32 %v3785, 7
        %v3787 = vsub.s32 3, %v3786
        %v3788 = vrot.slane %v3769, %v3787
        %v3789 = vlaneseq
        %v3790 = vshrl.u32 %v3789, 7
        %v3791 = vsub.s32 4, %v3790
        %v3792 = vrot.slane %v3769, %v3791
        %v3793 = vlaneseq
        %v3794 = vshrl.u32 %v3793, 7
        %v3795 = vsub.s32 5, %v3794
        %v3796 = vrot.slane %v3769, %v3795
        %v3797 = vlaneseq
        %v3798 = vshrl.u32 %v3797, 7
        %v3799 = vsub.s32 6, %v3798
        %v3800 = vrot.slane %v3769, %v3799
        %v3801 = vlaneseq
        %v3802 = vshrl.u32 %v3801, 7
        %v3803 = vsub.s32 7, %v3802
        %v3804 = vrot.slane %v3769, %v3803
        %v3805 = vlaneseq
        %v3806 = vshrl.u32 %v3805, 7
        %v3807 = vsub.s32 0, %v3806
        %v3808 = vrot.slane %v3770, %v3807
        %v3809 = vlaneseq
        %v3810 = vshrl.u32 %v3809, 7
        %v3811 = vsub.s32 1, %v3810
        %v3812 = vrot.slane %v3770, %v3811
        %v3813 = vlaneseq
        %v3814 = vshrl.u32 %v3813, 7
        %v3815 = vsub.s32 2, %v3814
        %v3816 = vrot.slane %v3770, %v3815
        %v3817 = vlaneseq
        %v3818 = vshrl.u32 %v3817, 7
        %v3819 = vsub.s32 3, %v3818
        %v3820 = vrot.slane %v3770, %v3819
        %v3821 = vlaneseq
        %v3822 = vshrl.u32 %v3821, 7
        %v3823 = vsub.s32 4, %v3822
        %v3824 = vrot.slane %v3770, %v3823
        %v3825 = vlaneseq
        %v3826 = vshrl.u32 %v3825, 7
        %v3827 = vsub.s32 5, %v3826
        %v3828 = vrot.slane %v3770, %v3827
        %v3829 = vlaneseq
        %v3830 = vshrl.u32 %v3829, 7
        %v3831 = vsub.s32 6, %v3830
        %v3832 = vrot.slane %v3770, %v3831
        %v3833 = vlaneseq
        %v3834 = vshrl.u32 %v3833, 7
        %v3835 = vsub.s32 7, %v3834
        %v3836 = vrot.slane %v3770, %v3835
        %v3853 = vmul.f32 %v3443, %v3776
        %v3854 = vmul.f32 %v3444, %v3776
        %v3855 = vmul.f32 %v3445, %v3780
        %v3856 = vmul.f32 %v3446, %v3780
        %v3857 = vmul.f32 %v3447, %v3784
        %v3858 = vmul.f32 %v3448, %v3784
        %v3859 = vmul.f32 %v3449, %v3788
        %v3860 = vmul.f32 %v3450, %v3788
        %v3861 = vmul.f32 %v3451, %v3792
        %v3862 = vmul.f32 %v3452, %v3792
        %v3863 = vmul.f32 %v3453, %v3796
        %v3864 = vmul.f32 %v3454, %v3796
        %v3865 = vmul.f32 %v3455, %v3800
        %v3866 = vmul.f32 %v3456, %v3800
        %v3867 = vmul.f32 %v3457, %v3804
        %v3868 = vmul.f32 %v3458, %v3804
        %v3869 = vmul.f32 %v3459, %v3808
        %v3870 = vmul.f32 %v3460, %v3808
        %v3871 = vmul.f32 %v3461, %v3812
        %v3872 = vmul.f32 %v3462, %v3812
        %v3873 = vmul.f32 %v3463, %v3816
        %v3874 = vmul.f32 %v3464, %v3816
        %v3875 = vmul.f32 %v3465, %v3820
        %v3876 = vmul.f32 %v3466, %v3820
        %v3877 = vmul.f32 %v3467, %v3824
        %v3878 = vmul.f32 %v3468, %v3824
        %v3879 = vmul.f32 %v3469, %v3828
        %v3880 = vmul.f32 %v3470, %v3828
        %v3881 = vmul.f32 %v3471, %v3832
        %v3882 = vmul.f32 %v3472, %v3832
        %v3883 = vmul.f32 %v3473, %v3836
        %v3884 = vmul.f32 %v3474, %v3836
        %3885 = vrot.lane.b32.xlu0 %v2592, 32
        %v3886 = vpop.permute.xlu0 %3885
        %3887 = vrot.lane.b32.xlu0 %v2593, 32
        %v3888 = vpop.permute.xlu0 %3887
        %3889 = vrot.lane.b32.xlu0 %v2594, 32
        %v3890 = vpop.permute.xlu0 %3889
        %3891 = vrot.lane.b32.xlu0 %v2595, 32
        %v3892 = vpop.permute.xlu0 %3891
        %3893 = vrot.lane.b32.xlu0 %v2596, 32
        %v3894 = vpop.permute.xlu0 %3893
        %3895 = vrot.lane.b32.xlu0 %v2597, 32
        %v3896 = vpop.permute.xlu0 %3895
        %3897 = vrot.lane.b32.xlu0 %v2598, 32
        %v3898 = vpop.permute.xlu0 %3897
        %3899 = vrot.lane.b32.xlu0 %v2599, 32
        %v3900 = vpop.permute.xlu0 %3899
        %3901 = vrot.lane.b32.xlu0 %v2600, 32
        %v3902 = vpop.permute.xlu0 %3901
        %3903 = vrot.lane.b32.xlu0 %v2601, 32
        %v3904 = vpop.permute.xlu0 %3903
        %3905 = vrot.lane.b32.xlu0 %v2602, 32
        %v3906 = vpop.permute.xlu0 %3905
        %3907 = vrot.lane.b32.xlu0 %v2603, 32
        %v3908 = vpop.permute.xlu0 %3907
        %3909 = vrot.lane.b32.xlu0 %v2604, 32
        %v3910 = vpop.permute.xlu0 %3909
        %3911 = vrot.lane.b32.xlu0 %v2605, 32
        %v3912 = vpop.permute.xlu0 %3911
        %3913 = vrot.lane.b32.xlu0 %v2606, 32
        %v3914 = vpop.permute.xlu0 %3913
        %3915 = vrot.lane.b32.xlu0 %v2607, 32
        %v3916 = vpop.permute.xlu0 %3915
        %3917 = vrot.lane.b32.xlu0 %v2608, 32
        %v3918 = vpop.permute.xlu0 %3917
        %3919 = vrot.lane.b32.xlu0 %v2609, 32
        %v3920 = vpop.permute.xlu0 %3919
        %3921 = vrot.lane.b32.xlu0 %v2610, 32
        %v3922 = vpop.permute.xlu0 %3921
        %3923 = vrot.lane.b32.xlu0 %v2611, 32
        %v3924 = vpop.permute.xlu0 %3923
        %3925 = vrot.lane.b32.xlu0 %v2612, 32
        %v3926 = vpop.permute.xlu0 %3925
        %3927 = vrot.lane.b32.xlu0 %v2613, 32
        %v3928 = vpop.permute.xlu0 %3927
        %3929 = vrot.lane.b32.xlu0 %v2614, 32
        %v3930 = vpop.permute.xlu0 %3929
        %3931 = vrot.lane.b32.xlu0 %v2615, 32
        %v3932 = vpop.permute.xlu0 %3931
        %3933 = vrot.lane.b32.xlu0 %v2616, 32
        %v3934 = vpop.permute.xlu0 %3933
        %3935 = vrot.lane.b32.xlu0 %v2617, 32
        %v3936 = vpop.permute.xlu0 %3935
        %3937 = vrot.lane.b32.xlu0 %v2618, 32
        %v3938 = vpop.permute.xlu0 %3937
        %3939 = vrot.lane.b32.xlu0 %v2619, 32
        %v3940 = vpop.permute.xlu0 %3939
        %3941 = vrot.lane.b32.xlu0 %v2620, 32
        %v3942 = vpop.permute.xlu0 %3941
        %3943 = vrot.lane.b32.xlu0 %v2621, 32
        %v3944 = vpop.permute.xlu0 %3943
        %3945 = vrot.lane.b32.xlu0 %v2622, 32
        %v3946 = vpop.permute.xlu0 %3945
        %3947 = vrot.lane.b32.xlu0 %v2623, 32
        %v3948 = vpop.permute.xlu0 %3947
        %v3981 = vsel %vm2033, %v3886, 0.0
        %3982 = vadd.xlane.f32.xlu0 %v3981
        %v3983 = vpop.xlane.xlu0 %3982
        %v3984 = vsel %vm2033, %v3888, 0.0
        %3985 = vadd.xlane.f32.xlu0 %v3984
        %v3986 = vpop.xlane.xlu0 %3985
        %v3987 = vsel %vm2033, %v3890, 0.0
        %3988 = vadd.xlane.f32.xlu0 %v3987
        %v3989 = vpop.xlane.xlu0 %3988
        %v3990 = vsel %vm2033, %v3892, 0.0
        %3991 = vadd.xlane.f32.xlu0 %v3990
        %v3992 = vpop.xlane.xlu0 %3991
        %v3993 = vsel %vm2033, %v3894, 0.0
        %3994 = vadd.xlane.f32.xlu0 %v3993
        %v3995 = vpop.xlane.xlu0 %3994
        %v3996 = vsel %vm2033, %v3896, 0.0
        %3997 = vadd.xlane.f32.xlu0 %v3996
        %v3998 = vpop.xlane.xlu0 %3997
        %v3999 = vsel %vm2033, %v3898, 0.0
        %4000 = vadd.xlane.f32.xlu0 %v3999
        %v4001 = vpop.xlane.xlu0 %4000
        %v4002 = vsel %vm2033, %v3900, 0.0
        %4003 = vadd.xlane.f32.xlu0 %v4002
        %v4004 = vpop.xlane.xlu0 %4003
        %v4005 = vsel %vm2033, %v3902, 0.0
        %4006 = vadd.xlane.f32.xlu0 %v4005
        %v4007 = vpop.xlane.xlu0 %4006
        %v4008 = vsel %vm2033, %v3904, 0.0
        %4009 = vadd.xlane.f32.xlu0 %v4008
        %v4010 = vpop.xlane.xlu0 %4009
        %v4011 = vsel %vm2033, %v3906, 0.0
        %4012 = vadd.xlane.f32.xlu0 %v4011
        %v4013 = vpop.xlane.xlu0 %4012
        %v4014 = vsel %vm2033, %v3908, 0.0
        %4015 = vadd.xlane.f32.xlu0 %v4014
        %v4016 = vpop.xlane.xlu0 %4015
        %v4017 = vsel %vm2033, %v3910, 0.0
        %4018 = vadd.xlane.f32.xlu0 %v4017
        %v4019 = vpop.xlane.xlu0 %4018
        %v4020 = vsel %vm2033, %v3912, 0.0
        %4021 = vadd.xlane.f32.xlu0 %v4020
        %v4022 = vpop.xlane.xlu0 %4021
        %v4023 = vsel %vm2033, %v3914, 0.0
        %4024 = vadd.xlane.f32.xlu0 %v4023
        %v4025 = vpop.xlane.xlu0 %4024
        %v4026 = vsel %vm2033, %v3916, 0.0
        %4027 = vadd.xlane.f32.xlu0 %v4026
        %v4028 = vpop.xlane.xlu0 %4027
        %v4029 = vsel %vm2033, %v3918, 0.0
        %4030 = vadd.xlane.f32.xlu0 %v4029
        %v4031 = vpop.xlane.xlu0 %4030
        %v4032 = vsel %vm2033, %v3920, 0.0
        %4033 = vadd.xlane.f32.xlu0 %v4032
        %v4034 = vpop.xlane.xlu0 %4033
        %v4035 = vsel %vm2033, %v3922, 0.0
        %4036 = vadd.xlane.f32.xlu0 %v4035
        %v4037 = vpop.xlane.xlu0 %4036
        %v4038 = vsel %vm2033, %v3924, 0.0
        %4039 = vadd.xlane.f32.xlu0 %v4038
        %v4040 = vpop.xlane.xlu0 %4039
        %v4041 = vsel %vm2033, %v3926, 0.0
        %4042 = vadd.xlane.f32.xlu0 %v4041
        %v4043 = vpop.xlane.xlu0 %4042
        %v4044 = vsel %vm2033, %v3928, 0.0
        %4045 = vadd.xlane.f32.xlu0 %v4044
        %v4046 = vpop.xlane.xlu0 %4045
        %v4047 = vsel %vm2033, %v3930, 0.0
        %4048 = vadd.xlane.f32.xlu0 %v4047
        %v4049 = vpop.xlane.xlu0 %4048
        %v4050 = vsel %vm2033, %v3932, 0.0
        %4051 = vadd.xlane.f32.xlu0 %v4050
        %v4052 = vpop.xlane.xlu0 %4051
        %v4053 = vsel %vm2033, %v3934, 0.0
        %4054 = vadd.xlane.f32.xlu0 %v4053
        %v4055 = vpop.xlane.xlu0 %4054
        %v4056 = vsel %vm2033, %v3936, 0.0
        %4057 = vadd.xlane.f32.xlu0 %v4056
        %v4058 = vpop.xlane.xlu0 %4057
        %v4059 = vsel %vm2033, %v3938, 0.0
        %4060 = vadd.xlane.f32.xlu0 %v4059
        %v4061 = vpop.xlane.xlu0 %4060
        %v4062 = vsel %vm2033, %v3940, 0.0
        %4063 = vadd.xlane.f32.xlu0 %v4062
        %v4064 = vpop.xlane.xlu0 %4063
        %v4065 = vsel %vm2033, %v3942, 0.0
        %4066 = vadd.xlane.f32.xlu0 %v4065
        %v4067 = vpop.xlane.xlu0 %4066
        %v4068 = vsel %vm2033, %v3944, 0.0
        %4069 = vadd.xlane.f32.xlu0 %v4068
        %v4070 = vpop.xlane.xlu0 %4069
        %v4071 = vsel %vm2033, %v3946, 0.0
        %4072 = vadd.xlane.f32.xlu0 %v4071
        %v4073 = vpop.xlane.xlu0 %4072
        %v4074 = vsel %vm2033, %v3948, 0.0
        %4075 = vadd.xlane.f32.xlu0 %v4074
        %v4076 = vpop.xlane.xlu0 %4075
        %v4109 = vlaneseq
        %v4110 = vshrl.u32 %v4109, 7
        %v4111 = vsub.s32 %v492, %v4110
        %v4112 = vrot.slane %v3983, %v4111
        %v4113 = vlaneseq
        %v4114 = vshrl.u32 %v4113, 7
        %v4115 = vsub.s32 %v2884, %v4114
        %v4116 = vrot.slane %v3986, %v4115
        %v4117 = vsel %vm2889, %v4116, %v4112
        %v4118 = vlaneseq
        %v4119 = vshrl.u32 %v4118, 7
        %v4120 = vsub.s32 %v492, %v4119
        %v4121 = vrot.slane %v3989, %v4120
        %v4122 = vlaneseq
        %v4123 = vshrl.u32 %v4122, 7
        %v4124 = vsub.s32 %v2884, %v4123
        %v4125 = vrot.slane %v3992, %v4124
        %v4126 = vsel %vm2889, %v4125, %v4121
        %v4127 = vlaneseq
        %v4128 = vshrl.u32 %v4127, 7
        %v4129 = vsub.s32 %v492, %v4128
        %v4130 = vrot.slane %v3995, %v4129
        %v4131 = vlaneseq
        %v4132 = vshrl.u32 %v4131, 7
        %v4133 = vsub.s32 %v2884, %v4132
        %v4134 = vrot.slane %v3998, %v4133
        %v4135 = vsel %vm2889, %v4134, %v4130
        %v4136 = vlaneseq
        %v4137 = vshrl.u32 %v4136, 7
        %v4138 = vsub.s32 %v492, %v4137
        %v4139 = vrot.slane %v4001, %v4138
        %v4140 = vlaneseq
        %v4141 = vshrl.u32 %v4140, 7
        %v4142 = vsub.s32 %v2884, %v4141
        %v4143 = vrot.slane %v4004, %v4142
        %v4144 = vsel %vm2889, %v4143, %v4139
        %v4145 = vlaneseq
        %v4146 = vshrl.u32 %v4145, 7
        %v4147 = vsub.s32 %v492, %v4146
        %v4148 = vrot.slane %v4007, %v4147
        %v4149 = vlaneseq
        %v4150 = vshrl.u32 %v4149, 7
        %v4151 = vsub.s32 %v2884, %v4150
        %v4152 = vrot.slane %v4010, %v4151
        %v4153 = vsel %vm2889, %v4152, %v4148
        %v4154 = vlaneseq
        %v4155 = vshrl.u32 %v4154, 7
        %v4156 = vsub.s32 %v492, %v4155
        %v4157 = vrot.slane %v4013, %v4156
        %v4158 = vlaneseq
        %v4159 = vshrl.u32 %v4158, 7
        %v4160 = vsub.s32 %v2884, %v4159
        %v4161 = vrot.slane %v4016, %v4160
        %v4162 = vsel %vm2889, %v4161, %v4157
        %v4163 = vlaneseq
        %v4164 = vshrl.u32 %v4163, 7
        %v4165 = vsub.s32 %v492, %v4164
        %v4166 = vrot.slane %v4019, %v4165
        %v4167 = vlaneseq
        %v4168 = vshrl.u32 %v4167, 7
        %v4169 = vsub.s32 %v2884, %v4168
        %v4170 = vrot.slane %v4022, %v4169
        %v4171 = vsel %vm2889, %v4170, %v4166
        %v4172 = vlaneseq
        %v4173 = vshrl.u32 %v4172, 7
        %v4174 = vsub.s32 %v492, %v4173
        %v4175 = vrot.slane %v4025, %v4174
        %v4176 = vlaneseq
        %v4177 = vshrl.u32 %v4176, 7
        %v4178 = vsub.s32 %v2884, %v4177
        %v4179 = vrot.slane %v4028, %v4178
        %v4180 = vsel %vm2889, %v4179, %v4175
        %v4181 = vlaneseq
        %v4182 = vshrl.u32 %v4181, 7
        %v4183 = vsub.s32 %v492, %v4182
        %v4184 = vrot.slane %v4031, %v4183
        %v4185 = vlaneseq
        %v4186 = vshrl.u32 %v4185, 7
        %v4187 = vsub.s32 %v2884, %v4186
        %v4188 = vrot.slane %v4034, %v4187
        %v4189 = vsel %vm2889, %v4188, %v4184
        %v4190 = vlaneseq
        %v4191 = vshrl.u32 %v4190, 7
        %v4192 = vsub.s32 %v492, %v4191
        %v4193 = vrot.slane %v4037, %v4192
        %v4194 = vlaneseq
        %v4195 = vshrl.u32 %v4194, 7
        %v4196 = vsub.s32 %v2884, %v4195
        %v4197 = vrot.slane %v4040, %v4196
        %v4198 = vsel %vm2889, %v4197, %v4193
        %v4199 = vlaneseq
        %v4200 = vshrl.u32 %v4199, 7
        %v4201 = vsub.s32 %v492, %v4200
        %v4202 = vrot.slane %v4043, %v4201
        %v4203 = vlaneseq
        %v4204 = vshrl.u32 %v4203, 7
        %v4205 = vsub.s32 %v2884, %v4204
        %v4206 = vrot.slane %v4046, %v4205
        %v4207 = vsel %vm2889, %v4206, %v4202
        %v4208 = vlaneseq
        %v4209 = vshrl.u32 %v4208, 7
        %v4210 = vsub.s32 %v492, %v4209
        %v4211 = vrot.slane %v4049, %v4210
        %v4212 = vlaneseq
        %v4213 = vshrl.u32 %v4212, 7
        %v4214 = vsub.s32 %v2884, %v4213
        %v4215 = vrot.slane %v4052, %v4214
        %v4216 = vsel %vm2889, %v4215, %v4211
        %v4217 = vlaneseq
        %v4218 = vshrl.u32 %v4217, 7
        %v4219 = vsub.s32 %v492, %v4218
        %v4220 = vrot.slane %v4055, %v4219
        %v4221 = vlaneseq
        %v4222 = vshrl.u32 %v4221, 7
        %v4223 = vsub.s32 %v2884, %v4222
        %v4224 = vrot.slane %v4058, %v4223
        %v4225 = vsel %vm2889, %v4224, %v4220
        %v4226 = vlaneseq
        %v4227 = vshrl.u32 %v4226, 7
        %v4228 = vsub.s32 %v492, %v4227
        %v4229 = vrot.slane %v4061, %v4228
        %v4230 = vlaneseq
        %v4231 = vshrl.u32 %v4230, 7
        %v4232 = vsub.s32 %v2884, %v4231
        %v4233 = vrot.slane %v4064, %v4232
        %v4234 = vsel %vm2889, %v4233, %v4229
        %v4235 = vlaneseq
        %v4236 = vshrl.u32 %v4235, 7
        %v4237 = vsub.s32 %v492, %v4236
        %v4238 = vrot.slane %v4067, %v4237
        %v4239 = vlaneseq
        %v4240 = vshrl.u32 %v4239, 7
        %v4241 = vsub.s32 %v2884, %v4240
        %v4242 = vrot.slane %v4070, %v4241
        %v4243 = vsel %vm2889, %v4242, %v4238
        %v4244 = vlaneseq
        %v4245 = vshrl.u32 %v4244, 7
        %v4246 = vsub.s32 %v492, %v4245
        %v4247 = vrot.slane %v4073, %v4246
        %v4248 = vlaneseq
        %v4249 = vshrl.u32 %v4248, 7
        %v4250 = vsub.s32 %v2884, %v4249
        %v4251 = vrot.slane %v4076, %v4250
        %v4252 = vsel %vm2889, %v4251, %v4247
        %v4253 = vsel %vm3026, %v4126, %v4117
        %v4254 = vsel %vm3028, %v4135, %v4253
        %v4255 = vsel %vm3030, %v4144, %v4254
        %v4256 = vsel %vm3032, %v4153, %v4255
        %v4257 = vsel %vm3034, %v4162, %v4256
        %v4258 = vsel %vm3036, %v4171, %v4257
        %v4259 = vsel %vm3038, %v4180, %v4258
        %v4260 = vsel %vm3026, %v4198, %v4189
        %v4261 = vsel %vm3028, %v4207, %v4260
        %v4262 = vsel %vm3030, %v4216, %v4261
        %v4263 = vsel %vm3032, %v4225, %v4262
        %v4264 = vsel %vm3034, %v4234, %v4263
        %v4265 = vsel %vm3036, %v4243, %v4264
        %v4266 = vsel %vm3038, %v4252, %v4265
        %v4269 = vsel %vm1521, %v4259, -inf
        %4270 = vmax.xlane.f32.xlu0 %v4269
        %v4271 = vpop.xlane.xlu0 %4270
        %v4272 = vsel %vm1521, %v4266, -inf
        %4273 = vmax.xlane.f32.xlu0 %v4272
        %v4274 = vpop.xlane.xlu0 %4273
        %v4277 = vlaneseq
        %v4278 = vshrl.u32 %v4277, 7
        %v4279 = vsub.s32 0, %v4278
        %v4280 = vrot.slane %v4271, %v4279
        %v4281 = vlaneseq
        %v4282 = vshrl.u32 %v4281, 7
        %v4283 = vsub.s32 1, %v4282
        %v4284 = vrot.slane %v4271, %v4283
        %v4285 = vlaneseq
        %v4286 = vshrl.u32 %v4285, 7
        %v4287 = vsub.s32 2, %v4286
        %v4288 = vrot.slane %v4271, %v4287
        %v4289 = vlaneseq
        %v4290 = vshrl.u32 %v4289, 7
        %v4291 = vsub.s32 3, %v4290
        %v4292 = vrot.slane %v4271, %v4291
        %v4293 = vlaneseq
        %v4294 = vshrl.u32 %v4293, 7
        %v4295 = vsub.s32 4, %v4294
        %v4296 = vrot.slane %v4271, %v4295
        %v4297 = vlaneseq
        %v4298 = vshrl.u32 %v4297, 7
        %v4299 = vsub.s32 5, %v4298
        %v4300 = vrot.slane %v4271, %v4299
        %v4301 = vlaneseq
        %v4302 = vshrl.u32 %v4301, 7
        %v4303 = vsub.s32 6, %v4302
        %v4304 = vrot.slane %v4271, %v4303
        %v4305 = vlaneseq
        %v4306 = vshrl.u32 %v4305, 7
        %v4307 = vsub.s32 7, %v4306
        %v4308 = vrot.slane %v4271, %v4307
        %v4309 = vlaneseq
        %v4310 = vshrl.u32 %v4309, 7
        %v4311 = vsub.s32 0, %v4310
        %v4312 = vrot.slane %v4274, %v4311
        %v4313 = vlaneseq
        %v4314 = vshrl.u32 %v4313, 7
        %v4315 = vsub.s32 1, %v4314
        %v4316 = vrot.slane %v4274, %v4315
        %v4317 = vlaneseq
        %v4318 = vshrl.u32 %v4317, 7
        %v4319 = vsub.s32 2, %v4318
        %v4320 = vrot.slane %v4274, %v4319
        %v4321 = vlaneseq
        %v4322 = vshrl.u32 %v4321, 7
        %v4323 = vsub.s32 3, %v4322
        %v4324 = vrot.slane %v4274, %v4323
        %v4325 = vlaneseq
        %v4326 = vshrl.u32 %v4325, 7
        %v4327 = vsub.s32 4, %v4326
        %v4328 = vrot.slane %v4274, %v4327
        %v4329 = vlaneseq
        %v4330 = vshrl.u32 %v4329, 7
        %v4331 = vsub.s32 5, %v4330
        %v4332 = vrot.slane %v4274, %v4331
        %v4333 = vlaneseq
        %v4334 = vshrl.u32 %v4333, 7
        %v4335 = vsub.s32 6, %v4334
        %v4336 = vrot.slane %v4274, %v4335
        %v4337 = vlaneseq
        %v4338 = vshrl.u32 %v4337, 7
        %v4339 = vsub.s32 7, %v4338
        %v4340 = vrot.slane %v4274, %v4339
        %v4357 = vsub.f32 %v3983, %v4280
        %v4358 = vsub.f32 %v3986, %v4280
        %v4359 = vsub.f32 %v3989, %v4284
        %v4360 = vsub.f32 %v3992, %v4284
        %v4361 = vsub.f32 %v3995, %v4288
        %v4362 = vsub.f32 %v3998, %v4288
        %v4363 = vsub.f32 %v4001, %v4292
        %v4364 = vsub.f32 %v4004, %v4292
        %v4365 = vsub.f32 %v4007, %v4296
        %v4366 = vsub.f32 %v4010, %v4296
        %v4367 = vsub.f32 %v4013, %v4300
        %v4368 = vsub.f32 %v4016, %v4300
        %v4369 = vsub.f32 %v4019, %v4304
        %v4370 = vsub.f32 %v4022, %v4304
        %v4371 = vsub.f32 %v4025, %v4308
        %v4372 = vsub.f32 %v4028, %v4308
        %v4373 = vsub.f32 %v4031, %v4312
        %v4374 = vsub.f32 %v4034, %v4312
        %v4375 = vsub.f32 %v4037, %v4316
        %v4376 = vsub.f32 %v4040, %v4316
        %v4377 = vsub.f32 %v4043, %v4320
        %v4378 = vsub.f32 %v4046, %v4320
        %v4379 = vsub.f32 %v4049, %v4324
        %v4380 = vsub.f32 %v4052, %v4324
        %v4381 = vsub.f32 %v4055, %v4328
        %v4382 = vsub.f32 %v4058, %v4328
        %v4383 = vsub.f32 %v4061, %v4332
        %v4384 = vsub.f32 %v4064, %v4332
        %v4385 = vsub.f32 %v4067, %v4336
        %v4386 = vsub.f32 %v4070, %v4336
        %v4387 = vsub.f32 %v4073, %v4340
        %v4388 = vsub.f32 %v4076, %v4340
        %v4389 = vmul.f32 %v4357, 1.442695
        %v4390 = vpow.pop %v4389
        %v4391 = vmul.f32 %v4358, 1.442695
        %v4392 = vpow.pop %v4391
        %v4393 = vmul.f32 %v4359, 1.442695
        %v4394 = vpow.pop %v4393
        %v4395 = vmul.f32 %v4360, 1.442695
        %v4396 = vpow.pop %v4395
        %v4397 = vmul.f32 %v4361, 1.442695
        %v4398 = vpow.pop %v4397
        %v4399 = vmul.f32 %v4362, 1.442695
        %v4400 = vpow.pop %v4399
        %v4401 = vmul.f32 %v4363, 1.442695
        %v4402 = vpow.pop %v4401
        %v4403 = vmul.f32 %v4364, 1.442695
        %v4404 = vpow.pop %v4403
        %v4405 = vmul.f32 %v4365, 1.442695
        %v4406 = vpow.pop %v4405
        %v4407 = vmul.f32 %v4366, 1.442695
        %v4408 = vpow.pop %v4407
        %v4409 = vmul.f32 %v4367, 1.442695
        %v4410 = vpow.pop %v4409
        %v4411 = vmul.f32 %v4368, 1.442695
        %v4412 = vpow.pop %v4411
        %v4413 = vmul.f32 %v4369, 1.442695
        %v4414 = vpow.pop %v4413
        %v4415 = vmul.f32 %v4370, 1.442695
        %v4416 = vpow.pop %v4415
        %v4417 = vmul.f32 %v4371, 1.442695
        %v4418 = vpow.pop %v4417
        %v4419 = vmul.f32 %v4372, 1.442695
        %v4420 = vpow.pop %v4419
        %v4421 = vmul.f32 %v4373, 1.442695
        %v4422 = vpow.pop %v4421
        %v4423 = vmul.f32 %v4374, 1.442695
        %v4424 = vpow.pop %v4423
        %v4425 = vmul.f32 %v4375, 1.442695
        %v4426 = vpow.pop %v4425
        %v4427 = vmul.f32 %v4376, 1.442695
        %v4428 = vpow.pop %v4427
        %v4429 = vmul.f32 %v4377, 1.442695
        %v4430 = vpow.pop %v4429
        %v4431 = vmul.f32 %v4378, 1.442695
        %v4432 = vpow.pop %v4431
        %v4433 = vmul.f32 %v4379, 1.442695
        %v4434 = vpow.pop %v4433
        %v4435 = vmul.f32 %v4380, 1.442695
        %v4436 = vpow.pop %v4435
        %v4437 = vmul.f32 %v4381, 1.442695
        %v4438 = vpow.pop %v4437
        %v4439 = vmul.f32 %v4382, 1.442695
        %v4440 = vpow.pop %v4439
        %v4441 = vmul.f32 %v4383, 1.442695
        %v4442 = vpow.pop %v4441
        %v4443 = vmul.f32 %v4384, 1.442695
        %v4444 = vpow.pop %v4443
        %v4445 = vmul.f32 %v4385, 1.442695
        %v4446 = vpow.pop %v4445
        %v4447 = vmul.f32 %v4386, 1.442695
        %v4448 = vpow.pop %v4447
        %v4449 = vmul.f32 %v4387, 1.442695
        %v4450 = vpow.pop %v4449
        %v4451 = vmul.f32 %v4388, 1.442695
        %v4452 = vpow.pop %v4451
        %v4453 = vmul.f32 %v4390, %v3241
        %v4454 = vmul.f32 %v4392, %v3245
        %v4455 = vmul.f32 %v4394, %v3252
        %v4456 = vmul.f32 %v4396, %v3256
        %v4457 = vmul.f32 %v4398, %v3263
        %v4458 = vmul.f32 %v4400, %v3267
        %v4459 = vmul.f32 %v4402, %v3274
        %v4460 = vmul.f32 %v4404, %v3278
        %v4461 = vmul.f32 %v4406, %v3285
        %v4462 = vmul.f32 %v4408, %v3289
        %v4463 = vmul.f32 %v4410, %v3296
        %v4464 = vmul.f32 %v4412, %v3300
        %v4465 = vmul.f32 %v4414, %v3307
        %v4466 = vmul.f32 %v4416, %v3311
        %v4467 = vmul.f32 %v4418, %v3318
        %v4468 = vmul.f32 %v4420, %v3322
        %v4469 = vmul.f32 %v4422, %v3329
        %v4470 = vmul.f32 %v4424, %v3333
        %v4471 = vmul.f32 %v4426, %v3340
        %v4472 = vmul.f32 %v4428, %v3344
        %v4473 = vmul.f32 %v4430, %v3351
        %v4474 = vmul.f32 %v4432, %v3355
        %v4475 = vmul.f32 %v4434, %v3362
        %v4476 = vmul.f32 %v4436, %v3366
        %v4477 = vmul.f32 %v4438, %v3373
        %v4478 = vmul.f32 %v4440, %v3377
        %v4479 = vmul.f32 %v4442, %v3384
        %v4480 = vmul.f32 %v4444, %v3388
        %v4481 = vmul.f32 %v4446, %v3395
        %v4482 = vmul.f32 %v4448, %v3399
        %v4483 = vmul.f32 %v4450, %v3406
        %v4484 = vmul.f32 %v4452, %v3410
        %4517 = vset.pattern.permute.xlu0 0
        %4518 = vperm.xlu0 %4517, %v4453
        %v4519 = vpop.permute.xlu0 %4518
        %4520 = vset.pattern.permute.xlu0 0
        %4521 = vperm.xlu0 %4520, %v4454
        %v4522 = vpop.permute.xlu0 %4521
        %4523 = vset.pattern.permute.xlu0 0
        %4524 = vperm.xlu0 %4523, %v4455
        %v4525 = vpop.permute.xlu0 %4524
        %4526 = vset.pattern.permute.xlu0 0
        %4527 = vperm.xlu0 %4526, %v4456
        %v4528 = vpop.permute.xlu0 %4527
        %4529 = vset.pattern.permute.xlu0 0
        %4530 = vperm.xlu0 %4529, %v4457
        %v4531 = vpop.permute.xlu0 %4530
        %4532 = vset.pattern.permute.xlu0 0
        %4533 = vperm.xlu0 %4532, %v4458
        %v4534 = vpop.permute.xlu0 %4533
        %4535 = vset.pattern.permute.xlu0 0
        %4536 = vperm.xlu0 %4535, %v4459
        %v4537 = vpop.permute.xlu0 %4536
        %4538 = vset.pattern.permute.xlu0 0
        %4539 = vperm.xlu0 %4538, %v4460
        %v4540 = vpop.permute.xlu0 %4539
        %4541 = vset.pattern.permute.xlu0 0
        %4542 = vperm.xlu0 %4541, %v4461
        %v4543 = vpop.permute.xlu0 %4542
        %4544 = vset.pattern.permute.xlu0 0
        %4545 = vperm.xlu0 %4544, %v4462
        %v4546 = vpop.permute.xlu0 %4545
        %4547 = vset.pattern.permute.xlu0 0
        %4548 = vperm.xlu0 %4547, %v4463
        %v4549 = vpop.permute.xlu0 %4548
        %4550 = vset.pattern.permute.xlu0 0
        %4551 = vperm.xlu0 %4550, %v4464
        %v4552 = vpop.permute.xlu0 %4551
        %4553 = vset.pattern.permute.xlu0 0
        %4554 = vperm.xlu0 %4553, %v4465
        %v4555 = vpop.permute.xlu0 %4554
        %4556 = vset.pattern.permute.xlu0 0
        %4557 = vperm.xlu0 %4556, %v4466
        %v4558 = vpop.permute.xlu0 %4557
        %4559 = vset.pattern.permute.xlu0 0
        %4560 = vperm.xlu0 %4559, %v4467
        %v4561 = vpop.permute.xlu0 %4560
        %4562 = vset.pattern.permute.xlu0 0
        %4563 = vperm.xlu0 %4562, %v4468
        %v4564 = vpop.permute.xlu0 %4563
        %4565 = vset.pattern.permute.xlu0 0
        %4566 = vperm.xlu0 %4565, %v4469
        %v4567 = vpop.permute.xlu0 %4566
        %4568 = vset.pattern.permute.xlu0 0
        %4569 = vperm.xlu0 %4568, %v4470
        %v4570 = vpop.permute.xlu0 %4569
        %4571 = vset.pattern.permute.xlu0 0
        %4572 = vperm.xlu0 %4571, %v4471
        %v4573 = vpop.permute.xlu0 %4572
        %4574 = vset.pattern.permute.xlu0 0
        %4575 = vperm.xlu0 %4574, %v4472
        %v4576 = vpop.permute.xlu0 %4575
        %4577 = vset.pattern.permute.xlu0 0
        %4578 = vperm.xlu0 %4577, %v4473
        %v4579 = vpop.permute.xlu0 %4578
        %4580 = vset.pattern.permute.xlu0 0
        %4581 = vperm.xlu0 %4580, %v4474
        %v4582 = vpop.permute.xlu0 %4581
        %4583 = vset.pattern.permute.xlu0 0
        %4584 = vperm.xlu0 %4583, %v4475
        %v4585 = vpop.permute.xlu0 %4584
        %4586 = vset.pattern.permute.xlu0 0
        %4587 = vperm.xlu0 %4586, %v4476
        %v4588 = vpop.permute.xlu0 %4587
        %4589 = vset.pattern.permute.xlu0 0
        %4590 = vperm.xlu0 %4589, %v4477
        %v4591 = vpop.permute.xlu0 %4590
        %4592 = vset.pattern.permute.xlu0 0
        %4593 = vperm.xlu0 %4592, %v4478
        %v4594 = vpop.permute.xlu0 %4593
        %4595 = vset.pattern.permute.xlu0 0
        %4596 = vperm.xlu0 %4595, %v4479
        %v4597 = vpop.permute.xlu0 %4596
        %4598 = vset.pattern.permute.xlu0 0
        %4599 = vperm.xlu0 %4598, %v4480
        %v4600 = vpop.permute.xlu0 %4599
        %4601 = vset.pattern.permute.xlu0 0
        %4602 = vperm.xlu0 %4601, %v4481
        %v4603 = vpop.permute.xlu0 %4602
        %4604 = vset.pattern.permute.xlu0 0
        %4605 = vperm.xlu0 %4604, %v4482
        %v4606 = vpop.permute.xlu0 %4605
        %4607 = vset.pattern.permute.xlu0 0
        %4608 = vperm.xlu0 %4607, %v4483
        %v4609 = vpop.permute.xlu0 %4608
        %4610 = vset.pattern.permute.xlu0 0
        %4611 = vperm.xlu0 %4610, %v4484
        %v4612 = vpop.permute.xlu0 %4611
        %v4613 = vlaneseq
        %v4614 = vshrl.u32 %v4613, 7
        %v4615 = vsub.s32 %v492, %v4614
        %v4616 = vrot.slane %v4519, %v4615
        %v4617 = vlaneseq
        %v4618 = vshrl.u32 %v4617, 7
        %v4619 = vsub.s32 %v2884, %v4618
        %v4620 = vrot.slane %v4522, %v4619
        %v4621 = vsel %vm2889, %v4620, %v4616
        %v4622 = vlaneseq
        %v4623 = vshrl.u32 %v4622, 7
        %v4624 = vsub.s32 %v492, %v4623
        %v4625 = vrot.slane %v4525, %v4624
        %v4626 = vlaneseq
        %v4627 = vshrl.u32 %v4626, 7
        %v4628 = vsub.s32 %v2884, %v4627
        %v4629 = vrot.slane %v4528, %v4628
        %v4630 = vsel %vm2889, %v4629, %v4625
        %v4631 = vlaneseq
        %v4632 = vshrl.u32 %v4631, 7
        %v4633 = vsub.s32 %v492, %v4632
        %v4634 = vrot.slane %v4531, %v4633
        %v4635 = vlaneseq
        %v4636 = vshrl.u32 %v4635, 7
        %v4637 = vsub.s32 %v2884, %v4636
        %v4638 = vrot.slane %v4534, %v4637
        %v4639 = vsel %vm2889, %v4638, %v4634
        %v4640 = vlaneseq
        %v4641 = vshrl.u32 %v4640, 7
        %v4642 = vsub.s32 %v492, %v4641
        %v4643 = vrot.slane %v4537, %v4642
        %v4644 = vlaneseq
        %v4645 = vshrl.u32 %v4644, 7
        %v4646 = vsub.s32 %v2884, %v4645
        %v4647 = vrot.slane %v4540, %v4646
        %v4648 = vsel %vm2889, %v4647, %v4643
        %v4649 = vlaneseq
        %v4650 = vshrl.u32 %v4649, 7
        %v4651 = vsub.s32 %v492, %v4650
        %v4652 = vrot.slane %v4543, %v4651
        %v4653 = vlaneseq
        %v4654 = vshrl.u32 %v4653, 7
        %v4655 = vsub.s32 %v2884, %v4654
        %v4656 = vrot.slane %v4546, %v4655
        %v4657 = vsel %vm2889, %v4656, %v4652
        %v4658 = vlaneseq
        %v4659 = vshrl.u32 %v4658, 7
        %v4660 = vsub.s32 %v492, %v4659
        %v4661 = vrot.slane %v4549, %v4660
        %v4662 = vlaneseq
        %v4663 = vshrl.u32 %v4662, 7
        %v4664 = vsub.s32 %v2884, %v4663
        %v4665 = vrot.slane %v4552, %v4664
        %v4666 = vsel %vm2889, %v4665, %v4661
        %v4667 = vlaneseq
        %v4668 = vshrl.u32 %v4667, 7
        %v4669 = vsub.s32 %v492, %v4668
        %v4670 = vrot.slane %v4555, %v4669
        %v4671 = vlaneseq
        %v4672 = vshrl.u32 %v4671, 7
        %v4673 = vsub.s32 %v2884, %v4672
        %v4674 = vrot.slane %v4558, %v4673
        %v4675 = vsel %vm2889, %v4674, %v4670
        %v4676 = vlaneseq
        %v4677 = vshrl.u32 %v4676, 7
        %v4678 = vsub.s32 %v492, %v4677
        %v4679 = vrot.slane %v4561, %v4678
        %v4680 = vlaneseq
        %v4681 = vshrl.u32 %v4680, 7
        %v4682 = vsub.s32 %v2884, %v4681
        %v4683 = vrot.slane %v4564, %v4682
        %v4684 = vsel %vm2889, %v4683, %v4679
        %v4685 = vlaneseq
        %v4686 = vshrl.u32 %v4685, 7
        %v4687 = vsub.s32 %v492, %v4686
        %v4688 = vrot.slane %v4567, %v4687
        %v4689 = vlaneseq
        %v4690 = vshrl.u32 %v4689, 7
        %v4691 = vsub.s32 %v2884, %v4690
        %v4692 = vrot.slane %v4570, %v4691
        %v4693 = vsel %vm2889, %v4692, %v4688
        %v4694 = vlaneseq
        %v4695 = vshrl.u32 %v4694, 7
        %v4696 = vsub.s32 %v492, %v4695
        %v4697 = vrot.slane %v4573, %v4696
        %v4698 = vlaneseq
        %v4699 = vshrl.u32 %v4698, 7
        %v4700 = vsub.s32 %v2884, %v4699
        %v4701 = vrot.slane %v4576, %v4700
        %v4702 = vsel %vm2889, %v4701, %v4697
        %v4703 = vlaneseq
        %v4704 = vshrl.u32 %v4703, 7
        %v4705 = vsub.s32 %v492, %v4704
        %v4706 = vrot.slane %v4579, %v4705
        %v4707 = vlaneseq
        %v4708 = vshrl.u32 %v4707, 7
        %v4709 = vsub.s32 %v2884, %v4708
        %v4710 = vrot.slane %v4582, %v4709
        %v4711 = vsel %vm2889, %v4710, %v4706
        %v4712 = vlaneseq
        %v4713 = vshrl.u32 %v4712, 7
        %v4714 = vsub.s32 %v492, %v4713
        %v4715 = vrot.slane %v4585, %v4714
        %v4716 = vlaneseq
        %v4717 = vshrl.u32 %v4716, 7
        %v4718 = vsub.s32 %v2884, %v4717
        %v4719 = vrot.slane %v4588, %v4718
        %v4720 = vsel %vm2889, %v4719, %v4715
        %v4721 = vlaneseq
        %v4722 = vshrl.u32 %v4721, 7
        %v4723 = vsub.s32 %v492, %v4722
        %v4724 = vrot.slane %v4591, %v4723
        %v4725 = vlaneseq
        %v4726 = vshrl.u32 %v4725, 7
        %v4727 = vsub.s32 %v2884, %v4726
        %v4728 = vrot.slane %v4594, %v4727
        %v4729 = vsel %vm2889, %v4728, %v4724
        %v4730 = vlaneseq
        %v4731 = vshrl.u32 %v4730, 7
        %v4732 = vsub.s32 %v492, %v4731
        %v4733 = vrot.slane %v4597, %v4732
        %v4734 = vlaneseq
        %v4735 = vshrl.u32 %v4734, 7
        %v4736 = vsub.s32 %v2884, %v4735
        %v4737 = vrot.slane %v4600, %v4736
        %v4738 = vsel %vm2889, %v4737, %v4733
        %v4739 = vlaneseq
        %v4740 = vshrl.u32 %v4739, 7
        %v4741 = vsub.s32 %v492, %v4740
        %v4742 = vrot.slane %v4603, %v4741
        %v4743 = vlaneseq
        %v4744 = vshrl.u32 %v4743, 7
        %v4745 = vsub.s32 %v2884, %v4744
        %v4746 = vrot.slane %v4606, %v4745
        %v4747 = vsel %vm2889, %v4746, %v4742
        %v4748 = vlaneseq
        %v4749 = vshrl.u32 %v4748, 7
        %v4750 = vsub.s32 %v492, %v4749
        %v4751 = vrot.slane %v4609, %v4750
        %v4752 = vlaneseq
        %v4753 = vshrl.u32 %v4752, 7
        %v4754 = vsub.s32 %v2884, %v4753
        %v4755 = vrot.slane %v4612, %v4754
        %v4756 = vsel %vm2889, %v4755, %v4751
        %v4757 = vsel %vm3026, %v4630, %v4621
        %v4758 = vsel %vm3028, %v4639, %v4757
        %v4759 = vsel %vm3030, %v4648, %v4758
        %v4760 = vsel %vm3032, %v4657, %v4759
        %v4761 = vsel %vm3034, %v4666, %v4760
        %v4762 = vsel %vm3036, %v4675, %v4761
        %v4763 = vsel %vm3038, %v4684, %v4762
        %v4764 = vsel %vm3026, %v4702, %v4693
        %v4765 = vsel %vm3028, %v4711, %v4764
        %v4766 = vsel %vm3030, %v4720, %v4765
        %v4767 = vsel %vm3032, %v4729, %v4766
        %v4768 = vsel %vm3034, %v4738, %v4767
        %v4769 = vsel %vm3036, %v4747, %v4768
        %v4770 = vsel %vm3038, %v4756, %v4769
        %v4773 = vsel %vm1521, %v4763, 0.0
        %4774 = vadd.xlane.f32.xlu0 %v4773
        %v4775 = vpop.xlane.xlu0 %4774
        %v4776 = vsel %vm1521, %v4770, 0.0
        %4777 = vadd.xlane.f32.xlu0 %v4776
        %v4778 = vpop.xlane.xlu0 %4777
        %v4779 = vrcp.pop %v4775
        %v4780 = vrcp.pop %v4778
        %v4783 = vlaneseq
        %v4784 = vshrl.u32 %v4783, 7
        %v4785 = vsub.s32 0, %v4784
        %v4786 = vrot.slane %v4779, %v4785
        %v4787 = vlaneseq
        %v4788 = vshrl.u32 %v4787, 7
        %v4789 = vsub.s32 1, %v4788
        %v4790 = vrot.slane %v4779, %v4789
        %v4791 = vlaneseq
        %v4792 = vshrl.u32 %v4791, 7
        %v4793 = vsub.s32 2, %v4792
        %v4794 = vrot.slane %v4779, %v4793
        %v4795 = vlaneseq
        %v4796 = vshrl.u32 %v4795, 7
        %v4797 = vsub.s32 3, %v4796
        %v4798 = vrot.slane %v4779, %v4797
        %v4799 = vlaneseq
        %v4800 = vshrl.u32 %v4799, 7
        %v4801 = vsub.s32 4, %v4800
        %v4802 = vrot.slane %v4779, %v4801
        %v4803 = vlaneseq
        %v4804 = vshrl.u32 %v4803, 7
        %v4805 = vsub.s32 5, %v4804
        %v4806 = vrot.slane %v4779, %v4805
        %v4807 = vlaneseq
        %v4808 = vshrl.u32 %v4807, 7
        %v4809 = vsub.s32 6, %v4808
        %v4810 = vrot.slane %v4779, %v4809
        %v4811 = vlaneseq
        %v4812 = vshrl.u32 %v4811, 7
        %v4813 = vsub.s32 7, %v4812
        %v4814 = vrot.slane %v4779, %v4813
        %v4815 = vlaneseq
        %v4816 = vshrl.u32 %v4815, 7
        %v4817 = vsub.s32 0, %v4816
        %v4818 = vrot.slane %v4780, %v4817
        %v4819 = vlaneseq
        %v4820 = vshrl.u32 %v4819, 7
        %v4821 = vsub.s32 1, %v4820
        %v4822 = vrot.slane %v4780, %v4821
        %v4823 = vlaneseq
        %v4824 = vshrl.u32 %v4823, 7
        %v4825 = vsub.s32 2, %v4824
        %v4826 = vrot.slane %v4780, %v4825
        %v4827 = vlaneseq
        %v4828 = vshrl.u32 %v4827, 7
        %v4829 = vsub.s32 3, %v4828
        %v4830 = vrot.slane %v4780, %v4829
        %v4831 = vlaneseq
        %v4832 = vshrl.u32 %v4831, 7
        %v4833 = vsub.s32 4, %v4832
        %v4834 = vrot.slane %v4780, %v4833
        %v4835 = vlaneseq
        %v4836 = vshrl.u32 %v4835, 7
        %v4837 = vsub.s32 5, %v4836
        %v4838 = vrot.slane %v4780, %v4837
        %v4839 = vlaneseq
        %v4840 = vshrl.u32 %v4839, 7
        %v4841 = vsub.s32 6, %v4840
        %v4842 = vrot.slane %v4780, %v4841
        %v4843 = vlaneseq
        %v4844 = vshrl.u32 %v4843, 7
        %v4845 = vsub.s32 7, %v4844
        %v4846 = vrot.slane %v4780, %v4845
        %v4863 = vmul.f32 %v4453, %v4786
        %v4864 = vmul.f32 %v4454, %v4786
        %v4865 = vmul.f32 %v4455, %v4790
        %v4866 = vmul.f32 %v4456, %v4790
        %v4867 = vmul.f32 %v4457, %v4794
        %v4868 = vmul.f32 %v4458, %v4794
        %v4869 = vmul.f32 %v4459, %v4798
        %v4870 = vmul.f32 %v4460, %v4798
        %v4871 = vmul.f32 %v4461, %v4802
        %v4872 = vmul.f32 %v4462, %v4802
        %v4873 = vmul.f32 %v4463, %v4806
        %v4874 = vmul.f32 %v4464, %v4806
        %v4875 = vmul.f32 %v4465, %v4810
        %v4876 = vmul.f32 %v4466, %v4810
        %v4877 = vmul.f32 %v4467, %v4814
        %v4878 = vmul.f32 %v4468, %v4814
        %v4879 = vmul.f32 %v4469, %v4818
        %v4880 = vmul.f32 %v4470, %v4818
        %v4881 = vmul.f32 %v4471, %v4822
        %v4882 = vmul.f32 %v4472, %v4822
        %v4883 = vmul.f32 %v4473, %v4826
        %v4884 = vmul.f32 %v4474, %v4826
        %v4885 = vmul.f32 %v4475, %v4830
        %v4886 = vmul.f32 %v4476, %v4830
        %v4887 = vmul.f32 %v4477, %v4834
        %v4888 = vmul.f32 %v4478, %v4834
        %v4889 = vmul.f32 %v4479, %v4838
        %v4890 = vmul.f32 %v4480, %v4838
        %v4891 = vmul.f32 %v4481, %v4842
        %v4892 = vmul.f32 %v4482, %v4842
        %v4893 = vmul.f32 %v4483, %v4846
        %v4894 = vmul.f32 %v4484, %v4846
        %4927 = vset.pattern.permute.xlu0 0
        %4928 = vperm.xlu0 %4927, %v3853
        %v4929 = vpop.permute.xlu0 %4928
        %4930 = vset.pattern.permute.xlu0 0
        %4931 = vperm.xlu0 %4930, %v3854
        %v4932 = vpop.permute.xlu0 %4931
        %4933 = vset.pattern.permute.xlu0 0
        %4934 = vperm.xlu0 %4933, %v3855
        %v4935 = vpop.permute.xlu0 %4934
        %4936 = vset.pattern.permute.xlu0 0
        %4937 = vperm.xlu0 %4936, %v3856
        %v4938 = vpop.permute.xlu0 %4937
        %4939 = vset.pattern.permute.xlu0 0
        %4940 = vperm.xlu0 %4939, %v3857
        %v4941 = vpop.permute.xlu0 %4940
        %4942 = vset.pattern.permute.xlu0 0
        %4943 = vperm.xlu0 %4942, %v3858
        %v4944 = vpop.permute.xlu0 %4943
        %4945 = vset.pattern.permute.xlu0 0
        %4946 = vperm.xlu0 %4945, %v3859
        %v4947 = vpop.permute.xlu0 %4946
        %4948 = vset.pattern.permute.xlu0 0
        %4949 = vperm.xlu0 %4948, %v3860
        %v4950 = vpop.permute.xlu0 %4949
        %4951 = vset.pattern.permute.xlu0 0
        %4952 = vperm.xlu0 %4951, %v3861
        %v4953 = vpop.permute.xlu0 %4952
        %4954 = vset.pattern.permute.xlu0 0
        %4955 = vperm.xlu0 %4954, %v3862
        %v4956 = vpop.permute.xlu0 %4955
        %4957 = vset.pattern.permute.xlu0 0
        %4958 = vperm.xlu0 %4957, %v3863
        %v4959 = vpop.permute.xlu0 %4958
        %4960 = vset.pattern.permute.xlu0 0
        %4961 = vperm.xlu0 %4960, %v3864
        %v4962 = vpop.permute.xlu0 %4961
        %4963 = vset.pattern.permute.xlu0 0
        %4964 = vperm.xlu0 %4963, %v3865
        %v4965 = vpop.permute.xlu0 %4964
        %4966 = vset.pattern.permute.xlu0 0
        %4967 = vperm.xlu0 %4966, %v3866
        %v4968 = vpop.permute.xlu0 %4967
        %4969 = vset.pattern.permute.xlu0 0
        %4970 = vperm.xlu0 %4969, %v3867
        %v4971 = vpop.permute.xlu0 %4970
        %4972 = vset.pattern.permute.xlu0 0
        %4973 = vperm.xlu0 %4972, %v3868
        %v4974 = vpop.permute.xlu0 %4973
        %4975 = vset.pattern.permute.xlu0 0
        %4976 = vperm.xlu0 %4975, %v3869
        %v4977 = vpop.permute.xlu0 %4976
        %4978 = vset.pattern.permute.xlu0 0
        %4979 = vperm.xlu0 %4978, %v3870
        %v4980 = vpop.permute.xlu0 %4979
        %4981 = vset.pattern.permute.xlu0 0
        %4982 = vperm.xlu0 %4981, %v3871
        %v4983 = vpop.permute.xlu0 %4982
        %4984 = vset.pattern.permute.xlu0 0
        %4985 = vperm.xlu0 %4984, %v3872
        %v4986 = vpop.permute.xlu0 %4985
        %4987 = vset.pattern.permute.xlu0 0
        %4988 = vperm.xlu0 %4987, %v3873
        %v4989 = vpop.permute.xlu0 %4988
        %4990 = vset.pattern.permute.xlu0 0
        %4991 = vperm.xlu0 %4990, %v3874
        %v4992 = vpop.permute.xlu0 %4991
        %4993 = vset.pattern.permute.xlu0 0
        %4994 = vperm.xlu0 %4993, %v3875
        %v4995 = vpop.permute.xlu0 %4994
        %4996 = vset.pattern.permute.xlu0 0
        %4997 = vperm.xlu0 %4996, %v3876
        %v4998 = vpop.permute.xlu0 %4997
        %4999 = vset.pattern.permute.xlu0 0
        %5000 = vperm.xlu0 %4999, %v3877
        %v5001 = vpop.permute.xlu0 %5000
        %5002 = vset.pattern.permute.xlu0 0
        %5003 = vperm.xlu0 %5002, %v3878
        %v5004 = vpop.permute.xlu0 %5003
        %5005 = vset.pattern.permute.xlu0 0
        %5006 = vperm.xlu0 %5005, %v3879
        %v5007 = vpop.permute.xlu0 %5006
        %5008 = vset.pattern.permute.xlu0 0
        %5009 = vperm.xlu0 %5008, %v3880
        %v5010 = vpop.permute.xlu0 %5009
        %5011 = vset.pattern.permute.xlu0 0
        %5012 = vperm.xlu0 %5011, %v3881
        %v5013 = vpop.permute.xlu0 %5012
        %5014 = vset.pattern.permute.xlu0 0
        %5015 = vperm.xlu0 %5014, %v3882
        %v5016 = vpop.permute.xlu0 %5015
        %5017 = vset.pattern.permute.xlu0 0
        %5018 = vperm.xlu0 %5017, %v3883
        %v5019 = vpop.permute.xlu0 %5018
        %5020 = vset.pattern.permute.xlu0 0
        %5021 = vperm.xlu0 %5020, %v3884
        %v5022 = vpop.permute.xlu0 %5021
        %v5023 = vlaneseq
        %v5024 = vshrl.u32 %v5023, 7
        %v5025 = vsub.s32 %v492, %v5024
        %v5026 = vrot.slane %v4929, %v5025
        %v5027 = vlaneseq
        %v5028 = vshrl.u32 %v5027, 7
        %v5029 = vsub.s32 %v2884, %v5028
        %v5030 = vrot.slane %v4932, %v5029
        %v5031 = vsel %vm2889, %v5030, %v5026
        %v5032 = vlaneseq
        %v5033 = vshrl.u32 %v5032, 7
        %v5034 = vsub.s32 %v492, %v5033
        %v5035 = vrot.slane %v4935, %v5034
        %v5036 = vlaneseq
        %v5037 = vshrl.u32 %v5036, 7
        %v5038 = vsub.s32 %v2884, %v5037
        %v5039 = vrot.slane %v4938, %v5038
        %v5040 = vsel %vm2889, %v5039, %v5035
        %v5041 = vlaneseq
        %v5042 = vshrl.u32 %v5041, 7
        %v5043 = vsub.s32 %v492, %v5042
        %v5044 = vrot.slane %v4941, %v5043
        %v5045 = vlaneseq
        %v5046 = vshrl.u32 %v5045, 7
        %v5047 = vsub.s32 %v2884, %v5046
        %v5048 = vrot.slane %v4944, %v5047
        %v5049 = vsel %vm2889, %v5048, %v5044
        %v5050 = vlaneseq
        %v5051 = vshrl.u32 %v5050, 7
        %v5052 = vsub.s32 %v492, %v5051
        %v5053 = vrot.slane %v4947, %v5052
        %v5054 = vlaneseq
        %v5055 = vshrl.u32 %v5054, 7
        %v5056 = vsub.s32 %v2884, %v5055
        %v5057 = vrot.slane %v4950, %v5056
        %v5058 = vsel %vm2889, %v5057, %v5053
        %v5059 = vlaneseq
        %v5060 = vshrl.u32 %v5059, 7
        %v5061 = vsub.s32 %v492, %v5060
        %v5062 = vrot.slane %v4953, %v5061
        %v5063 = vlaneseq
        %v5064 = vshrl.u32 %v5063, 7
        %v5065 = vsub.s32 %v2884, %v5064
        %v5066 = vrot.slane %v4956, %v5065
        %v5067 = vsel %vm2889, %v5066, %v5062
        %v5068 = vlaneseq
        %v5069 = vshrl.u32 %v5068, 7
        %v5070 = vsub.s32 %v492, %v5069
        %v5071 = vrot.slane %v4959, %v5070
        %v5072 = vlaneseq
        %v5073 = vshrl.u32 %v5072, 7
        %v5074 = vsub.s32 %v2884, %v5073
        %v5075 = vrot.slane %v4962, %v5074
        %v5076 = vsel %vm2889, %v5075, %v5071
        %v5077 = vlaneseq
        %v5078 = vshrl.u32 %v5077, 7
        %v5079 = vsub.s32 %v492, %v5078
        %v5080 = vrot.slane %v4965, %v5079
        %v5081 = vlaneseq
        %v5082 = vshrl.u32 %v5081, 7
        %v5083 = vsub.s32 %v2884, %v5082
        %v5084 = vrot.slane %v4968, %v5083
        %v5085 = vsel %vm2889, %v5084, %v5080
        %v5086 = vlaneseq
        %v5087 = vshrl.u32 %v5086, 7
        %v5088 = vsub.s32 %v492, %v5087
        %v5089 = vrot.slane %v4971, %v5088
        %v5090 = vlaneseq
        %v5091 = vshrl.u32 %v5090, 7
        %v5092 = vsub.s32 %v2884, %v5091
        %v5093 = vrot.slane %v4974, %v5092
        %v5094 = vsel %vm2889, %v5093, %v5089
        %v5095 = vlaneseq
        %v5096 = vshrl.u32 %v5095, 7
        %v5097 = vsub.s32 %v492, %v5096
        %v5098 = vrot.slane %v4977, %v5097
        %v5099 = vlaneseq
        %v5100 = vshrl.u32 %v5099, 7
        %v5101 = vsub.s32 %v2884, %v5100
        %v5102 = vrot.slane %v4980, %v5101
        %v5103 = vsel %vm2889, %v5102, %v5098
        %v5104 = vlaneseq
        %v5105 = vshrl.u32 %v5104, 7
        %v5106 = vsub.s32 %v492, %v5105
        %v5107 = vrot.slane %v4983, %v5106
        %v5108 = vlaneseq
        %v5109 = vshrl.u32 %v5108, 7
        %v5110 = vsub.s32 %v2884, %v5109
        %v5111 = vrot.slane %v4986, %v5110
        %v5112 = vsel %vm2889, %v5111, %v5107
        %v5113 = vlaneseq
        %v5114 = vshrl.u32 %v5113, 7
        %v5115 = vsub.s32 %v492, %v5114
        %v5116 = vrot.slane %v4989, %v5115
        %v5117 = vlaneseq
        %v5118 = vshrl.u32 %v5117, 7
        %v5119 = vsub.s32 %v2884, %v5118
        %v5120 = vrot.slane %v4992, %v5119
        %v5121 = vsel %vm2889, %v5120, %v5116
        %v5122 = vlaneseq
        %v5123 = vshrl.u32 %v5122, 7
        %v5124 = vsub.s32 %v492, %v5123
        %v5125 = vrot.slane %v4995, %v5124
        %v5126 = vlaneseq
        %v5127 = vshrl.u32 %v5126, 7
        %v5128 = vsub.s32 %v2884, %v5127
        %v5129 = vrot.slane %v4998, %v5128
        %v5130 = vsel %vm2889, %v5129, %v5125
        %v5131 = vlaneseq
        %v5132 = vshrl.u32 %v5131, 7
        %v5133 = vsub.s32 %v492, %v5132
        %v5134 = vrot.slane %v5001, %v5133
        %v5135 = vlaneseq
        %v5136 = vshrl.u32 %v5135, 7
        %v5137 = vsub.s32 %v2884, %v5136
        %v5138 = vrot.slane %v5004, %v5137
        %v5139 = vsel %vm2889, %v5138, %v5134
        %v5140 = vlaneseq
        %v5141 = vshrl.u32 %v5140, 7
        %v5142 = vsub.s32 %v492, %v5141
        %v5143 = vrot.slane %v5007, %v5142
        %v5144 = vlaneseq
        %v5145 = vshrl.u32 %v5144, 7
        %v5146 = vsub.s32 %v2884, %v5145
        %v5147 = vrot.slane %v5010, %v5146
        %v5148 = vsel %vm2889, %v5147, %v5143
        %v5149 = vlaneseq
        %v5150 = vshrl.u32 %v5149, 7
        %v5151 = vsub.s32 %v492, %v5150
        %v5152 = vrot.slane %v5013, %v5151
        %v5153 = vlaneseq
        %v5154 = vshrl.u32 %v5153, 7
        %v5155 = vsub.s32 %v2884, %v5154
        %v5156 = vrot.slane %v5016, %v5155
        %v5157 = vsel %vm2889, %v5156, %v5152
        %v5158 = vlaneseq
        %v5159 = vshrl.u32 %v5158, 7
        %v5160 = vsub.s32 %v492, %v5159
        %v5161 = vrot.slane %v5019, %v5160
        %v5162 = vlaneseq
        %v5163 = vshrl.u32 %v5162, 7
        %v5164 = vsub.s32 %v2884, %v5163
        %v5165 = vrot.slane %v5022, %v5164
        %v5166 = vsel %vm2889, %v5165, %v5161
        %v5167 = vsel %vm3026, %v5040, %v5031
        %v5168 = vsel %vm3028, %v5049, %v5167
        %v5169 = vsel %vm3030, %v5058, %v5168
        %v5170 = vsel %vm3032, %v5067, %v5169
        %v5171 = vsel %vm3034, %v5076, %v5170
        %v5172 = vsel %vm3036, %v5085, %v5171
        %v5173 = vsel %vm3038, %v5094, %v5172
        %v5174 = vsel %vm3026, %v5112, %v5103
        %v5175 = vsel %vm3028, %v5121, %v5174
        %v5176 = vsel %vm3030, %v5130, %v5175
        %v5177 = vsel %vm3032, %v5139, %v5176
        %v5178 = vsel %vm3034, %v5148, %v5177
        %v5179 = vsel %vm3036, %v5157, %v5178
        %v5180 = vsel %vm3038, %v5166, %v5179
        %5215 = vset.pattern.permute.xlu0 0
        %5216 = vperm.xlu0 %5215, %v4863
        %v5217 = vpop.permute.xlu0 %5216
        %5218 = vset.pattern.permute.xlu0 0
        %5219 = vperm.xlu0 %5218, %v4864
        %v5220 = vpop.permute.xlu0 %5219
        %5221 = vset.pattern.permute.xlu0 0
        %5222 = vperm.xlu0 %5221, %v4865
        %v5223 = vpop.permute.xlu0 %5222
        %5224 = vset.pattern.permute.xlu0 0
        %5225 = vperm.xlu0 %5224, %v4866
        %v5226 = vpop.permute.xlu0 %5225
        %5227 = vset.pattern.permute.xlu0 0
        %5228 = vperm.xlu0 %5227, %v4867
        %v5229 = vpop.permute.xlu0 %5228
        %5230 = vset.pattern.permute.xlu0 0
        %5231 = vperm.xlu0 %5230, %v4868
        %v5232 = vpop.permute.xlu0 %5231
        %5233 = vset.pattern.permute.xlu0 0
        %5234 = vperm.xlu0 %5233, %v4869
        %v5235 = vpop.permute.xlu0 %5234
        %5236 = vset.pattern.permute.xlu0 0
        %5237 = vperm.xlu0 %5236, %v4870
        %v5238 = vpop.permute.xlu0 %5237
        %5239 = vset.pattern.permute.xlu0 0
        %5240 = vperm.xlu0 %5239, %v4871
        %v5241 = vpop.permute.xlu0 %5240
        %5242 = vset.pattern.permute.xlu0 0
        %5243 = vperm.xlu0 %5242, %v4872
        %v5244 = vpop.permute.xlu0 %5243
        %5245 = vset.pattern.permute.xlu0 0
        %5246 = vperm.xlu0 %5245, %v4873
        %v5247 = vpop.permute.xlu0 %5246
        %5248 = vset.pattern.permute.xlu0 0
        %5249 = vperm.xlu0 %5248, %v4874
        %v5250 = vpop.permute.xlu0 %5249
        %5251 = vset.pattern.permute.xlu0 0
        %5252 = vperm.xlu0 %5251, %v4875
        %v5253 = vpop.permute.xlu0 %5252
        %5254 = vset.pattern.permute.xlu0 0
        %5255 = vperm.xlu0 %5254, %v4876
        %v5256 = vpop.permute.xlu0 %5255
        %5257 = vset.pattern.permute.xlu0 0
        %5258 = vperm.xlu0 %5257, %v4877
        %v5259 = vpop.permute.xlu0 %5258
        %5260 = vset.pattern.permute.xlu0 0
        %5261 = vperm.xlu0 %5260, %v4878
        %v5262 = vpop.permute.xlu0 %5261
        %5263 = vset.pattern.permute.xlu0 0
        %5264 = vperm.xlu0 %5263, %v4879
        %v5265 = vpop.permute.xlu0 %5264
        %5266 = vset.pattern.permute.xlu0 0
        %5267 = vperm.xlu0 %5266, %v4880
        %v5268 = vpop.permute.xlu0 %5267
        %5269 = vset.pattern.permute.xlu0 0
        %5270 = vperm.xlu0 %5269, %v4881
        %v5271 = vpop.permute.xlu0 %5270
        %5272 = vset.pattern.permute.xlu0 0
        %5273 = vperm.xlu0 %5272, %v4882
        %v5274 = vpop.permute.xlu0 %5273
        %5275 = vset.pattern.permute.xlu0 0
        %5276 = vperm.xlu0 %5275, %v4883
        %v5277 = vpop.permute.xlu0 %5276
        %5278 = vset.pattern.permute.xlu0 0
        %5279 = vperm.xlu0 %5278, %v4884
        %v5280 = vpop.permute.xlu0 %5279
        %5281 = vset.pattern.permute.xlu0 0
        %5282 = vperm.xlu0 %5281, %v4885
        %v5283 = vpop.permute.xlu0 %5282
        %5284 = vset.pattern.permute.xlu0 0
        %5285 = vperm.xlu0 %5284, %v4886
        %v5286 = vpop.permute.xlu0 %5285
        %5287 = vset.pattern.permute.xlu0 0
        %5288 = vperm.xlu0 %5287, %v4887
        %v5289 = vpop.permute.xlu0 %5288
        %5290 = vset.pattern.permute.xlu0 0
        %5291 = vperm.xlu0 %5290, %v4888
        %v5292 = vpop.permute.xlu0 %5291
        %5293 = vset.pattern.permute.xlu0 0
        %5294 = vperm.xlu0 %5293, %v4889
        %v5295 = vpop.permute.xlu0 %5294
        %5296 = vset.pattern.permute.xlu0 0
        %5297 = vperm.xlu0 %5296, %v4890
        %v5298 = vpop.permute.xlu0 %5297
        %5299 = vset.pattern.permute.xlu0 0
        %5300 = vperm.xlu0 %5299, %v4891
        %v5301 = vpop.permute.xlu0 %5300
        %5302 = vset.pattern.permute.xlu0 0
        %5303 = vperm.xlu0 %5302, %v4892
        %v5304 = vpop.permute.xlu0 %5303
        %5305 = vset.pattern.permute.xlu0 0
        %5306 = vperm.xlu0 %5305, %v4893
        %v5307 = vpop.permute.xlu0 %5306
        %5308 = vset.pattern.permute.xlu0 0
        %5309 = vperm.xlu0 %5308, %v4894
        %v5310 = vpop.permute.xlu0 %5309
        %v5311 = vadd.s32 %v492, 4294967280
        %v5312 = vlaneseq
        %v5313 = vshrl.u32 %v5312, 7
        %v5314 = vsub.s32 %v5311, %v5313
        %v5315 = vrot.slane %v5217, %v5314
        %v5316 = vadd.s32 %v492, 4294967272
        %v5317 = vlaneseq
        %v5318 = vshrl.u32 %v5317, 7
        %v5319 = vsub.s32 %v5316, %v5318
        %v5320 = vrot.slane %v5220, %v5319
        %vm5321 = vcmask 261312
        %v5322 = vsel %vm5321, %v5320, %v5315
        %v5323 = vlaneseq
        %v5324 = vshrl.u32 %v5323, 7
        %v5325 = vsub.s32 %v5311, %v5324
        %v5326 = vrot.slane %v5223, %v5325
        %v5327 = vlaneseq
        %v5328 = vshrl.u32 %v5327, 7
        %v5329 = vsub.s32 %v5316, %v5328
        %v5330 = vrot.slane %v5226, %v5329
        %v5331 = vsel %vm5321, %v5330, %v5326
        %v5332 = vlaneseq
        %v5333 = vshrl.u32 %v5332, 7
        %v5334 = vsub.s32 %v5311, %v5333
        %v5335 = vrot.slane %v5229, %v5334
        %v5336 = vlaneseq
        %v5337 = vshrl.u32 %v5336, 7
        %v5338 = vsub.s32 %v5316, %v5337
        %v5339 = vrot.slane %v5232, %v5338
        %v5340 = vsel %vm5321, %v5339, %v5335
        %v5341 = vlaneseq
        %v5342 = vshrl.u32 %v5341, 7
        %v5343 = vsub.s32 %v5311, %v5342
        %v5344 = vrot.slane %v5235, %v5343
        %v5345 = vlaneseq
        %v5346 = vshrl.u32 %v5345, 7
        %v5347 = vsub.s32 %v5316, %v5346
        %v5348 = vrot.slane %v5238, %v5347
        %v5349 = vsel %vm5321, %v5348, %v5344
        %v5350 = vlaneseq
        %v5351 = vshrl.u32 %v5350, 7
        %v5352 = vsub.s32 %v5311, %v5351
        %v5353 = vrot.slane %v5241, %v5352
        %v5354 = vlaneseq
        %v5355 = vshrl.u32 %v5354, 7
        %v5356 = vsub.s32 %v5316, %v5355
        %v5357 = vrot.slane %v5244, %v5356
        %v5358 = vsel %vm5321, %v5357, %v5353
        %v5359 = vlaneseq
        %v5360 = vshrl.u32 %v5359, 7
        %v5361 = vsub.s32 %v5311, %v5360
        %v5362 = vrot.slane %v5247, %v5361
        %v5363 = vlaneseq
        %v5364 = vshrl.u32 %v5363, 7
        %v5365 = vsub.s32 %v5316, %v5364
        %v5366 = vrot.slane %v5250, %v5365
        %v5367 = vsel %vm5321, %v5366, %v5362
        %v5368 = vlaneseq
        %v5369 = vshrl.u32 %v5368, 7
        %v5370 = vsub.s32 %v5311, %v5369
        %v5371 = vrot.slane %v5253, %v5370
        %v5372 = vlaneseq
        %v5373 = vshrl.u32 %v5372, 7
        %v5374 = vsub.s32 %v5316, %v5373
        %v5375 = vrot.slane %v5256, %v5374
        %v5376 = vsel %vm5321, %v5375, %v5371
        %v5377 = vlaneseq
        %v5378 = vshrl.u32 %v5377, 7
        %v5379 = vsub.s32 %v5311, %v5378
        %v5380 = vrot.slane %v5259, %v5379
        %v5381 = vlaneseq
        %v5382 = vshrl.u32 %v5381, 7
        %v5383 = vsub.s32 %v5316, %v5382
        %v5384 = vrot.slane %v5262, %v5383
        %v5385 = vsel %vm5321, %v5384, %v5380
        %v5386 = vlaneseq
        %v5387 = vshrl.u32 %v5386, 7
        %v5388 = vsub.s32 %v5311, %v5387
        %v5389 = vrot.slane %v5265, %v5388
        %v5390 = vlaneseq
        %v5391 = vshrl.u32 %v5390, 7
        %v5392 = vsub.s32 %v5316, %v5391
        %v5393 = vrot.slane %v5268, %v5392
        %v5394 = vsel %vm5321, %v5393, %v5389
        %v5395 = vlaneseq
        %v5396 = vshrl.u32 %v5395, 7
        %v5397 = vsub.s32 %v5311, %v5396
        %v5398 = vrot.slane %v5271, %v5397
        %v5399 = vlaneseq
        %v5400 = vshrl.u32 %v5399, 7
        %v5401 = vsub.s32 %v5316, %v5400
        %v5402 = vrot.slane %v5274, %v5401
        %v5403 = vsel %vm5321, %v5402, %v5398
        %v5404 = vlaneseq
        %v5405 = vshrl.u32 %v5404, 7
        %v5406 = vsub.s32 %v5311, %v5405
        %v5407 = vrot.slane %v5277, %v5406
        %v5408 = vlaneseq
        %v5409 = vshrl.u32 %v5408, 7
        %v5410 = vsub.s32 %v5316, %v5409
        %v5411 = vrot.slane %v5280, %v5410
        %v5412 = vsel %vm5321, %v5411, %v5407
        %v5413 = vlaneseq
        %v5414 = vshrl.u32 %v5413, 7
        %v5415 = vsub.s32 %v5311, %v5414
        %v5416 = vrot.slane %v5283, %v5415
        %v5417 = vlaneseq
        %v5418 = vshrl.u32 %v5417, 7
        %v5419 = vsub.s32 %v5316, %v5418
        %v5420 = vrot.slane %v5286, %v5419
        %v5421 = vsel %vm5321, %v5420, %v5416
        %v5422 = vlaneseq
        %v5423 = vshrl.u32 %v5422, 7
        %v5424 = vsub.s32 %v5311, %v5423
        %v5425 = vrot.slane %v5289, %v5424
        %v5426 = vlaneseq
        %v5427 = vshrl.u32 %v5426, 7
        %v5428 = vsub.s32 %v5316, %v5427
        %v5429 = vrot.slane %v5292, %v5428
        %v5430 = vsel %vm5321, %v5429, %v5425
        %v5431 = vlaneseq
        %v5432 = vshrl.u32 %v5431, 7
        %v5433 = vsub.s32 %v5311, %v5432
        %v5434 = vrot.slane %v5295, %v5433
        %v5435 = vlaneseq
        %v5436 = vshrl.u32 %v5435, 7
        %v5437 = vsub.s32 %v5316, %v5436
        %v5438 = vrot.slane %v5298, %v5437
        %v5439 = vsel %vm5321, %v5438, %v5434
        %v5440 = vlaneseq
        %v5441 = vshrl.u32 %v5440, 7
        %v5442 = vsub.s32 %v5311, %v5441
        %v5443 = vrot.slane %v5301, %v5442
        %v5444 = vlaneseq
        %v5445 = vshrl.u32 %v5444, 7
        %v5446 = vsub.s32 %v5316, %v5445
        %v5447 = vrot.slane %v5304, %v5446
        %v5448 = vsel %vm5321, %v5447, %v5443
        %v5449 = vlaneseq
        %v5450 = vshrl.u32 %v5449, 7
        %v5451 = vsub.s32 %v5311, %v5450
        %v5452 = vrot.slane %v5307, %v5451
        %v5453 = vlaneseq
        %v5454 = vshrl.u32 %v5453, 7
        %v5455 = vsub.s32 %v5316, %v5454
        %v5456 = vrot.slane %v5310, %v5455
        %v5457 = vsel %vm5321, %v5456, %v5452
        %v5458 = vsel %vm3026, %v5331, %v5322
        %v5459 = vsel %vm3028, %v5340, %v5458
        %v5460 = vsel %vm3030, %v5349, %v5459
        %v5461 = vsel %vm3032, %v5358, %v5460
        %v5462 = vsel %vm3034, %v5367, %v5461
        %v5463 = vsel %vm3036, %v5376, %v5462
        %v5464 = vsel %vm3038, %v5385, %v5463
        %v5465 = vsel %vm3026, %v5403, %v5394
        %v5466 = vsel %vm3028, %v5412, %v5465
        %v5467 = vsel %vm3030, %v5421, %v5466
        %v5468 = vsel %vm3032, %v5430, %v5467
        %v5469 = vsel %vm3034, %v5439, %v5468
        %v5470 = vsel %vm3036, %v5448, %v5469
        %v5471 = vsel %vm3038, %v5457, %v5470
        %v5474 = vsel %vm1521, %v5173, %v5464
        %v5475 = vsel %vm1521, %v5180, %v5471
        %5476 = vrot.lane.b32.xlu0 %v2107, 96
        %v5477 = vpop.permute.xlu0 %5476
        %5478 = vrot.lane.b32.xlu0 %v2112, 96
        %v5479 = vpop.permute.xlu0 %5478
        %v5483 = vsel %vm2033, %v5474, 0
        %v5486 = vsel %vm2033, %v5475, 0
        %5488 = vmatprep.subr.mxu0 0.0
        %5489 = vmatpush1.msra.mxu0 %v2107
        %5490 = vmatprep.subr.mxu0 0.0
        %5491 = vmatpush1.msra.mxu0 %v2112
        %5492 = vmatprep.subr.mxu0 0.0
        %5493 = vmatpush1.msra.mxu0 %v5477
        %5494 = vmatprep.subr.mxu0 0.0
        %5495 = vmatpush1.msra.mxu0 %v5479
        %5496 = vmatprep.subr.mxu0 0.0
        %5497 = vmatpush1.msra.mxu0 0.0
        %5498 = vmatprep.subr.mxu0 0.0
        %5499 = vmatpush1.msra.mxu0 0.0
        %5500 = vmatprep.subr.mxu0 0.0
        %5501 = vmatpush1.msra.mxu0 0.0
        %5502 = vmatprep.subr.mxu0 0.0
        %5503 = vmatpush1.msra.mxu0 0.0
        %5504 = vmatprep.subr.mxu0 0.0
        %5505 = vmatpush1.msra.mxu0 0.0
        %5506 = vmatprep.subr.mxu0 0.0
        %5507 = vmatpush1.msra.mxu0 0.0
        %5508 = vmatprep.subr.mxu0 0.0
        %5509 = vmatpush1.msra.mxu0 0.0
        %5510 = vmatprep.subr.mxu0 0.0
        %5511 = vmatpush1.msra.mxu0 0.0
        %5512 = vmatprep.subr.mxu0 0.0
        %5513 = vmatpush1.msra.mxu0 0.0
        %5514 = vmatprep.subr.mxu0 0.0
        %5515 = vmatpush1.msra.mxu0 0.0
        %5516 = vmatprep.subr.mxu0 0.0
        %5517 = vmatpush1.msra.mxu0 0.0
        %5518 = vmatprep.subr.mxu0 0.0
        %5519 = vmatpush1.msra.mxu0 0.0
        %5520 = vmatprep.subr.mxu0 0.0
        %5521 = vmatpush1.msra.mxu0 0.0
        %5522 = vmatprep.subr.mxu0 0.0
        %5523 = vmatpush1.msra.mxu0 0.0
        %5524 = vmatprep.subr.mxu0 0.0
        %5525 = vmatpush1.msra.mxu0 0.0
        %5526 = vmatprep.subr.mxu0 0.0
        %5527 = vmatpush1.msra.mxu0 0.0
        %5528 = vmatprep.subr.mxu0 0.0
        %5529 = vmatpush1.msra.mxu0 0.0
        %5530 = vmatprep.subr.mxu0 0.0
        %5531 = vmatpush1.msra.mxu0 0.0
        %5532 = vmatprep.subr.mxu0 0.0
        %5533 = vmatpush1.msra.mxu0 0.0
        %5534 = vmatprep.subr.mxu0 0.0
        %5535 = vmatpush1.msra.mxu0 0.0
        %5536 = vmatprep.subr.mxu0 0.0
        %5537 = vmatpush1.msra.mxu0 0.0
        %5538 = vmatprep.subr.mxu0 0.0
        %5539 = vmatpush1.msra.mxu0 0.0
        %5540 = vmatprep.subr.mxu0 0.0
        %5541 = vmatpush1.msra.mxu0 0.0
        %5542 = vmatprep.subr.mxu0 0.0
        %5543 = vmatpush1.msra.mxu0 0.0
        %5544 = vmatprep.subr.mxu0 0.0
        %5545 = vmatpush1.msra.mxu0 0.0
        %5546 = vmatprep.subr.mxu0 0.0
        %5547 = vmatpush1.msra.mxu0 0.0
        %5548 = vmatprep.subr.mxu0 0.0
        %5549 = vmatpush1.msra.mxu0 0.0
        %5550 = vmatprep.subr.mxu0 0.0
        %5551 = vmatpush1.msra.mxu0 0.0
        %5552 = vmatprep.mubr.f32.mxu0 0.0
        %5553 = vmatmul.mubr.f32.gmra.mrb[0].mxu0 %v5483
        %v5554 = vpop.f32.mrb[0].mxu0
        %v5555 = vadd.f32 0.0, %v5554
        %v5556 = vpop.f32.mrb[0].mxu0
        %5557 = vmatprep.mubr.f32.mxu0 0.0
        %5558 = vmatmul.mubr.f32.gmra.mrb[0].mxu0 %v5486
        %v5559 = vpop.f32.mrb[0].mxu0
        %v5560 = vadd.f32 0.0, %v5559
        %v5561 = vpop.f32.mrb[0].mxu0
        %5562 = vdwg.mxu0
        %v5563 = vmul.f32 %v5555, 0.5
        %v5564 = vmul.f32 %v5560, 0.5
        %v5565 = vadd.f32 %v5563, %v515
        %v5566 = vadd.f32 %v5564, %v515
        %v5567 = vmax.f32 %v5565, 0.0
        %v5568 = vmax.f32 %v5566, 0.0
        %v5570 = vsel %vm2033, %v5567, 0
        %v5573 = vsel %vm2033, %v5568, 0
        %5575 = vmatprep.subr.mxu0 0.0
        %5576 = vmatpush1.msra.mxu0 %v2029
        %5577 = vmatprep.subr.mxu0 0.0
        %5578 = vmatpush1.msra.mxu0 %v2030
        %5579 = vmatprep.subr.mxu0 0.0
        %5580 = vmatpush1.msra.mxu0 %v2031
        %5581 = vmatprep.subr.mxu0 0.0
        %5582 = vmatpush1.msra.mxu0 %v2032
        %5583 = vmatprep.subr.mxu0 0.0
        %5584 = vmatpush1.msra.mxu0 0.0
        %5585 = vmatprep.subr.mxu0 0.0
        %5586 = vmatpush1.msra.mxu0 0.0
        %5587 = vmatprep.subr.mxu0 0.0
        %5588 = vmatpush1.msra.mxu0 0.0
        %5589 = vmatprep.subr.mxu0 0.0
        %5590 = vmatpush1.msra.mxu0 0.0
        %5591 = vmatprep.subr.mxu0 0.0
        %5592 = vmatpush1.msra.mxu0 0.0
        %5593 = vmatprep.subr.mxu0 0.0
        %5594 = vmatpush1.msra.mxu0 0.0
        %5595 = vmatprep.subr.mxu0 0.0
        %5596 = vmatpush1.msra.mxu0 0.0
        %5597 = vmatprep.subr.mxu0 0.0
        %5598 = vmatpush1.msra.mxu0 0.0
        %5599 = vmatprep.subr.mxu0 0.0
        %5600 = vmatpush1.msra.mxu0 0.0
        %5601 = vmatprep.subr.mxu0 0.0
        %5602 = vmatpush1.msra.mxu0 0.0
        %5603 = vmatprep.subr.mxu0 0.0
        %5604 = vmatpush1.msra.mxu0 0.0
        %5605 = vmatprep.subr.mxu0 0.0
        %5606 = vmatpush1.msra.mxu0 0.0
        %5607 = vmatprep.subr.mxu0 0.0
        %5608 = vmatpush1.msra.mxu0 0.0
        %5609 = vmatprep.subr.mxu0 0.0
        %5610 = vmatpush1.msra.mxu0 0.0
        %5611 = vmatprep.subr.mxu0 0.0
        %5612 = vmatpush1.msra.mxu0 0.0
        %5613 = vmatprep.subr.mxu0 0.0
        %5614 = vmatpush1.msra.mxu0 0.0
        %5615 = vmatprep.subr.mxu0 0.0
        %5616 = vmatpush1.msra.mxu0 0.0
        %5617 = vmatprep.subr.mxu0 0.0
        %5618 = vmatpush1.msra.mxu0 0.0
        %5619 = vmatprep.subr.mxu0 0.0
        %5620 = vmatpush1.msra.mxu0 0.0
        %5621 = vmatprep.subr.mxu0 0.0
        %5622 = vmatpush1.msra.mxu0 0.0
        %5623 = vmatprep.subr.mxu0 0.0
        %5624 = vmatpush1.msra.mxu0 0.0
        %5625 = vmatprep.subr.mxu0 0.0
        %5626 = vmatpush1.msra.mxu0 0.0
        %5627 = vmatprep.subr.mxu0 0.0
        %5628 = vmatpush1.msra.mxu0 0.0
        %5629 = vmatprep.subr.mxu0 0.0
        %5630 = vmatpush1.msra.mxu0 0.0
        %5631 = vmatprep.subr.mxu0 0.0
        %5632 = vmatpush1.msra.mxu0 0.0
        %5633 = vmatprep.subr.mxu0 0.0
        %5634 = vmatpush1.msra.mxu0 0.0
        %5635 = vmatprep.subr.mxu0 0.0
        %5636 = vmatpush1.msra.mxu0 0.0
        %5637 = vmatprep.subr.mxu0 0.0
        %5638 = vmatpush1.msra.mxu0 0.0
        %5639 = vmatprep.mubr.f32.mxu0 0.0
        %5640 = vmatmul.mubr.f32.gmra.mrb[0].mxu0 %v5570
        %v5641 = vpop.f32.mrb[0].mxu0
        %v5642 = vadd.f32 %v508, %v5641
        %v5643 = vpop.f32.mrb[0].mxu0
        %5644 = vmatprep.mubr.f32.mxu0 0.0
        %5645 = vmatmul.mubr.f32.gmra.mrb[0].mxu0 %v5573
        %v5646 = vpop.f32.mrb[0].mxu0
        %v5647 = vadd.f32 %v508, %v5646
        %v5648 = vpop.f32.mrb[0].mxu0
        %5649 = vdwg.mxu0
        %v5652 = vcombine.high %v5642, %v5642
        %v5654 = vunpack.c.l.s4 1966171168
        %v5655 = vunpack.c.0.s8 %v5654
        %v5656 = vlaneseq
        %v5657 = vshrl.u32 %v5656, 7
        %v5658 = vsub.s32 %v5655, %v5657
        %v5659 = vrot.slane %v5642, %v5658
        %v5661 = vunpack.c.l.s4 1966171168
        %v5662 = vunpack.c.0.s8 %v5661
        %v5663 = vlaneseq
        %v5664 = vshrl.u32 %v5663, 7
        %v5665 = vsub.s32 %v5662, %v5664
        %v5666 = vrot.slane %v5652, %v5665
        %v5667 = vcombine.high %v5659, %v5659
        %v5668 = vcombine.high %v5666, %v5666
        %v5670 = vunpack.c.l.s4 1966171168
        %v5671 = vunpack.c.0.s8 %v5670
        %v5672 = vlaneseq
        %v5673 = vshrl.u32 %v5672, 7
        %v5674 = vsub.s32 %v5671, %v5673
        %v5675 = vrot.slane %v5659, %v5674
        %v5677 = vunpack.c.l.s4 1966171168
        %v5678 = vunpack.c.0.s8 %v5677
        %v5679 = vlaneseq
        %v5680 = vshrl.u32 %v5679, 7
        %v5681 = vsub.s32 %v5678, %v5680
        %v5682 = vrot.slane %v5666, %v5681
        %v5684 = vunpack.c.l.s4 1966171168
        %v5685 = vunpack.c.0.s8 %v5684
        %v5686 = vlaneseq
        %v5687 = vshrl.u32 %v5686, 7
        %v5688 = vsub.s32 %v5685, %v5687
        %v5689 = vrot.slane %v5667, %v5688
        %v5691 = vunpack.c.l.s4 1966171168
        %v5692 = vunpack.c.0.s8 %v5691
        %v5693 = vlaneseq
        %v5694 = vshrl.u32 %v5693, 7
        %v5695 = vsub.s32 %v5692, %v5694
        %v5696 = vrot.slane %v5668, %v5695
        %v5697 = vcombine.high %v5675, %v5675
        %v5698 = vcombine.high %v5682, %v5682
        %v5699 = vcombine.high %v5689, %v5689
        %v5700 = vcombine.high %v5696, %v5696
        %v5701 = vcombine.high %v5647, %v5647
        %v5703 = vunpack.c.l.s4 1966171168
        %v5704 = vunpack.c.0.s8 %v5703
        %v5705 = vlaneseq
        %v5706 = vshrl.u32 %v5705, 7
        %v5707 = vsub.s32 %v5704, %v5706
        %v5708 = vrot.slane %v5647, %v5707
        %v5710 = vunpack.c.l.s4 1966171168
        %v5711 = vunpack.c.0.s8 %v5710
        %v5712 = vlaneseq
        %v5713 = vshrl.u32 %v5712, 7
        %v5714 = vsub.s32 %v5711, %v5713
        %v5715 = vrot.slane %v5701, %v5714
        %v5716 = vcombine.high %v5708, %v5708
        %v5717 = vcombine.high %v5715, %v5715
        %v5719 = vunpack.c.l.s4 1966171168
        %v5720 = vunpack.c.0.s8 %v5719
        %v5721 = vlaneseq
        %v5722 = vshrl.u32 %v5721, 7
        %v5723 = vsub.s32 %v5720, %v5722
        %v5724 = vrot.slane %v5708, %v5723
        %v5726 = vunpack.c.l.s4 1966171168
        %v5727 = vunpack.c.0.s8 %v5726
        %v5728 = vlaneseq
        %v5729 = vshrl.u32 %v5728, 7
        %v5730 = vsub.s32 %v5727, %v5729
        %v5731 = vrot.slane %v5715, %v5730
        %v5733 = vunpack.c.l.s4 1966171168
        %v5734 = vunpack.c.0.s8 %v5733
        %v5735 = vlaneseq
        %v5736 = vshrl.u32 %v5735, 7
        %v5737 = vsub.s32 %v5734, %v5736
        %v5738 = vrot.slane %v5716, %v5737
        %v5740 = vunpack.c.l.s4 1966171168
        %v5741 = vunpack.c.0.s8 %v5740
        %v5742 = vlaneseq
        %v5743 = vshrl.u32 %v5742, 7
        %v5744 = vsub.s32 %v5741, %v5743
        %v5745 = vrot.slane %v5717, %v5744
        %v5746 = vcombine.high %v5724, %v5724
        %v5747 = vcombine.high %v5731, %v5731
        %v5748 = vcombine.high %v5738, %v5738
        %v5749 = vcombine.high %v5745, %v5745
        %v5750 = vlaneseq
        %v5751 = vshrl.u32 %v5750, 7
        %v5752 = vsub.s32 0, %v5751
        %v5753 = vrot.slane %v5675, %v5752
        %v5754 = vlaneseq
        %v5755 = vshrl.u32 %v5754, 7
        %v5756 = vsub.s32 0, %v5755
        %v5757 = vrot.slane %v5689, %v5756
        %v5758 = vlaneseq
        %v5759 = vshrl.u32 %v5758, 7
        %v5760 = vsub.s32 0, %v5759
        %v5761 = vrot.slane %v5697, %v5760
        %v5762 = vlaneseq
        %v5763 = vshrl.u32 %v5762, 7
        %v5764 = vsub.s32 0, %v5763
        %v5765 = vrot.slane %v5699, %v5764
        %v5766 = vlaneseq
        %v5767 = vshrl.u32 %v5766, 7
        %v5768 = vsub.s32 0, %v5767
        %v5769 = vrot.slane %v5682, %v5768
        %v5770 = vlaneseq
        %v5771 = vshrl.u32 %v5770, 7
        %v5772 = vsub.s32 0, %v5771
        %v5773 = vrot.slane %v5696, %v5772
        %v5774 = vlaneseq
        %v5775 = vshrl.u32 %v5774, 7
        %v5776 = vsub.s32 0, %v5775
        %v5777 = vrot.slane %v5698, %v5776
        %v5778 = vlaneseq
        %v5779 = vshrl.u32 %v5778, 7
        %v5780 = vsub.s32 0, %v5779
        %v5781 = vrot.slane %v5700, %v5780
        %v5782 = vlaneseq
        %v5783 = vshrl.u32 %v5782, 7
        %v5784 = vsub.s32 0, %v5783
        %v5785 = vrot.slane %v5724, %v5784
        %v5786 = vlaneseq
        %v5787 = vshrl.u32 %v5786, 7
        %v5788 = vsub.s32 0, %v5787
        %v5789 = vrot.slane %v5738, %v5788
        %v5790 = vlaneseq
        %v5791 = vshrl.u32 %v5790, 7
        %v5792 = vsub.s32 0, %v5791
        %v5793 = vrot.slane %v5746, %v5792
        %v5794 = vlaneseq
        %v5795 = vshrl.u32 %v5794, 7
        %v5796 = vsub.s32 0, %v5795
        %v5797 = vrot.slane %v5748, %v5796
        %v5798 = vlaneseq
        %v5799 = vshrl.u32 %v5798, 7
        %v5800 = vsub.s32 0, %v5799
        %v5801 = vrot.slane %v5731, %v5800
        %v5802 = vlaneseq
        %v5803 = vshrl.u32 %v5802, 7
        %v5804 = vsub.s32 0, %v5803
        %v5805 = vrot.slane %v5745, %v5804
        %v5806 = vlaneseq
        %v5807 = vshrl.u32 %v5806, 7
        %v5808 = vsub.s32 0, %v5807
        %v5809 = vrot.slane %v5747, %v5808
        %v5810 = vlaneseq
        %v5811 = vshrl.u32 %v5810, 7
        %v5812 = vsub.s32 0, %v5811
        %v5813 = vrot.slane %v5749, %v5812
        %5830 = vrot.lane.b32.xlu0 %v5642, 64
        %v5831 = vpop.permute.xlu0 %5830
        %5832 = vrot.lane.b32.xlu0 %v5647, 64
        %v5833 = vpop.permute.xlu0 %5832
        %v5836 = vadd.f32 %v5753, %v5831
        %v5837 = vadd.f32 %v5753, %v5833
        %v5838 = vadd.f32 %v5757, %v5831
        %v5839 = vadd.f32 %v5757, %v5833
        %v5840 = vadd.f32 %v5761, %v5831
        %v5841 = vadd.f32 %v5761, %v5833
        %v5842 = vadd.f32 %v5765, %v5831
        %v5843 = vadd.f32 %v5765, %v5833
        %v5844 = vadd.f32 %v5769, %v5831
        %v5845 = vadd.f32 %v5769, %v5833
        %v5846 = vadd.f32 %v5773, %v5831
        %v5847 = vadd.f32 %v5773, %v5833
        %v5848 = vadd.f32 %v5777, %v5831
        %v5849 = vadd.f32 %v5777, %v5833
        %v5850 = vadd.f32 %v5781, %v5831
        %v5851 = vadd.f32 %v5781, %v5833
        %v5852 = vadd.f32 %v5785, %v5831
        %v5853 = vadd.f32 %v5785, %v5833
        %v5854 = vadd.f32 %v5789, %v5831
        %v5855 = vadd.f32 %v5789, %v5833
        %v5856 = vadd.f32 %v5793, %v5831
        %v5857 = vadd.f32 %v5793, %v5833
        %v5858 = vadd.f32 %v5797, %v5831
        %v5859 = vadd.f32 %v5797, %v5833
        %v5860 = vadd.f32 %v5801, %v5831
        %v5861 = vadd.f32 %v5801, %v5833
        %v5862 = vadd.f32 %v5805, %v5831
        %v5863 = vadd.f32 %v5805, %v5833
        %v5864 = vadd.f32 %v5809, %v5831
        %v5865 = vadd.f32 %v5809, %v5833
        %v5866 = vadd.f32 %v5813, %v5831
        %v5867 = vadd.f32 %v5813, %v5833
        %v5868 = vadd.f32 %v5836, %v2366
        %v5869 = vadd.f32 %v5837, %v2368
        %v5870 = vadd.f32 %v5838, %v2370
        %v5871 = vadd.f32 %v5839, %v2372
        %v5872 = vadd.f32 %v5840, %v2374
        %v5873 = vadd.f32 %v5841, %v2376
        %v5874 = vadd.f32 %v5842, %v2378
        %v5875 = vadd.f32 %v5843, %v2380
        %v5876 = vadd.f32 %v5844, %v2382
        %v5877 = vadd.f32 %v5845, %v2384
        %v5878 = vadd.f32 %v5846, %v2386
        %v5879 = vadd.f32 %v5847, %v2388
        %v5880 = vadd.f32 %v5848, %v2390
        %v5881 = vadd.f32 %v5849, %v2392
        %v5882 = vadd.f32 %v5850, %v2394
        %v5883 = vadd.f32 %v5851, %v2396
        %v5884 = vadd.f32 %v5852, %v2398
        %v5885 = vadd.f32 %v5853, %v2400
        %v5886 = vadd.f32 %v5854, %v2402
        %v5887 = vadd.f32 %v5855, %v2404
        %v5888 = vadd.f32 %v5856, %v2406
        %v5889 = vadd.f32 %v5857, %v2408
        %v5890 = vadd.f32 %v5858, %v2410
        %v5891 = vadd.f32 %v5859, %v2412
        %v5892 = vadd.f32 %v5860, %v2414
        %v5893 = vadd.f32 %v5861, %v2416
        %v5894 = vadd.f32 %v5862, %v2418
        %v5895 = vadd.f32 %v5863, %v2420
        %v5896 = vadd.f32 %v5864, %v2422
        %v5897 = vadd.f32 %v5865, %v2424
        %v5898 = vadd.f32 %v5866, %v2426
        %v5899 = vadd.f32 %v5867, %v2428
        %vm5900 = vcmp.gt.f32.partialorder %v5868, 0.0
        %vm5901 = vcmp.gt.f32.partialorder %v5869, 0.0
        %vm5902 = vcmp.gt.f32.partialorder %v5870, 0.0
        %vm5903 = vcmp.gt.f32.partialorder %v5871, 0.0
        %vm5904 = vcmp.gt.f32.partialorder %v5872, 0.0
        %vm5905 = vcmp.gt.f32.partialorder %v5873, 0.0
        %vm5906 = vcmp.gt.f32.partialorder %v5874, 0.0
        %vm5907 = vcmp.gt.f32.partialorder %v5875, 0.0
        %vm5908 = vcmp.gt.f32.partialorder %v5876, 0.0
        %vm5909 = vcmp.gt.f32.partialorder %v5877, 0.0
        %vm5910 = vcmp.gt.f32.partialorder %v5878, 0.0
        %vm5911 = vcmp.gt.f32.partialorder %v5879, 0.0
        %vm5912 = vcmp.gt.f32.partialorder %v5880, 0.0
        %vm5913 = vcmp.gt.f32.partialorder %v5881, 0.0
        %vm5914 = vcmp.gt.f32.partialorder %v5882, 0.0
        %vm5915 = vcmp.gt.f32.partialorder %v5883, 0.0
        %vm5916 = vcmp.gt.f32.partialorder %v5884, 0.0
        %vm5917 = vcmp.gt.f32.partialorder %v5885, 0.0
        %vm5918 = vcmp.gt.f32.partialorder %v5886, 0.0
        %vm5919 = vcmp.gt.f32.partialorder %v5887, 0.0
        %vm5920 = vcmp.gt.f32.partialorder %v5888, 0.0
        %vm5921 = vcmp.gt.f32.partialorder %v5889, 0.0
        %vm5922 = vcmp.gt.f32.partialorder %v5890, 0.0
        %vm5923 = vcmp.gt.f32.partialorder %v5891, 0.0
        %vm5924 = vcmp.gt.f32.partialorder %v5892, 0.0
        %vm5925 = vcmp.gt.f32.partialorder %v5893, 0.0
        %vm5926 = vcmp.gt.f32.partialorder %v5894, 0.0
        %vm5927 = vcmp.gt.f32.partialorder %v5895, 0.0
        %vm5928 = vcmp.gt.f32.partialorder %v5896, 0.0
        %vm5929 = vcmp.gt.f32.partialorder %v5897, 0.0
        %vm5930 = vcmp.gt.f32.partialorder %v5898, 0.0
        %vm5931 = vcmp.gt.f32.partialorder %v5899, 0.0
        %v5932 = vmul.f32 %v5868, 0.2
        %v5933 = vmul.f32 %v5869, 0.2
        %v5934 = vmul.f32 %v5870, 0.2
        %v5935 = vmul.f32 %v5871, 0.2
        %v5936 = vmul.f32 %v5872, 0.2
        %v5937 = vmul.f32 %v5873, 0.2
        %v5938 = vmul.f32 %v5874, 0.2
        %v5939 = vmul.f32 %v5875, 0.2
        %v5940 = vmul.f32 %v5876, 0.2
        %v5941 = vmul.f32 %v5877, 0.2
        %v5942 = vmul.f32 %v5878, 0.2
        %v5943 = vmul.f32 %v5879, 0.2
        %v5944 = vmul.f32 %v5880, 0.2
        %v5945 = vmul.f32 %v5881, 0.2
        %v5946 = vmul.f32 %v5882, 0.2
        %v5947 = vmul.f32 %v5883, 0.2
        %v5948 = vmul.f32 %v5884, 0.2
        %v5949 = vmul.f32 %v5885, 0.2
        %v5950 = vmul.f32 %v5886, 0.2
        %v5951 = vmul.f32 %v5887, 0.2
        %v5952 = vmul.f32 %v5888, 0.2
        %v5953 = vmul.f32 %v5889, 0.2
        %v5954 = vmul.f32 %v5890, 0.2
        %v5955 = vmul.f32 %v5891, 0.2
        %v5956 = vmul.f32 %v5892, 0.2
        %v5957 = vmul.f32 %v5893, 0.2
        %v5958 = vmul.f32 %v5894, 0.2
        %v5959 = vmul.f32 %v5895, 0.2
        %v5960 = vmul.f32 %v5896, 0.2
        %v5961 = vmul.f32 %v5897, 0.2
        %v5962 = vmul.f32 %v5898, 0.2
        %v5963 = vmul.f32 %v5899, 0.2
        %v5964 = vsel %vm5900, %v5868, %v5932
        %v5965 = vsel %vm5901, %v5869, %v5933
        %v5966 = vsel %vm5902, %v5870, %v5934
        %v5967 = vsel %vm5903, %v5871, %v5935
        %v5968 = vsel %vm5904, %v5872, %v5936
        %v5969 = vsel %vm5905, %v5873, %v5937
        %v5970 = vsel %vm5906, %v5874, %v5938
        %v5971 = vsel %vm5907, %v5875, %v5939
        %v5972 = vsel %vm5908, %v5876, %v5940
        %v5973 = vsel %vm5909, %v5877, %v5941
        %v5974 = vsel %vm5910, %v5878, %v5942
        %v5975 = vsel %vm5911, %v5879, %v5943
        %v5976 = vsel %vm5912, %v5880, %v5944
        %v5977 = vsel %vm5913, %v5881, %v5945
        %v5978 = vsel %vm5914, %v5882, %v5946
        %v5979 = vsel %vm5915, %v5883, %v5947
        %v5980 = vsel %vm5916, %v5884, %v5948
        %v5981 = vsel %vm5917, %v5885, %v5949
        %v5982 = vsel %vm5918, %v5886, %v5950
        %v5983 = vsel %vm5919, %v5887, %v5951
        %v5984 = vsel %vm5920, %v5888, %v5952
        %v5985 = vsel %vm5921, %v5889, %v5953
        %v5986 = vsel %vm5922, %v5890, %v5954
        %v5987 = vsel %vm5923, %v5891, %v5955
        %v5988 = vsel %vm5924, %v5892, %v5956
        %v5989 = vsel %vm5925, %v5893, %v5957
        %v5990 = vsel %vm5926, %v5894, %v5958
        %v5991 = vsel %vm5927, %v5895, %v5959
        %v5992 = vsel %vm5928, %v5896, %v5960
        %v5993 = vsel %vm5929, %v5897, %v5961
        %v5994 = vsel %vm5930, %v5898, %v5962
        %v5995 = vsel %vm5931, %v5899, %v5963
        %v5996 = vmul.f32 %v5964, %v2590
        %v5997 = vmul.f32 %v5965, %v2590
        %v5998 = vmul.f32 %v5966, %v2590
        %v5999 = vmul.f32 %v5967, %v2590
        %v6000 = vmul.f32 %v5968, %v2590
        %v6001 = vmul.f32 %v5969, %v2590
        %v6002 = vmul.f32 %v5970, %v2590
        %v6003 = vmul.f32 %v5971, %v2590
        %v6004 = vmul.f32 %v5972, %v2590
        %v6005 = vmul.f32 %v5973, %v2590
        %v6006 = vmul.f32 %v5974, %v2590
        %v6007 = vmul.f32 %v5975, %v2590
        %v6008 = vmul.f32 %v5976, %v2590
        %v6009 = vmul.f32 %v5977, %v2590
        %v6010 = vmul.f32 %v5978, %v2590
        %v6011 = vmul.f32 %v5979, %v2590
        %v6012 = vmul.f32 %v5980, %v2590
        %v6013 = vmul.f32 %v5981, %v2590
        %v6014 = vmul.f32 %v5982, %v2590
        %v6015 = vmul.f32 %v5983, %v2590
        %v6016 = vmul.f32 %v5984, %v2590
        %v6017 = vmul.f32 %v5985, %v2590
        %v6018 = vmul.f32 %v5986, %v2590
        %v6019 = vmul.f32 %v5987, %v2590
        %v6020 = vmul.f32 %v5988, %v2590
        %v6021 = vmul.f32 %v5989, %v2590
        %v6022 = vmul.f32 %v5990, %v2590
        %v6023 = vmul.f32 %v5991, %v2590
        %v6024 = vmul.f32 %v5992, %v2590
        %v6025 = vmul.f32 %v5993, %v2590
        %v6026 = vmul.f32 %v5994, %v2590
        %v6027 = vmul.f32 %v5995, %v2590
        %6060 = vrot.lane.b32.xlu0 %v5996, 64
        %v6061 = vpop.permute.xlu0 %6060
        %6062 = vrot.lane.b32.xlu0 %v5997, 64
        %v6063 = vpop.permute.xlu0 %6062
        %6064 = vrot.lane.b32.xlu0 %v5998, 64
        %v6065 = vpop.permute.xlu0 %6064
        %6066 = vrot.lane.b32.xlu0 %v5999, 64
        %v6067 = vpop.permute.xlu0 %6066
        %6068 = vrot.lane.b32.xlu0 %v6000, 64
        %v6069 = vpop.permute.xlu0 %6068
        %6070 = vrot.lane.b32.xlu0 %v6001, 64
        %v6071 = vpop.permute.xlu0 %6070
        %6072 = vrot.lane.b32.xlu0 %v6002, 64
        %v6073 = vpop.permute.xlu0 %6072
        %6074 = vrot.lane.b32.xlu0 %v6003, 64
        %v6075 = vpop.permute.xlu0 %6074
        %6076 = vrot.lane.b32.xlu0 %v6004, 64
        %v6077 = vpop.permute.xlu0 %6076
        %6078 = vrot.lane.b32.xlu0 %v6005, 64
        %v6079 = vpop.permute.xlu0 %6078
        %6080 = vrot.lane.b32.xlu0 %v6006, 64
        %v6081 = vpop.permute.xlu0 %6080
        %6082 = vrot.lane.b32.xlu0 %v6007, 64
        %v6083 = vpop.permute.xlu0 %6082
        %6084 = vrot.lane.b32.xlu0 %v6008, 64
        %v6085 = vpop.permute.xlu0 %6084
        %6086 = vrot.lane.b32.xlu0 %v6009, 64
        %v6087 = vpop.permute.xlu0 %6086
        %6088 = vrot.lane.b32.xlu0 %v6010, 64
        %v6089 = vpop.permute.xlu0 %6088
        %6090 = vrot.lane.b32.xlu0 %v6011, 64
        %v6091 = vpop.permute.xlu0 %6090
        %6092 = vrot.lane.b32.xlu0 %v6012, 64
        %v6093 = vpop.permute.xlu0 %6092
        %6094 = vrot.lane.b32.xlu0 %v6013, 64
        %v6095 = vpop.permute.xlu0 %6094
        %6096 = vrot.lane.b32.xlu0 %v6014, 64
        %v6097 = vpop.permute.xlu0 %6096
        %6098 = vrot.lane.b32.xlu0 %v6015, 64
        %v6099 = vpop.permute.xlu0 %6098
        %6100 = vrot.lane.b32.xlu0 %v6016, 64
        %v6101 = vpop.permute.xlu0 %6100
        %6102 = vrot.lane.b32.xlu0 %v6017, 64
        %v6103 = vpop.permute.xlu0 %6102
        %6104 = vrot.lane.b32.xlu0 %v6018, 64
        %v6105 = vpop.permute.xlu0 %6104
        %6106 = vrot.lane.b32.xlu0 %v6019, 64
        %v6107 = vpop.permute.xlu0 %6106
        %6108 = vrot.lane.b32.xlu0 %v6020, 64
        %v6109 = vpop.permute.xlu0 %6108
        %6110 = vrot.lane.b32.xlu0 %v6021, 64
        %v6111 = vpop.permute.xlu0 %6110
        %6112 = vrot.lane.b32.xlu0 %v6022, 64
        %v6113 = vpop.permute.xlu0 %6112
        %6114 = vrot.lane.b32.xlu0 %v6023, 64
        %v6115 = vpop.permute.xlu0 %6114
        %6116 = vrot.lane.b32.xlu0 %v6024, 64
        %v6117 = vpop.permute.xlu0 %6116
        %6118 = vrot.lane.b32.xlu0 %v6025, 64
        %v6119 = vpop.permute.xlu0 %6118
        %6120 = vrot.lane.b32.xlu0 %v6026, 64
        %v6121 = vpop.permute.xlu0 %6120
        %6122 = vrot.lane.b32.xlu0 %v6027, 64
        %v6123 = vpop.permute.xlu0 %6122
        %v6156 = vsel %vm2033, %v6061, 0.0
        %6157 = vadd.xlane.f32.xlu0 %v6156
        %v6158 = vpop.xlane.xlu0 %6157
        %v6159 = vsel %vm2033, %v6063, 0.0
        %6160 = vadd.xlane.f32.xlu0 %v6159
        %v6161 = vpop.xlane.xlu0 %6160
        %v6162 = vsel %vm2033, %v6065, 0.0
        %6163 = vadd.xlane.f32.xlu0 %v6162
        %v6164 = vpop.xlane.xlu0 %6163
        %v6165 = vsel %vm2033, %v6067, 0.0
        %6166 = vadd.xlane.f32.xlu0 %v6165
        %v6167 = vpop.xlane.xlu0 %6166
        %v6168 = vsel %vm2033, %v6069, 0.0
        %6169 = vadd.xlane.f32.xlu0 %v6168
        %v6170 = vpop.xlane.xlu0 %6169
        %v6171 = vsel %vm2033, %v6071, 0.0
        %6172 = vadd.xlane.f32.xlu0 %v6171
        %v6173 = vpop.xlane.xlu0 %6172
        %v6174 = vsel %vm2033, %v6073, 0.0
        %6175 = vadd.xlane.f32.xlu0 %v6174
        %v6176 = vpop.xlane.xlu0 %6175
        %v6177 = vsel %vm2033, %v6075, 0.0
        %6178 = vadd.xlane.f32.xlu0 %v6177
        %v6179 = vpop.xlane.xlu0 %6178
        %v6180 = vsel %vm2033, %v6077, 0.0
        %6181 = vadd.xlane.f32.xlu0 %v6180
        %v6182 = vpop.xlane.xlu0 %6181
        %v6183 = vsel %vm2033, %v6079, 0.0
        %6184 = vadd.xlane.f32.xlu0 %v6183
        %v6185 = vpop.xlane.xlu0 %6184
        %v6186 = vsel %vm2033, %v6081, 0.0
        %6187 = vadd.xlane.f32.xlu0 %v6186
        %v6188 = vpop.xlane.xlu0 %6187
        %v6189 = vsel %vm2033, %v6083, 0.0
        %6190 = vadd.xlane.f32.xlu0 %v6189
        %v6191 = vpop.xlane.xlu0 %6190
        %v6192 = vsel %vm2033, %v6085, 0.0
        %6193 = vadd.xlane.f32.xlu0 %v6192
        %v6194 = vpop.xlane.xlu0 %6193
        %v6195 = vsel %vm2033, %v6087, 0.0
        %6196 = vadd.xlane.f32.xlu0 %v6195
        %v6197 = vpop.xlane.xlu0 %6196
        %v6198 = vsel %vm2033, %v6089, 0.0
        %6199 = vadd.xlane.f32.xlu0 %v6198
        %v6200 = vpop.xlane.xlu0 %6199
        %v6201 = vsel %vm2033, %v6091, 0.0
        %6202 = vadd.xlane.f32.xlu0 %v6201
        %v6203 = vpop.xlane.xlu0 %6202
        %v6204 = vsel %vm2033, %v6093, 0.0
        %6205 = vadd.xlane.f32.xlu0 %v6204
        %v6206 = vpop.xlane.xlu0 %6205
        %v6207 = vsel %vm2033, %v6095, 0.0
        %6208 = vadd.xlane.f32.xlu0 %v6207
        %v6209 = vpop.xlane.xlu0 %6208
        %v6210 = vsel %vm2033, %v6097, 0.0
        %6211 = vadd.xlane.f32.xlu0 %v6210
        %v6212 = vpop.xlane.xlu0 %6211
        %v6213 = vsel %vm2033, %v6099, 0.0
        %6214 = vadd.xlane.f32.xlu0 %v6213
        %v6215 = vpop.xlane.xlu0 %6214
        %v6216 = vsel %vm2033, %v6101, 0.0
        %6217 = vadd.xlane.f32.xlu0 %v6216
        %v6218 = vpop.xlane.xlu0 %6217
        %v6219 = vsel %vm2033, %v6103, 0.0
        %6220 = vadd.xlane.f32.xlu0 %v6219
        %v6221 = vpop.xlane.xlu0 %6220
        %v6222 = vsel %vm2033, %v6105, 0.0
        %6223 = vadd.xlane.f32.xlu0 %v6222
        %v6224 = vpop.xlane.xlu0 %6223
        %v6225 = vsel %vm2033, %v6107, 0.0
        %6226 = vadd.xlane.f32.xlu0 %v6225
        %v6227 = vpop.xlane.xlu0 %6226
        %v6228 = vsel %vm2033, %v6109, 0.0
        %6229 = vadd.xlane.f32.xlu0 %v6228
        %v6230 = vpop.xlane.xlu0 %6229
        %v6231 = vsel %vm2033, %v6111, 0.0
        %6232 = vadd.xlane.f32.xlu0 %v6231
        %v6233 = vpop.xlane.xlu0 %6232
        %v6234 = vsel %vm2033, %v6113, 0.0
        %6235 = vadd.xlane.f32.xlu0 %v6234
        %v6236 = vpop.xlane.xlu0 %6235
        %v6237 = vsel %vm2033, %v6115, 0.0
        %6238 = vadd.xlane.f32.xlu0 %v6237
        %v6239 = vpop.xlane.xlu0 %6238
        %v6240 = vsel %vm2033, %v6117, 0.0
        %6241 = vadd.xlane.f32.xlu0 %v6240
        %v6242 = vpop.xlane.xlu0 %6241
        %v6243 = vsel %vm2033, %v6119, 0.0
        %6244 = vadd.xlane.f32.xlu0 %v6243
        %v6245 = vpop.xlane.xlu0 %6244
        %v6246 = vsel %vm2033, %v6121, 0.0
        %6247 = vadd.xlane.f32.xlu0 %v6246
        %v6248 = vpop.xlane.xlu0 %6247
        %v6249 = vsel %vm2033, %v6123, 0.0
        %6250 = vadd.xlane.f32.xlu0 %v6249
        %v6251 = vpop.xlane.xlu0 %6250
        %v6284 = vlaneseq
        %v6285 = vshrl.u32 %v6284, 7
        %v6286 = vsub.s32 %v492, %v6285
        %v6287 = vrot.slane %v6158, %v6286
        %v6288 = vlaneseq
        %v6289 = vshrl.u32 %v6288, 7
        %v6290 = vsub.s32 %v2884, %v6289
        %v6291 = vrot.slane %v6161, %v6290
        %v6292 = vsel %vm2889, %v6291, %v6287
        %v6293 = vlaneseq
        %v6294 = vshrl.u32 %v6293, 7
        %v6295 = vsub.s32 %v492, %v6294
        %v6296 = vrot.slane %v6164, %v6295
        %v6297 = vlaneseq
        %v6298 = vshrl.u32 %v6297, 7
        %v6299 = vsub.s32 %v2884, %v6298
        %v6300 = vrot.slane %v6167, %v6299
        %v6301 = vsel %vm2889, %v6300, %v6296
        %v6302 = vlaneseq
        %v6303 = vshrl.u32 %v6302, 7
        %v6304 = vsub.s32 %v492, %v6303
        %v6305 = vrot.slane %v6170, %v6304
        %v6306 = vlaneseq
        %v6307 = vshrl.u32 %v6306, 7
        %v6308 = vsub.s32 %v2884, %v6307
        %v6309 = vrot.slane %v6173, %v6308
        %v6310 = vsel %vm2889, %v6309, %v6305
        %v6311 = vlaneseq
        %v6312 = vshrl.u32 %v6311, 7
        %v6313 = vsub.s32 %v492, %v6312
        %v6314 = vrot.slane %v6176, %v6313
        %v6315 = vlaneseq
        %v6316 = vshrl.u32 %v6315, 7
        %v6317 = vsub.s32 %v2884, %v6316
        %v6318 = vrot.slane %v6179, %v6317
        %v6319 = vsel %vm2889, %v6318, %v6314
        %v6320 = vlaneseq
        %v6321 = vshrl.u32 %v6320, 7
        %v6322 = vsub.s32 %v492, %v6321
        %v6323 = vrot.slane %v6182, %v6322
        %v6324 = vlaneseq
        %v6325 = vshrl.u32 %v6324, 7
        %v6326 = vsub.s32 %v2884, %v6325
        %v6327 = vrot.slane %v6185, %v6326
        %v6328 = vsel %vm2889, %v6327, %v6323
        %v6329 = vlaneseq
        %v6330 = vshrl.u32 %v6329, 7
        %v6331 = vsub.s32 %v492, %v6330
        %v6332 = vrot.slane %v6188, %v6331
        %v6333 = vlaneseq
        %v6334 = vshrl.u32 %v6333, 7
        %v6335 = vsub.s32 %v2884, %v6334
        %v6336 = vrot.slane %v6191, %v6335
        %v6337 = vsel %vm2889, %v6336, %v6332
        %v6338 = vlaneseq
        %v6339 = vshrl.u32 %v6338, 7
        %v6340 = vsub.s32 %v492, %v6339
        %v6341 = vrot.slane %v6194, %v6340
        %v6342 = vlaneseq
        %v6343 = vshrl.u32 %v6342, 7
        %v6344 = vsub.s32 %v2884, %v6343
        %v6345 = vrot.slane %v6197, %v6344
        %v6346 = vsel %vm2889, %v6345, %v6341
        %v6347 = vlaneseq
        %v6348 = vshrl.u32 %v6347, 7
        %v6349 = vsub.s32 %v492, %v6348
        %v6350 = vrot.slane %v6200, %v6349
        %v6351 = vlaneseq
        %v6352 = vshrl.u32 %v6351, 7
        %v6353 = vsub.s32 %v2884, %v6352
        %v6354 = vrot.slane %v6203, %v6353
        %v6355 = vsel %vm2889, %v6354, %v6350
        %v6356 = vlaneseq
        %v6357 = vshrl.u32 %v6356, 7
        %v6358 = vsub.s32 %v492, %v6357
        %v6359 = vrot.slane %v6206, %v6358
        %v6360 = vlaneseq
        %v6361 = vshrl.u32 %v6360, 7
        %v6362 = vsub.s32 %v2884, %v6361
        %v6363 = vrot.slane %v6209, %v6362
        %v6364 = vsel %vm2889, %v6363, %v6359
        %v6365 = vlaneseq
        %v6366 = vshrl.u32 %v6365, 7
        %v6367 = vsub.s32 %v492, %v6366
        %v6368 = vrot.slane %v6212, %v6367
        %v6369 = vlaneseq
        %v6370 = vshrl.u32 %v6369, 7
        %v6371 = vsub.s32 %v2884, %v6370
        %v6372 = vrot.slane %v6215, %v6371
        %v6373 = vsel %vm2889, %v6372, %v6368
        %v6374 = vlaneseq
        %v6375 = vshrl.u32 %v6374, 7
        %v6376 = vsub.s32 %v492, %v6375
        %v6377 = vrot.slane %v6218, %v6376
        %v6378 = vlaneseq
        %v6379 = vshrl.u32 %v6378, 7
        %v6380 = vsub.s32 %v2884, %v6379
        %v6381 = vrot.slane %v6221, %v6380
        %v6382 = vsel %vm2889, %v6381, %v6377
        %v6383 = vlaneseq
        %v6384 = vshrl.u32 %v6383, 7
        %v6385 = vsub.s32 %v492, %v6384
        %v6386 = vrot.slane %v6224, %v6385
        %v6387 = vlaneseq
        %v6388 = vshrl.u32 %v6387, 7
        %v6389 = vsub.s32 %v2884, %v6388
        %v6390 = vrot.slane %v6227, %v6389
        %v6391 = vsel %vm2889, %v6390, %v6386
        %v6392 = vlaneseq
        %v6393 = vshrl.u32 %v6392, 7
        %v6394 = vsub.s32 %v492, %v6393
        %v6395 = vrot.slane %v6230, %v6394
        %v6396 = vlaneseq
        %v6397 = vshrl.u32 %v6396, 7
        %v6398 = vsub.s32 %v2884, %v6397
        %v6399 = vrot.slane %v6233, %v6398
        %v6400 = vsel %vm2889, %v6399, %v6395
        %v6401 = vlaneseq
        %v6402 = vshrl.u32 %v6401, 7
        %v6403 = vsub.s32 %v492, %v6402
        %v6404 = vrot.slane %v6236, %v6403
        %v6405 = vlaneseq
        %v6406 = vshrl.u32 %v6405, 7
        %v6407 = vsub.s32 %v2884, %v6406
        %v6408 = vrot.slane %v6239, %v6407
        %v6409 = vsel %vm2889, %v6408, %v6404
        %v6410 = vlaneseq
        %v6411 = vshrl.u32 %v6410, 7
        %v6412 = vsub.s32 %v492, %v6411
        %v6413 = vrot.slane %v6242, %v6412
        %v6414 = vlaneseq
        %v6415 = vshrl.u32 %v6414, 7
        %v6416 = vsub.s32 %v2884, %v6415
        %v6417 = vrot.slane %v6245, %v6416
        %v6418 = vsel %vm2889, %v6417, %v6413
        %v6419 = vlaneseq
        %v6420 = vshrl.u32 %v6419, 7
        %v6421 = vsub.s32 %v492, %v6420
        %v6422 = vrot.slane %v6248, %v6421
        %v6423 = vlaneseq
        %v6424 = vshrl.u32 %v6423, 7
        %v6425 = vsub.s32 %v2884, %v6424
        %v6426 = vrot.slane %v6251, %v6425
        %v6427 = vsel %vm2889, %v6426, %v6422
        %v6428 = vsel %vm3026, %v6301, %v6292
        %v6429 = vsel %vm3028, %v6310, %v6428
        %v6430 = vsel %vm3030, %v6319, %v6429
        %v6431 = vsel %vm3032, %v6328, %v6430
        %v6432 = vsel %vm3034, %v6337, %v6431
        %v6433 = vsel %vm3036, %v6346, %v6432
        %v6434 = vsel %vm3038, %v6355, %v6433
        %v6435 = vsel %vm3026, %v6373, %v6364
        %v6436 = vsel %vm3028, %v6382, %v6435
        %v6437 = vsel %vm3030, %v6391, %v6436
        %v6438 = vsel %vm3032, %v6400, %v6437
        %v6439 = vsel %vm3034, %v6409, %v6438
        %v6440 = vsel %vm3036, %v6418, %v6439
        %v6441 = vsel %vm3038, %v6427, %v6440
        %v6444 = vsel %vm1521, %v6434, -inf
        %6445 = vmax.xlane.f32.xlu0 %v6444
        %v6446 = vpop.xlane.xlu0 %6445
        %v6447 = vsel %vm1521, %v6441, -inf
        %6448 = vmax.xlane.f32.xlu0 %v6447
        %v6449 = vpop.xlane.xlu0 %6448
        %v6452 = vlaneseq
        %v6453 = vshrl.u32 %v6452, 7
        %v6454 = vsub.s32 0, %v6453
        %v6455 = vrot.slane %v6446, %v6454
        %v6456 = vlaneseq
        %v6457 = vshrl.u32 %v6456, 7
        %v6458 = vsub.s32 1, %v6457
        %v6459 = vrot.slane %v6446, %v6458
        %v6460 = vlaneseq
        %v6461 = vshrl.u32 %v6460, 7
        %v6462 = vsub.s32 2, %v6461
        %v6463 = vrot.slane %v6446, %v6462
        %v6464 = vlaneseq
        %v6465 = vshrl.u32 %v6464, 7
        %v6466 = vsub.s32 3, %v6465
        %v6467 = vrot.slane %v6446, %v6466
        %v6468 = vlaneseq
        %v6469 = vshrl.u32 %v6468, 7
        %v6470 = vsub.s32 4, %v6469
        %v6471 = vrot.slane %v6446, %v6470
        %v6472 = vlaneseq
        %v6473 = vshrl.u32 %v6472, 7
        %v6474 = vsub.s32 5, %v6473
        %v6475 = vrot.slane %v6446, %v6474
        %v6476 = vlaneseq
        %v6477 = vshrl.u32 %v6476, 7
        %v6478 = vsub.s32 6, %v6477
        %v6479 = vrot.slane %v6446, %v6478
        %v6480 = vlaneseq
        %v6481 = vshrl.u32 %v6480, 7
        %v6482 = vsub.s32 7, %v6481
        %v6483 = vrot.slane %v6446, %v6482
        %v6484 = vlaneseq
        %v6485 = vshrl.u32 %v6484, 7
        %v6486 = vsub.s32 0, %v6485
        %v6487 = vrot.slane %v6449, %v6486
        %v6488 = vlaneseq
        %v6489 = vshrl.u32 %v6488, 7
        %v6490 = vsub.s32 1, %v6489
        %v6491 = vrot.slane %v6449, %v6490
        %v6492 = vlaneseq
        %v6493 = vshrl.u32 %v6492, 7
        %v6494 = vsub.s32 2, %v6493
        %v6495 = vrot.slane %v6449, %v6494
        %v6496 = vlaneseq
        %v6497 = vshrl.u32 %v6496, 7
        %v6498 = vsub.s32 3, %v6497
        %v6499 = vrot.slane %v6449, %v6498
        %v6500 = vlaneseq
        %v6501 = vshrl.u32 %v6500, 7
        %v6502 = vsub.s32 4, %v6501
        %v6503 = vrot.slane %v6449, %v6502
        %v6504 = vlaneseq
        %v6505 = vshrl.u32 %v6504, 7
        %v6506 = vsub.s32 5, %v6505
        %v6507 = vrot.slane %v6449, %v6506
        %v6508 = vlaneseq
        %v6509 = vshrl.u32 %v6508, 7
        %v6510 = vsub.s32 6, %v6509
        %v6511 = vrot.slane %v6449, %v6510
        %v6512 = vlaneseq
        %v6513 = vshrl.u32 %v6512, 7
        %v6514 = vsub.s32 7, %v6513
        %v6515 = vrot.slane %v6449, %v6514
        %v6532 = vsub.f32 %v6158, %v6455
        %v6533 = vsub.f32 %v6161, %v6455
        %v6534 = vsub.f32 %v6164, %v6459
        %v6535 = vsub.f32 %v6167, %v6459
        %v6536 = vsub.f32 %v6170, %v6463
        %v6537 = vsub.f32 %v6173, %v6463
        %v6538 = vsub.f32 %v6176, %v6467
        %v6539 = vsub.f32 %v6179, %v6467
        %v6540 = vsub.f32 %v6182, %v6471
        %v6541 = vsub.f32 %v6185, %v6471
        %v6542 = vsub.f32 %v6188, %v6475
        %v6543 = vsub.f32 %v6191, %v6475
        %v6544 = vsub.f32 %v6194, %v6479
        %v6545 = vsub.f32 %v6197, %v6479
        %v6546 = vsub.f32 %v6200, %v6483
        %v6547 = vsub.f32 %v6203, %v6483
        %v6548 = vsub.f32 %v6206, %v6487
        %v6549 = vsub.f32 %v6209, %v6487
        %v6550 = vsub.f32 %v6212, %v6491
        %v6551 = vsub.f32 %v6215, %v6491
        %v6552 = vsub.f32 %v6218, %v6495
        %v6553 = vsub.f32 %v6221, %v6495
        %v6554 = vsub.f32 %v6224, %v6499
        %v6555 = vsub.f32 %v6227, %v6499
        %v6556 = vsub.f32 %v6230, %v6503
        %v6557 = vsub.f32 %v6233, %v6503
        %v6558 = vsub.f32 %v6236, %v6507
        %v6559 = vsub.f32 %v6239, %v6507
        %v6560 = vsub.f32 %v6242, %v6511
        %v6561 = vsub.f32 %v6245, %v6511
        %v6562 = vsub.f32 %v6248, %v6515
        %v6563 = vsub.f32 %v6251, %v6515
        %v6564 = vmul.f32 %v6532, 1.442695
        %v6565 = vpow.pop %v6564
        %v6566 = vmul.f32 %v6533, 1.442695
        %v6567 = vpow.pop %v6566
        %v6568 = vmul.f32 %v6534, 1.442695
        %v6569 = vpow.pop %v6568
        %v6570 = vmul.f32 %v6535, 1.442695
        %v6571 = vpow.pop %v6570
        %v6572 = vmul.f32 %v6536, 1.442695
        %v6573 = vpow.pop %v6572
        %v6574 = vmul.f32 %v6537, 1.442695
        %v6575 = vpow.pop %v6574
        %v6576 = vmul.f32 %v6538, 1.442695
        %v6577 = vpow.pop %v6576
        %v6578 = vmul.f32 %v6539, 1.442695
        %v6579 = vpow.pop %v6578
        %v6580 = vmul.f32 %v6540, 1.442695
        %v6581 = vpow.pop %v6580
        %v6582 = vmul.f32 %v6541, 1.442695
        %v6583 = vpow.pop %v6582
        %v6584 = vmul.f32 %v6542, 1.442695
        %v6585 = vpow.pop %v6584
        %v6586 = vmul.f32 %v6543, 1.442695
        %v6587 = vpow.pop %v6586
        %v6588 = vmul.f32 %v6544, 1.442695
        %v6589 = vpow.pop %v6588
        %v6590 = vmul.f32 %v6545, 1.442695
        %v6591 = vpow.pop %v6590
        %v6592 = vmul.f32 %v6546, 1.442695
        %v6593 = vpow.pop %v6592
        %v6594 = vmul.f32 %v6547, 1.442695
        %v6595 = vpow.pop %v6594
        %v6596 = vmul.f32 %v6548, 1.442695
        %v6597 = vpow.pop %v6596
        %v6598 = vmul.f32 %v6549, 1.442695
        %v6599 = vpow.pop %v6598
        %v6600 = vmul.f32 %v6550, 1.442695
        %v6601 = vpow.pop %v6600
        %v6602 = vmul.f32 %v6551, 1.442695
        %v6603 = vpow.pop %v6602
        %v6604 = vmul.f32 %v6552, 1.442695
        %v6605 = vpow.pop %v6604
        %v6606 = vmul.f32 %v6553, 1.442695
        %v6607 = vpow.pop %v6606
        %v6608 = vmul.f32 %v6554, 1.442695
        %v6609 = vpow.pop %v6608
        %v6610 = vmul.f32 %v6555, 1.442695
        %v6611 = vpow.pop %v6610
        %v6612 = vmul.f32 %v6556, 1.442695
        %v6613 = vpow.pop %v6612
        %v6614 = vmul.f32 %v6557, 1.442695
        %v6615 = vpow.pop %v6614
        %v6616 = vmul.f32 %v6558, 1.442695
        %v6617 = vpow.pop %v6616
        %v6618 = vmul.f32 %v6559, 1.442695
        %v6619 = vpow.pop %v6618
        %v6620 = vmul.f32 %v6560, 1.442695
        %v6621 = vpow.pop %v6620
        %v6622 = vmul.f32 %v6561, 1.442695
        %v6623 = vpow.pop %v6622
        %v6624 = vmul.f32 %v6562, 1.442695
        %v6625 = vpow.pop %v6624
        %v6626 = vmul.f32 %v6563, 1.442695
        %v6627 = vpow.pop %v6626
        %v6628 = vmul.f32 %v6565, %v3241
        %v6629 = vmul.f32 %v6567, %v3245
        %v6630 = vmul.f32 %v6569, %v3252
        %v6631 = vmul.f32 %v6571, %v3256
        %v6632 = vmul.f32 %v6573, %v3263
        %v6633 = vmul.f32 %v6575, %v3267
        %v6634 = vmul.f32 %v6577, %v3274
        %v6635 = vmul.f32 %v6579, %v3278
        %v6636 = vmul.f32 %v6581, %v3285
        %v6637 = vmul.f32 %v6583, %v3289
        %v6638 = vmul.f32 %v6585, %v3296
        %v6639 = vmul.f32 %v6587, %v3300
        %v6640 = vmul.f32 %v6589, %v3307
        %v6641 = vmul.f32 %v6591, %v3311
        %v6642 = vmul.f32 %v6593, %v3318
        %v6643 = vmul.f32 %v6595, %v3322
        %v6644 = vmul.f32 %v6597, %v3329
        %v6645 = vmul.f32 %v6599, %v3333
        %v6646 = vmul.f32 %v6601, %v3340
        %v6647 = vmul.f32 %v6603, %v3344
        %v6648 = vmul.f32 %v6605, %v3351
        %v6649 = vmul.f32 %v6607, %v3355
        %v6650 = vmul.f32 %v6609, %v3362
        %v6651 = vmul.f32 %v6611, %v3366
        %v6652 = vmul.f32 %v6613, %v3373
        %v6653 = vmul.f32 %v6615, %v3377
        %v6654 = vmul.f32 %v6617, %v3384
        %v6655 = vmul.f32 %v6619, %v3388
        %v6656 = vmul.f32 %v6621, %v3395
        %v6657 = vmul.f32 %v6623, %v3399
        %v6658 = vmul.f32 %v6625, %v3406
        %v6659 = vmul.f32 %v6627, %v3410
        %6692 = vset.pattern.permute.xlu0 0
        %6693 = vperm.xlu0 %6692, %v6628
        %v6694 = vpop.permute.xlu0 %6693
        %6695 = vset.pattern.permute.xlu0 0
        %6696 = vperm.xlu0 %6695, %v6629
        %v6697 = vpop.permute.xlu0 %6696
        %6698 = vset.pattern.permute.xlu0 0
        %6699 = vperm.xlu0 %6698, %v6630
        %v6700 = vpop.permute.xlu0 %6699
        %6701 = vset.pattern.permute.xlu0 0
        %6702 = vperm.xlu0 %6701, %v6631
        %v6703 = vpop.permute.xlu0 %6702
        %6704 = vset.pattern.permute.xlu0 0
        %6705 = vperm.xlu0 %6704, %v6632
        %v6706 = vpop.permute.xlu0 %6705
        %6707 = vset.pattern.permute.xlu0 0
        %6708 = vperm.xlu0 %6707, %v6633
        %v6709 = vpop.permute.xlu0 %6708
        %6710 = vset.pattern.permute.xlu0 0
        %6711 = vperm.xlu0 %6710, %v6634
        %v6712 = vpop.permute.xlu0 %6711
        %6713 = vset.pattern.permute.xlu0 0
        %6714 = vperm.xlu0 %6713, %v6635
        %v6715 = vpop.permute.xlu0 %6714
        %6716 = vset.pattern.permute.xlu0 0
        %6717 = vperm.xlu0 %6716, %v6636
        %v6718 = vpop.permute.xlu0 %6717
        %6719 = vset.pattern.permute.xlu0 0
        %6720 = vperm.xlu0 %6719, %v6637
        %v6721 = vpop.permute.xlu0 %6720
        %6722 = vset.pattern.permute.xlu0 0
        %6723 = vperm.xlu0 %6722, %v6638
        %v6724 = vpop.permute.xlu0 %6723
        %6725 = vset.pattern.permute.xlu0 0
        %6726 = vperm.xlu0 %6725, %v6639
        %v6727 = vpop.permute.xlu0 %6726
        %6728 = vset.pattern.permute.xlu0 0
        %6729 = vperm.xlu0 %6728, %v6640
        %v6730 = vpop.permute.xlu0 %6729
        %6731 = vset.pattern.permute.xlu0 0
        %6732 = vperm.xlu0 %6731, %v6641
        %v6733 = vpop.permute.xlu0 %6732
        %6734 = vset.pattern.permute.xlu0 0
        %6735 = vperm.xlu0 %6734, %v6642
        %v6736 = vpop.permute.xlu0 %6735
        %6737 = vset.pattern.permute.xlu0 0
        %6738 = vperm.xlu0 %6737, %v6643
        %v6739 = vpop.permute.xlu0 %6738
        %6740 = vset.pattern.permute.xlu0 0
        %6741 = vperm.xlu0 %6740, %v6644
        %v6742 = vpop.permute.xlu0 %6741
        %6743 = vset.pattern.permute.xlu0 0
        %6744 = vperm.xlu0 %6743, %v6645
        %v6745 = vpop.permute.xlu0 %6744
        %6746 = vset.pattern.permute.xlu0 0
        %6747 = vperm.xlu0 %6746, %v6646
        %v6748 = vpop.permute.xlu0 %6747
        %6749 = vset.pattern.permute.xlu0 0
        %6750 = vperm.xlu0 %6749, %v6647
        %v6751 = vpop.permute.xlu0 %6750
        %6752 = vset.pattern.permute.xlu0 0
        %6753 = vperm.xlu0 %6752, %v6648
        %v6754 = vpop.permute.xlu0 %6753
        %6755 = vset.pattern.permute.xlu0 0
        %6756 = vperm.xlu0 %6755, %v6649
        %v6757 = vpop.permute.xlu0 %6756
        %6758 = vset.pattern.permute.xlu0 0
        %6759 = vperm.xlu0 %6758, %v6650
        %v6760 = vpop.permute.xlu0 %6759
        %6761 = vset.pattern.permute.xlu0 0
        %6762 = vperm.xlu0 %6761, %v6651
        %v6763 = vpop.permute.xlu0 %6762
        %6764 = vset.pattern.permute.xlu0 0
        %6765 = vperm.xlu0 %6764, %v6652
        %v6766 = vpop.permute.xlu0 %6765
        %6767 = vset.pattern.permute.xlu0 0
        %6768 = vperm.xlu0 %6767, %v6653
        %v6769 = vpop.permute.xlu0 %6768
        %6770 = vset.pattern.permute.xlu0 0
        %6771 = vperm.xlu0 %6770, %v6654
        %v6772 = vpop.permute.xlu0 %6771
        %6773 = vset.pattern.permute.xlu0 0
        %6774 = vperm.xlu0 %6773, %v6655
        %v6775 = vpop.permute.xlu0 %6774
        %6776 = vset.pattern.permute.xlu0 0
        %6777 = vperm.xlu0 %6776, %v6656
        %v6778 = vpop.permute.xlu0 %6777
        %6779 = vset.pattern.permute.xlu0 0
        %6780 = vperm.xlu0 %6779, %v6657
        %v6781 = vpop.permute.xlu0 %6780
        %6782 = vset.pattern.permute.xlu0 0
        %6783 = vperm.xlu0 %6782, %v6658
        %v6784 = vpop.permute.xlu0 %6783
        %6785 = vset.pattern.permute.xlu0 0
        %6786 = vperm.xlu0 %6785, %v6659
        %v6787 = vpop.permute.xlu0 %6786
        %v6788 = vlaneseq
        %v6789 = vshrl.u32 %v6788, 7
        %v6790 = vsub.s32 %v492, %v6789
        %v6791 = vrot.slane %v6694, %v6790
        %v6792 = vlaneseq
        %v6793 = vshrl.u32 %v6792, 7
        %v6794 = vsub.s32 %v2884, %v6793
        %v6795 = vrot.slane %v6697, %v6794
        %v6796 = vsel %vm2889, %v6795, %v6791
        %v6797 = vlaneseq
        %v6798 = vshrl.u32 %v6797, 7
        %v6799 = vsub.s32 %v492, %v6798
        %v6800 = vrot.slane %v6700, %v6799
        %v6801 = vlaneseq
        %v6802 = vshrl.u32 %v6801, 7
        %v6803 = vsub.s32 %v2884, %v6802
        %v6804 = vrot.slane %v6703, %v6803
        %v6805 = vsel %vm2889, %v6804, %v6800
        %v6806 = vlaneseq
        %v6807 = vshrl.u32 %v6806, 7
        %v6808 = vsub.s32 %v492, %v6807
        %v6809 = vrot.slane %v6706, %v6808
        %v6810 = vlaneseq
        %v6811 = vshrl.u32 %v6810, 7
        %v6812 = vsub.s32 %v2884, %v6811
        %v6813 = vrot.slane %v6709, %v6812
        %v6814 = vsel %vm2889, %v6813, %v6809
        %v6815 = vlaneseq
        %v6816 = vshrl.u32 %v6815, 7
        %v6817 = vsub.s32 %v492, %v6816
        %v6818 = vrot.slane %v6712, %v6817
        %v6819 = vlaneseq
        %v6820 = vshrl.u32 %v6819, 7
        %v6821 = vsub.s32 %v2884, %v6820
        %v6822 = vrot.slane %v6715, %v6821
        %v6823 = vsel %vm2889, %v6822, %v6818
        %v6824 = vlaneseq
        %v6825 = vshrl.u32 %v6824, 7
        %v6826 = vsub.s32 %v492, %v6825
        %v6827 = vrot.slane %v6718, %v6826
        %v6828 = vlaneseq
        %v6829 = vshrl.u32 %v6828, 7
        %v6830 = vsub.s32 %v2884, %v6829
        %v6831 = vrot.slane %v6721, %v6830
        %v6832 = vsel %vm2889, %v6831, %v6827
        %v6833 = vlaneseq
        %v6834 = vshrl.u32 %v6833, 7
        %v6835 = vsub.s32 %v492, %v6834
        %v6836 = vrot.slane %v6724, %v6835
        %v6837 = vlaneseq
        %v6838 = vshrl.u32 %v6837, 7
        %v6839 = vsub.s32 %v2884, %v6838
        %v6840 = vrot.slane %v6727, %v6839
        %v6841 = vsel %vm2889, %v6840, %v6836
        %v6842 = vlaneseq
        %v6843 = vshrl.u32 %v6842, 7
        %v6844 = vsub.s32 %v492, %v6843
        %v6845 = vrot.slane %v6730, %v6844
        %v6846 = vlaneseq
        %v6847 = vshrl.u32 %v6846, 7
        %v6848 = vsub.s32 %v2884, %v6847
        %v6849 = vrot.slane %v6733, %v6848
        %v6850 = vsel %vm2889, %v6849, %v6845
        %v6851 = vlaneseq
        %v6852 = vshrl.u32 %v6851, 7
        %v6853 = vsub.s32 %v492, %v6852
        %v6854 = vrot.slane %v6736, %v6853
        %v6855 = vlaneseq
        %v6856 = vshrl.u32 %v6855, 7
        %v6857 = vsub.s32 %v2884, %v6856
        %v6858 = vrot.slane %v6739, %v6857
        %v6859 = vsel %vm2889, %v6858, %v6854
        %v6860 = vlaneseq
        %v6861 = vshrl.u32 %v6860, 7
        %v6862 = vsub.s32 %v492, %v6861
        %v6863 = vrot.slane %v6742, %v6862
        %v6864 = vlaneseq
        %v6865 = vshrl.u32 %v6864, 7
        %v6866 = vsub.s32 %v2884, %v6865
        %v6867 = vrot.slane %v6745, %v6866
        %v6868 = vsel %vm2889, %v6867, %v6863
        %v6869 = vlaneseq
        %v6870 = vshrl.u32 %v6869, 7
        %v6871 = vsub.s32 %v492, %v6870
        %v6872 = vrot.slane %v6748, %v6871
        %v6873 = vlaneseq
        %v6874 = vshrl.u32 %v6873, 7
        %v6875 = vsub.s32 %v2884, %v6874
        %v6876 = vrot.slane %v6751, %v6875
        %v6877 = vsel %vm2889, %v6876, %v6872
        %v6878 = vlaneseq
        %v6879 = vshrl.u32 %v6878, 7
        %v6880 = vsub.s32 %v492, %v6879
        %v6881 = vrot.slane %v6754, %v6880
        %v6882 = vlaneseq
        %v6883 = vshrl.u32 %v6882, 7
        %v6884 = vsub.s32 %v2884, %v6883
        %v6885 = vrot.slane %v6757, %v6884
        %v6886 = vsel %vm2889, %v6885, %v6881
        %v6887 = vlaneseq
        %v6888 = vshrl.u32 %v6887, 7
        %v6889 = vsub.s32 %v492, %v6888
        %v6890 = vrot.slane %v6760, %v6889
        %v6891 = vlaneseq
        %v6892 = vshrl.u32 %v6891, 7
        %v6893 = vsub.s32 %v2884, %v6892
        %v6894 = vrot.slane %v6763, %v6893
        %v6895 = vsel %vm2889, %v6894, %v6890
        %v6896 = vlaneseq
        %v6897 = vshrl.u32 %v6896, 7
        %v6898 = vsub.s32 %v492, %v6897
        %v6899 = vrot.slane %v6766, %v6898
        %v6900 = vlaneseq
        %v6901 = vshrl.u32 %v6900, 7
        %v6902 = vsub.s32 %v2884, %v6901
        %v6903 = vrot.slane %v6769, %v6902
        %v6904 = vsel %vm2889, %v6903, %v6899
        %v6905 = vlaneseq
        %v6906 = vshrl.u32 %v6905, 7
        %v6907 = vsub.s32 %v492, %v6906
        %v6908 = vrot.slane %v6772, %v6907
        %v6909 = vlaneseq
        %v6910 = vshrl.u32 %v6909, 7
        %v6911 = vsub.s32 %v2884, %v6910
        %v6912 = vrot.slane %v6775, %v6911
        %v6913 = vsel %vm2889, %v6912, %v6908
        %v6914 = vlaneseq
        %v6915 = vshrl.u32 %v6914, 7
        %v6916 = vsub.s32 %v492, %v6915
        %v6917 = vrot.slane %v6778, %v6916
        %v6918 = vlaneseq
        %v6919 = vshrl.u32 %v6918, 7
        %v6920 = vsub.s32 %v2884, %v6919
        %v6921 = vrot.slane %v6781, %v6920
        %v6922 = vsel %vm2889, %v6921, %v6917
        %v6923 = vlaneseq
        %v6924 = vshrl.u32 %v6923, 7
        %v6925 = vsub.s32 %v492, %v6924
        %v6926 = vrot.slane %v6784, %v6925
        %v6927 = vlaneseq
        %v6928 = vshrl.u32 %v6927, 7
        %v6929 = vsub.s32 %v2884, %v6928
        %v6930 = vrot.slane %v6787, %v6929
        %v6931 = vsel %vm2889, %v6930, %v6926
        %v6932 = vsel %vm3026, %v6805, %v6796
        %v6933 = vsel %vm3028, %v6814, %v6932
        %v6934 = vsel %vm3030, %v6823, %v6933
        %v6935 = vsel %vm3032, %v6832, %v6934
        %v6936 = vsel %vm3034, %v6841, %v6935
        %v6937 = vsel %vm3036, %v6850, %v6936
        %v6938 = vsel %vm3038, %v6859, %v6937
        %v6939 = vsel %vm3026, %v6877, %v6868
        %v6940 = vsel %vm3028, %v6886, %v6939
        %v6941 = vsel %vm3030, %v6895, %v6940
        %v6942 = vsel %vm3032, %v6904, %v6941
        %v6943 = vsel %vm3034, %v6913, %v6942
        %v6944 = vsel %vm3036, %v6922, %v6943
        %v6945 = vsel %vm3038, %v6931, %v6944
        %v6948 = vsel %vm1521, %v6938, 0.0
        %6949 = vadd.xlane.f32.xlu0 %v6948
        %v6950 = vpop.xlane.xlu0 %6949
        %v6951 = vsel %vm1521, %v6945, 0.0
        %6952 = vadd.xlane.f32.xlu0 %v6951
        %v6953 = vpop.xlane.xlu0 %6952
        %v6954 = vrcp.pop %v6950
        %v6955 = vrcp.pop %v6953
        %v6958 = vlaneseq
        %v6959 = vshrl.u32 %v6958, 7
        %v6960 = vsub.s32 0, %v6959
        %v6961 = vrot.slane %v6954, %v6960
        %v6962 = vlaneseq
        %v6963 = vshrl.u32 %v6962, 7
        %v6964 = vsub.s32 1, %v6963
        %v6965 = vrot.slane %v6954, %v6964
        %v6966 = vlaneseq
        %v6967 = vshrl.u32 %v6966, 7
        %v6968 = vsub.s32 2, %v6967
        %v6969 = vrot.slane %v6954, %v6968
        %v6970 = vlaneseq
        %v6971 = vshrl.u32 %v6970, 7
        %v6972 = vsub.s32 3, %v6971
        %v6973 = vrot.slane %v6954, %v6972
        %v6974 = vlaneseq
        %v6975 = vshrl.u32 %v6974, 7
        %v6976 = vsub.s32 4, %v6975
        %v6977 = vrot.slane %v6954, %v6976
        %v6978 = vlaneseq
        %v6979 = vshrl.u32 %v6978, 7
        %v6980 = vsub.s32 5, %v6979
        %v6981 = vrot.slane %v6954, %v6980
        %v6982 = vlaneseq
        %v6983 = vshrl.u32 %v6982, 7
        %v6984 = vsub.s32 6, %v6983
        %v6985 = vrot.slane %v6954, %v6984
        %v6986 = vlaneseq
        %v6987 = vshrl.u32 %v6986, 7
        %v6988 = vsub.s32 7, %v6987
        %v6989 = vrot.slane %v6954, %v6988
        %v6990 = vlaneseq
        %v6991 = vshrl.u32 %v6990, 7
        %v6992 = vsub.s32 0, %v6991
        %v6993 = vrot.slane %v6955, %v6992
        %v6994 = vlaneseq
        %v6995 = vshrl.u32 %v6994, 7
        %v6996 = vsub.s32 1, %v6995
        %v6997 = vrot.slane %v6955, %v6996
        %v6998 = vlaneseq
        %v6999 = vshrl.u32 %v6998, 7
        %v7000 = vsub.s32 2, %v6999
        %v7001 = vrot.slane %v6955, %v7000
        %v7002 = vlaneseq
        %v7003 = vshrl.u32 %v7002, 7
        %v7004 = vsub.s32 3, %v7003
        %v7005 = vrot.slane %v6955, %v7004
        %v7006 = vlaneseq
        %v7007 = vshrl.u32 %v7006, 7
        %v7008 = vsub.s32 4, %v7007
        %v7009 = vrot.slane %v6955, %v7008
        %v7010 = vlaneseq
        %v7011 = vshrl.u32 %v7010, 7
        %v7012 = vsub.s32 5, %v7011
        %v7013 = vrot.slane %v6955, %v7012
        %v7014 = vlaneseq
        %v7015 = vshrl.u32 %v7014, 7
        %v7016 = vsub.s32 6, %v7015
        %v7017 = vrot.slane %v6955, %v7016
        %v7018 = vlaneseq
        %v7019 = vshrl.u32 %v7018, 7
        %v7020 = vsub.s32 7, %v7019
        %v7021 = vrot.slane %v6955, %v7020
        %v7038 = vmul.f32 %v6628, %v6961
        %v7039 = vmul.f32 %v6629, %v6961
        %v7040 = vmul.f32 %v6630, %v6965
        %v7041 = vmul.f32 %v6631, %v6965
        %v7042 = vmul.f32 %v6632, %v6969
        %v7043 = vmul.f32 %v6633, %v6969
        %v7044 = vmul.f32 %v6634, %v6973
        %v7045 = vmul.f32 %v6635, %v6973
        %v7046 = vmul.f32 %v6636, %v6977
        %v7047 = vmul.f32 %v6637, %v6977
        %v7048 = vmul.f32 %v6638, %v6981
        %v7049 = vmul.f32 %v6639, %v6981
        %v7050 = vmul.f32 %v6640, %v6985
        %v7051 = vmul.f32 %v6641, %v6985
        %v7052 = vmul.f32 %v6642, %v6989
        %v7053 = vmul.f32 %v6643, %v6989
        %v7054 = vmul.f32 %v6644, %v6993
        %v7055 = vmul.f32 %v6645, %v6993
        %v7056 = vmul.f32 %v6646, %v6997
        %v7057 = vmul.f32 %v6647, %v6997
        %v7058 = vmul.f32 %v6648, %v7001
        %v7059 = vmul.f32 %v6649, %v7001
        %v7060 = vmul.f32 %v6650, %v7005
        %v7061 = vmul.f32 %v6651, %v7005
        %v7062 = vmul.f32 %v6652, %v7009
        %v7063 = vmul.f32 %v6653, %v7009
        %v7064 = vmul.f32 %v6654, %v7013
        %v7065 = vmul.f32 %v6655, %v7013
        %v7066 = vmul.f32 %v6656, %v7017
        %v7067 = vmul.f32 %v6657, %v7017
        %v7068 = vmul.f32 %v6658, %v7021
        %v7069 = vmul.f32 %v6659, %v7021
        %7070 = vrot.lane.b32.xlu0 %v5996, 32
        %v7071 = vpop.permute.xlu0 %7070
        %7072 = vrot.lane.b32.xlu0 %v5997, 32
        %v7073 = vpop.permute.xlu0 %7072
        %7074 = vrot.lane.b32.xlu0 %v5998, 32
        %v7075 = vpop.permute.xlu0 %7074
        %7076 = vrot.lane.b32.xlu0 %v5999, 32
        %v7077 = vpop.permute.xlu0 %7076
        %7078 = vrot.lane.b32.xlu0 %v6000, 32
        %v7079 = vpop.permute.xlu0 %7078
        %7080 = vrot.lane.b32.xlu0 %v6001, 32
        %v7081 = vpop.permute.xlu0 %7080
        %7082 = vrot.lane.b32.xlu0 %v6002, 32
        %v7083 = vpop.permute.xlu0 %7082
        %7084 = vrot.lane.b32.xlu0 %v6003, 32
        %v7085 = vpop.permute.xlu0 %7084
        %7086 = vrot.lane.b32.xlu0 %v6004, 32
        %v7087 = vpop.permute.xlu0 %7086
        %7088 = vrot.lane.b32.xlu0 %v6005, 32
        %v7089 = vpop.permute.xlu0 %7088
        %7090 = vrot.lane.b32.xlu0 %v6006, 32
        %v7091 = vpop.permute.xlu0 %7090
        %7092 = vrot.lane.b32.xlu0 %v6007, 32
        %v7093 = vpop.permute.xlu0 %7092
        %7094 = vrot.lane.b32.xlu0 %v6008, 32
        %v7095 = vpop.permute.xlu0 %7094
        %7096 = vrot.lane.b32.xlu0 %v6009, 32
        %v7097 = vpop.permute.xlu0 %7096
        %7098 = vrot.lane.b32.xlu0 %v6010, 32
        %v7099 = vpop.permute.xlu0 %7098
        %7100 = vrot.lane.b32.xlu0 %v6011, 32
        %v7101 = vpop.permute.xlu0 %7100
        %7102 = vrot.lane.b32.xlu0 %v6012, 32
        %v7103 = vpop.permute.xlu0 %7102
        %7104 = vrot.lane.b32.xlu0 %v6013, 32
        %v7105 = vpop.permute.xlu0 %7104
        %7106 = vrot.lane.b32.xlu0 %v6014, 32
        %v7107 = vpop.permute.xlu0 %7106
        %7108 = vrot.lane.b32.xlu0 %v6015, 32
        %v7109 = vpop.permute.xlu0 %7108
        %7110 = vrot.lane.b32.xlu0 %v6016, 32
        %v7111 = vpop.permute.xlu0 %7110
        %7112 = vrot.lane.b32.xlu0 %v6017, 32
        %v7113 = vpop.permute.xlu0 %7112
        %7114 = vrot.lane.b32.xlu0 %v6018, 32
        %v7115 = vpop.permute.xlu0 %7114
        %7116 = vrot.lane.b32.xlu0 %v6019, 32
        %v7117 = vpop.permute.xlu0 %7116
        %7118 = vrot.lane.b32.xlu0 %v6020, 32
        %v7119 = vpop.permute.xlu0 %7118
        %7120 = vrot.lane.b32.xlu0 %v6021, 32
        %v7121 = vpop.permute.xlu0 %7120
        %7122 = vrot.lane.b32.xlu0 %v6022, 32
        %v7123 = vpop.permute.xlu0 %7122
        %7124 = vrot.lane.b32.xlu0 %v6023, 32
        %v7125 = vpop.permute.xlu0 %7124
        %7126 = vrot.lane.b32.xlu0 %v6024, 32
        %v7127 = vpop.permute.xlu0 %7126
        %7128 = vrot.lane.b32.xlu0 %v6025, 32
        %v7129 = vpop.permute.xlu0 %7128
        %7130 = vrot.lane.b32.xlu0 %v6026, 32
        %v7131 = vpop.permute.xlu0 %7130
        %7132 = vrot.lane.b32.xlu0 %v6027, 32
        %v7133 = vpop.permute.xlu0 %7132
        %v7166 = vsel %vm2033, %v7071, 0.0
        %7167 = vadd.xlane.f32.xlu0 %v7166
        %v7168 = vpop.xlane.xlu0 %7167
        %v7169 = vsel %vm2033, %v7073, 0.0
        %7170 = vadd.xlane.f32.xlu0 %v7169
        %v7171 = vpop.xlane.xlu0 %7170
        %v7172 = vsel %vm2033, %v7075, 0.0
        %7173 = vadd.xlane.f32.xlu0 %v7172
        %v7174 = vpop.xlane.xlu0 %7173
        %v7175 = vsel %vm2033, %v7077, 0.0
        %7176 = vadd.xlane.f32.xlu0 %v7175
        %v7177 = vpop.xlane.xlu0 %7176
        %v7178 = vsel %vm2033, %v7079, 0.0
        %7179 = vadd.xlane.f32.xlu0 %v7178
        %v7180 = vpop.xlane.xlu0 %7179
        %v7181 = vsel %vm2033, %v7081, 0.0
        %7182 = vadd.xlane.f32.xlu0 %v7181
        %v7183 = vpop.xlane.xlu0 %7182
        %v7184 = vsel %vm2033, %v7083, 0.0
        %7185 = vadd.xlane.f32.xlu0 %v7184
        %v7186 = vpop.xlane.xlu0 %7185
        %v7187 = vsel %vm2033, %v7085, 0.0
        %7188 = vadd.xlane.f32.xlu0 %v7187
        %v7189 = vpop.xlane.xlu0 %7188
        %v7190 = vsel %vm2033, %v7087, 0.0
        %7191 = vadd.xlane.f32.xlu0 %v7190
        %v7192 = vpop.xlane.xlu0 %7191
        %v7193 = vsel %vm2033, %v7089, 0.0
        %7194 = vadd.xlane.f32.xlu0 %v7193
        %v7195 = vpop.xlane.xlu0 %7194
        %v7196 = vsel %vm2033, %v7091, 0.0
        %7197 = vadd.xlane.f32.xlu0 %v7196
        %v7198 = vpop.xlane.xlu0 %7197
        %v7199 = vsel %vm2033, %v7093, 0.0
        %7200 = vadd.xlane.f32.xlu0 %v7199
        %v7201 = vpop.xlane.xlu0 %7200
        %v7202 = vsel %vm2033, %v7095, 0.0
        %7203 = vadd.xlane.f32.xlu0 %v7202
        %v7204 = vpop.xlane.xlu0 %7203
        %v7205 = vsel %vm2033, %v7097, 0.0
        %7206 = vadd.xlane.f32.xlu0 %v7205
        %v7207 = vpop.xlane.xlu0 %7206
        %v7208 = vsel %vm2033, %v7099, 0.0
        %7209 = vadd.xlane.f32.xlu0 %v7208
        %v7210 = vpop.xlane.xlu0 %7209
        %v7211 = vsel %vm2033, %v7101, 0.0
        %7212 = vadd.xlane.f32.xlu0 %v7211
        %v7213 = vpop.xlane.xlu0 %7212
        %v7214 = vsel %vm2033, %v7103, 0.0
        %7215 = vadd.xlane.f32.xlu0 %v7214
        %v7216 = vpop.xlane.xlu0 %7215
        %v7217 = vsel %vm2033, %v7105, 0.0
        %7218 = vadd.xlane.f32.xlu0 %v7217
        %v7219 = vpop.xlane.xlu0 %7218
        %v7220 = vsel %vm2033, %v7107, 0.0
        %7221 = vadd.xlane.f32.xlu0 %v7220
        %v7222 = vpop.xlane.xlu0 %7221
        %v7223 = vsel %vm2033, %v7109, 0.0
        %7224 = vadd.xlane.f32.xlu0 %v7223
        %v7225 = vpop.xlane.xlu0 %7224
        %v7226 = vsel %vm2033, %v7111, 0.0
        %7227 = vadd.xlane.f32.xlu0 %v7226
        %v7228 = vpop.xlane.xlu0 %7227
        %v7229 = vsel %vm2033, %v7113, 0.0
        %7230 = vadd.xlane.f32.xlu0 %v7229
        %v7231 = vpop.xlane.xlu0 %7230
        %v7232 = vsel %vm2033, %v7115, 0.0
        %7233 = vadd.xlane.f32.xlu0 %v7232
        %v7234 = vpop.xlane.xlu0 %7233
        %v7235 = vsel %vm2033, %v7117, 0.0
        %7236 = vadd.xlane.f32.xlu0 %v7235
        %v7237 = vpop.xlane.xlu0 %7236
        %v7238 = vsel %vm2033, %v7119, 0.0
        %7239 = vadd.xlane.f32.xlu0 %v7238
        %v7240 = vpop.xlane.xlu0 %7239
        %v7241 = vsel %vm2033, %v7121, 0.0
        %7242 = vadd.xlane.f32.xlu0 %v7241
        %v7243 = vpop.xlane.xlu0 %7242
        %v7244 = vsel %vm2033, %v7123, 0.0
        %7245 = vadd.xlane.f32.xlu0 %v7244
        %v7246 = vpop.xlane.xlu0 %7245
        %v7247 = vsel %vm2033, %v7125, 0.0
        %7248 = vadd.xlane.f32.xlu0 %v7247
        %v7249 = vpop.xlane.xlu0 %7248
        %v7250 = vsel %vm2033, %v7127, 0.0
        %7251 = vadd.xlane.f32.xlu0 %v7250
        %v7252 = vpop.xlane.xlu0 %7251
        %v7253 = vsel %vm2033, %v7129, 0.0
        %7254 = vadd.xlane.f32.xlu0 %v7253
        %v7255 = vpop.xlane.xlu0 %7254
        %v7256 = vsel %vm2033, %v7131, 0.0
        %7257 = vadd.xlane.f32.xlu0 %v7256
        %v7258 = vpop.xlane.xlu0 %7257
        %v7259 = vsel %vm2033, %v7133, 0.0
        %7260 = vadd.xlane.f32.xlu0 %v7259
        %v7261 = vpop.xlane.xlu0 %7260
        %v7294 = vlaneseq
        %v7295 = vshrl.u32 %v7294, 7
        %v7296 = vsub.s32 %v492, %v7295
        %v7297 = vrot.slane %v7168, %v7296
        %v7298 = vlaneseq
        %v7299 = vshrl.u32 %v7298, 7
        %v7300 = vsub.s32 %v2884, %v7299
        %v7301 = vrot.slane %v7171, %v7300
        %v7302 = vsel %vm2889, %v7301, %v7297
        %v7303 = vlaneseq
        %v7304 = vshrl.u32 %v7303, 7
        %v7305 = vsub.s32 %v492, %v7304
        %v7306 = vrot.slane %v7174, %v7305
        %v7307 = vlaneseq
        %v7308 = vshrl.u32 %v7307, 7
        %v7309 = vsub.s32 %v2884, %v7308
        %v7310 = vrot.slane %v7177, %v7309
        %v7311 = vsel %vm2889, %v7310, %v7306
        %v7312 = vlaneseq
        %v7313 = vshrl.u32 %v7312, 7
        %v7314 = vsub.s32 %v492, %v7313
        %v7315 = vrot.slane %v7180, %v7314
        %v7316 = vlaneseq
        %v7317 = vshrl.u32 %v7316, 7
        %v7318 = vsub.s32 %v2884, %v7317
        %v7319 = vrot.slane %v7183, %v7318
        %v7320 = vsel %vm2889, %v7319, %v7315
        %v7321 = vlaneseq
        %v7322 = vshrl.u32 %v7321, 7
        %v7323 = vsub.s32 %v492, %v7322
        %v7324 = vrot.slane %v7186, %v7323
        %v7325 = vlaneseq
        %v7326 = vshrl.u32 %v7325, 7
        %v7327 = vsub.s32 %v2884, %v7326
        %v7328 = vrot.slane %v7189, %v7327
        %v7329 = vsel %vm2889, %v7328, %v7324
        %v7330 = vlaneseq
        %v7331 = vshrl.u32 %v7330, 7
        %v7332 = vsub.s32 %v492, %v7331
        %v7333 = vrot.slane %v7192, %v7332
        %v7334 = vlaneseq
        %v7335 = vshrl.u32 %v7334, 7
        %v7336 = vsub.s32 %v2884, %v7335
        %v7337 = vrot.slane %v7195, %v7336
        %v7338 = vsel %vm2889, %v7337, %v7333
        %v7339 = vlaneseq
        %v7340 = vshrl.u32 %v7339, 7
        %v7341 = vsub.s32 %v492, %v7340
        %v7342 = vrot.slane %v7198, %v7341
        %v7343 = vlaneseq
        %v7344 = vshrl.u32 %v7343, 7
        %v7345 = vsub.s32 %v2884, %v7344
        %v7346 = vrot.slane %v7201, %v7345
        %v7347 = vsel %vm2889, %v7346, %v7342
        %v7348 = vlaneseq
        %v7349 = vshrl.u32 %v7348, 7
        %v7350 = vsub.s32 %v492, %v7349
        %v7351 = vrot.slane %v7204, %v7350
        %v7352 = vlaneseq
        %v7353 = vshrl.u32 %v7352, 7
        %v7354 = vsub.s32 %v2884, %v7353
        %v7355 = vrot.slane %v7207, %v7354
        %v7356 = vsel %vm2889, %v7355, %v7351
        %v7357 = vlaneseq
        %v7358 = vshrl.u32 %v7357, 7
        %v7359 = vsub.s32 %v492, %v7358
        %v7360 = vrot.slane %v7210, %v7359
        %v7361 = vlaneseq
        %v7362 = vshrl.u32 %v7361, 7
        %v7363 = vsub.s32 %v2884, %v7362
        %v7364 = vrot.slane %v7213, %v7363
        %v7365 = vsel %vm2889, %v7364, %v7360
        %v7366 = vlaneseq
        %v7367 = vshrl.u32 %v7366, 7
        %v7368 = vsub.s32 %v492, %v7367
        %v7369 = vrot.slane %v7216, %v7368
        %v7370 = vlaneseq
        %v7371 = vshrl.u32 %v7370, 7
        %v7372 = vsub.s32 %v2884, %v7371
        %v7373 = vrot.slane %v7219, %v7372
        %v7374 = vsel %vm2889, %v7373, %v7369
        %v7375 = vlaneseq
        %v7376 = vshrl.u32 %v7375, 7
        %v7377 = vsub.s32 %v492, %v7376
        %v7378 = vrot.slane %v7222, %v7377
        %v7379 = vlaneseq
        %v7380 = vshrl.u32 %v7379, 7
        %v7381 = vsub.s32 %v2884, %v7380
        %v7382 = vrot.slane %v7225, %v7381
        %v7383 = vsel %vm2889, %v7382, %v7378
        %v7384 = vlaneseq
        %v7385 = vshrl.u32 %v7384, 7
        %v7386 = vsub.s32 %v492, %v7385
        %v7387 = vrot.slane %v7228, %v7386
        %v7388 = vlaneseq
        %v7389 = vshrl.u32 %v7388, 7
        %v7390 = vsub.s32 %v2884, %v7389
        %v7391 = vrot.slane %v7231, %v7390
        %v7392 = vsel %vm2889, %v7391, %v7387
        %v7393 = vlaneseq
        %v7394 = vshrl.u32 %v7393, 7
        %v7395 = vsub.s32 %v492, %v7394
        %v7396 = vrot.slane %v7234, %v7395
        %v7397 = vlaneseq
        %v7398 = vshrl.u32 %v7397, 7
        %v7399 = vsub.s32 %v2884, %v7398
        %v7400 = vrot.slane %v7237, %v7399
        %v7401 = vsel %vm2889, %v7400, %v7396
        %v7402 = vlaneseq
        %v7403 = vshrl.u32 %v7402, 7
        %v7404 = vsub.s32 %v492, %v7403
        %v7405 = vrot.slane %v7240, %v7404
        %v7406 = vlaneseq
        %v7407 = vshrl.u32 %v7406, 7
        %v7408 = vsub.s32 %v2884, %v7407
        %v7409 = vrot.slane %v7243, %v7408
        %v7410 = vsel %vm2889, %v7409, %v7405
        %v7411 = vlaneseq
        %v7412 = vshrl.u32 %v7411, 7
        %v7413 = vsub.s32 %v492, %v7412
        %v7414 = vrot.slane %v7246, %v7413
        %v7415 = vlaneseq
        %v7416 = vshrl.u32 %v7415, 7
        %v7417 = vsub.s32 %v2884, %v7416
        %v7418 = vrot.slane %v7249, %v7417
        %v7419 = vsel %vm2889, %v7418, %v7414
        %v7420 = vlaneseq
        %v7421 = vshrl.u32 %v7420, 7
        %v7422 = vsub.s32 %v492, %v7421
        %v7423 = vrot.slane %v7252, %v7422
        %v7424 = vlaneseq
        %v7425 = vshrl.u32 %v7424, 7
        %v7426 = vsub.s32 %v2884, %v7425
        %v7427 = vrot.slane %v7255, %v7426
        %v7428 = vsel %vm2889, %v7427, %v7423
        %v7429 = vlaneseq
        %v7430 = vshrl.u32 %v7429, 7
        %v7431 = vsub.s32 %v492, %v7430
        %v7432 = vrot.slane %v7258, %v7431
        %v7433 = vlaneseq
        %v7434 = vshrl.u32 %v7433, 7
        %v7435 = vsub.s32 %v2884, %v7434
        %v7436 = vrot.slane %v7261, %v7435
        %v7437 = vsel %vm2889, %v7436, %v7432
        %v7438 = vsel %vm3026, %v7311, %v7302
        %v7439 = vsel %vm3028, %v7320, %v7438
        %v7440 = vsel %vm3030, %v7329, %v7439
        %v7441 = vsel %vm3032, %v7338, %v7440
        %v7442 = vsel %vm3034, %v7347, %v7441
        %v7443 = vsel %vm3036, %v7356, %v7442
        %v7444 = vsel %vm3038, %v7365, %v7443
        %v7445 = vsel %vm3026, %v7383, %v7374
        %v7446 = vsel %vm3028, %v7392, %v7445
        %v7447 = vsel %vm3030, %v7401, %v7446
        %v7448 = vsel %vm3032, %v7410, %v7447
        %v7449 = vsel %vm3034, %v7419, %v7448
        %v7450 = vsel %vm3036, %v7428, %v7449
        %v7451 = vsel %vm3038, %v7437, %v7450
        %v7454 = vsel %vm1521, %v7444, -inf
        %7455 = vmax.xlane.f32.xlu0 %v7454
        %v7456 = vpop.xlane.xlu0 %7455
        %v7457 = vsel %vm1521, %v7451, -inf
        %7458 = vmax.xlane.f32.xlu0 %v7457
        %v7459 = vpop.xlane.xlu0 %7458
        %v7462 = vlaneseq
        %v7463 = vshrl.u32 %v7462, 7
        %v7464 = vsub.s32 0, %v7463
        %v7465 = vrot.slane %v7456, %v7464
        %v7466 = vlaneseq
        %v7467 = vshrl.u32 %v7466, 7
        %v7468 = vsub.s32 1, %v7467
        %v7469 = vrot.slane %v7456, %v7468
        %v7470 = vlaneseq
        %v7471 = vshrl.u32 %v7470, 7
        %v7472 = vsub.s32 2, %v7471
        %v7473 = vrot.slane %v7456, %v7472
        %v7474 = vlaneseq
        %v7475 = vshrl.u32 %v7474, 7
        %v7476 = vsub.s32 3, %v7475
        %v7477 = vrot.slane %v7456, %v7476
        %v7478 = vlaneseq
        %v7479 = vshrl.u32 %v7478, 7
        %v7480 = vsub.s32 4, %v7479
        %v7481 = vrot.slane %v7456, %v7480
        %v7482 = vlaneseq
        %v7483 = vshrl.u32 %v7482, 7
        %v7484 = vsub.s32 5, %v7483
        %v7485 = vrot.slane %v7456, %v7484
        %v7486 = vlaneseq
        %v7487 = vshrl.u32 %v7486, 7
        %v7488 = vsub.s32 6, %v7487
        %v7489 = vrot.slane %v7456, %v7488
        %v7490 = vlaneseq
        %v7491 = vshrl.u32 %v7490, 7
        %v7492 = vsub.s32 7, %v7491
        %v7493 = vrot.slane %v7456, %v7492
        %v7494 = vlaneseq
        %v7495 = vshrl.u32 %v7494, 7
        %v7496 = vsub.s32 0, %v7495
        %v7497 = vrot.slane %v7459, %v7496
        %v7498 = vlaneseq
        %v7499 = vshrl.u32 %v7498, 7
        %v7500 = vsub.s32 1, %v7499
        %v7501 = vrot.slane %v7459, %v7500
        %v7502 = vlaneseq
        %v7503 = vshrl.u32 %v7502, 7
        %v7504 = vsub.s32 2, %v7503
        %v7505 = vrot.slane %v7459, %v7504
        %v7506 = vlaneseq
        %v7507 = vshrl.u32 %v7506, 7
        %v7508 = vsub.s32 3, %v7507
        %v7509 = vrot.slane %v7459, %v7508
        %v7510 = vlaneseq
        %v7511 = vshrl.u32 %v7510, 7
        %v7512 = vsub.s32 4, %v7511
        %v7513 = vrot.slane %v7459, %v7512
        %v7514 = vlaneseq
        %v7515 = vshrl.u32 %v7514, 7
        %v7516 = vsub.s32 5, %v7515
        %v7517 = vrot.slane %v7459, %v7516
        %v7518 = vlaneseq
        %v7519 = vshrl.u32 %v7518, 7
        %v7520 = vsub.s32 6, %v7519
        %v7521 = vrot.slane %v7459, %v7520
        %v7522 = vlaneseq
        %v7523 = vshrl.u32 %v7522, 7
        %v7524 = vsub.s32 7, %v7523
        %v7525 = vrot.slane %v7459, %v7524
        %v7542 = vsub.f32 %v7168, %v7465
        %v7543 = vsub.f32 %v7171, %v7465
        %v7544 = vsub.f32 %v7174, %v7469
        %v7545 = vsub.f32 %v7177, %v7469
        %v7546 = vsub.f32 %v7180, %v7473
        %v7547 = vsub.f32 %v7183, %v7473
        %v7548 = vsub.f32 %v7186, %v7477
        %v7549 = vsub.f32 %v7189, %v7477
        %v7550 = vsub.f32 %v7192, %v7481
        %v7551 = vsub.f32 %v7195, %v7481
        %v7552 = vsub.f32 %v7198, %v7485
        %v7553 = vsub.f32 %v7201, %v7485
        %v7554 = vsub.f32 %v7204, %v7489
        %v7555 = vsub.f32 %v7207, %v7489
        %v7556 = vsub.f32 %v7210, %v7493
        %v7557 = vsub.f32 %v7213, %v7493
        %v7558 = vsub.f32 %v7216, %v7497
        %v7559 = vsub.f32 %v7219, %v7497
        %v7560 = vsub.f32 %v7222, %v7501
        %v7561 = vsub.f32 %v7225, %v7501
        %v7562 = vsub.f32 %v7228, %v7505
        %v7563 = vsub.f32 %v7231, %v7505
        %v7564 = vsub.f32 %v7234, %v7509
        %v7565 = vsub.f32 %v7237, %v7509
        %v7566 = vsub.f32 %v7240, %v7513
        %v7567 = vsub.f32 %v7243, %v7513
        %v7568 = vsub.f32 %v7246, %v7517
        %v7569 = vsub.f32 %v7249, %v7517
        %v7570 = vsub.f32 %v7252, %v7521
        %v7571 = vsub.f32 %v7255, %v7521
        %v7572 = vsub.f32 %v7258, %v7525
        %v7573 = vsub.f32 %v7261, %v7525
        %v7574 = vmul.f32 %v7542, 1.442695
        %v7575 = vpow.pop %v7574
        %v7576 = vmul.f32 %v7543, 1.442695
        %v7577 = vpow.pop %v7576
        %v7578 = vmul.f32 %v7544, 1.442695
        %v7579 = vpow.pop %v7578
        %v7580 = vmul.f32 %v7545, 1.442695
        %v7581 = vpow.pop %v7580
        %v7582 = vmul.f32 %v7546, 1.442695
        %v7583 = vpow.pop %v7582
        %v7584 = vmul.f32 %v7547, 1.442695
        %v7585 = vpow.pop %v7584
        %v7586 = vmul.f32 %v7548, 1.442695
        %v7587 = vpow.pop %v7586
        %v7588 = vmul.f32 %v7549, 1.442695
        %v7589 = vpow.pop %v7588
        %v7590 = vmul.f32 %v7550, 1.442695
        %v7591 = vpow.pop %v7590
        %v7592 = vmul.f32 %v7551, 1.442695
        %v7593 = vpow.pop %v7592
        %v7594 = vmul.f32 %v7552, 1.442695
        %v7595 = vpow.pop %v7594
        %v7596 = vmul.f32 %v7553, 1.442695
        %v7597 = vpow.pop %v7596
        %v7598 = vmul.f32 %v7554, 1.442695
        %v7599 = vpow.pop %v7598
        %v7600 = vmul.f32 %v7555, 1.442695
        %v7601 = vpow.pop %v7600
        %v7602 = vmul.f32 %v7556, 1.442695
        %v7603 = vpow.pop %v7602
        %v7604 = vmul.f32 %v7557, 1.442695
        %v7605 = vpow.pop %v7604
        %v7606 = vmul.f32 %v7558, 1.442695
        %v7607 = vpow.pop %v7606
        %v7608 = vmul.f32 %v7559, 1.442695
        %v7609 = vpow.pop %v7608
        %v7610 = vmul.f32 %v7560, 1.442695
        %v7611 = vpow.pop %v7610
        %v7612 = vmul.f32 %v7561, 1.442695
        %v7613 = vpow.pop %v7612
        %v7614 = vmul.f32 %v7562, 1.442695
        %v7615 = vpow.pop %v7614
        %v7616 = vmul.f32 %v7563, 1.442695
        %v7617 = vpow.pop %v7616
        %v7618 = vmul.f32 %v7564, 1.442695
        %v7619 = vpow.pop %v7618
        %v7620 = vmul.f32 %v7565, 1.442695
        %v7621 = vpow.pop %v7620
        %v7622 = vmul.f32 %v7566, 1.442695
        %v7623 = vpow.pop %v7622
        %v7624 = vmul.f32 %v7567, 1.442695
        %v7625 = vpow.pop %v7624
        %v7626 = vmul.f32 %v7568, 1.442695
        %v7627 = vpow.pop %v7626
        %v7628 = vmul.f32 %v7569, 1.442695
        %v7629 = vpow.pop %v7628
        %v7630 = vmul.f32 %v7570, 1.442695
        %v7631 = vpow.pop %v7630
        %v7632 = vmul.f32 %v7571, 1.442695
        %v7633 = vpow.pop %v7632
        %v7634 = vmul.f32 %v7572, 1.442695
        %v7635 = vpow.pop %v7634
        %v7636 = vmul.f32 %v7573, 1.442695
        %v7637 = vpow.pop %v7636
        %v7638 = vmul.f32 %v7575, %v3241
        %v7639 = vmul.f32 %v7577, %v3245
        %v7640 = vmul.f32 %v7579, %v3252
        %v7641 = vmul.f32 %v7581, %v3256
        %v7642 = vmul.f32 %v7583, %v3263
        %v7643 = vmul.f32 %v7585, %v3267
        %v7644 = vmul.f32 %v7587, %v3274
        %v7645 = vmul.f32 %v7589, %v3278
        %v7646 = vmul.f32 %v7591, %v3285
        %v7647 = vmul.f32 %v7593, %v3289
        %v7648 = vmul.f32 %v7595, %v3296
        %v7649 = vmul.f32 %v7597, %v3300
        %v7650 = vmul.f32 %v7599, %v3307
        %v7651 = vmul.f32 %v7601, %v3311
        %v7652 = vmul.f32 %v7603, %v3318
        %v7653 = vmul.f32 %v7605, %v3322
        %v7654 = vmul.f32 %v7607, %v3329
        %v7655 = vmul.f32 %v7609, %v3333
        %v7656 = vmul.f32 %v7611, %v3340
        %v7657 = vmul.f32 %v7613, %v3344
        %v7658 = vmul.f32 %v7615, %v3351
        %v7659 = vmul.f32 %v7617, %v3355
        %v7660 = vmul.f32 %v7619, %v3362
        %v7661 = vmul.f32 %v7621, %v3366
        %v7662 = vmul.f32 %v7623, %v3373
        %v7663 = vmul.f32 %v7625, %v3377
        %v7664 = vmul.f32 %v7627, %v3384
        %v7665 = vmul.f32 %v7629, %v3388
        %v7666 = vmul.f32 %v7631, %v3395
        %v7667 = vmul.f32 %v7633, %v3399
        %v7668 = vmul.f32 %v7635, %v3406
        %v7669 = vmul.f32 %v7637, %v3410
        %7702 = vset.pattern.permute.xlu0 0
        %7703 = vperm.xlu0 %7702, %v7638
        %v7704 = vpop.permute.xlu0 %7703
        %7705 = vset.pattern.permute.xlu0 0
        %7706 = vperm.xlu0 %7705, %v7639
        %v7707 = vpop.permute.xlu0 %7706
        %7708 = vset.pattern.permute.xlu0 0
        %7709 = vperm.xlu0 %7708, %v7640
        %v7710 = vpop.permute.xlu0 %7709
        %7711 = vset.pattern.permute.xlu0 0
        %7712 = vperm.xlu0 %7711, %v7641
        %v7713 = vpop.permute.xlu0 %7712
        %7714 = vset.pattern.permute.xlu0 0
        %7715 = vperm.xlu0 %7714, %v7642
        %v7716 = vpop.permute.xlu0 %7715
        %7717 = vset.pattern.permute.xlu0 0
        %7718 = vperm.xlu0 %7717, %v7643
        %v7719 = vpop.permute.xlu0 %7718
        %7720 = vset.pattern.permute.xlu0 0
        %7721 = vperm.xlu0 %7720, %v7644
        %v7722 = vpop.permute.xlu0 %7721
        %7723 = vset.pattern.permute.xlu0 0
        %7724 = vperm.xlu0 %7723, %v7645
        %v7725 = vpop.permute.xlu0 %7724
        %7726 = vset.pattern.permute.xlu0 0
        %7727 = vperm.xlu0 %7726, %v7646
        %v7728 = vpop.permute.xlu0 %7727
        %7729 = vset.pattern.permute.xlu0 0
        %7730 = vperm.xlu0 %7729, %v7647
        %v7731 = vpop.permute.xlu0 %7730
        %7732 = vset.pattern.permute.xlu0 0
        %7733 = vperm.xlu0 %7732, %v7648
        %v7734 = vpop.permute.xlu0 %7733
        %7735 = vset.pattern.permute.xlu0 0
        %7736 = vperm.xlu0 %7735, %v7649
        %v7737 = vpop.permute.xlu0 %7736
        %7738 = vset.pattern.permute.xlu0 0
        %7739 = vperm.xlu0 %7738, %v7650
        %v7740 = vpop.permute.xlu0 %7739
        %7741 = vset.pattern.permute.xlu0 0
        %7742 = vperm.xlu0 %7741, %v7651
        %v7743 = vpop.permute.xlu0 %7742
        %7744 = vset.pattern.permute.xlu0 0
        %7745 = vperm.xlu0 %7744, %v7652
        %v7746 = vpop.permute.xlu0 %7745
        %7747 = vset.pattern.permute.xlu0 0
        %7748 = vperm.xlu0 %7747, %v7653
        %v7749 = vpop.permute.xlu0 %7748
        %7750 = vset.pattern.permute.xlu0 0
        %7751 = vperm.xlu0 %7750, %v7654
        %v7752 = vpop.permute.xlu0 %7751
        %7753 = vset.pattern.permute.xlu0 0
        %7754 = vperm.xlu0 %7753, %v7655
        %v7755 = vpop.permute.xlu0 %7754
        %7756 = vset.pattern.permute.xlu0 0
        %7757 = vperm.xlu0 %7756, %v7656
        %v7758 = vpop.permute.xlu0 %7757
        %7759 = vset.pattern.permute.xlu0 0
        %7760 = vperm.xlu0 %7759, %v7657
        %v7761 = vpop.permute.xlu0 %7760
        %7762 = vset.pattern.permute.xlu0 0
        %7763 = vperm.xlu0 %7762, %v7658
        %v7764 = vpop.permute.xlu0 %7763
        %7765 = vset.pattern.permute.xlu0 0
        %7766 = vperm.xlu0 %7765, %v7659
        %v7767 = vpop.permute.xlu0 %7766
        %7768 = vset.pattern.permute.xlu0 0
        %7769 = vperm.xlu0 %7768, %v7660
        %v7770 = vpop.permute.xlu0 %7769
        %7771 = vset.pattern.permute.xlu0 0
        %7772 = vperm.xlu0 %7771, %v7661
        %v7773 = vpop.permute.xlu0 %7772
        %7774 = vset.pattern.permute.xlu0 0
        %7775 = vperm.xlu0 %7774, %v7662
        %v7776 = vpop.permute.xlu0 %7775
        %7777 = vset.pattern.permute.xlu0 0
        %7778 = vperm.xlu0 %7777, %v7663
        %v7779 = vpop.permute.xlu0 %7778
        %7780 = vset.pattern.permute.xlu0 0
        %7781 = vperm.xlu0 %7780, %v7664
        %v7782 = vpop.permute.xlu0 %7781
        %7783 = vset.pattern.permute.xlu0 0
        %7784 = vperm.xlu0 %7783, %v7665
        %v7785 = vpop.permute.xlu0 %7784
        %7786 = vset.pattern.permute.xlu0 0
        %7787 = vperm.xlu0 %7786, %v7666
        %v7788 = vpop.permute.xlu0 %7787
        %7789 = vset.pattern.permute.xlu0 0
        %7790 = vperm.xlu0 %7789, %v7667
        %v7791 = vpop.permute.xlu0 %7790
        %7792 = vset.pattern.permute.xlu0 0
        %7793 = vperm.xlu0 %7792, %v7668
        %v7794 = vpop.permute.xlu0 %7793
        %7795 = vset.pattern.permute.xlu0 0
        %7796 = vperm.xlu0 %7795, %v7669
        %v7797 = vpop.permute.xlu0 %7796
        %v7798 = vlaneseq
        %v7799 = vshrl.u32 %v7798, 7
        %v7800 = vsub.s32 %v492, %v7799
        %v7801 = vrot.slane %v7704, %v7800
        %v7802 = vlaneseq
        %v7803 = vshrl.u32 %v7802, 7
        %v7804 = vsub.s32 %v2884, %v7803
        %v7805 = vrot.slane %v7707, %v7804
        %v7806 = vsel %vm2889, %v7805, %v7801
        %v7807 = vlaneseq
        %v7808 = vshrl.u32 %v7807, 7
        %v7809 = vsub.s32 %v492, %v7808
        %v7810 = vrot.slane %v7710, %v7809
        %v7811 = vlaneseq
        %v7812 = vshrl.u32 %v7811, 7
        %v7813 = vsub.s32 %v2884, %v7812
        %v7814 = vrot.slane %v7713, %v7813
        %v7815 = vsel %vm2889, %v7814, %v7810
        %v7816 = vlaneseq
        %v7817 = vshrl.u32 %v7816, 7
        %v7818 = vsub.s32 %v492, %v7817
        %v7819 = vrot.slane %v7716, %v7818
        %v7820 = vlaneseq
        %v7821 = vshrl.u32 %v7820, 7
        %v7822 = vsub.s32 %v2884, %v7821
        %v7823 = vrot.slane %v7719, %v7822
        %v7824 = vsel %vm2889, %v7823, %v7819
        %v7825 = vlaneseq
        %v7826 = vshrl.u32 %v7825, 7
        %v7827 = vsub.s32 %v492, %v7826
        %v7828 = vrot.slane %v7722, %v7827
        %v7829 = vlaneseq
        %v7830 = vshrl.u32 %v7829, 7
        %v7831 = vsub.s32 %v2884, %v7830
        %v7832 = vrot.slane %v7725, %v7831
        %v7833 = vsel %vm2889, %v7832, %v7828
        %v7834 = vlaneseq
        %v7835 = vshrl.u32 %v7834, 7
        %v7836 = vsub.s32 %v492, %v7835
        %v7837 = vrot.slane %v7728, %v7836
        %v7838 = vlaneseq
        %v7839 = vshrl.u32 %v7838, 7
        %v7840 = vsub.s32 %v2884, %v7839
        %v7841 = vrot.slane %v7731, %v7840
        %v7842 = vsel %vm2889, %v7841, %v7837
        %v7843 = vlaneseq
        %v7844 = vshrl.u32 %v7843, 7
        %v7845 = vsub.s32 %v492, %v7844
        %v7846 = vrot.slane %v7734, %v7845
        %v7847 = vlaneseq
        %v7848 = vshrl.u32 %v7847, 7
        %v7849 = vsub.s32 %v2884, %v7848
        %v7850 = vrot.slane %v7737, %v7849
        %v7851 = vsel %vm2889, %v7850, %v7846
        %v7852 = vlaneseq
        %v7853 = vshrl.u32 %v7852, 7
        %v7854 = vsub.s32 %v492, %v7853
        %v7855 = vrot.slane %v7740, %v7854
        %v7856 = vlaneseq
        %v7857 = vshrl.u32 %v7856, 7
        %v7858 = vsub.s32 %v2884, %v7857
        %v7859 = vrot.slane %v7743, %v7858
        %v7860 = vsel %vm2889, %v7859, %v7855
        %v7861 = vlaneseq
        %v7862 = vshrl.u32 %v7861, 7
        %v7863 = vsub.s32 %v492, %v7862
        %v7864 = vrot.slane %v7746, %v7863
        %v7865 = vlaneseq
        %v7866 = vshrl.u32 %v7865, 7
        %v7867 = vsub.s32 %v2884, %v7866
        %v7868 = vrot.slane %v7749, %v7867
        %v7869 = vsel %vm2889, %v7868, %v7864
        %v7870 = vlaneseq
        %v7871 = vshrl.u32 %v7870, 7
        %v7872 = vsub.s32 %v492, %v7871
        %v7873 = vrot.slane %v7752, %v7872
        %v7874 = vlaneseq
        %v7875 = vshrl.u32 %v7874, 7
        %v7876 = vsub.s32 %v2884, %v7875
        %v7877 = vrot.slane %v7755, %v7876
        %v7878 = vsel %vm2889, %v7877, %v7873
        %v7879 = vlaneseq
        %v7880 = vshrl.u32 %v7879, 7
        %v7881 = vsub.s32 %v492, %v7880
        %v7882 = vrot.slane %v7758, %v7881
        %v7883 = vlaneseq
        %v7884 = vshrl.u32 %v7883, 7
        %v7885 = vsub.s32 %v2884, %v7884
        %v7886 = vrot.slane %v7761, %v7885
        %v7887 = vsel %vm2889, %v7886, %v7882
        %v7888 = vlaneseq
        %v7889 = vshrl.u32 %v7888, 7
        %v7890 = vsub.s32 %v492, %v7889
        %v7891 = vrot.slane %v7764, %v7890
        %v7892 = vlaneseq
        %v7893 = vshrl.u32 %v7892, 7
        %v7894 = vsub.s32 %v2884, %v7893
        %v7895 = vrot.slane %v7767, %v7894
        %v7896 = vsel %vm2889, %v7895, %v7891
        %v7897 = vlaneseq
        %v7898 = vshrl.u32 %v7897, 7
        %v7899 = vsub.s32 %v492, %v7898
        %v7900 = vrot.slane %v7770, %v7899
        %v7901 = vlaneseq
        %v7902 = vshrl.u32 %v7901, 7
        %v7903 = vsub.s32 %v2884, %v7902
        %v7904 = vrot.slane %v7773, %v7903
        %v7905 = vsel %vm2889, %v7904, %v7900
        %v7906 = vlaneseq
        %v7907 = vshrl.u32 %v7906, 7
        %v7908 = vsub.s32 %v492, %v7907
        %v7909 = vrot.slane %v7776, %v7908
        %v7910 = vlaneseq
        %v7911 = vshrl.u32 %v7910, 7
        %v7912 = vsub.s32 %v2884, %v7911
        %v7913 = vrot.slane %v7779, %v7912
        %v7914 = vsel %vm2889, %v7913, %v7909
        %v7915 = vlaneseq
        %v7916 = vshrl.u32 %v7915, 7
        %v7917 = vsub.s32 %v492, %v7916
        %v7918 = vrot.slane %v7782, %v7917
        %v7919 = vlaneseq
        %v7920 = vshrl.u32 %v7919, 7
        %v7921 = vsub.s32 %v2884, %v7920
        %v7922 = vrot.slane %v7785, %v7921
        %v7923 = vsel %vm2889, %v7922, %v7918
        %v7924 = vlaneseq
        %v7925 = vshrl.u32 %v7924, 7
        %v7926 = vsub.s32 %v492, %v7925
        %v7927 = vrot.slane %v7788, %v7926
        %v7928 = vlaneseq
        %v7929 = vshrl.u32 %v7928, 7
        %v7930 = vsub.s32 %v2884, %v7929
        %v7931 = vrot.slane %v7791, %v7930
        %v7932 = vsel %vm2889, %v7931, %v7927
        %v7933 = vlaneseq
        %v7934 = vshrl.u32 %v7933, 7
        %v7935 = vsub.s32 %v492, %v7934
        %v7936 = vrot.slane %v7794, %v7935
        %v7937 = vlaneseq
        %v7938 = vshrl.u32 %v7937, 7
        %v7939 = vsub.s32 %v2884, %v7938
        %v7940 = vrot.slane %v7797, %v7939
        %v7941 = vsel %vm2889, %v7940, %v7936
        %v7942 = vsel %vm3026, %v7815, %v7806
        %v7943 = vsel %vm3028, %v7824, %v7942
        %v7944 = vsel %vm3030, %v7833, %v7943
        %v7945 = vsel %vm3032, %v7842, %v7944
        %v7946 = vsel %vm3034, %v7851, %v7945
        %v7947 = vsel %vm3036, %v7860, %v7946
        %v7948 = vsel %vm3038, %v7869, %v7947
        %v7949 = vsel %vm3026, %v7887, %v7878
        %v7950 = vsel %vm3028, %v7896, %v7949
        %v7951 = vsel %vm3030, %v7905, %v7950
        %v7952 = vsel %vm3032, %v7914, %v7951
        %v7953 = vsel %vm3034, %v7923, %v7952
        %v7954 = vsel %vm3036, %v7932, %v7953
        %v7955 = vsel %vm3038, %v7941, %v7954
        %v7958 = vsel %vm1521, %v7948, 0.0
        %7959 = vadd.xlane.f32.xlu0 %v7958
        %v7960 = vpop.xlane.xlu0 %7959
        %v7961 = vsel %vm1521, %v7955, 0.0
        %7962 = vadd.xlane.f32.xlu0 %v7961
        %v7963 = vpop.xlane.xlu0 %7962
        %v7964 = vrcp.pop %v7960
        %v7965 = vrcp.pop %v7963
        %v7968 = vlaneseq
        %v7969 = vshrl.u32 %v7968, 7
        %v7970 = vsub.s32 0, %v7969
        %v7971 = vrot.slane %v7964, %v7970
        %v7972 = vlaneseq
        %v7973 = vshrl.u32 %v7972, 7
        %v7974 = vsub.s32 1, %v7973
        %v7975 = vrot.slane %v7964, %v7974
        %v7976 = vlaneseq
        %v7977 = vshrl.u32 %v7976, 7
        %v7978 = vsub.s32 2, %v7977
        %v7979 = vrot.slane %v7964, %v7978
        %v7980 = vlaneseq
        %v7981 = vshrl.u32 %v7980, 7
        %v7982 = vsub.s32 3, %v7981
        %v7983 = vrot.slane %v7964, %v7982
        %v7984 = vlaneseq
        %v7985 = vshrl.u32 %v7984, 7
        %v7986 = vsub.s32 4, %v7985
        %v7987 = vrot.slane %v7964, %v7986
        %v7988 = vlaneseq
        %v7989 = vshrl.u32 %v7988, 7
        %v7990 = vsub.s32 5, %v7989
        %v7991 = vrot.slane %v7964, %v7990
        %v7992 = vlaneseq
        %v7993 = vshrl.u32 %v7992, 7
        %v7994 = vsub.s32 6, %v7993
        %v7995 = vrot.slane %v7964, %v7994
        %v7996 = vlaneseq
        %v7997 = vshrl.u32 %v7996, 7
        %v7998 = vsub.s32 7, %v7997
        %v7999 = vrot.slane %v7964, %v7998
        %v8000 = vlaneseq
        %v8001 = vshrl.u32 %v8000, 7
        %v8002 = vsub.s32 0, %v8001
        %v8003 = vrot.slane %v7965, %v8002
        %v8004 = vlaneseq
        %v8005 = vshrl.u32 %v8004, 7
        %v8006 = vsub.s32 1, %v8005
        %v8007 = vrot.slane %v7965, %v8006
        %v8008 = vlaneseq
        %v8009 = vshrl.u32 %v8008, 7
        %v8010 = vsub.s32 2, %v8009
        %v8011 = vrot.slane %v7965, %v8010
        %v8012 = vlaneseq
        %v8013 = vshrl.u32 %v8012, 7
        %v8014 = vsub.s32 3, %v8013
        %v8015 = vrot.slane %v7965, %v8014
        %v8016 = vlaneseq
        %v8017 = vshrl.u32 %v8016, 7
        %v8018 = vsub.s32 4, %v8017
        %v8019 = vrot.slane %v7965, %v8018
        %v8020 = vlaneseq
        %v8021 = vshrl.u32 %v8020, 7
        %v8022 = vsub.s32 5, %v8021
        %v8023 = vrot.slane %v7965, %v8022
        %v8024 = vlaneseq
        %v8025 = vshrl.u32 %v8024, 7
        %v8026 = vsub.s32 6, %v8025
        %v8027 = vrot.slane %v7965, %v8026
        %v8028 = vlaneseq
        %v8029 = vshrl.u32 %v8028, 7
        %v8030 = vsub.s32 7, %v8029
        %v8031 = vrot.slane %v7965, %v8030
        %v8048 = vmul.f32 %v7638, %v7971
        %v8049 = vmul.f32 %v7639, %v7971
        %v8050 = vmul.f32 %v7640, %v7975
        %v8051 = vmul.f32 %v7641, %v7975
        %v8052 = vmul.f32 %v7642, %v7979
        %v8053 = vmul.f32 %v7643, %v7979
        %v8054 = vmul.f32 %v7644, %v7983
        %v8055 = vmul.f32 %v7645, %v7983
        %v8056 = vmul.f32 %v7646, %v7987
        %v8057 = vmul.f32 %v7647, %v7987
        %v8058 = vmul.f32 %v7648, %v7991
        %v8059 = vmul.f32 %v7649, %v7991
        %v8060 = vmul.f32 %v7650, %v7995
        %v8061 = vmul.f32 %v7651, %v7995
        %v8062 = vmul.f32 %v7652, %v7999
        %v8063 = vmul.f32 %v7653, %v7999
        %v8064 = vmul.f32 %v7654, %v8003
        %v8065 = vmul.f32 %v7655, %v8003
        %v8066 = vmul.f32 %v7656, %v8007
        %v8067 = vmul.f32 %v7657, %v8007
        %v8068 = vmul.f32 %v7658, %v8011
        %v8069 = vmul.f32 %v7659, %v8011
        %v8070 = vmul.f32 %v7660, %v8015
        %v8071 = vmul.f32 %v7661, %v8015
        %v8072 = vmul.f32 %v7662, %v8019
        %v8073 = vmul.f32 %v7663, %v8019
        %v8074 = vmul.f32 %v7664, %v8023
        %v8075 = vmul.f32 %v7665, %v8023
        %v8076 = vmul.f32 %v7666, %v8027
        %v8077 = vmul.f32 %v7667, %v8027
        %v8078 = vmul.f32 %v7668, %v8031
        %v8079 = vmul.f32 %v7669, %v8031
        %8112 = vset.pattern.permute.xlu0 0
        %8113 = vperm.xlu0 %8112, %v7038
        %v8114 = vpop.permute.xlu0 %8113
        %8115 = vset.pattern.permute.xlu0 0
        %8116 = vperm.xlu0 %8115, %v7039
        %v8117 = vpop.permute.xlu0 %8116
        %8118 = vset.pattern.permute.xlu0 0
        %8119 = vperm.xlu0 %8118, %v7040
        %v8120 = vpop.permute.xlu0 %8119
        %8121 = vset.pattern.permute.xlu0 0
        %8122 = vperm.xlu0 %8121, %v7041
        %v8123 = vpop.permute.xlu0 %8122
        %8124 = vset.pattern.permute.xlu0 0
        %8125 = vperm.xlu0 %8124, %v7042
        %v8126 = vpop.permute.xlu0 %8125
        %8127 = vset.pattern.permute.xlu0 0
        %8128 = vperm.xlu0 %8127, %v7043
        %v8129 = vpop.permute.xlu0 %8128
        %8130 = vset.pattern.permute.xlu0 0
        %8131 = vperm.xlu0 %8130, %v7044
        %v8132 = vpop.permute.xlu0 %8131
        %8133 = vset.pattern.permute.xlu0 0
        %8134 = vperm.xlu0 %8133, %v7045
        %v8135 = vpop.permute.xlu0 %8134
        %8136 = vset.pattern.permute.xlu0 0
        %8137 = vperm.xlu0 %8136, %v7046
        %v8138 = vpop.permute.xlu0 %8137
        %8139 = vset.pattern.permute.xlu0 0
        %8140 = vperm.xlu0 %8139, %v7047
        %v8141 = vpop.permute.xlu0 %8140
        %8142 = vset.pattern.permute.xlu0 0
        %8143 = vperm.xlu0 %8142, %v7048
        %v8144 = vpop.permute.xlu0 %8143
        %8145 = vset.pattern.permute.xlu0 0
        %8146 = vperm.xlu0 %8145, %v7049
        %v8147 = vpop.permute.xlu0 %8146
        %8148 = vset.pattern.permute.xlu0 0
        %8149 = vperm.xlu0 %8148, %v7050
        %v8150 = vpop.permute.xlu0 %8149
        %8151 = vset.pattern.permute.xlu0 0
        %8152 = vperm.xlu0 %8151, %v7051
        %v8153 = vpop.permute.xlu0 %8152
        %8154 = vset.pattern.permute.xlu0 0
        %8155 = vperm.xlu0 %8154, %v7052
        %v8156 = vpop.permute.xlu0 %8155
        %8157 = vset.pattern.permute.xlu0 0
        %8158 = vperm.xlu0 %8157, %v7053
        %v8159 = vpop.permute.xlu0 %8158
        %8160 = vset.pattern.permute.xlu0 0
        %8161 = vperm.xlu0 %8160, %v7054
        %v8162 = vpop.permute.xlu0 %8161
        %8163 = vset.pattern.permute.xlu0 0
        %8164 = vperm.xlu0 %8163, %v7055
        %v8165 = vpop.permute.xlu0 %8164
        %8166 = vset.pattern.permute.xlu0 0
        %8167 = vperm.xlu0 %8166, %v7056
        %v8168 = vpop.permute.xlu0 %8167
        %8169 = vset.pattern.permute.xlu0 0
        %8170 = vperm.xlu0 %8169, %v7057
        %v8171 = vpop.permute.xlu0 %8170
        %8172 = vset.pattern.permute.xlu0 0
        %8173 = vperm.xlu0 %8172, %v7058
        %v8174 = vpop.permute.xlu0 %8173
        %8175 = vset.pattern.permute.xlu0 0
        %8176 = vperm.xlu0 %8175, %v7059
        %v8177 = vpop.permute.xlu0 %8176
        %8178 = vset.pattern.permute.xlu0 0
        %8179 = vperm.xlu0 %8178, %v7060
        %v8180 = vpop.permute.xlu0 %8179
        %8181 = vset.pattern.permute.xlu0 0
        %8182 = vperm.xlu0 %8181, %v7061
        %v8183 = vpop.permute.xlu0 %8182
        %8184 = vset.pattern.permute.xlu0 0
        %8185 = vperm.xlu0 %8184, %v7062
        %v8186 = vpop.permute.xlu0 %8185
        %8187 = vset.pattern.permute.xlu0 0
        %8188 = vperm.xlu0 %8187, %v7063
        %v8189 = vpop.permute.xlu0 %8188
        %8190 = vset.pattern.permute.xlu0 0
        %8191 = vperm.xlu0 %8190, %v7064
        %v8192 = vpop.permute.xlu0 %8191
        %8193 = vset.pattern.permute.xlu0 0
        %8194 = vperm.xlu0 %8193, %v7065
        %v8195 = vpop.permute.xlu0 %8194
        %8196 = vset.pattern.permute.xlu0 0
        %8197 = vperm.xlu0 %8196, %v7066
        %v8198 = vpop.permute.xlu0 %8197
        %8199 = vset.pattern.permute.xlu0 0
        %8200 = vperm.xlu0 %8199, %v7067
        %v8201 = vpop.permute.xlu0 %8200
        %8202 = vset.pattern.permute.xlu0 0
        %8203 = vperm.xlu0 %8202, %v7068
        %v8204 = vpop.permute.xlu0 %8203
        %8205 = vset.pattern.permute.xlu0 0
        %8206 = vperm.xlu0 %8205, %v7069
        %v8207 = vpop.permute.xlu0 %8206
        %v8208 = vlaneseq
        %v8209 = vshrl.u32 %v8208, 7
        %v8210 = vsub.s32 %v492, %v8209
        %v8211 = vrot.slane %v8114, %v8210
        %v8212 = vlaneseq
        %v8213 = vshrl.u32 %v8212, 7
        %v8214 = vsub.s32 %v2884, %v8213
        %v8215 = vrot.slane %v8117, %v8214
        %v8216 = vsel %vm2889, %v8215, %v8211
        %v8217 = vlaneseq
        %v8218 = vshrl.u32 %v8217, 7
        %v8219 = vsub.s32 %v492, %v8218
        %v8220 = vrot.slane %v8120, %v8219
        %v8221 = vlaneseq
        %v8222 = vshrl.u32 %v8221, 7
        %v8223 = vsub.s32 %v2884, %v8222
        %v8224 = vrot.slane %v8123, %v8223
        %v8225 = vsel %vm2889, %v8224, %v8220
        %v8226 = vlaneseq
        %v8227 = vshrl.u32 %v8226, 7
        %v8228 = vsub.s32 %v492, %v8227
        %v8229 = vrot.slane %v8126, %v8228
        %v8230 = vlaneseq
        %v8231 = vshrl.u32 %v8230, 7
        %v8232 = vsub.s32 %v2884, %v8231
        %v8233 = vrot.slane %v8129, %v8232
        %v8234 = vsel %vm2889, %v8233, %v8229
        %v8235 = vlaneseq
        %v8236 = vshrl.u32 %v8235, 7
        %v8237 = vsub.s32 %v492, %v8236
        %v8238 = vrot.slane %v8132, %v8237
        %v8239 = vlaneseq
        %v8240 = vshrl.u32 %v8239, 7
        %v8241 = vsub.s32 %v2884, %v8240
        %v8242 = vrot.slane %v8135, %v8241
        %v8243 = vsel %vm2889, %v8242, %v8238
        %v8244 = vlaneseq
        %v8245 = vshrl.u32 %v8244, 7
        %v8246 = vsub.s32 %v492, %v8245
        %v8247 = vrot.slane %v8138, %v8246
        %v8248 = vlaneseq
        %v8249 = vshrl.u32 %v8248, 7
        %v8250 = vsub.s32 %v2884, %v8249
        %v8251 = vrot.slane %v8141, %v8250
        %v8252 = vsel %vm2889, %v8251, %v8247
        %v8253 = vlaneseq
        %v8254 = vshrl.u32 %v8253, 7
        %v8255 = vsub.s32 %v492, %v8254
        %v8256 = vrot.slane %v8144, %v8255
        %v8257 = vlaneseq
        %v8258 = vshrl.u32 %v8257, 7
        %v8259 = vsub.s32 %v2884, %v8258
        %v8260 = vrot.slane %v8147, %v8259
        %v8261 = vsel %vm2889, %v8260, %v8256
        %v8262 = vlaneseq
        %v8263 = vshrl.u32 %v8262, 7
        %v8264 = vsub.s32 %v492, %v8263
        %v8265 = vrot.slane %v8150, %v8264
        %v8266 = vlaneseq
        %v8267 = vshrl.u32 %v8266, 7
        %v8268 = vsub.s32 %v2884, %v8267
        %v8269 = vrot.slane %v8153, %v8268
        %v8270 = vsel %vm2889, %v8269, %v8265
        %v8271 = vlaneseq
        %v8272 = vshrl.u32 %v8271, 7
        %v8273 = vsub.s32 %v492, %v8272
        %v8274 = vrot.slane %v8156, %v8273
        %v8275 = vlaneseq
        %v8276 = vshrl.u32 %v8275, 7
        %v8277 = vsub.s32 %v2884, %v8276
        %v8278 = vrot.slane %v8159, %v8277
        %v8279 = vsel %vm2889, %v8278, %v8274
        %v8280 = vlaneseq
        %v8281 = vshrl.u32 %v8280, 7
        %v8282 = vsub.s32 %v492, %v8281
        %v8283 = vrot.slane %v8162, %v8282
        %v8284 = vlaneseq
        %v8285 = vshrl.u32 %v8284, 7
        %v8286 = vsub.s32 %v2884, %v8285
        %v8287 = vrot.slane %v8165, %v8286
        %v8288 = vsel %vm2889, %v8287, %v8283
        %v8289 = vlaneseq
        %v8290 = vshrl.u32 %v8289, 7
        %v8291 = vsub.s32 %v492, %v8290
        %v8292 = vrot.slane %v8168, %v8291
        %v8293 = vlaneseq
        %v8294 = vshrl.u32 %v8293, 7
        %v8295 = vsub.s32 %v2884, %v8294
        %v8296 = vrot.slane %v8171, %v8295
        %v8297 = vsel %vm2889, %v8296, %v8292
        %v8298 = vlaneseq
        %v8299 = vshrl.u32 %v8298, 7
        %v8300 = vsub.s32 %v492, %v8299
        %v8301 = vrot.slane %v8174, %v8300
        %v8302 = vlaneseq
        %v8303 = vshrl.u32 %v8302, 7
        %v8304 = vsub.s32 %v2884, %v8303
        %v8305 = vrot.slane %v8177, %v8304
        %v8306 = vsel %vm2889, %v8305, %v8301
        %v8307 = vlaneseq
        %v8308 = vshrl.u32 %v8307, 7
        %v8309 = vsub.s32 %v492, %v8308
        %v8310 = vrot.slane %v8180, %v8309
        %v8311 = vlaneseq
        %v8312 = vshrl.u32 %v8311, 7
        %v8313 = vsub.s32 %v2884, %v8312
        %v8314 = vrot.slane %v8183, %v8313
        %v8315 = vsel %vm2889, %v8314, %v8310
        %v8316 = vlaneseq
        %v8317 = vshrl.u32 %v8316, 7
        %v8318 = vsub.s32 %v492, %v8317
        %v8319 = vrot.slane %v8186, %v8318
        %v8320 = vlaneseq
        %v8321 = vshrl.u32 %v8320, 7
        %v8322 = vsub.s32 %v2884, %v8321
        %v8323 = vrot.slane %v8189, %v8322
        %v8324 = vsel %vm2889, %v8323, %v8319
        %v8325 = vlaneseq
        %v8326 = vshrl.u32 %v8325, 7
        %v8327 = vsub.s32 %v492, %v8326
        %v8328 = vrot.slane %v8192, %v8327
        %v8329 = vlaneseq
        %v8330 = vshrl.u32 %v8329, 7
        %v8331 = vsub.s32 %v2884, %v8330
        %v8332 = vrot.slane %v8195, %v8331
        %v8333 = vsel %vm2889, %v8332, %v8328
        %v8334 = vlaneseq
        %v8335 = vshrl.u32 %v8334, 7
        %v8336 = vsub.s32 %v492, %v8335
        %v8337 = vrot.slane %v8198, %v8336
        %v8338 = vlaneseq
        %v8339 = vshrl.u32 %v8338, 7
        %v8340 = vsub.s32 %v2884, %v8339
        %v8341 = vrot.slane %v8201, %v8340
        %v8342 = vsel %vm2889, %v8341, %v8337
        %v8343 = vlaneseq
        %v8344 = vshrl.u32 %v8343, 7
        %v8345 = vsub.s32 %v492, %v8344
        %v8346 = vrot.slane %v8204, %v8345
        %v8347 = vlaneseq
        %v8348 = vshrl.u32 %v8347, 7
        %v8349 = vsub.s32 %v2884, %v8348
        %v8350 = vrot.slane %v8207, %v8349
        %v8351 = vsel %vm2889, %v8350, %v8346
        %v8352 = vsel %vm3026, %v8225, %v8216
        %v8353 = vsel %vm3028, %v8234, %v8352
        %v8354 = vsel %vm3030, %v8243, %v8353
        %v8355 = vsel %vm3032, %v8252, %v8354
        %v8356 = vsel %vm3034, %v8261, %v8355
        %v8357 = vsel %vm3036, %v8270, %v8356
        %v8358 = vsel %vm3038, %v8279, %v8357
        %v8359 = vsel %vm3026, %v8297, %v8288
        %v8360 = vsel %vm3028, %v8306, %v8359
        %v8361 = vsel %vm3030, %v8315, %v8360
        %v8362 = vsel %vm3032, %v8324, %v8361
        %v8363 = vsel %vm3034, %v8333, %v8362
        %v8364 = vsel %vm3036, %v8342, %v8363
        %v8365 = vsel %vm3038, %v8351, %v8364
        %8400 = vset.pattern.permute.xlu0 0
        %8401 = vperm.xlu0 %8400, %v8048
        %v8402 = vpop.permute.xlu0 %8401
        %8403 = vset.pattern.permute.xlu0 0
        %8404 = vperm.xlu0 %8403, %v8049
        %v8405 = vpop.permute.xlu0 %8404
        %8406 = vset.pattern.permute.xlu0 0
        %8407 = vperm.xlu0 %8406, %v8050
        %v8408 = vpop.permute.xlu0 %8407
        %8409 = vset.pattern.permute.xlu0 0
        %8410 = vperm.xlu0 %8409, %v8051
        %v8411 = vpop.permute.xlu0 %8410
        %8412 = vset.pattern.permute.xlu0 0
        %8413 = vperm.xlu0 %8412, %v8052
        %v8414 = vpop.permute.xlu0 %8413
        %8415 = vset.pattern.permute.xlu0 0
        %8416 = vperm.xlu0 %8415, %v8053
        %v8417 = vpop.permute.xlu0 %8416
        %8418 = vset.pattern.permute.xlu0 0
        %8419 = vperm.xlu0 %8418, %v8054
        %v8420 = vpop.permute.xlu0 %8419
        %8421 = vset.pattern.permute.xlu0 0
        %8422 = vperm.xlu0 %8421, %v8055
        %v8423 = vpop.permute.xlu0 %8422
        %8424 = vset.pattern.permute.xlu0 0
        %8425 = vperm.xlu0 %8424, %v8056
        %v8426 = vpop.permute.xlu0 %8425
        %8427 = vset.pattern.permute.xlu0 0
        %8428 = vperm.xlu0 %8427, %v8057
        %v8429 = vpop.permute.xlu0 %8428
        %8430 = vset.pattern.permute.xlu0 0
        %8431 = vperm.xlu0 %8430, %v8058
        %v8432 = vpop.permute.xlu0 %8431
        %8433 = vset.pattern.permute.xlu0 0
        %8434 = vperm.xlu0 %8433, %v8059
        %v8435 = vpop.permute.xlu0 %8434
        %8436 = vset.pattern.permute.xlu0 0
        %8437 = vperm.xlu0 %8436, %v8060
        %v8438 = vpop.permute.xlu0 %8437
        %8439 = vset.pattern.permute.xlu0 0
        %8440 = vperm.xlu0 %8439, %v8061
        %v8441 = vpop.permute.xlu0 %8440
        %8442 = vset.pattern.permute.xlu0 0
        %8443 = vperm.xlu0 %8442, %v8062
        %v8444 = vpop.permute.xlu0 %8443
        %8445 = vset.pattern.permute.xlu0 0
        %8446 = vperm.xlu0 %8445, %v8063
        %v8447 = vpop.permute.xlu0 %8446
        %8448 = vset.pattern.permute.xlu0 0
        %8449 = vperm.xlu0 %8448, %v8064
        %v8450 = vpop.permute.xlu0 %8449
        %8451 = vset.pattern.permute.xlu0 0
        %8452 = vperm.xlu0 %8451, %v8065
        %v8453 = vpop.permute.xlu0 %8452
        %8454 = vset.pattern.permute.xlu0 0
        %8455 = vperm.xlu0 %8454, %v8066
        %v8456 = vpop.permute.xlu0 %8455
        %8457 = vset.pattern.permute.xlu0 0
        %8458 = vperm.xlu0 %8457, %v8067
        %v8459 = vpop.permute.xlu0 %8458
        %8460 = vset.pattern.permute.xlu0 0
        %8461 = vperm.xlu0 %8460, %v8068
        %v8462 = vpop.permute.xlu0 %8461
        %8463 = vset.pattern.permute.xlu0 0
        %8464 = vperm.xlu0 %8463, %v8069
        %v8465 = vpop.permute.xlu0 %8464
        %8466 = vset.pattern.permute.xlu0 0
        %8467 = vperm.xlu0 %8466, %v8070
        %v8468 = vpop.permute.xlu0 %8467
        %8469 = vset.pattern.permute.xlu0 0
        %8470 = vperm.xlu0 %8469, %v8071
        %v8471 = vpop.permute.xlu0 %8470
        %8472 = vset.pattern.permute.xlu0 0
        %8473 = vperm.xlu0 %8472, %v8072
        %v8474 = vpop.permute.xlu0 %8473
        %8475 = vset.pattern.permute.xlu0 0
        %8476 = vperm.xlu0 %8475, %v8073
        %v8477 = vpop.permute.xlu0 %8476
        %8478 = vset.pattern.permute.xlu0 0
        %8479 = vperm.xlu0 %8478, %v8074
        %v8480 = vpop.permute.xlu0 %8479
        %8481 = vset.pattern.permute.xlu0 0
        %8482 = vperm.xlu0 %8481, %v8075
        %v8483 = vpop.permute.xlu0 %8482
        %8484 = vset.pattern.permute.xlu0 0
        %8485 = vperm.xlu0 %8484, %v8076
        %v8486 = vpop.permute.xlu0 %8485
        %8487 = vset.pattern.permute.xlu0 0
        %8488 = vperm.xlu0 %8487, %v8077
        %v8489 = vpop.permute.xlu0 %8488
        %8490 = vset.pattern.permute.xlu0 0
        %8491 = vperm.xlu0 %8490, %v8078
        %v8492 = vpop.permute.xlu0 %8491
        %8493 = vset.pattern.permute.xlu0 0
        %8494 = vperm.xlu0 %8493, %v8079
        %v8495 = vpop.permute.xlu0 %8494
        %v8496 = vlaneseq
        %v8497 = vshrl.u32 %v8496, 7
        %v8498 = vsub.s32 %v5311, %v8497
        %v8499 = vrot.slane %v8402, %v8498
        %v8500 = vlaneseq
        %v8501 = vshrl.u32 %v8500, 7
        %v8502 = vsub.s32 %v5316, %v8501
        %v8503 = vrot.slane %v8405, %v8502
        %v8504 = vsel %vm5321, %v8503, %v8499
        %v8505 = vlaneseq
        %v8506 = vshrl.u32 %v8505, 7
        %v8507 = vsub.s32 %v5311, %v8506
        %v8508 = vrot.slane %v8408, %v8507
        %v8509 = vlaneseq
        %v8510 = vshrl.u32 %v8509, 7
        %v8511 = vsub.s32 %v5316, %v8510
        %v8512 = vrot.slane %v8411, %v8511
        %v8513 = vsel %vm5321, %v8512, %v8508
        %v8514 = vlaneseq
        %v8515 = vshrl.u32 %v8514, 7
        %v8516 = vsub.s32 %v5311, %v8515
        %v8517 = vrot.slane %v8414, %v8516
        %v8518 = vlaneseq
        %v8519 = vshrl.u32 %v8518, 7
        %v8520 = vsub.s32 %v5316, %v8519
        %v8521 = vrot.slane %v8417, %v8520
        %v8522 = vsel %vm5321, %v8521, %v8517
        %v8523 = vlaneseq
        %v8524 = vshrl.u32 %v8523, 7
        %v8525 = vsub.s32 %v5311, %v8524
        %v8526 = vrot.slane %v8420, %v8525
        %v8527 = vlaneseq
        %v8528 = vshrl.u32 %v8527, 7
        %v8529 = vsub.s32 %v5316, %v8528
        %v8530 = vrot.slane %v8423, %v8529
        %v8531 = vsel %vm5321, %v8530, %v8526
        %v8532 = vlaneseq
        %v8533 = vshrl.u32 %v8532, 7
        %v8534 = vsub.s32 %v5311, %v8533
        %v8535 = vrot.slane %v8426, %v8534
        %v8536 = vlaneseq
        %v8537 = vshrl.u32 %v8536, 7
        %v8538 = vsub.s32 %v5316, %v8537
        %v8539 = vrot.slane %v8429, %v8538
        %v8540 = vsel %vm5321, %v8539, %v8535
        %v8541 = vlaneseq
        %v8542 = vshrl.u32 %v8541, 7
        %v8543 = vsub.s32 %v5311, %v8542
        %v8544 = vrot.slane %v8432, %v8543
        %v8545 = vlaneseq
        %v8546 = vshrl.u32 %v8545, 7
        %v8547 = vsub.s32 %v5316, %v8546
        %v8548 = vrot.slane %v8435, %v8547
        %v8549 = vsel %vm5321, %v8548, %v8544
        %v8550 = vlaneseq
        %v8551 = vshrl.u32 %v8550, 7
        %v8552 = vsub.s32 %v5311, %v8551
        %v8553 = vrot.slane %v8438, %v8552
        %v8554 = vlaneseq
        %v8555 = vshrl.u32 %v8554, 7
        %v8556 = vsub.s32 %v5316, %v8555
        %v8557 = vrot.slane %v8441, %v8556
        %v8558 = vsel %vm5321, %v8557, %v8553
        %v8559 = vlaneseq
        %v8560 = vshrl.u32 %v8559, 7
        %v8561 = vsub.s32 %v5311, %v8560
        %v8562 = vrot.slane %v8444, %v8561
        %v8563 = vlaneseq
        %v8564 = vshrl.u32 %v8563, 7
        %v8565 = vsub.s32 %v5316, %v8564
        %v8566 = vrot.slane %v8447, %v8565
        %v8567 = vsel %vm5321, %v8566, %v8562
        %v8568 = vlaneseq
        %v8569 = vshrl.u32 %v8568, 7
        %v8570 = vsub.s32 %v5311, %v8569
        %v8571 = vrot.slane %v8450, %v8570
        %v8572 = vlaneseq
        %v8573 = vshrl.u32 %v8572, 7
        %v8574 = vsub.s32 %v5316, %v8573
        %v8575 = vrot.slane %v8453, %v8574
        %v8576 = vsel %vm5321, %v8575, %v8571
        %v8577 = vlaneseq
        %v8578 = vshrl.u32 %v8577, 7
        %v8579 = vsub.s32 %v5311, %v8578
        %v8580 = vrot.slane %v8456, %v8579
        %v8581 = vlaneseq
        %v8582 = vshrl.u32 %v8581, 7
        %v8583 = vsub.s32 %v5316, %v8582
        %v8584 = vrot.slane %v8459, %v8583
        %v8585 = vsel %vm5321, %v8584, %v8580
        %v8586 = vlaneseq
        %v8587 = vshrl.u32 %v8586, 7
        %v8588 = vsub.s32 %v5311, %v8587
        %v8589 = vrot.slane %v8462, %v8588
        %v8590 = vlaneseq
        %v8591 = vshrl.u32 %v8590, 7
        %v8592 = vsub.s32 %v5316, %v8591
        %v8593 = vrot.slane %v8465, %v8592
        %v8594 = vsel %vm5321, %v8593, %v8589
        %v8595 = vlaneseq
        %v8596 = vshrl.u32 %v8595, 7
        %v8597 = vsub.s32 %v5311, %v8596
        %v8598 = vrot.slane %v8468, %v8597
        %v8599 = vlaneseq
        %v8600 = vshrl.u32 %v8599, 7
        %v8601 = vsub.s32 %v5316, %v8600
        %v8602 = vrot.slane %v8471, %v8601
        %v8603 = vsel %vm5321, %v8602, %v8598
        %v8604 = vlaneseq
        %v8605 = vshrl.u32 %v8604, 7
        %v8606 = vsub.s32 %v5311, %v8605
        %v8607 = vrot.slane %v8474, %v8606
        %v8608 = vlaneseq
        %v8609 = vshrl.u32 %v8608, 7
        %v8610 = vsub.s32 %v5316, %v8609
        %v8611 = vrot.slane %v8477, %v8610
        %v8612 = vsel %vm5321, %v8611, %v8607
        %v8613 = vlaneseq
        %v8614 = vshrl.u32 %v8613, 7
        %v8615 = vsub.s32 %v5311, %v8614
        %v8616 = vrot.slane %v8480, %v8615
        %v8617 = vlaneseq
        %v8618 = vshrl.u32 %v8617, 7
        %v8619 = vsub.s32 %v5316, %v8618
        %v8620 = vrot.slane %v8483, %v8619
        %v8621 = vsel %vm5321, %v8620, %v8616
        %v8622 = vlaneseq
        %v8623 = vshrl.u32 %v8622, 7
        %v8624 = vsub.s32 %v5311, %v8623
        %v8625 = vrot.slane %v8486, %v8624
        %v8626 = vlaneseq
        %v8627 = vshrl.u32 %v8626, 7
        %v8628 = vsub.s32 %v5316, %v8627
        %v8629 = vrot.slane %v8489, %v8628
        %v8630 = vsel %vm5321, %v8629, %v8625
        %v8631 = vlaneseq
        %v8632 = vshrl.u32 %v8631, 7
        %v8633 = vsub.s32 %v5311, %v8632
        %v8634 = vrot.slane %v8492, %v8633
        %v8635 = vlaneseq
        %v8636 = vshrl.u32 %v8635, 7
        %v8637 = vsub.s32 %v5316, %v8636
        %v8638 = vrot.slane %v8495, %v8637
        %v8639 = vsel %vm5321, %v8638, %v8634
        %v8640 = vsel %vm3026, %v8513, %v8504
        %v8641 = vsel %vm3028, %v8522, %v8640
        %v8642 = vsel %vm3030, %v8531, %v8641
        %v8643 = vsel %vm3032, %v8540, %v8642
        %v8644 = vsel %vm3034, %v8549, %v8643
        %v8645 = vsel %vm3036, %v8558, %v8644
        %v8646 = vsel %vm3038, %v8567, %v8645
        %v8647 = vsel %vm3026, %v8585, %v8576
        %v8648 = vsel %vm3028, %v8594, %v8647
        %v8649 = vsel %vm3030, %v8603, %v8648
        %v8650 = vsel %vm3032, %v8612, %v8649
        %v8651 = vsel %vm3034, %v8621, %v8650
        %v8652 = vsel %vm3036, %v8630, %v8651
        %v8653 = vsel %vm3038, %v8639, %v8652
        %v8656 = vsel %vm1521, %v8358, %v8646
        %v8657 = vsel %vm1521, %v8365, %v8653
        %8658 = vrot.lane.b32.xlu0 %v5642, 96
        %v8659 = vpop.permute.xlu0 %8658
        %8660 = vrot.lane.b32.xlu0 %v5647, 96
        %v8661 = vpop.permute.xlu0 %8660
        %v8665 = vsel %vm2033, %v8656, 0
        %v8668 = vsel %vm2033, %v8657, 0
        %8670 = vmatprep.subr.mxu0 0.0
        %8671 = vmatpush1.msra.mxu0 %v5642
        %8672 = vmatprep.subr.mxu0 0.0
        %8673 = vmatpush1.msra.mxu0 %v5647
        %8674 = vmatprep.subr.mxu0 0.0
        %8675 = vmatpush1.msra.mxu0 %v8659
        %8676 = vmatprep.subr.mxu0 0.0
        %8677 = vmatpush1.msra.mxu0 %v8661
        %8678 = vmatprep.subr.mxu0 0.0
        %8679 = vmatpush1.msra.mxu0 0.0
        %8680 = vmatprep.subr.mxu0 0.0
        %8681 = vmatpush1.msra.mxu0 0.0
        %8682 = vmatprep.subr.mxu0 0.0
        %8683 = vmatpush1.msra.mxu0 0.0
        %8684 = vmatprep.subr.mxu0 0.0
        %8685 = vmatpush1.msra.mxu0 0.0
        %8686 = vmatprep.subr.mxu0 0.0
        %8687 = vmatpush1.msra.mxu0 0.0
        %8688 = vmatprep.subr.mxu0 0.0
        %8689 = vmatpush1.msra.mxu0 0.0
        %8690 = vmatprep.subr.mxu0 0.0
        %8691 = vmatpush1.msra.mxu0 0.0
        %8692 = vmatprep.subr.mxu0 0.0
        %8693 = vmatpush1.msra.mxu0 0.0
        %8694 = vmatprep.subr.mxu0 0.0
        %8695 = vmatpush1.msra.mxu0 0.0
        %8696 = vmatprep.subr.mxu0 0.0
        %8697 = vmatpush1.msra.mxu0 0.0
        %8698 = vmatprep.subr.mxu0 0.0
        %8699 = vmatpush1.msra.mxu0 0.0
        %8700 = vmatprep.subr.mxu0 0.0
        %8701 = vmatpush1.msra.mxu0 0.0
        %8702 = vmatprep.subr.mxu0 0.0
        %8703 = vmatpush1.msra.mxu0 0.0
        %8704 = vmatprep.subr.mxu0 0.0
        %8705 = vmatpush1.msra.mxu0 0.0
        %8706 = vmatprep.subr.mxu0 0.0
        %8707 = vmatpush1.msra.mxu0 0.0
        %8708 = vmatprep.subr.mxu0 0.0
        %8709 = vmatpush1.msra.mxu0 0.0
        %8710 = vmatprep.subr.mxu0 0.0
        %8711 = vmatpush1.msra.mxu0 0.0
        %8712 = vmatprep.subr.mxu0 0.0
        %8713 = vmatpush1.msra.mxu0 0.0
        %8714 = vmatprep.subr.mxu0 0.0
        %8715 = vmatpush1.msra.mxu0 0.0
        %8716 = vmatprep.subr.mxu0 0.0
        %8717 = vmatpush1.msra.mxu0 0.0
        %8718 = vmatprep.subr.mxu0 0.0
        %8719 = vmatpush1.msra.mxu0 0.0
        %8720 = vmatprep.subr.mxu0 0.0
        %8721 = vmatpush1.msra.mxu0 0.0
        %8722 = vmatprep.subr.mxu0 0.0
        %8723 = vmatpush1.msra.mxu0 0.0
        %8724 = vmatprep.subr.mxu0 0.0
        %8725 = vmatpush1.msra.mxu0 0.0
        %8726 = vmatprep.subr.mxu0 0.0
        %8727 = vmatpush1.msra.mxu0 0.0
        %8728 = vmatprep.subr.mxu0 0.0
        %8729 = vmatpush1.msra.mxu0 0.0
        %8730 = vmatprep.subr.mxu0 0.0
        %8731 = vmatpush1.msra.mxu0 0.0
        %8732 = vmatprep.subr.mxu0 0.0
        %8733 = vmatpush1.msra.mxu0 0.0
        %8734 = vmatprep.mubr.f32.mxu0 0.0
        %8735 = vmatmul.mubr.f32.gmra.mrb[0].mxu0 %v8665
        %v8736 = vpop.f32.mrb[0].mxu0
        %v8737 = vadd.f32 0.0, %v8736
        %v8738 = vpop.f32.mrb[0].mxu0
        %8739 = vmatprep.mubr.f32.mxu0 0.0
        %8740 = vmatmul.mubr.f32.gmra.mrb[0].mxu0 %v8668
        %v8741 = vpop.f32.mrb[0].mxu0
        %v8742 = vadd.f32 0.0, %v8741
        %v8743 = vpop.f32.mrb[0].mxu0
        %8744 = vdwg.mxu0
        %v8745 = vmul.f32 %v8737, 0.5
        %v8746 = vmul.f32 %v8742, 0.5
        %v8747 = vadd.f32 %v8745, %v515
        %v8748 = vadd.f32 %v8746, %v515
        %v8749 = vmax.f32 %v8747, 0.0
        %v8750 = vmax.f32 %v8748, 0.0
        %v8752 = vsel %vm2033, %v8749, 0
        %v8755 = vsel %vm2033, %v8750, 0
        %8757 = vmatprep.subr.mxu0 0.0
        %8758 = vmatpush1.msra.mxu0 %v2029
        %8759 = vmatprep.subr.mxu0 0.0
        %8760 = vmatpush1.msra.mxu0 %v2030
        %8761 = vmatprep.subr.mxu0 0.0
        %8762 = vmatpush1.msra.mxu0 %v2031
        %8763 = vmatprep.subr.mxu0 0.0
        %8764 = vmatpush1.msra.mxu0 %v2032
        %8765 = vmatprep.subr.mxu0 0.0
        %8766 = vmatpush1.msra.mxu0 0.0
        %8767 = vmatprep.subr.mxu0 0.0
        %8768 = vmatpush1.msra.mxu0 0.0
        %8769 = vmatprep.subr.mxu0 0.0
        %8770 = vmatpush1.msra.mxu0 0.0
        %8771 = vmatprep.subr.mxu0 0.0
        %8772 = vmatpush1.msra.mxu0 0.0
        %8773 = vmatprep.subr.mxu0 0.0
        %8774 = vmatpush1.msra.mxu0 0.0
        %8775 = vmatprep.subr.mxu0 0.0
        %8776 = vmatpush1.msra.mxu0 0.0
        %8777 = vmatprep.subr.mxu0 0.0
        %8778 = vmatpush1.msra.mxu0 0.0
        %8779 = vmatprep.subr.mxu0 0.0
        %8780 = vmatpush1.msra.mxu0 0.0
        %8781 = vmatprep.subr.mxu0 0.0
        %8782 = vmatpush1.msra.mxu0 0.0
        %8783 = vmatprep.subr.mxu0 0.0
        %8784 = vmatpush1.msra.mxu0 0.0
        %8785 = vmatprep.subr.mxu0 0.0
        %8786 = vmatpush1.msra.mxu0 0.0
        %8787 = vmatprep.subr.mxu0 0.0
        %8788 = vmatpush1.msra.mxu0 0.0
        %8789 = vmatprep.subr.mxu0 0.0
        %8790 = vmatpush1.msra.mxu0 0.0
        %8791 = vmatprep.subr.mxu0 0.0
        %8792 = vmatpush1.msra.mxu0 0.0
        %8793 = vmatprep.subr.mxu0 0.0
        %8794 = vmatpush1.msra.mxu0 0.0
        %8795 = vmatprep.subr.mxu0 0.0
        %8796 = vmatpush1.msra.mxu0 0.0
        %8797 = vmatprep.subr.mxu0 0.0
        %8798 = vmatpush1.msra.mxu0 0.0
        %8799 = vmatprep.subr.mxu0 0.0
        %8800 = vmatpush1.msra.mxu0 0.0
        %8801 = vmatprep.subr.mxu0 0.0
        %8802 = vmatpush1.msra.mxu0 0.0
        %8803 = vmatprep.subr.mxu0 0.0
        %8804 = vmatpush1.msra.mxu0 0.0
        %8805 = vmatprep.subr.mxu0 0.0
        %8806 = vmatpush1.msra.mxu0 0.0
        %8807 = vmatprep.subr.mxu0 0.0
        %8808 = vmatpush1.msra.mxu0 0.0
        %8809 = vmatprep.subr.mxu0 0.0
        %8810 = vmatpush1.msra.mxu0 0.0
        %8811 = vmatprep.subr.mxu0 0.0
        %8812 = vmatpush1.msra.mxu0 0.0
        %8813 = vmatprep.subr.mxu0 0.0
        %8814 = vmatpush1.msra.mxu0 0.0
        %8815 = vmatprep.subr.mxu0 0.0
        %8816 = vmatpush1.msra.mxu0 0.0
        %8817 = vmatprep.subr.mxu0 0.0
        %8818 = vmatpush1.msra.mxu0 0.0
        %8819 = vmatprep.subr.mxu0 0.0
        %8820 = vmatpush1.msra.mxu0 0.0
        %8821 = vmatprep.mubr.f32.mxu0 0.0
        %8822 = vmatmul.mubr.f32.gmra.mrb[0].mxu0 %v8752
        %v8823 = vpop.f32.mrb[0].mxu0
        %v8824 = vadd.f32 %v508, %v8823
        %v8825 = vpop.f32.mrb[0].mxu0
        %8826 = vmatprep.mubr.f32.mxu0 0.0
        %8827 = vmatmul.mubr.f32.gmra.mrb[0].mxu0 %v8755
        %v8828 = vpop.f32.mrb[0].mxu0
        %v8829 = vadd.f32 %v508, %v8828
        %v8830 = vpop.f32.mrb[0].mxu0
        %8831 = vdwg.mxu0
        %v8834 = vcombine.high %v8824, %v8824
        %v8836 = vunpack.c.l.s4 1966171168
        %v8837 = vunpack.c.0.s8 %v8836
        %v8838 = vlaneseq
        %v8839 = vshrl.u32 %v8838, 7
        %v8840 = vsub.s32 %v8837, %v8839
        %v8841 = vrot.slane %v8824, %v8840
        %v8843 = vunpack.c.l.s4 1966171168
        %v8844 = vunpack.c.0.s8 %v8843
        %v8845 = vlaneseq
        %v8846 = vshrl.u32 %v8845, 7
        %v8847 = vsub.s32 %v8844, %v8846
        %v8848 = vrot.slane %v8834, %v8847
        %v8849 = vcombine.high %v8841, %v8841
        %v8850 = vcombine.high %v8848, %v8848
        %v8852 = vunpack.c.l.s4 1966171168
        %v8853 = vunpack.c.0.s8 %v8852
        %v8854 = vlaneseq
        %v8855 = vshrl.u32 %v8854, 7
        %v8856 = vsub.s32 %v8853, %v8855
        %v8857 = vrot.slane %v8841, %v8856
        %v8859 = vunpack.c.l.s4 1966171168
        %v8860 = vunpack.c.0.s8 %v8859
        %v8861 = vlaneseq
        %v8862 = vshrl.u32 %v8861, 7
        %v8863 = vsub.s32 %v8860, %v8862
        %v8864 = vrot.slane %v8848, %v8863
        %v8866 = vunpack.c.l.s4 1966171168
        %v8867 = vunpack.c.0.s8 %v8866
        %v8868 = vlaneseq
        %v8869 = vshrl.u32 %v8868, 7
        %v8870 = vsub.s32 %v8867, %v8869
        %v8871 = vrot.slane %v8849, %v8870
        %v8873 = vunpack.c.l.s4 1966171168
        %v8874 = vunpack.c.0.s8 %v8873
        %v8875 = vlaneseq
        %v8876 = vshrl.u32 %v8875, 7
        %v8877 = vsub.s32 %v8874, %v8876
        %v8878 = vrot.slane %v8850, %v8877
        %v8879 = vcombine.high %v8857, %v8857
        %v8880 = vcombine.high %v8864, %v8864
        %v8881 = vcombine.high %v8871, %v8871
        %v8882 = vcombine.high %v8878, %v8878
        %v8883 = vcombine.high %v8829, %v8829
        %v8885 = vunpack.c.l.s4 1966171168
        %v8886 = vunpack.c.0.s8 %v8885
        %v8887 = vlaneseq
        %v8888 = vshrl.u32 %v8887, 7
        %v8889 = vsub.s32 %v8886, %v8888
        %v8890 = vrot.slane %v8829, %v8889
        %v8892 = vunpack.c.l.s4 1966171168
        %v8893 = vunpack.c.0.s8 %v8892
        %v8894 = vlaneseq
        %v8895 = vshrl.u32 %v8894, 7
        %v8896 = vsub.s32 %v8893, %v8895
        %v8897 = vrot.slane %v8883, %v8896
        %v8898 = vcombine.high %v8890, %v8890
        %v8899 = vcombine.high %v8897, %v8897
        %v8901 = vunpack.c.l.s4 1966171168
        %v8902 = vunpack.c.0.s8 %v8901
        %v8903 = vlaneseq
        %v8904 = vshrl.u32 %v8903, 7
        %v8905 = vsub.s32 %v8902, %v8904
        %v8906 = vrot.slane %v8890, %v8905
        %v8908 = vunpack.c.l.s4 1966171168
        %v8909 = vunpack.c.0.s8 %v8908
        %v8910 = vlaneseq
        %v8911 = vshrl.u32 %v8910, 7
        %v8912 = vsub.s32 %v8909, %v8911
        %v8913 = vrot.slane %v8897, %v8912
        %v8915 = vunpack.c.l.s4 1966171168
        %v8916 = vunpack.c.0.s8 %v8915
        %v8917 = vlaneseq
        %v8918 = vshrl.u32 %v8917, 7
        %v8919 = vsub.s32 %v8916, %v8918
        %v8920 = vrot.slane %v8898, %v8919
        %v8922 = vunpack.c.l.s4 1966171168
        %v8923 = vunpack.c.0.s8 %v8922
        %v8924 = vlaneseq
        %v8925 = vshrl.u32 %v8924, 7
        %v8926 = vsub.s32 %v8923, %v8925
        %v8927 = vrot.slane %v8899, %v8926
        %v8928 = vcombine.high %v8906, %v8906
        %v8929 = vcombine.high %v8913, %v8913
        %v8930 = vcombine.high %v8920, %v8920
        %v8931 = vcombine.high %v8927, %v8927
        %v8932 = vlaneseq
        %v8933 = vshrl.u32 %v8932, 7
        %v8934 = vsub.s32 0, %v8933
        %v8935 = vrot.slane %v8857, %v8934
        %v8936 = vlaneseq
        %v8937 = vshrl.u32 %v8936, 7
        %v8938 = vsub.s32 0, %v8937
        %v8939 = vrot.slane %v8871, %v8938
        %v8940 = vlaneseq
        %v8941 = vshrl.u32 %v8940, 7
        %v8942 = vsub.s32 0, %v8941
        %v8943 = vrot.slane %v8879, %v8942
        %v8944 = vlaneseq
        %v8945 = vshrl.u32 %v8944, 7
        %v8946 = vsub.s32 0, %v8945
        %v8947 = vrot.slane %v8881, %v8946
        %v8948 = vlaneseq
        %v8949 = vshrl.u32 %v8948, 7
        %v8950 = vsub.s32 0, %v8949
        %v8951 = vrot.slane %v8864, %v8950
        %v8952 = vlaneseq
        %v8953 = vshrl.u32 %v8952, 7
        %v8954 = vsub.s32 0, %v8953
        %v8955 = vrot.slane %v8878, %v8954
        %v8956 = vlaneseq
        %v8957 = vshrl.u32 %v8956, 7
        %v8958 = vsub.s32 0, %v8957
        %v8959 = vrot.slane %v8880, %v8958
        %v8960 = vlaneseq
        %v8961 = vshrl.u32 %v8960, 7
        %v8962 = vsub.s32 0, %v8961
        %v8963 = vrot.slane %v8882, %v8962
        %v8964 = vlaneseq
        %v8965 = vshrl.u32 %v8964, 7
        %v8966 = vsub.s32 0, %v8965
        %v8967 = vrot.slane %v8906, %v8966
        %v8968 = vlaneseq
        %v8969 = vshrl.u32 %v8968, 7
        %v8970 = vsub.s32 0, %v8969
        %v8971 = vrot.slane %v8920, %v8970
        %v8972 = vlaneseq
        %v8973 = vshrl.u32 %v8972, 7
        %v8974 = vsub.s32 0, %v8973
        %v8975 = vrot.slane %v8928, %v8974
        %v8976 = vlaneseq
        %v8977 = vshrl.u32 %v8976, 7
        %v8978 = vsub.s32 0, %v8977
        %v8979 = vrot.slane %v8930, %v8978
        %v8980 = vlaneseq
        %v8981 = vshrl.u32 %v8980, 7
        %v8982 = vsub.s32 0, %v8981
        %v8983 = vrot.slane %v8913, %v8982
        %v8984 = vlaneseq
        %v8985 = vshrl.u32 %v8984, 7
        %v8986 = vsub.s32 0, %v8985
        %v8987 = vrot.slane %v8927, %v8986
        %v8988 = vlaneseq
        %v8989 = vshrl.u32 %v8988, 7
        %v8990 = vsub.s32 0, %v8989
        %v8991 = vrot.slane %v8929, %v8990
        %v8992 = vlaneseq
        %v8993 = vshrl.u32 %v8992, 7
        %v8994 = vsub.s32 0, %v8993
        %v8995 = vrot.slane %v8931, %v8994
        %9012 = vrot.lane.b32.xlu0 %v8824, 64
        %v9013 = vpop.permute.xlu0 %9012
        %9014 = vrot.lane.b32.xlu0 %v8829, 64
        %v9015 = vpop.permute.xlu0 %9014
        %v9018 = vadd.f32 %v8935, %v9013
        %v9019 = vadd.f32 %v8935, %v9015
        %v9020 = vadd.f32 %v8939, %v9013
        %v9021 = vadd.f32 %v8939, %v9015
        %v9022 = vadd.f32 %v8943, %v9013
        %v9023 = vadd.f32 %v8943, %v9015
        %v9024 = vadd.f32 %v8947, %v9013
        %v9025 = vadd.f32 %v8947, %v9015
        %v9026 = vadd.f32 %v8951, %v9013
        %v9027 = vadd.f32 %v8951, %v9015
        %v9028 = vadd.f32 %v8955, %v9013
        %v9029 = vadd.f32 %v8955, %v9015
        %v9030 = vadd.f32 %v8959, %v9013
        %v9031 = vadd.f32 %v8959, %v9015
        %v9032 = vadd.f32 %v8963, %v9013
        %v9033 = vadd.f32 %v8963, %v9015
        %v9034 = vadd.f32 %v8967, %v9013
        %v9035 = vadd.f32 %v8967, %v9015
        %v9036 = vadd.f32 %v8971, %v9013
        %v9037 = vadd.f32 %v8971, %v9015
        %v9038 = vadd.f32 %v8975, %v9013
        %v9039 = vadd.f32 %v8975, %v9015
        %v9040 = vadd.f32 %v8979, %v9013
        %v9041 = vadd.f32 %v8979, %v9015
        %v9042 = vadd.f32 %v8983, %v9013
        %v9043 = vadd.f32 %v8983, %v9015
        %v9044 = vadd.f32 %v8987, %v9013
        %v9045 = vadd.f32 %v8987, %v9015
        %v9046 = vadd.f32 %v8991, %v9013
        %v9047 = vadd.f32 %v8991, %v9015
        %v9048 = vadd.f32 %v8995, %v9013
        %v9049 = vadd.f32 %v8995, %v9015
        %v9050 = vadd.f32 %v9018, %v2366
        %v9051 = vadd.f32 %v9019, %v2368
        %v9052 = vadd.f32 %v9020, %v2370
        %v9053 = vadd.f32 %v9021, %v2372
        %v9054 = vadd.f32 %v9022, %v2374
        %v9055 = vadd.f32 %v9023, %v2376
        %v9056 = vadd.f32 %v9024, %v2378
        %v9057 = vadd.f32 %v9025, %v2380
        %v9058 = vadd.f32 %v9026, %v2382
        %v9059 = vadd.f32 %v9027, %v2384
        %v9060 = vadd.f32 %v9028, %v2386
        %v9061 = vadd.f32 %v9029, %v2388
        %v9062 = vadd.f32 %v9030, %v2390
        %v9063 = vadd.f32 %v9031, %v2392
        %v9064 = vadd.f32 %v9032, %v2394
        %v9065 = vadd.f32 %v9033, %v2396
        %v9066 = vadd.f32 %v9034, %v2398
        %v9067 = vadd.f32 %v9035, %v2400
        %v9068 = vadd.f32 %v9036, %v2402
        %v9069 = vadd.f32 %v9037, %v2404
        %v9070 = vadd.f32 %v9038, %v2406
        %v9071 = vadd.f32 %v9039, %v2408
        %v9072 = vadd.f32 %v9040, %v2410
        %v9073 = vadd.f32 %v9041, %v2412
        %v9074 = vadd.f32 %v9042, %v2414
        %v9075 = vadd.f32 %v9043, %v2416
        %v9076 = vadd.f32 %v9044, %v2418
        %v9077 = vadd.f32 %v9045, %v2420
        %v9078 = vadd.f32 %v9046, %v2422
        %v9079 = vadd.f32 %v9047, %v2424
        %v9080 = vadd.f32 %v9048, %v2426
        %v9081 = vadd.f32 %v9049, %v2428
        %vm9082 = vcmp.gt.f32.partialorder %v9050, 0.0
        %vm9083 = vcmp.gt.f32.partialorder %v9051, 0.0
        %vm9084 = vcmp.gt.f32.partialorder %v9052, 0.0
        %vm9085 = vcmp.gt.f32.partialorder %v9053, 0.0
        %vm9086 = vcmp.gt.f32.partialorder %v9054, 0.0
        %vm9087 = vcmp.gt.f32.partialorder %v9055, 0.0
        %vm9088 = vcmp.gt.f32.partialorder %v9056, 0.0
        %vm9089 = vcmp.gt.f32.partialorder %v9057, 0.0
        %vm9090 = vcmp.gt.f32.partialorder %v9058, 0.0
        %vm9091 = vcmp.gt.f32.partialorder %v9059, 0.0
        %vm9092 = vcmp.gt.f32.partialorder %v9060, 0.0
        %vm9093 = vcmp.gt.f32.partialorder %v9061, 0.0
        %vm9094 = vcmp.gt.f32.partialorder %v9062, 0.0
        %vm9095 = vcmp.gt.f32.partialorder %v9063, 0.0
        %vm9096 = vcmp.gt.f32.partialorder %v9064, 0.0
        %vm9097 = vcmp.gt.f32.partialorder %v9065, 0.0
        %vm9098 = vcmp.gt.f32.partialorder %v9066, 0.0
        %vm9099 = vcmp.gt.f32.partialorder %v9067, 0.0
        %vm9100 = vcmp.gt.f32.partialorder %v9068, 0.0
        %vm9101 = vcmp.gt.f32.partialorder %v9069, 0.0
        %vm9102 = vcmp.gt.f32.partialorder %v9070, 0.0
        %vm9103 = vcmp.gt.f32.partialorder %v9071, 0.0
        %vm9104 = vcmp.gt.f32.partialorder %v9072, 0.0
        %vm9105 = vcmp.gt.f32.partialorder %v9073, 0.0
        %vm9106 = vcmp.gt.f32.partialorder %v9074, 0.0
        %vm9107 = vcmp.gt.f32.partialorder %v9075, 0.0
        %vm9108 = vcmp.gt.f32.partialorder %v9076, 0.0
        %vm9109 = vcmp.gt.f32.partialorder %v9077, 0.0
        %vm9110 = vcmp.gt.f32.partialorder %v9078, 0.0
        %vm9111 = vcmp.gt.f32.partialorder %v9079, 0.0
        %vm9112 = vcmp.gt.f32.partialorder %v9080, 0.0
        %vm9113 = vcmp.gt.f32.partialorder %v9081, 0.0
        %v9114 = vmul.f32 %v9050, 0.2
        %v9115 = vmul.f32 %v9051, 0.2
        %v9116 = vmul.f32 %v9052, 0.2
        %v9117 = vmul.f32 %v9053, 0.2
        %v9118 = vmul.f32 %v9054, 0.2
        %v9119 = vmul.f32 %v9055, 0.2
        %v9120 = vmul.f32 %v9056, 0.2
        %v9121 = vmul.f32 %v9057, 0.2
        %v9122 = vmul.f32 %v9058, 0.2
        %v9123 = vmul.f32 %v9059, 0.2
        %v9124 = vmul.f32 %v9060, 0.2
        %v9125 = vmul.f32 %v9061, 0.2
        %v9126 = vmul.f32 %v9062, 0.2
        %v9127 = vmul.f32 %v9063, 0.2
        %v9128 = vmul.f32 %v9064, 0.2
        %v9129 = vmul.f32 %v9065, 0.2
        %v9130 = vmul.f32 %v9066, 0.2
        %v9131 = vmul.f32 %v9067, 0.2
        %v9132 = vmul.f32 %v9068, 0.2
        %v9133 = vmul.f32 %v9069, 0.2
        %v9134 = vmul.f32 %v9070, 0.2
        %v9135 = vmul.f32 %v9071, 0.2
        %v9136 = vmul.f32 %v9072, 0.2
        %v9137 = vmul.f32 %v9073, 0.2
        %v9138 = vmul.f32 %v9074, 0.2
        %v9139 = vmul.f32 %v9075, 0.2
        %v9140 = vmul.f32 %v9076, 0.2
        %v9141 = vmul.f32 %v9077, 0.2
        %v9142 = vmul.f32 %v9078, 0.2
        %v9143 = vmul.f32 %v9079, 0.2
        %v9144 = vmul.f32 %v9080, 0.2
        %v9145 = vmul.f32 %v9081, 0.2
        %v9146 = vsel %vm9082, %v9050, %v9114
        %v9147 = vsel %vm9083, %v9051, %v9115
        %v9148 = vsel %vm9084, %v9052, %v9116
        %v9149 = vsel %vm9085, %v9053, %v9117
        %v9150 = vsel %vm9086, %v9054, %v9118
        %v9151 = vsel %vm9087, %v9055, %v9119
        %v9152 = vsel %vm9088, %v9056, %v9120
        %v9153 = vsel %vm9089, %v9057, %v9121
        %v9154 = vsel %vm9090, %v9058, %v9122
        %v9155 = vsel %vm9091, %v9059, %v9123
        %v9156 = vsel %vm9092, %v9060, %v9124
        %v9157 = vsel %vm9093, %v9061, %v9125
        %v9158 = vsel %vm9094, %v9062, %v9126
        %v9159 = vsel %vm9095, %v9063, %v9127
        %v9160 = vsel %vm9096, %v9064, %v9128
        %v9161 = vsel %vm9097, %v9065, %v9129
        %v9162 = vsel %vm9098, %v9066, %v9130
        %v9163 = vsel %vm9099, %v9067, %v9131
        %v9164 = vsel %vm9100, %v9068, %v9132
        %v9165 = vsel %vm9101, %v9069, %v9133
        %v9166 = vsel %vm9102, %v9070, %v9134
        %v9167 = vsel %vm9103, %v9071, %v9135
        %v9168 = vsel %vm9104, %v9072, %v9136
        %v9169 = vsel %vm9105, %v9073, %v9137
        %v9170 = vsel %vm9106, %v9074, %v9138
        %v9171 = vsel %vm9107, %v9075, %v9139
        %v9172 = vsel %vm9108, %v9076, %v9140
        %v9173 = vsel %vm9109, %v9077, %v9141
        %v9174 = vsel %vm9110, %v9078, %v9142
        %v9175 = vsel %vm9111, %v9079, %v9143
        %v9176 = vsel %vm9112, %v9080, %v9144
        %v9177 = vsel %vm9113, %v9081, %v9145
        %v9178 = vmul.f32 %v9146, %v2590
        %v9179 = vmul.f32 %v9147, %v2590
        %v9180 = vmul.f32 %v9148, %v2590
        %v9181 = vmul.f32 %v9149, %v2590
        %v9182 = vmul.f32 %v9150, %v2590
        %v9183 = vmul.f32 %v9151, %v2590
        %v9184 = vmul.f32 %v9152, %v2590
        %v9185 = vmul.f32 %v9153, %v2590
        %v9186 = vmul.f32 %v9154, %v2590
        %v9187 = vmul.f32 %v9155, %v2590
        %v9188 = vmul.f32 %v9156, %v2590
        %v9189 = vmul.f32 %v9157, %v2590
        %v9190 = vmul.f32 %v9158, %v2590
        %v9191 = vmul.f32 %v9159, %v2590
        %v9192 = vmul.f32 %v9160, %v2590
        %v9193 = vmul.f32 %v9161, %v2590
        %v9194 = vmul.f32 %v9162, %v2590
        %v9195 = vmul.f32 %v9163, %v2590
        %v9196 = vmul.f32 %v9164, %v2590
        %v9197 = vmul.f32 %v9165, %v2590
        %v9198 = vmul.f32 %v9166, %v2590
        %v9199 = vmul.f32 %v9167, %v2590
        %v9200 = vmul.f32 %v9168, %v2590
        %v9201 = vmul.f32 %v9169, %v2590
        %v9202 = vmul.f32 %v9170, %v2590
        %v9203 = vmul.f32 %v9171, %v2590
        %v9204 = vmul.f32 %v9172, %v2590
        %v9205 = vmul.f32 %v9173, %v2590
        %v9206 = vmul.f32 %v9174, %v2590
        %v9207 = vmul.f32 %v9175, %v2590
        %v9208 = vmul.f32 %v9176, %v2590
        %v9209 = vmul.f32 %v9177, %v2590
        %9242 = vrot.lane.b32.xlu0 %v9178, 64
        %v9243 = vpop.permute.xlu0 %9242
        %9244 = vrot.lane.b32.xlu0 %v9179, 64
        %v9245 = vpop.permute.xlu0 %9244
        %9246 = vrot.lane.b32.xlu0 %v9180, 64
        %v9247 = vpop.permute.xlu0 %9246
        %9248 = vrot.lane.b32.xlu0 %v9181, 64
        %v9249 = vpop.permute.xlu0 %9248
        %9250 = vrot.lane.b32.xlu0 %v9182, 64
        %v9251 = vpop.permute.xlu0 %9250
        %9252 = vrot.lane.b32.xlu0 %v9183, 64
        %v9253 = vpop.permute.xlu0 %9252
        %9254 = vrot.lane.b32.xlu0 %v9184, 64
        %v9255 = vpop.permute.xlu0 %9254
        %9256 = vrot.lane.b32.xlu0 %v9185, 64
        %v9257 = vpop.permute.xlu0 %9256
        %9258 = vrot.lane.b32.xlu0 %v9186, 64
        %v9259 = vpop.permute.xlu0 %9258
        %9260 = vrot.lane.b32.xlu0 %v9187, 64
        %v9261 = vpop.permute.xlu0 %9260
        %9262 = vrot.lane.b32.xlu0 %v9188, 64
        %v9263 = vpop.permute.xlu0 %9262
        %9264 = vrot.lane.b32.xlu0 %v9189, 64
        %v9265 = vpop.permute.xlu0 %9264
        %9266 = vrot.lane.b32.xlu0 %v9190, 64
        %v9267 = vpop.permute.xlu0 %9266
        %9268 = vrot.lane.b32.xlu0 %v9191, 64
        %v9269 = vpop.permute.xlu0 %9268
        %9270 = vrot.lane.b32.xlu0 %v9192, 64
        %v9271 = vpop.permute.xlu0 %9270
        %9272 = vrot.lane.b32.xlu0 %v9193, 64
        %v9273 = vpop.permute.xlu0 %9272
        %9274 = vrot.lane.b32.xlu0 %v9194, 64
        %v9275 = vpop.permute.xlu0 %9274
        %9276 = vrot.lane.b32.xlu0 %v9195, 64
        %v9277 = vpop.permute.xlu0 %9276
        %9278 = vrot.lane.b32.xlu0 %v9196, 64
        %v9279 = vpop.permute.xlu0 %9278
        %9280 = vrot.lane.b32.xlu0 %v9197, 64
        %v9281 = vpop.permute.xlu0 %9280
        %9282 = vrot.lane.b32.xlu0 %v9198, 64
        %v9283 = vpop.permute.xlu0 %9282
        %9284 = vrot.lane.b32.xlu0 %v9199, 64
        %v9285 = vpop.permute.xlu0 %9284
        %9286 = vrot.lane.b32.xlu0 %v9200, 64
        %v9287 = vpop.permute.xlu0 %9286
        %9288 = vrot.lane.b32.xlu0 %v9201, 64
        %v9289 = vpop.permute.xlu0 %9288
        %9290 = vrot.lane.b32.xlu0 %v9202, 64
        %v9291 = vpop.permute.xlu0 %9290
        %9292 = vrot.lane.b32.xlu0 %v9203, 64
        %v9293 = vpop.permute.xlu0 %9292
        %9294 = vrot.lane.b32.xlu0 %v9204, 64
        %v9295 = vpop.permute.xlu0 %9294
        %9296 = vrot.lane.b32.xlu0 %v9205, 64
        %v9297 = vpop.permute.xlu0 %9296
        %9298 = vrot.lane.b32.xlu0 %v9206, 64
        %v9299 = vpop.permute.xlu0 %9298
        %9300 = vrot.lane.b32.xlu0 %v9207, 64
        %v9301 = vpop.permute.xlu0 %9300
        %9302 = vrot.lane.b32.xlu0 %v9208, 64
        %v9303 = vpop.permute.xlu0 %9302
        %9304 = vrot.lane.b32.xlu0 %v9209, 64
        %v9305 = vpop.permute.xlu0 %9304
        %v9338 = vsel %vm2033, %v9243, 0.0
        %9339 = vadd.xlane.f32.xlu0 %v9338
        %v9340 = vpop.xlane.xlu0 %9339
        %v9341 = vsel %vm2033, %v9245, 0.0
        %9342 = vadd.xlane.f32.xlu0 %v9341
        %v9343 = vpop.xlane.xlu0 %9342
        %v9344 = vsel %vm2033, %v9247, 0.0
        %9345 = vadd.xlane.f32.xlu0 %v9344
        %v9346 = vpop.xlane.xlu0 %9345
        %v9347 = vsel %vm2033, %v9249, 0.0
        %9348 = vadd.xlane.f32.xlu0 %v9347
        %v9349 = vpop.xlane.xlu0 %9348
        %v9350 = vsel %vm2033, %v9251, 0.0
        %9351 = vadd.xlane.f32.xlu0 %v9350
        %v9352 = vpop.xlane.xlu0 %9351
        %v9353 = vsel %vm2033, %v9253, 0.0
        %9354 = vadd.xlane.f32.xlu0 %v9353
        %v9355 = vpop.xlane.xlu0 %9354
        %v9356 = vsel %vm2033, %v9255, 0.0
        %9357 = vadd.xlane.f32.xlu0 %v9356
        %v9358 = vpop.xlane.xlu0 %9357
        %v9359 = vsel %vm2033, %v9257, 0.0
        %9360 = vadd.xlane.f32.xlu0 %v9359
        %v9361 = vpop.xlane.xlu0 %9360
        %v9362 = vsel %vm2033, %v9259, 0.0
        %9363 = vadd.xlane.f32.xlu0 %v9362
        %v9364 = vpop.xlane.xlu0 %9363
        %v9365 = vsel %vm2033, %v9261, 0.0
        %9366 = vadd.xlane.f32.xlu0 %v9365
        %v9367 = vpop.xlane.xlu0 %9366
        %v9368 = vsel %vm2033, %v9263, 0.0
        %9369 = vadd.xlane.f32.xlu0 %v9368
        %v9370 = vpop.xlane.xlu0 %9369
        %v9371 = vsel %vm2033, %v9265, 0.0
        %9372 = vadd.xlane.f32.xlu0 %v9371
        %v9373 = vpop.xlane.xlu0 %9372
        %v9374 = vsel %vm2033, %v9267, 0.0
        %9375 = vadd.xlane.f32.xlu0 %v9374
        %v9376 = vpop.xlane.xlu0 %9375
        %v9377 = vsel %vm2033, %v9269, 0.0
        %9378 = vadd.xlane.f32.xlu0 %v9377
        %v9379 = vpop.xlane.xlu0 %9378
        %v9380 = vsel %vm2033, %v9271, 0.0
        %9381 = vadd.xlane.f32.xlu0 %v9380
        %v9382 = vpop.xlane.xlu0 %9381
        %v9383 = vsel %vm2033, %v9273, 0.0
        %9384 = vadd.xlane.f32.xlu0 %v9383
        %v9385 = vpop.xlane.xlu0 %9384
        %v9386 = vsel %vm2033, %v9275, 0.0
        %9387 = vadd.xlane.f32.xlu0 %v9386
        %v9388 = vpop.xlane.xlu0 %9387
        %v9389 = vsel %vm2033, %v9277, 0.0
        %9390 = vadd.xlane.f32.xlu0 %v9389
        %v9391 = vpop.xlane.xlu0 %9390
        %v9392 = vsel %vm2033, %v9279, 0.0
        %9393 = vadd.xlane.f32.xlu0 %v9392
        %v9394 = vpop.xlane.xlu0 %9393
        %v9395 = vsel %vm2033, %v9281, 0.0
        %9396 = vadd.xlane.f32.xlu0 %v9395
        %v9397 = vpop.xlane.xlu0 %9396
        %v9398 = vsel %vm2033, %v9283, 0.0
        %9399 = vadd.xlane.f32.xlu0 %v9398
        %v9400 = vpop.xlane.xlu0 %9399
        %v9401 = vsel %vm2033, %v9285, 0.0
        %9402 = vadd.xlane.f32.xlu0 %v9401
        %v9403 = vpop.xlane.xlu0 %9402
        %v9404 = vsel %vm2033, %v9287, 0.0
        %9405 = vadd.xlane.f32.xlu0 %v9404
        %v9406 = vpop.xlane.xlu0 %9405
        %v9407 = vsel %vm2033, %v9289, 0.0
        %9408 = vadd.xlane.f32.xlu0 %v9407
        %v9409 = vpop.xlane.xlu0 %9408
        %v9410 = vsel %vm2033, %v9291, 0.0
        %9411 = vadd.xlane.f32.xlu0 %v9410
        %v9412 = vpop.xlane.xlu0 %9411
        %v9413 = vsel %vm2033, %v9293, 0.0
        %9414 = vadd.xlane.f32.xlu0 %v9413
        %v9415 = vpop.xlane.xlu0 %9414
        %v9416 = vsel %vm2033, %v9295, 0.0
        %9417 = vadd.xlane.f32.xlu0 %v9416
        %v9418 = vpop.xlane.xlu0 %9417
        %v9419 = vsel %vm2033, %v9297, 0.0
        %9420 = vadd.xlane.f32.xlu0 %v9419
        %v9421 = vpop.xlane.xlu0 %9420
        %v9422 = vsel %vm2033, %v9299, 0.0
        %9423 = vadd.xlane.f32.xlu0 %v9422
        %v9424 = vpop.xlane.xlu0 %9423
        %v9425 = vsel %vm2033, %v9301, 0.0
        %9426 = vadd.xlane.f32.xlu0 %v9425
        %v9427 = vpop.xlane.xlu0 %9426
        %v9428 = vsel %vm2033, %v9303, 0.0
        %9429 = vadd.xlane.f32.xlu0 %v9428
        %v9430 = vpop.xlane.xlu0 %9429
        %v9431 = vsel %vm2033, %v9305, 0.0
        %9432 = vadd.xlane.f32.xlu0 %v9431
        %v9433 = vpop.xlane.xlu0 %9432
        %v9466 = vlaneseq
        %v9467 = vshrl.u32 %v9466, 7
        %v9468 = vsub.s32 %v492, %v9467
        %v9469 = vrot.slane %v9340, %v9468
        %v9470 = vlaneseq
        %v9471 = vshrl.u32 %v9470, 7
        %v9472 = vsub.s32 %v2884, %v9471
        %v9473 = vrot.slane %v9343, %v9472
        %v9474 = vsel %vm2889, %v9473, %v9469
        %v9475 = vlaneseq
        %v9476 = vshrl.u32 %v9475, 7
        %v9477 = vsub.s32 %v492, %v9476
        %v9478 = vrot.slane %v9346, %v9477
        %v9479 = vlaneseq
        %v9480 = vshrl.u32 %v9479, 7
        %v9481 = vsub.s32 %v2884, %v9480
        %v9482 = vrot.slane %v9349, %v9481
        %v9483 = vsel %vm2889, %v9482, %v9478
        %v9484 = vlaneseq
        %v9485 = vshrl.u32 %v9484, 7
        %v9486 = vsub.s32 %v492, %v9485
        %v9487 = vrot.slane %v9352, %v9486
        %v9488 = vlaneseq
        %v9489 = vshrl.u32 %v9488, 7
        %v9490 = vsub.s32 %v2884, %v9489
        %v9491 = vrot.slane %v9355, %v9490
        %v9492 = vsel %vm2889, %v9491, %v9487
        %v9493 = vlaneseq
        %v9494 = vshrl.u32 %v9493, 7
        %v9495 = vsub.s32 %v492, %v9494
        %v9496 = vrot.slane %v9358, %v9495
        %v9497 = vlaneseq
        %v9498 = vshrl.u32 %v9497, 7
        %v9499 = vsub.s32 %v2884, %v9498
        %v9500 = vrot.slane %v9361, %v9499
        %v9501 = vsel %vm2889, %v9500, %v9496
        %v9502 = vlaneseq
        %v9503 = vshrl.u32 %v9502, 7
        %v9504 = vsub.s32 %v492, %v9503
        %v9505 = vrot.slane %v9364, %v9504
        %v9506 = vlaneseq
        %v9507 = vshrl.u32 %v9506, 7
        %v9508 = vsub.s32 %v2884, %v9507
        %v9509 = vrot.slane %v9367, %v9508
        %v9510 = vsel %vm2889, %v9509, %v9505
        %v9511 = vlaneseq
        %v9512 = vshrl.u32 %v9511, 7
        %v9513 = vsub.s32 %v492, %v9512
        %v9514 = vrot.slane %v9370, %v9513
        %v9515 = vlaneseq
        %v9516 = vshrl.u32 %v9515, 7
        %v9517 = vsub.s32 %v2884, %v9516
        %v9518 = vrot.slane %v9373, %v9517
        %v9519 = vsel %vm2889, %v9518, %v9514
        %v9520 = vlaneseq
        %v9521 = vshrl.u32 %v9520, 7
        %v9522 = vsub.s32 %v492, %v9521
        %v9523 = vrot.slane %v9376, %v9522
        %v9524 = vlaneseq
        %v9525 = vshrl.u32 %v9524, 7
        %v9526 = vsub.s32 %v2884, %v9525
        %v9527 = vrot.slane %v9379, %v9526
        %v9528 = vsel %vm2889, %v9527, %v9523
        %v9529 = vlaneseq
        %v9530 = vshrl.u32 %v9529, 7
        %v9531 = vsub.s32 %v492, %v9530
        %v9532 = vrot.slane %v9382, %v9531
        %v9533 = vlaneseq
        %v9534 = vshrl.u32 %v9533, 7
        %v9535 = vsub.s32 %v2884, %v9534
        %v9536 = vrot.slane %v9385, %v9535
        %v9537 = vsel %vm2889, %v9536, %v9532
        %v9538 = vlaneseq
        %v9539 = vshrl.u32 %v9538, 7
        %v9540 = vsub.s32 %v492, %v9539
        %v9541 = vrot.slane %v9388, %v9540
        %v9542 = vlaneseq
        %v9543 = vshrl.u32 %v9542, 7
        %v9544 = vsub.s32 %v2884, %v9543
        %v9545 = vrot.slane %v9391, %v9544
        %v9546 = vsel %vm2889, %v9545, %v9541
        %v9547 = vlaneseq
        %v9548 = vshrl.u32 %v9547, 7
        %v9549 = vsub.s32 %v492, %v9548
        %v9550 = vrot.slane %v9394, %v9549
        %v9551 = vlaneseq
        %v9552 = vshrl.u32 %v9551, 7
        %v9553 = vsub.s32 %v2884, %v9552
        %v9554 = vrot.slane %v9397, %v9553
        %v9555 = vsel %vm2889, %v9554, %v9550
        %v9556 = vlaneseq
        %v9557 = vshrl.u32 %v9556, 7
        %v9558 = vsub.s32 %v492, %v9557
        %v9559 = vrot.slane %v9400, %v9558
        %v9560 = vlaneseq
        %v9561 = vshrl.u32 %v9560, 7
        %v9562 = vsub.s32 %v2884, %v9561
        %v9563 = vrot.slane %v9403, %v9562
        %v9564 = vsel %vm2889, %v9563, %v9559
        %v9565 = vlaneseq
        %v9566 = vshrl.u32 %v9565, 7
        %v9567 = vsub.s32 %v492, %v9566
        %v9568 = vrot.slane %v9406, %v9567
        %v9569 = vlaneseq
        %v9570 = vshrl.u32 %v9569, 7
        %v9571 = vsub.s32 %v2884, %v9570
        %v9572 = vrot.slane %v9409, %v9571
        %v9573 = vsel %vm2889, %v9572, %v9568
        %v9574 = vlaneseq
        %v9575 = vshrl.u32 %v9574, 7
        %v9576 = vsub.s32 %v492, %v9575
        %v9577 = vrot.slane %v9412, %v9576
        %v9578 = vlaneseq
        %v9579 = vshrl.u32 %v9578, 7
        %v9580 = vsub.s32 %v2884, %v9579
        %v9581 = vrot.slane %v9415, %v9580
        %v9582 = vsel %vm2889, %v9581, %v9577
        %v9583 = vlaneseq
        %v9584 = vshrl.u32 %v9583, 7
        %v9585 = vsub.s32 %v492, %v9584
        %v9586 = vrot.slane %v9418, %v9585
        %v9587 = vlaneseq
        %v9588 = vshrl.u32 %v9587, 7
        %v9589 = vsub.s32 %v2884, %v9588
        %v9590 = vrot.slane %v9421, %v9589
        %v9591 = vsel %vm2889, %v9590, %v9586
        %v9592 = vlaneseq
        %v9593 = vshrl.u32 %v9592, 7
        %v9594 = vsub.s32 %v492, %v9593
        %v9595 = vrot.slane %v9424, %v9594
        %v9596 = vlaneseq
        %v9597 = vshrl.u32 %v9596, 7
        %v9598 = vsub.s32 %v2884, %v9597
        %v9599 = vrot.slane %v9427, %v9598
        %v9600 = vsel %vm2889, %v9599, %v9595
        %v9601 = vlaneseq
        %v9602 = vshrl.u32 %v9601, 7
        %v9603 = vsub.s32 %v492, %v9602
        %v9604 = vrot.slane %v9430, %v9603
        %v9605 = vlaneseq
        %v9606 = vshrl.u32 %v9605, 7
        %v9607 = vsub.s32 %v2884, %v9606
        %v9608 = vrot.slane %v9433, %v9607
        %v9609 = vsel %vm2889, %v9608, %v9604
        %v9610 = vsel %vm3026, %v9483, %v9474
        %v9611 = vsel %vm3028, %v9492, %v9610
        %v9612 = vsel %vm3030, %v9501, %v9611
        %v9613 = vsel %vm3032, %v9510, %v9612
        %v9614 = vsel %vm3034, %v9519, %v9613
        %v9615 = vsel %vm3036, %v9528, %v9614
        %v9616 = vsel %vm3038, %v9537, %v9615
        %v9617 = vsel %vm3026, %v9555, %v9546
        %v9618 = vsel %vm3028, %v9564, %v9617
        %v9619 = vsel %vm3030, %v9573, %v9618
        %v9620 = vsel %vm3032, %v9582, %v9619
        %v9621 = vsel %vm3034, %v9591, %v9620
        %v9622 = vsel %vm3036, %v9600, %v9621
        %v9623 = vsel %vm3038, %v9609, %v9622
        %v9626 = vsel %vm1521, %v9616, -inf
        %9627 = vmax.xlane.f32.xlu0 %v9626
        %v9628 = vpop.xlane.xlu0 %9627
        %v9629 = vsel %vm1521, %v9623, -inf
        %9630 = vmax.xlane.f32.xlu0 %v9629
        %v9631 = vpop.xlane.xlu0 %9630
        %v9634 = vlaneseq
        %v9635 = vshrl.u32 %v9634, 7
        %v9636 = vsub.s32 0, %v9635
        %v9637 = vrot.slane %v9628, %v9636
        %v9638 = vlaneseq
        %v9639 = vshrl.u32 %v9638, 7
        %v9640 = vsub.s32 1, %v9639
        %v9641 = vrot.slane %v9628, %v9640
        %v9642 = vlaneseq
        %v9643 = vshrl.u32 %v9642, 7
        %v9644 = vsub.s32 2, %v9643
        %v9645 = vrot.slane %v9628, %v9644
        %v9646 = vlaneseq
        %v9647 = vshrl.u32 %v9646, 7
        %v9648 = vsub.s32 3, %v9647
        %v9649 = vrot.slane %v9628, %v9648
        %v9650 = vlaneseq
        %v9651 = vshrl.u32 %v9650, 7
        %v9652 = vsub.s32 4, %v9651
        %v9653 = vrot.slane %v9628, %v9652
        %v9654 = vlaneseq
        %v9655 = vshrl.u32 %v9654, 7
        %v9656 = vsub.s32 5, %v9655
        %v9657 = vrot.slane %v9628, %v9656
        %v9658 = vlaneseq
        %v9659 = vshrl.u32 %v9658, 7
        %v9660 = vsub.s32 6, %v9659
        %v9661 = vrot.slane %v9628, %v9660
        %v9662 = vlaneseq
        %v9663 = vshrl.u32 %v9662, 7
        %v9664 = vsub.s32 7, %v9663
        %v9665 = vrot.slane %v9628, %v9664
        %v9666 = vlaneseq
        %v9667 = vshrl.u32 %v9666, 7
        %v9668 = vsub.s32 0, %v9667
        %v9669 = vrot.slane %v9631, %v9668
        %v9670 = vlaneseq
        %v9671 = vshrl.u32 %v9670, 7
        %v9672 = vsub.s32 1, %v9671
        %v9673 = vrot.slane %v9631, %v9672
        %v9674 = vlaneseq
        %v9675 = vshrl.u32 %v9674, 7
        %v9676 = vsub.s32 2, %v9675
        %v9677 = vrot.slane %v9631, %v9676
        %v9678 = vlaneseq
        %v9679 = vshrl.u32 %v9678, 7
        %v9680 = vsub.s32 3, %v9679
        %v9681 = vrot.slane %v9631, %v9680
        %v9682 = vlaneseq
        %v9683 = vshrl.u32 %v9682, 7
        %v9684 = vsub.s32 4, %v9683
        %v9685 = vrot.slane %v9631, %v9684
        %v9686 = vlaneseq
        %v9687 = vshrl.u32 %v9686, 7
        %v9688 = vsub.s32 5, %v9687
        %v9689 = vrot.slane %v9631, %v9688
        %v9690 = vlaneseq
        %v9691 = vshrl.u32 %v9690, 7
        %v9692 = vsub.s32 6, %v9691
        %v9693 = vrot.slane %v9631, %v9692
        %v9694 = vlaneseq
        %v9695 = vshrl.u32 %v9694, 7
        %v9696 = vsub.s32 7, %v9695
        %v9697 = vrot.slane %v9631, %v9696
        %v9714 = vsub.f32 %v9340, %v9637
        %v9715 = vsub.f32 %v9343, %v9637
        %v9716 = vsub.f32 %v9346, %v9641
        %v9717 = vsub.f32 %v9349, %v9641
        %v9718 = vsub.f32 %v9352, %v9645
        %v9719 = vsub.f32 %v9355, %v9645
        %v9720 = vsub.f32 %v9358, %v9649
        %v9721 = vsub.f32 %v9361, %v9649
        %v9722 = vsub.f32 %v9364, %v9653
        %v9723 = vsub.f32 %v9367, %v9653
        %v9724 = vsub.f32 %v9370, %v9657
        %v9725 = vsub.f32 %v9373, %v9657
        %v9726 = vsub.f32 %v9376, %v9661
        %v9727 = vsub.f32 %v9379, %v9661
        %v9728 = vsub.f32 %v9382, %v9665
        %v9729 = vsub.f32 %v9385, %v9665
        %v9730 = vsub.f32 %v9388, %v9669
        %v9731 = vsub.f32 %v9391, %v9669
        %v9732 = vsub.f32 %v9394, %v9673
        %v9733 = vsub.f32 %v9397, %v9673
        %v9734 = vsub.f32 %v9400, %v9677
        %v9735 = vsub.f32 %v9403, %v9677
        %v9736 = vsub.f32 %v9406, %v9681
        %v9737 = vsub.f32 %v9409, %v9681
        %v9738 = vsub.f32 %v9412, %v9685
        %v9739 = vsub.f32 %v9415, %v9685
        %v9740 = vsub.f32 %v9418, %v9689
        %v9741 = vsub.f32 %v9421, %v9689
        %v9742 = vsub.f32 %v9424, %v9693
        %v9743 = vsub.f32 %v9427, %v9693
        %v9744 = vsub.f32 %v9430, %v9697
        %v9745 = vsub.f32 %v9433, %v9697
        %v9746 = vmul.f32 %v9714, 1.442695
        %v9747 = vpow.pop %v9746
        %v9748 = vmul.f32 %v9715, 1.442695
        %v9749 = vpow.pop %v9748
        %v9750 = vmul.f32 %v9716, 1.442695
        %v9751 = vpow.pop %v9750
        %v9752 = vmul.f32 %v9717, 1.442695
        %v9753 = vpow.pop %v9752
        %v9754 = vmul.f32 %v9718, 1.442695
        %v9755 = vpow.pop %v9754
        %v9756 = vmul.f32 %v9719, 1.442695
        %v9757 = vpow.pop %v9756
        %v9758 = vmul.f32 %v9720, 1.442695
        %v9759 = vpow.pop %v9758
        %v9760 = vmul.f32 %v9721, 1.442695
        %v9761 = vpow.pop %v9760
        %v9762 = vmul.f32 %v9722, 1.442695
        %v9763 = vpow.pop %v9762
        %v9764 = vmul.f32 %v9723, 1.442695
        %v9765 = vpow.pop %v9764
        %v9766 = vmul.f32 %v9724, 1.442695
        %v9767 = vpow.pop %v9766
        %v9768 = vmul.f32 %v9725, 1.442695
        %v9769 = vpow.pop %v9768
        %v9770 = vmul.f32 %v9726, 1.442695
        %v9771 = vpow.pop %v9770
        %v9772 = vmul.f32 %v9727, 1.442695
        %v9773 = vpow.pop %v9772
        %v9774 = vmul.f32 %v9728, 1.442695
        %v9775 = vpow.pop %v9774
        %v9776 = vmul.f32 %v9729, 1.442695
        %v9777 = vpow.pop %v9776
        %v9778 = vmul.f32 %v9730, 1.442695
        %v9779 = vpow.pop %v9778
        %v9780 = vmul.f32 %v9731, 1.442695
        %v9781 = vpow.pop %v9780
        %v9782 = vmul.f32 %v9732, 1.442695
        %v9783 = vpow.pop %v9782
        %v9784 = vmul.f32 %v9733, 1.442695
        %v9785 = vpow.pop %v9784
        %v9786 = vmul.f32 %v9734, 1.442695
        %v9787 = vpow.pop %v9786
        %v9788 = vmul.f32 %v9735, 1.442695
        %v9789 = vpow.pop %v9788
        %v9790 = vmul.f32 %v9736, 1.442695
        %v9791 = vpow.pop %v9790
        %v9792 = vmul.f32 %v9737, 1.442695
        %v9793 = vpow.pop %v9792
        %v9794 = vmul.f32 %v9738, 1.442695
        %v9795 = vpow.pop %v9794
        %v9796 = vmul.f32 %v9739, 1.442695
        %v9797 = vpow.pop %v9796
        %v9798 = vmul.f32 %v9740, 1.442695
        %v9799 = vpow.pop %v9798
        %v9800 = vmul.f32 %v9741, 1.442695
        %v9801 = vpow.pop %v9800
        %v9802 = vmul.f32 %v9742, 1.442695
        %v9803 = vpow.pop %v9802
        %v9804 = vmul.f32 %v9743, 1.442695
        %v9805 = vpow.pop %v9804
        %v9806 = vmul.f32 %v9744, 1.442695
        %v9807 = vpow.pop %v9806
        %v9808 = vmul.f32 %v9745, 1.442695
        %v9809 = vpow.pop %v9808
        %v9810 = vmul.f32 %v9747, %v3241
        %v9811 = vmul.f32 %v9749, %v3245
        %v9812 = vmul.f32 %v9751, %v3252
        %v9813 = vmul.f32 %v9753, %v3256
        %v9814 = vmul.f32 %v9755, %v3263
        %v9815 = vmul.f32 %v9757, %v3267
        %v9816 = vmul.f32 %v9759, %v3274
        %v9817 = vmul.f32 %v9761, %v3278
        %v9818 = vmul.f32 %v9763, %v3285
        %v9819 = vmul.f32 %v9765, %v3289
        %v9820 = vmul.f32 %v9767, %v3296
        %v9821 = vmul.f32 %v9769, %v3300
        %v9822 = vmul.f32 %v9771, %v3307
        %v9823 = vmul.f32 %v9773, %v3311
        %v9824 = vmul.f32 %v9775, %v3318
        %v9825 = vmul.f32 %v9777, %v3322
        %v9826 = vmul.f32 %v9779, %v3329
        %v9827 = vmul.f32 %v9781, %v3333
        %v9828 = vmul.f32 %v9783, %v3340
        %v9829 = vmul.f32 %v9785, %v3344
        %v9830 = vmul.f32 %v9787, %v3351
        %v9831 = vmul.f32 %v9789, %v3355
        %v9832 = vmul.f32 %v9791, %v3362
        %v9833 = vmul.f32 %v9793, %v3366
        %v9834 = vmul.f32 %v9795, %v3373
        %v9835 = vmul.f32 %v9797, %v3377
        %v9836 = vmul.f32 %v9799, %v3384
        %v9837 = vmul.f32 %v9801, %v3388
        %v9838 = vmul.f32 %v9803, %v3395
        %v9839 = vmul.f32 %v9805, %v3399
        %v9840 = vmul.f32 %v9807, %v3406
        %v9841 = vmul.f32 %v9809, %v3410
        %9874 = vset.pattern.permute.xlu0 0
        %9875 = vperm.xlu0 %9874, %v9810
        %v9876 = vpop.permute.xlu0 %9875
        %9877 = vset.pattern.permute.xlu0 0
        %9878 = vperm.xlu0 %9877, %v9811
        %v9879 = vpop.permute.xlu0 %9878
        %9880 = vset.pattern.permute.xlu0 0
        %9881 = vperm.xlu0 %9880, %v9812
        %v9882 = vpop.permute.xlu0 %9881
        %9883 = vset.pattern.permute.xlu0 0
        %9884 = vperm.xlu0 %9883, %v9813
        %v9885 = vpop.permute.xlu0 %9884
        %9886 = vset.pattern.permute.xlu0 0
        %9887 = vperm.xlu0 %9886, %v9814
        %v9888 = vpop.permute.xlu0 %9887
        %9889 = vset.pattern.permute.xlu0 0
        %9890 = vperm.xlu0 %9889, %v9815
        %v9891 = vpop.permute.xlu0 %9890
        %9892 = vset.pattern.permute.xlu0 0
        %9893 = vperm.xlu0 %9892, %v9816
        %v9894 = vpop.permute.xlu0 %9893
        %9895 = vset.pattern.permute.xlu0 0
        %9896 = vperm.xlu0 %9895, %v9817
        %v9897 = vpop.permute.xlu0 %9896
        %9898 = vset.pattern.permute.xlu0 0
        %9899 = vperm.xlu0 %9898, %v9818
        %v9900 = vpop.permute.xlu0 %9899
        %9901 = vset.pattern.permute.xlu0 0
        %9902 = vperm.xlu0 %9901, %v9819
        %v9903 = vpop.permute.xlu0 %9902
        %9904 = vset.pattern.permute.xlu0 0
        %9905 = vperm.xlu0 %9904, %v9820
        %v9906 = vpop.permute.xlu0 %9905
        %9907 = vset.pattern.permute.xlu0 0
        %9908 = vperm.xlu0 %9907, %v9821
        %v9909 = vpop.permute.xlu0 %9908
        %9910 = vset.pattern.permute.xlu0 0
        %9911 = vperm.xlu0 %9910, %v9822
        %v9912 = vpop.permute.xlu0 %9911
        %9913 = vset.pattern.permute.xlu0 0
        %9914 = vperm.xlu0 %9913, %v9823
        %v9915 = vpop.permute.xlu0 %9914
        %9916 = vset.pattern.permute.xlu0 0
        %9917 = vperm.xlu0 %9916, %v9824
        %v9918 = vpop.permute.xlu0 %9917
        %9919 = vset.pattern.permute.xlu0 0
        %9920 = vperm.xlu0 %9919, %v9825
        %v9921 = vpop.permute.xlu0 %9920
        %9922 = vset.pattern.permute.xlu0 0
        %9923 = vperm.xlu0 %9922, %v9826
        %v9924 = vpop.permute.xlu0 %9923
        %9925 = vset.pattern.permute.xlu0 0
        %9926 = vperm.xlu0 %9925, %v9827
        %v9927 = vpop.permute.xlu0 %9926
        %9928 = vset.pattern.permute.xlu0 0
        %9929 = vperm.xlu0 %9928, %v9828
        %v9930 = vpop.permute.xlu0 %9929
        %9931 = vset.pattern.permute.xlu0 0
        %9932 = vperm.xlu0 %9931, %v9829
        %v9933 = vpop.permute.xlu0 %9932
        %9934 = vset.pattern.permute.xlu0 0
        %9935 = vperm.xlu0 %9934, %v9830
        %v9936 = vpop.permute.xlu0 %9935
        %9937 = vset.pattern.permute.xlu0 0
        %9938 = vperm.xlu0 %9937, %v9831
        %v9939 = vpop.permute.xlu0 %9938
        %9940 = vset.pattern.permute.xlu0 0
        %9941 = vperm.xlu0 %9940, %v9832
        %v9942 = vpop.permute.xlu0 %9941
        %9943 = vset.pattern.permute.xlu0 0
        %9944 = vperm.xlu0 %9943, %v9833
        %v9945 = vpop.permute.xlu0 %9944
        %9946 = vset.pattern.permute.xlu0 0
        %9947 = vperm.xlu0 %9946, %v9834
        %v9948 = vpop.permute.xlu0 %9947
        %9949 = vset.pattern.permute.xlu0 0
        %9950 = vperm.xlu0 %9949, %v9835
        %v9951 = vpop.permute.xlu0 %9950
        %9952 = vset.pattern.permute.xlu0 0
        %9953 = vperm.xlu0 %9952, %v9836
        %v9954 = vpop.permute.xlu0 %9953
        %9955 = vset.pattern.permute.xlu0 0
        %9956 = vperm.xlu0 %9955, %v9837
        %v9957 = vpop.permute.xlu0 %9956
        %9958 = vset.pattern.permute.xlu0 0
        %9959 = vperm.xlu0 %9958, %v9838
        %v9960 = vpop.permute.xlu0 %9959
        %9961 = vset.pattern.permute.xlu0 0
        %9962 = vperm.xlu0 %9961, %v9839
        %v9963 = vpop.permute.xlu0 %9962
        %9964 = vset.pattern.permute.xlu0 0
        %9965 = vperm.xlu0 %9964, %v9840
        %v9966 = vpop.permute.xlu0 %9965
        %9967 = vset.pattern.permute.xlu0 0
        %9968 = vperm.xlu0 %9967, %v9841
        %v9969 = vpop.permute.xlu0 %9968
        %v9970 = vlaneseq
        %v9971 = vshrl.u32 %v9970, 7
        %v9972 = vsub.s32 %v492, %v9971
        %v9973 = vrot.slane %v9876, %v9972
        %v9974 = vlaneseq
        %v9975 = vshrl.u32 %v9974, 7
        %v9976 = vsub.s32 %v2884, %v9975
        %v9977 = vrot.slane %v9879, %v9976
        %v9978 = vsel %vm2889, %v9977, %v9973
        %v9979 = vlaneseq
        %v9980 = vshrl.u32 %v9979, 7
        %v9981 = vsub.s32 %v492, %v9980
        %v9982 = vrot.slane %v9882, %v9981
        %v9983 = vlaneseq
        %v9984 = vshrl.u32 %v9983, 7
        %v9985 = vsub.s32 %v2884, %v9984
        %v9986 = vrot.slane %v9885, %v9985
        %v9987 = vsel %vm2889, %v9986, %v9982
        %v9988 = vlaneseq
        %v9989 = vshrl.u32 %v9988, 7
        %v9990 = vsub.s32 %v492, %v9989
        %v9991 = vrot.slane %v9888, %v9990
        %v9992 = vlaneseq
        %v9993 = vshrl.u32 %v9992, 7
        %v9994 = vsub.s32 %v2884, %v9993
        %v9995 = vrot.slane %v9891, %v9994
        %v9996 = vsel %vm2889, %v9995, %v9991
        %v9997 = vlaneseq
        %v9998 = vshrl.u32 %v9997, 7
        %v9999 = vsub.s32 %v492, %v9998
        %v10000 = vrot.slane %v9894, %v9999
        %v10001 = vlaneseq
        %v10002 = vshrl.u32 %v10001, 7
        %v10003 = vsub.s32 %v2884, %v10002
        %v10004 = vrot.slane %v9897, %v10003
        %v10005 = vsel %vm2889, %v10004, %v10000
        %v10006 = vlaneseq
        %v10007 = vshrl.u32 %v10006, 7
        %v10008 = vsub.s32 %v492, %v10007
        %v10009 = vrot.slane %v9900, %v10008
        %v10010 = vlaneseq
        %v10011 = vshrl.u32 %v10010, 7
        %v10012 = vsub.s32 %v2884, %v10011
        %v10013 = vrot.slane %v9903, %v10012
        %v10014 = vsel %vm2889, %v10013, %v10009
        %v10015 = vlaneseq
        %v10016 = vshrl.u32 %v10015, 7
        %v10017 = vsub.s32 %v492, %v10016
        %v10018 = vrot.slane %v9906, %v10017
        %v10019 = vlaneseq
        %v10020 = vshrl.u32 %v10019, 7
        %v10021 = vsub.s32 %v2884, %v10020
        %v10022 = vrot.slane %v9909, %v10021
        %v10023 = vsel %vm2889, %v10022, %v10018
        %v10024 = vlaneseq
        %v10025 = vshrl.u32 %v10024, 7
        %v10026 = vsub.s32 %v492, %v10025
        %v10027 = vrot.slane %v9912, %v10026
        %v10028 = vlaneseq
        %v10029 = vshrl.u32 %v10028, 7
        %v10030 = vsub.s32 %v2884, %v10029
        %v10031 = vrot.slane %v9915, %v10030
        %v10032 = vsel %vm2889, %v10031, %v10027
        %v10033 = vlaneseq
        %v10034 = vshrl.u32 %v10033, 7
        %v10035 = vsub.s32 %v492, %v10034
        %v10036 = vrot.slane %v9918, %v10035
        %v10037 = vlaneseq
        %v10038 = vshrl.u32 %v10037, 7
        %v10039 = vsub.s32 %v2884, %v10038
        %v10040 = vrot.slane %v9921, %v10039
        %v10041 = vsel %vm2889, %v10040, %v10036
        %v10042 = vlaneseq
        %v10043 = vshrl.u32 %v10042, 7
        %v10044 = vsub.s32 %v492, %v10043
        %v10045 = vrot.slane %v9924, %v10044
        %v10046 = vlaneseq
        %v10047 = vshrl.u32 %v10046, 7
        %v10048 = vsub.s32 %v2884, %v10047
        %v10049 = vrot.slane %v9927, %v10048
        %v10050 = vsel %vm2889, %v10049, %v10045
        %v10051 = vlaneseq
        %v10052 = vshrl.u32 %v10051, 7
        %v10053 = vsub.s32 %v492, %v10052
        %v10054 = vrot.slane %v9930, %v10053
        %v10055 = vlaneseq
        %v10056 = vshrl.u32 %v10055, 7
        %v10057 = vsub.s32 %v2884, %v10056
        %v10058 = vrot.slane %v9933, %v10057
        %v10059 = vsel %vm2889, %v10058, %v10054
        %v10060 = vlaneseq
        %v10061 = vshrl.u32 %v10060, 7
        %v10062 = vsub.s32 %v492, %v10061
        %v10063 = vrot.slane %v9936, %v10062
        %v10064 = vlaneseq
        %v10065 = vshrl.u32 %v10064, 7
        %v10066 = vsub.s32 %v2884, %v10065
        %v10067 = vrot.slane %v9939, %v10066
        %v10068 = vsel %vm2889, %v10067, %v10063
        %v10069 = vlaneseq
        %v10070 = vshrl.u32 %v10069, 7
        %v10071 = vsub.s32 %v492, %v10070
        %v10072 = vrot.slane %v9942, %v10071
        %v10073 = vlaneseq
        %v10074 = vshrl.u32 %v10073, 7
        %v10075 = vsub.s32 %v2884, %v10074
        %v10076 = vrot.slane %v9945, %v10075
        %v10077 = vsel %vm2889, %v10076, %v10072
        %v10078 = vlaneseq
        %v10079 = vshrl.u32 %v10078, 7
        %v10080 = vsub.s32 %v492, %v10079
        %v10081 = vrot.slane %v9948, %v10080
        %v10082 = vlaneseq
        %v10083 = vshrl.u32 %v10082, 7
        %v10084 = vsub.s32 %v2884, %v10083
        %v10085 = vrot.slane %v9951, %v10084
        %v10086 = vsel %vm2889, %v10085, %v10081
        %v10087 = vlaneseq
        %v10088 = vshrl.u32 %v10087, 7
        %v10089 = vsub.s32 %v492, %v10088
        %v10090 = vrot.slane %v9954, %v10089
        %v10091 = vlaneseq
        %v10092 = vshrl.u32 %v10091, 7
        %v10093 = vsub.s32 %v2884, %v10092
        %v10094 = vrot.slane %v9957, %v10093
        %v10095 = vsel %vm2889, %v10094, %v10090
        %v10096 = vlaneseq
        %v10097 = vshrl.u32 %v10096, 7
        %v10098 = vsub.s32 %v492, %v10097
        %v10099 = vrot.slane %v9960, %v10098
        %v10100 = vlaneseq
        %v10101 = vshrl.u32 %v10100, 7
        %v10102 = vsub.s32 %v2884, %v10101
        %v10103 = vrot.slane %v9963, %v10102
        %v10104 = vsel %vm2889, %v10103, %v10099
        %v10105 = vlaneseq
        %v10106 = vshrl.u32 %v10105, 7
        %v10107 = vsub.s32 %v492, %v10106
        %v10108 = vrot.slane %v9966, %v10107
        %v10109 = vlaneseq
        %v10110 = vshrl.u32 %v10109, 7
        %v10111 = vsub.s32 %v2884, %v10110
        %v10112 = vrot.slane %v9969, %v10111
        %v10113 = vsel %vm2889, %v10112, %v10108
        %v10114 = vsel %vm3026, %v9987, %v9978
        %v10115 = vsel %vm3028, %v9996, %v10114
        %v10116 = vsel %vm3030, %v10005, %v10115
        %v10117 = vsel %vm3032, %v10014, %v10116
        %v10118 = vsel %vm3034, %v10023, %v10117
        %v10119 = vsel %vm3036, %v10032, %v10118
        %v10120 = vsel %vm3038, %v10041, %v10119
        %v10121 = vsel %vm3026, %v10059, %v10050
        %v10122 = vsel %vm3028, %v10068, %v10121
        %v10123 = vsel %vm3030, %v10077, %v10122
        %v10124 = vsel %vm3032, %v10086, %v10123
        %v10125 = vsel %vm3034, %v10095, %v10124
        %v10126 = vsel %vm3036, %v10104, %v10125
        %v10127 = vsel %vm3038, %v10113, %v10126
        %v10130 = vsel %vm1521, %v10120, 0.0
        %10131 = vadd.xlane.f32.xlu0 %v10130
        %v10132 = vpop.xlane.xlu0 %10131
        %v10133 = vsel %vm1521, %v10127, 0.0
        %10134 = vadd.xlane.f32.xlu0 %v10133
        %v10135 = vpop.xlane.xlu0 %10134
        %v10136 = vrcp.pop %v10132
        %v10137 = vrcp.pop %v10135
        %v10140 = vlaneseq
        %v10141 = vshrl.u32 %v10140, 7
        %v10142 = vsub.s32 0, %v10141
        %v10143 = vrot.slane %v10136, %v10142
        %v10144 = vlaneseq
        %v10145 = vshrl.u32 %v10144, 7
        %v10146 = vsub.s32 1, %v10145
        %v10147 = vrot.slane %v10136, %v10146
        %v10148 = vlaneseq
        %v10149 = vshrl.u32 %v10148, 7
        %v10150 = vsub.s32 2, %v10149
        %v10151 = vrot.slane %v10136, %v10150
        %v10152 = vlaneseq
        %v10153 = vshrl.u32 %v10152, 7
        %v10154 = vsub.s32 3, %v10153
        %v10155 = vrot.slane %v10136, %v10154
        %v10156 = vlaneseq
        %v10157 = vshrl.u32 %v10156, 7
        %v10158 = vsub.s32 4, %v10157
        %v10159 = vrot.slane %v10136, %v10158
        %v10160 = vlaneseq
        %v10161 = vshrl.u32 %v10160, 7
        %v10162 = vsub.s32 5, %v10161
        %v10163 = vrot.slane %v10136, %v10162
        %v10164 = vlaneseq
        %v10165 = vshrl.u32 %v10164, 7
        %v10166 = vsub.s32 6, %v10165
        %v10167 = vrot.slane %v10136, %v10166
        %v10168 = vlaneseq
        %v10169 = vshrl.u32 %v10168, 7
        %v10170 = vsub.s32 7, %v10169
        %v10171 = vrot.slane %v10136, %v10170
        %v10172 = vlaneseq
        %v10173 = vshrl.u32 %v10172, 7
        %v10174 = vsub.s32 0, %v10173
        %v10175 = vrot.slane %v10137, %v10174
        %v10176 = vlaneseq
        %v10177 = vshrl.u32 %v10176, 7
        %v10178 = vsub.s32 1, %v10177
        %v10179 = vrot.slane %v10137, %v10178
        %v10180 = vlaneseq
        %v10181 = vshrl.u32 %v10180, 7
        %v10182 = vsub.s32 2, %v10181
        %v10183 = vrot.slane %v10137, %v10182
        %v10184 = vlaneseq
        %v10185 = vshrl.u32 %v10184, 7
        %v10186 = vsub.s32 3, %v10185
        %v10187 = vrot.slane %v10137, %v10186
        %v10188 = vlaneseq
        %v10189 = vshrl.u32 %v10188, 7
        %v10190 = vsub.s32 4, %v10189
        %v10191 = vrot.slane %v10137, %v10190
        %v10192 = vlaneseq
        %v10193 = vshrl.u32 %v10192, 7
        %v10194 = vsub.s32 5, %v10193
        %v10195 = vrot.slane %v10137, %v10194
        %v10196 = vlaneseq
        %v10197 = vshrl.u32 %v10196, 7
        %v10198 = vsub.s32 6, %v10197
        %v10199 = vrot.slane %v10137, %v10198
        %v10200 = vlaneseq
        %v10201 = vshrl.u32 %v10200, 7
        %v10202 = vsub.s32 7, %v10201
        %v10203 = vrot.slane %v10137, %v10202
        %v10220 = vmul.f32 %v9810, %v10143
        %v10221 = vmul.f32 %v9811, %v10143
        %v10222 = vmul.f32 %v9812, %v10147
        %v10223 = vmul.f32 %v9813, %v10147
        %v10224 = vmul.f32 %v9814, %v10151
        %v10225 = vmul.f32 %v9815, %v10151
        %v10226 = vmul.f32 %v9816, %v10155
        %v10227 = vmul.f32 %v9817, %v10155
        %v10228 = vmul.f32 %v9818, %v10159
        %v10229 = vmul.f32 %v9819, %v10159
        %v10230 = vmul.f32 %v9820, %v10163
        %v10231 = vmul.f32 %v9821, %v10163
        %v10232 = vmul.f32 %v9822, %v10167
        %v10233 = vmul.f32 %v9823, %v10167
        %v10234 = vmul.f32 %v9824, %v10171
        %v10235 = vmul.f32 %v9825, %v10171
        %v10236 = vmul.f32 %v9826, %v10175
        %v10237 = vmul.f32 %v9827, %v10175
        %v10238 = vmul.f32 %v9828, %v10179
        %v10239 = vmul.f32 %v9829, %v10179
        %v10240 = vmul.f32 %v9830, %v10183
        %v10241 = vmul.f32 %v9831, %v10183
        %v10242 = vmul.f32 %v9832, %v10187
        %v10243 = vmul.f32 %v9833, %v10187
        %v10244 = vmul.f32 %v9834, %v10191
        %v10245 = vmul.f32 %v9835, %v10191
        %v10246 = vmul.f32 %v9836, %v10195
        %v10247 = vmul.f32 %v9837, %v10195
        %v10248 = vmul.f32 %v9838, %v10199
        %v10249 = vmul.f32 %v9839, %v10199
        %v10250 = vmul.f32 %v9840, %v10203
        %v10251 = vmul.f32 %v9841, %v10203
        %10252 = vrot.lane.b32.xlu0 %v9178, 32
        %v10253 = vpop.permute.xlu0 %10252
        %10254 = vrot.lane.b32.xlu0 %v9179, 32
        %v10255 = vpop.permute.xlu0 %10254
        %10256 = vrot.lane.b32.xlu0 %v9180, 32
        %v10257 = vpop.permute.xlu0 %10256
        %10258 = vrot.lane.b32.xlu0 %v9181, 32
        %v10259 = vpop.permute.xlu0 %10258
        %10260 = vrot.lane.b32.xlu0 %v9182, 32
        %v10261 = vpop.permute.xlu0 %10260
        %10262 = vrot.lane.b32.xlu0 %v9183, 32
        %v10263 = vpop.permute.xlu0 %10262
        %10264 = vrot.lane.b32.xlu0 %v9184, 32
        %v10265 = vpop.permute.xlu0 %10264
        %10266 = vrot.lane.b32.xlu0 %v9185, 32
        %v10267 = vpop.permute.xlu0 %10266
        %10268 = vrot.lane.b32.xlu0 %v9186, 32
        %v10269 = vpop.permute.xlu0 %10268
        %10270 = vrot.lane.b32.xlu0 %v9187, 32
        %v10271 = vpop.permute.xlu0 %10270
        %10272 = vrot.lane.b32.xlu0 %v9188, 32
        %v10273 = vpop.permute.xlu0 %10272
        %10274 = vrot.lane.b32.xlu0 %v9189, 32
        %v10275 = vpop.permute.xlu0 %10274
        %10276 = vrot.lane.b32.xlu0 %v9190, 32
        %v10277 = vpop.permute.xlu0 %10276
        %10278 = vrot.lane.b32.xlu0 %v9191, 32
        %v10279 = vpop.permute.xlu0 %10278
        %10280 = vrot.lane.b32.xlu0 %v9192, 32
        %v10281 = vpop.permute.xlu0 %10280
        %10282 = vrot.lane.b32.xlu0 %v9193, 32
        %v10283 = vpop.permute.xlu0 %10282
        %10284 = vrot.lane.b32.xlu0 %v9194, 32
        %v10285 = vpop.permute.xlu0 %10284
        %10286 = vrot.lane.b32.xlu0 %v9195, 32
        %v10287 = vpop.permute.xlu0 %10286
        %10288 = vrot.lane.b32.xlu0 %v9196, 32
        %v10289 = vpop.permute.xlu0 %10288
        %10290 = vrot.lane.b32.xlu0 %v9197, 32
        %v10291 = vpop.permute.xlu0 %10290
        %10292 = vrot.lane.b32.xlu0 %v9198, 32
        %v10293 = vpop.permute.xlu0 %10292
        %10294 = vrot.lane.b32.xlu0 %v9199, 32
        %v10295 = vpop.permute.xlu0 %10294
        %10296 = vrot.lane.b32.xlu0 %v9200, 32
        %v10297 = vpop.permute.xlu0 %10296
        %10298 = vrot.lane.b32.xlu0 %v9201, 32
        %v10299 = vpop.permute.xlu0 %10298
        %10300 = vrot.lane.b32.xlu0 %v9202, 32
        %v10301 = vpop.permute.xlu0 %10300
        %10302 = vrot.lane.b32.xlu0 %v9203, 32
        %v10303 = vpop.permute.xlu0 %10302
        %10304 = vrot.lane.b32.xlu0 %v9204, 32
        %v10305 = vpop.permute.xlu0 %10304
        %10306 = vrot.lane.b32.xlu0 %v9205, 32
        %v10307 = vpop.permute.xlu0 %10306
        %10308 = vrot.lane.b32.xlu0 %v9206, 32
        %v10309 = vpop.permute.xlu0 %10308
        %10310 = vrot.lane.b32.xlu0 %v9207, 32
        %v10311 = vpop.permute.xlu0 %10310
        %10312 = vrot.lane.b32.xlu0 %v9208, 32
        %v10313 = vpop.permute.xlu0 %10312
        %10314 = vrot.lane.b32.xlu0 %v9209, 32
        %v10315 = vpop.permute.xlu0 %10314
        %v10348 = vsel %vm2033, %v10253, 0.0
        %10349 = vadd.xlane.f32.xlu0 %v10348
        %v10350 = vpop.xlane.xlu0 %10349
        %v10351 = vsel %vm2033, %v10255, 0.0
        %10352 = vadd.xlane.f32.xlu0 %v10351
        %v10353 = vpop.xlane.xlu0 %10352
        %v10354 = vsel %vm2033, %v10257, 0.0
        %10355 = vadd.xlane.f32.xlu0 %v10354
        %v10356 = vpop.xlane.xlu0 %10355
        %v10357 = vsel %vm2033, %v10259, 0.0
        %10358 = vadd.xlane.f32.xlu0 %v10357
        %v10359 = vpop.xlane.xlu0 %10358
        %v10360 = vsel %vm2033, %v10261, 0.0
        %10361 = vadd.xlane.f32.xlu0 %v10360
        %v10362 = vpop.xlane.xlu0 %10361
        %v10363 = vsel %vm2033, %v10263, 0.0
        %10364 = vadd.xlane.f32.xlu0 %v10363
        %v10365 = vpop.xlane.xlu0 %10364
        %v10366 = vsel %vm2033, %v10265, 0.0
        %10367 = vadd.xlane.f32.xlu0 %v10366
        %v10368 = vpop.xlane.xlu0 %10367
        %v10369 = vsel %vm2033, %v10267, 0.0
        %10370 = vadd.xlane.f32.xlu0 %v10369
        %v10371 = vpop.xlane.xlu0 %10370
        %v10372 = vsel %vm2033, %v10269, 0.0
        %10373 = vadd.xlane.f32.xlu0 %v10372
        %v10374 = vpop.xlane.xlu0 %10373
        %v10375 = vsel %vm2033, %v10271, 0.0
        %10376 = vadd.xlane.f32.xlu0 %v10375
        %v10377 = vpop.xlane.xlu0 %10376
        %v10378 = vsel %vm2033, %v10273, 0.0
        %10379 = vadd.xlane.f32.xlu0 %v10378
        %v10380 = vpop.xlane.xlu0 %10379
        %v10381 = vsel %vm2033, %v10275, 0.0
        %10382 = vadd.xlane.f32.xlu0 %v10381
        %v10383 = vpop.xlane.xlu0 %10382
        %v10384 = vsel %vm2033, %v10277, 0.0
        %10385 = vadd.xlane.f32.xlu0 %v10384
        %v10386 = vpop.xlane.xlu0 %10385
        %v10387 = vsel %vm2033, %v10279, 0.0
        %10388 = vadd.xlane.f32.xlu0 %v10387
        %v10389 = vpop.xlane.xlu0 %10388
        %v10390 = vsel %vm2033, %v10281, 0.0
        %10391 = vadd.xlane.f32.xlu0 %v10390
        %v10392 = vpop.xlane.xlu0 %10391
        %v10393 = vsel %vm2033, %v10283, 0.0
        %10394 = vadd.xlane.f32.xlu0 %v10393
        %v10395 = vpop.xlane.xlu0 %10394
        %v10396 = vsel %vm2033, %v10285, 0.0
        %10397 = vadd.xlane.f32.xlu0 %v10396
        %v10398 = vpop.xlane.xlu0 %10397
        %v10399 = vsel %vm2033, %v10287, 0.0
        %10400 = vadd.xlane.f32.xlu0 %v10399
        %v10401 = vpop.xlane.xlu0 %10400
        %v10402 = vsel %vm2033, %v10289, 0.0
        %10403 = vadd.xlane.f32.xlu0 %v10402
        %v10404 = vpop.xlane.xlu0 %10403
        %v10405 = vsel %vm2033, %v10291, 0.0
        %10406 = vadd.xlane.f32.xlu0 %v10405
        %v10407 = vpop.xlane.xlu0 %10406
        %v10408 = vsel %vm2033, %v10293, 0.0
        %10409 = vadd.xlane.f32.xlu0 %v10408
        %v10410 = vpop.xlane.xlu0 %10409
        %v10411 = vsel %vm2033, %v10295, 0.0
        %10412 = vadd.xlane.f32.xlu0 %v10411
        %v10413 = vpop.xlane.xlu0 %10412
        %v10414 = vsel %vm2033, %v10297, 0.0
        %10415 = vadd.xlane.f32.xlu0 %v10414
        %v10416 = vpop.xlane.xlu0 %10415
        %v10417 = vsel %vm2033, %v10299, 0.0
        %10418 = vadd.xlane.f32.xlu0 %v10417
        %v10419 = vpop.xlane.xlu0 %10418
        %v10420 = vsel %vm2033, %v10301, 0.0
        %10421 = vadd.xlane.f32.xlu0 %v10420
        %v10422 = vpop.xlane.xlu0 %10421
        %v10423 = vsel %vm2033, %v10303, 0.0
        %10424 = vadd.xlane.f32.xlu0 %v10423
        %v10425 = vpop.xlane.xlu0 %10424
        %v10426 = vsel %vm2033, %v10305, 0.0
        %10427 = vadd.xlane.f32.xlu0 %v10426
        %v10428 = vpop.xlane.xlu0 %10427
        %v10429 = vsel %vm2033, %v10307, 0.0
        %10430 = vadd.xlane.f32.xlu0 %v10429
        %v10431 = vpop.xlane.xlu0 %10430
        %v10432 = vsel %vm2033, %v10309, 0.0
        %10433 = vadd.xlane.f32.xlu0 %v10432
        %v10434 = vpop.xlane.xlu0 %10433
        %v10435 = vsel %vm2033, %v10311, 0.0
        %10436 = vadd.xlane.f32.xlu0 %v10435
        %v10437 = vpop.xlane.xlu0 %10436
        %v10438 = vsel %vm2033, %v10313, 0.0
        %10439 = vadd.xlane.f32.xlu0 %v10438
        %v10440 = vpop.xlane.xlu0 %10439
        %v10441 = vsel %vm2033, %v10315, 0.0
        %10442 = vadd.xlane.f32.xlu0 %v10441
        %v10443 = vpop.xlane.xlu0 %10442
        %v10476 = vlaneseq
        %v10477 = vshrl.u32 %v10476, 7
        %v10478 = vsub.s32 %v492, %v10477
        %v10479 = vrot.slane %v10350, %v10478
        %v10480 = vlaneseq
        %v10481 = vshrl.u32 %v10480, 7
        %v10482 = vsub.s32 %v2884, %v10481
        %v10483 = vrot.slane %v10353, %v10482
        %v10484 = vsel %vm2889, %v10483, %v10479
        %v10485 = vlaneseq
        %v10486 = vshrl.u32 %v10485, 7
        %v10487 = vsub.s32 %v492, %v10486
        %v10488 = vrot.slane %v10356, %v10487
        %v10489 = vlaneseq
        %v10490 = vshrl.u32 %v10489, 7
        %v10491 = vsub.s32 %v2884, %v10490
        %v10492 = vrot.slane %v10359, %v10491
        %v10493 = vsel %vm2889, %v10492, %v10488
        %v10494 = vlaneseq
        %v10495 = vshrl.u32 %v10494, 7
        %v10496 = vsub.s32 %v492, %v10495
        %v10497 = vrot.slane %v10362, %v10496
        %v10498 = vlaneseq
        %v10499 = vshrl.u32 %v10498, 7
        %v10500 = vsub.s32 %v2884, %v10499
        %v10501 = vrot.slane %v10365, %v10500
        %v10502 = vsel %vm2889, %v10501, %v10497
        %v10503 = vlaneseq
        %v10504 = vshrl.u32 %v10503, 7
        %v10505 = vsub.s32 %v492, %v10504
        %v10506 = vrot.slane %v10368, %v10505
        %v10507 = vlaneseq
        %v10508 = vshrl.u32 %v10507, 7
        %v10509 = vsub.s32 %v2884, %v10508
        %v10510 = vrot.slane %v10371, %v10509
        %v10511 = vsel %vm2889, %v10510, %v10506
        %v10512 = vlaneseq
        %v10513 = vshrl.u32 %v10512, 7
        %v10514 = vsub.s32 %v492, %v10513
        %v10515 = vrot.slane %v10374, %v10514
        %v10516 = vlaneseq
        %v10517 = vshrl.u32 %v10516, 7
        %v10518 = vsub.s32 %v2884, %v10517
        %v10519 = vrot.slane %v10377, %v10518
        %v10520 = vsel %vm2889, %v10519, %v10515
        %v10521 = vlaneseq
        %v10522 = vshrl.u32 %v10521, 7
        %v10523 = vsub.s32 %v492, %v10522
        %v10524 = vrot.slane %v10380, %v10523
        %v10525 = vlaneseq
        %v10526 = vshrl.u32 %v10525, 7
        %v10527 = vsub.s32 %v2884, %v10526
        %v10528 = vrot.slane %v10383, %v10527
        %v10529 = vsel %vm2889, %v10528, %v10524
        %v10530 = vlaneseq
        %v10531 = vshrl.u32 %v10530, 7
        %v10532 = vsub.s32 %v492, %v10531
        %v10533 = vrot.slane %v10386, %v10532
        %v10534 = vlaneseq
        %v10535 = vshrl.u32 %v10534, 7
        %v10536 = vsub.s32 %v2884, %v10535
        %v10537 = vrot.slane %v10389, %v10536
        %v10538 = vsel %vm2889, %v10537, %v10533
        %v10539 = vlaneseq
        %v10540 = vshrl.u32 %v10539, 7
        %v10541 = vsub.s32 %v492, %v10540
        %v10542 = vrot.slane %v10392, %v10541
        %v10543 = vlaneseq
        %v10544 = vshrl.u32 %v10543, 7
        %v10545 = vsub.s32 %v2884, %v10544
        %v10546 = vrot.slane %v10395, %v10545
        %v10547 = vsel %vm2889, %v10546, %v10542
        %v10548 = vlaneseq
        %v10549 = vshrl.u32 %v10548, 7
        %v10550 = vsub.s32 %v492, %v10549
        %v10551 = vrot.slane %v10398, %v10550
        %v10552 = vlaneseq
        %v10553 = vshrl.u32 %v10552, 7
        %v10554 = vsub.s32 %v2884, %v10553
        %v10555 = vrot.slane %v10401, %v10554
        %v10556 = vsel %vm2889, %v10555, %v10551
        %v10557 = vlaneseq
        %v10558 = vshrl.u32 %v10557, 7
        %v10559 = vsub.s32 %v492, %v10558
        %v10560 = vrot.slane %v10404, %v10559
        %v10561 = vlaneseq
        %v10562 = vshrl.u32 %v10561, 7
        %v10563 = vsub.s32 %v2884, %v10562
        %v10564 = vrot.slane %v10407, %v10563
        %v10565 = vsel %vm2889, %v10564, %v10560
        %v10566 = vlaneseq
        %v10567 = vshrl.u32 %v10566, 7
        %v10568 = vsub.s32 %v492, %v10567
        %v10569 = vrot.slane %v10410, %v10568
        %v10570 = vlaneseq
        %v10571 = vshrl.u32 %v10570, 7
        %v10572 = vsub.s32 %v2884, %v10571
        %v10573 = vrot.slane %v10413, %v10572
        %v10574 = vsel %vm2889, %v10573, %v10569
        %v10575 = vlaneseq
        %v10576 = vshrl.u32 %v10575, 7
        %v10577 = vsub.s32 %v492, %v10576
        %v10578 = vrot.slane %v10416, %v10577
        %v10579 = vlaneseq
        %v10580 = vshrl.u32 %v10579, 7
        %v10581 = vsub.s32 %v2884, %v10580
        %v10582 = vrot.slane %v10419, %v10581
        %v10583 = vsel %vm2889, %v10582, %v10578
        %v10584 = vlaneseq
        %v10585 = vshrl.u32 %v10584, 7
        %v10586 = vsub.s32 %v492, %v10585
        %v10587 = vrot.slane %v10422, %v10586
        %v10588 = vlaneseq
        %v10589 = vshrl.u32 %v10588, 7
        %v10590 = vsub.s32 %v2884, %v10589
        %v10591 = vrot.slane %v10425, %v10590
        %v10592 = vsel %vm2889, %v10591, %v10587
        %v10593 = vlaneseq
        %v10594 = vshrl.u32 %v10593, 7
        %v10595 = vsub.s32 %v492, %v10594
        %v10596 = vrot.slane %v10428, %v10595
        %v10597 = vlaneseq
        %v10598 = vshrl.u32 %v10597, 7
        %v10599 = vsub.s32 %v2884, %v10598
        %v10600 = vrot.slane %v10431, %v10599
        %v10601 = vsel %vm2889, %v10600, %v10596
        %v10602 = vlaneseq
        %v10603 = vshrl.u32 %v10602, 7
        %v10604 = vsub.s32 %v492, %v10603
        %v10605 = vrot.slane %v10434, %v10604
        %v10606 = vlaneseq
        %v10607 = vshrl.u32 %v10606, 7
        %v10608 = vsub.s32 %v2884, %v10607
        %v10609 = vrot.slane %v10437, %v10608
        %v10610 = vsel %vm2889, %v10609, %v10605
        %v10611 = vlaneseq
        %v10612 = vshrl.u32 %v10611, 7
        %v10613 = vsub.s32 %v492, %v10612
        %v10614 = vrot.slane %v10440, %v10613
        %v10615 = vlaneseq
        %v10616 = vshrl.u32 %v10615, 7
        %v10617 = vsub.s32 %v2884, %v10616
        %v10618 = vrot.slane %v10443, %v10617
        %v10619 = vsel %vm2889, %v10618, %v10614
        %v10620 = vsel %vm3026, %v10493, %v10484
        %v10621 = vsel %vm3028, %v10502, %v10620
        %v10622 = vsel %vm3030, %v10511, %v10621
        %v10623 = vsel %vm3032, %v10520, %v10622
        %v10624 = vsel %vm3034, %v10529, %v10623
        %v10625 = vsel %vm3036, %v10538, %v10624
        %v10626 = vsel %vm3038, %v10547, %v10625
        %v10627 = vsel %vm3026, %v10565, %v10556
        %v10628 = vsel %vm3028, %v10574, %v10627
        %v10629 = vsel %vm3030, %v10583, %v10628
        %v10630 = vsel %vm3032, %v10592, %v10629
        %v10631 = vsel %vm3034, %v10601, %v10630
        %v10632 = vsel %vm3036, %v10610, %v10631
        %v10633 = vsel %vm3038, %v10619, %v10632
        %v10636 = vsel %vm1521, %v10626, -inf
        %10637 = vmax.xlane.f32.xlu0 %v10636
        %v10638 = vpop.xlane.xlu0 %10637
        %v10639 = vsel %vm1521, %v10633, -inf
        %10640 = vmax.xlane.f32.xlu0 %v10639
        %v10641 = vpop.xlane.xlu0 %10640
        %v10644 = vlaneseq
        %v10645 = vshrl.u32 %v10644, 7
        %v10646 = vsub.s32 0, %v10645
        %v10647 = vrot.slane %v10638, %v10646
        %v10648 = vlaneseq
        %v10649 = vshrl.u32 %v10648, 7
        %v10650 = vsub.s32 1, %v10649
        %v10651 = vrot.slane %v10638, %v10650
        %v10652 = vlaneseq
        %v10653 = vshrl.u32 %v10652, 7
        %v10654 = vsub.s32 2, %v10653
        %v10655 = vrot.slane %v10638, %v10654
        %v10656 = vlaneseq
        %v10657 = vshrl.u32 %v10656, 7
        %v10658 = vsub.s32 3, %v10657
        %v10659 = vrot.slane %v10638, %v10658
        %v10660 = vlaneseq
        %v10661 = vshrl.u32 %v10660, 7
        %v10662 = vsub.s32 4, %v10661
        %v10663 = vrot.slane %v10638, %v10662
        %v10664 = vlaneseq
        %v10665 = vshrl.u32 %v10664, 7
        %v10666 = vsub.s32 5, %v10665
        %v10667 = vrot.slane %v10638, %v10666
        %v10668 = vlaneseq
        %v10669 = vshrl.u32 %v10668, 7
        %v10670 = vsub.s32 6, %v10669
        %v10671 = vrot.slane %v10638, %v10670
        %v10672 = vlaneseq
        %v10673 = vshrl.u32 %v10672, 7
        %v10674 = vsub.s32 7, %v10673
        %v10675 = vrot.slane %v10638, %v10674
        %v10676 = vlaneseq
        %v10677 = vshrl.u32 %v10676, 7
        %v10678 = vsub.s32 0, %v10677
        %v10679 = vrot.slane %v10641, %v10678
        %v10680 = vlaneseq
        %v10681 = vshrl.u32 %v10680, 7
        %v10682 = vsub.s32 1, %v10681
        %v10683 = vrot.slane %v10641, %v10682
        %v10684 = vlaneseq
        %v10685 = vshrl.u32 %v10684, 7
        %v10686 = vsub.s32 2, %v10685
        %v10687 = vrot.slane %v10641, %v10686
        %v10688 = vlaneseq
        %v10689 = vshrl.u32 %v10688, 7
        %v10690 = vsub.s32 3, %v10689
        %v10691 = vrot.slane %v10641, %v10690
        %v10692 = vlaneseq
        %v10693 = vshrl.u32 %v10692, 7
        %v10694 = vsub.s32 4, %v10693
        %v10695 = vrot.slane %v10641, %v10694
        %v10696 = vlaneseq
        %v10697 = vshrl.u32 %v10696, 7
        %v10698 = vsub.s32 5, %v10697
        %v10699 = vrot.slane %v10641, %v10698
        %v10700 = vlaneseq
        %v10701 = vshrl.u32 %v10700, 7
        %v10702 = vsub.s32 6, %v10701
        %v10703 = vrot.slane %v10641, %v10702
        %v10704 = vlaneseq
        %v10705 = vshrl.u32 %v10704, 7
        %v10706 = vsub.s32 7, %v10705
        %v10707 = vrot.slane %v10641, %v10706
        %v10724 = vsub.f32 %v10350, %v10647
        %v10725 = vsub.f32 %v10353, %v10647
        %v10726 = vsub.f32 %v10356, %v10651
        %v10727 = vsub.f32 %v10359, %v10651
        %v10728 = vsub.f32 %v10362, %v10655
        %v10729 = vsub.f32 %v10365, %v10655
        %v10730 = vsub.f32 %v10368, %v10659
        %v10731 = vsub.f32 %v10371, %v10659
        %v10732 = vsub.f32 %v10374, %v10663
        %v10733 = vsub.f32 %v10377, %v10663
        %v10734 = vsub.f32 %v10380, %v10667
        %v10735 = vsub.f32 %v10383, %v10667
        %v10736 = vsub.f32 %v10386, %v10671
        %v10737 = vsub.f32 %v10389, %v10671
        %v10738 = vsub.f32 %v10392, %v10675
        %v10739 = vsub.f32 %v10395, %v10675
        %v10740 = vsub.f32 %v10398, %v10679
        %v10741 = vsub.f32 %v10401, %v10679
        %v10742 = vsub.f32 %v10404, %v10683
        %v10743 = vsub.f32 %v10407, %v10683
        %v10744 = vsub.f32 %v10410, %v10687
        %v10745 = vsub.f32 %v10413, %v10687
        %v10746 = vsub.f32 %v10416, %v10691
        %v10747 = vsub.f32 %v10419, %v10691
        %v10748 = vsub.f32 %v10422, %v10695
        %v10749 = vsub.f32 %v10425, %v10695
        %v10750 = vsub.f32 %v10428, %v10699
        %v10751 = vsub.f32 %v10431, %v10699
        %v10752 = vsub.f32 %v10434, %v10703
        %v10753 = vsub.f32 %v10437, %v10703
        %v10754 = vsub.f32 %v10440, %v10707
        %v10755 = vsub.f32 %v10443, %v10707
        %v10756 = vmul.f32 %v10724, 1.442695
        %v10757 = vpow.pop %v10756
        %v10758 = vmul.f32 %v10725, 1.442695
        %v10759 = vpow.pop %v10758
        %v10760 = vmul.f32 %v10726, 1.442695
        %v10761 = vpow.pop %v10760
        %v10762 = vmul.f32 %v10727, 1.442695
        %v10763 = vpow.pop %v10762
        %v10764 = vmul.f32 %v10728, 1.442695
        %v10765 = vpow.pop %v10764
        %v10766 = vmul.f32 %v10729, 1.442695
        %v10767 = vpow.pop %v10766
        %v10768 = vmul.f32 %v10730, 1.442695
        %v10769 = vpow.pop %v10768
        %v10770 = vmul.f32 %v10731, 1.442695
        %v10771 = vpow.pop %v10770
        %v10772 = vmul.f32 %v10732, 1.442695
        %v10773 = vpow.pop %v10772
        %v10774 = vmul.f32 %v10733, 1.442695
        %v10775 = vpow.pop %v10774
        %v10776 = vmul.f32 %v10734, 1.442695
        %v10777 = vpow.pop %v10776
        %v10778 = vmul.f32 %v10735, 1.442695
        %v10779 = vpow.pop %v10778
        %v10780 = vmul.f32 %v10736, 1.442695
        %v10781 = vpow.pop %v10780
        %v10782 = vmul.f32 %v10737, 1.442695
        %v10783 = vpow.pop %v10782
        %v10784 = vmul.f32 %v10738, 1.442695
        %v10785 = vpow.pop %v10784
        %v10786 = vmul.f32 %v10739, 1.442695
        %v10787 = vpow.pop %v10786
        %v10788 = vmul.f32 %v10740, 1.442695
        %v10789 = vpow.pop %v10788
        %v10790 = vmul.f32 %v10741, 1.442695
        %v10791 = vpow.pop %v10790
        %v10792 = vmul.f32 %v10742, 1.442695
        %v10793 = vpow.pop %v10792
        %v10794 = vmul.f32 %v10743, 1.442695
        %v10795 = vpow.pop %v10794
        %v10796 = vmul.f32 %v10744, 1.442695
        %v10797 = vpow.pop %v10796
        %v10798 = vmul.f32 %v10745, 1.442695
        %v10799 = vpow.pop %v10798
        %v10800 = vmul.f32 %v10746, 1.442695
        %v10801 = vpow.pop %v10800
        %v10802 = vmul.f32 %v10747, 1.442695
        %v10803 = vpow.pop %v10802
        %v10804 = vmul.f32 %v10748, 1.442695
        %v10805 = vpow.pop %v10804
        %v10806 = vmul.f32 %v10749, 1.442695
        %v10807 = vpow.pop %v10806
        %v10808 = vmul.f32 %v10750, 1.442695
        %v10809 = vpow.pop %v10808
        %v10810 = vmul.f32 %v10751, 1.442695
        %v10811 = vpow.pop %v10810
        %v10812 = vmul.f32 %v10752, 1.442695
        %v10813 = vpow.pop %v10812
        %v10814 = vmul.f32 %v10753, 1.442695
        %v10815 = vpow.pop %v10814
        %v10816 = vmul.f32 %v10754, 1.442695
        %v10817 = vpow.pop %v10816
        %v10818 = vmul.f32 %v10755, 1.442695
        %v10819 = vpow.pop %v10818
        %v10820 = vmul.f32 %v10757, %v3241
        %v10821 = vmul.f32 %v10759, %v3245
        %v10822 = vmul.f32 %v10761, %v3252
        %v10823 = vmul.f32 %v10763, %v3256
        %v10824 = vmul.f32 %v10765, %v3263
        %v10825 = vmul.f32 %v10767, %v3267
        %v10826 = vmul.f32 %v10769, %v3274
        %v10827 = vmul.f32 %v10771, %v3278
        %v10828 = vmul.f32 %v10773, %v3285
        %v10829 = vmul.f32 %v10775, %v3289
        %v10830 = vmul.f32 %v10777, %v3296
        %v10831 = vmul.f32 %v10779, %v3300
        %v10832 = vmul.f32 %v10781, %v3307
        %v10833 = vmul.f32 %v10783, %v3311
        %v10834 = vmul.f32 %v10785, %v3318
        %v10835 = vmul.f32 %v10787, %v3322
        %v10836 = vmul.f32 %v10789, %v3329
        %v10837 = vmul.f32 %v10791, %v3333
        %v10838 = vmul.f32 %v10793, %v3340
        %v10839 = vmul.f32 %v10795, %v3344
        %v10840 = vmul.f32 %v10797, %v3351
        %v10841 = vmul.f32 %v10799, %v3355
        %v10842 = vmul.f32 %v10801, %v3362
        %v10843 = vmul.f32 %v10803, %v3366
        %v10844 = vmul.f32 %v10805, %v3373
        %v10845 = vmul.f32 %v10807, %v3377
        %v10846 = vmul.f32 %v10809, %v3384
        %v10847 = vmul.f32 %v10811, %v3388
        %v10848 = vmul.f32 %v10813, %v3395
        %v10849 = vmul.f32 %v10815, %v3399
        %v10850 = vmul.f32 %v10817, %v3406
        %v10851 = vmul.f32 %v10819, %v3410
        %10884 = vset.pattern.permute.xlu0 0
        %10885 = vperm.xlu0 %10884, %v10820
        %v10886 = vpop.permute.xlu0 %10885
        %10887 = vset.pattern.permute.xlu0 0
        %10888 = vperm.xlu0 %10887, %v10821
        %v10889 = vpop.permute.xlu0 %10888
        %10890 = vset.pattern.permute.xlu0 0
        %10891 = vperm.xlu0 %10890, %v10822
        %v10892 = vpop.permute.xlu0 %10891
        %10893 = vset.pattern.permute.xlu0 0
        %10894 = vperm.xlu0 %10893, %v10823
        %v10895 = vpop.permute.xlu0 %10894
        %10896 = vset.pattern.permute.xlu0 0
        %10897 = vperm.xlu0 %10896, %v10824
        %v10898 = vpop.permute.xlu0 %10897
        %10899 = vset.pattern.permute.xlu0 0
        %10900 = vperm.xlu0 %10899, %v10825
        %v10901 = vpop.permute.xlu0 %10900
        %10902 = vset.pattern.permute.xlu0 0
        %10903 = vperm.xlu0 %10902, %v10826
        %v10904 = vpop.permute.xlu0 %10903
        %10905 = vset.pattern.permute.xlu0 0
        %10906 = vperm.xlu0 %10905, %v10827
        %v10907 = vpop.permute.xlu0 %10906
        %10908 = vset.pattern.permute.xlu0 0
        %10909 = vperm.xlu0 %10908, %v10828
        %v10910 = vpop.permute.xlu0 %10909
        %10911 = vset.pattern.permute.xlu0 0
        %10912 = vperm.xlu0 %10911, %v10829
        %v10913 = vpop.permute.xlu0 %10912
        %10914 = vset.pattern.permute.xlu0 0
        %10915 = vperm.xlu0 %10914, %v10830
        %v10916 = vpop.permute.xlu0 %10915
        %10917 = vset.pattern.permute.xlu0 0
        %10918 = vperm.xlu0 %10917, %v10831
        %v10919 = vpop.permute.xlu0 %10918
        %10920 = vset.pattern.permute.xlu0 0
        %10921 = vperm.xlu0 %10920, %v10832
        %v10922 = vpop.permute.xlu0 %10921
        %10923 = vset.pattern.permute.xlu0 0
        %10924 = vperm.xlu0 %10923, %v10833
        %v10925 = vpop.permute.xlu0 %10924
        %10926 = vset.pattern.permute.xlu0 0
        %10927 = vperm.xlu0 %10926, %v10834
        %v10928 = vpop.permute.xlu0 %10927
        %10929 = vset.pattern.permute.xlu0 0
        %10930 = vperm.xlu0 %10929, %v10835
        %v10931 = vpop.permute.xlu0 %10930
        %10932 = vset.pattern.permute.xlu0 0
        %10933 = vperm.xlu0 %10932, %v10836
        %v10934 = vpop.permute.xlu0 %10933
        %10935 = vset.pattern.permute.xlu0 0
        %10936 = vperm.xlu0 %10935, %v10837
        %v10937 = vpop.permute.xlu0 %10936
        %10938 = vset.pattern.permute.xlu0 0
        %10939 = vperm.xlu0 %10938, %v10838
        %v10940 = vpop.permute.xlu0 %10939
        %10941 = vset.pattern.permute.xlu0 0
        %10942 = vperm.xlu0 %10941, %v10839
        %v10943 = vpop.permute.xlu0 %10942
        %10944 = vset.pattern.permute.xlu0 0
        %10945 = vperm.xlu0 %10944, %v10840
        %v10946 = vpop.permute.xlu0 %10945
        %10947 = vset.pattern.permute.xlu0 0
        %10948 = vperm.xlu0 %10947, %v10841
        %v10949 = vpop.permute.xlu0 %10948
        %10950 = vset.pattern.permute.xlu0 0
        %10951 = vperm.xlu0 %10950, %v10842
        %v10952 = vpop.permute.xlu0 %10951
        %10953 = vset.pattern.permute.xlu0 0
        %10954 = vperm.xlu0 %10953, %v10843
        %v10955 = vpop.permute.xlu0 %10954
        %10956 = vset.pattern.permute.xlu0 0
        %10957 = vperm.xlu0 %10956, %v10844
        %v10958 = vpop.permute.xlu0 %10957
        %10959 = vset.pattern.permute.xlu0 0
        %10960 = vperm.xlu0 %10959, %v10845
        %v10961 = vpop.permute.xlu0 %10960
        %10962 = vset.pattern.permute.xlu0 0
        %10963 = vperm.xlu0 %10962, %v10846
        %v10964 = vpop.permute.xlu0 %10963
        %10965 = vset.pattern.permute.xlu0 0
        %10966 = vperm.xlu0 %10965, %v10847
        %v10967 = vpop.permute.xlu0 %10966
        %10968 = vset.pattern.permute.xlu0 0
        %10969 = vperm.xlu0 %10968, %v10848
        %v10970 = vpop.permute.xlu0 %10969
        %10971 = vset.pattern.permute.xlu0 0
        %10972 = vperm.xlu0 %10971, %v10849
        %v10973 = vpop.permute.xlu0 %10972
        %10974 = vset.pattern.permute.xlu0 0
        %10975 = vperm.xlu0 %10974, %v10850
        %v10976 = vpop.permute.xlu0 %10975
        %10977 = vset.pattern.permute.xlu0 0
        %10978 = vperm.xlu0 %10977, %v10851
        %v10979 = vpop.permute.xlu0 %10978
        %v10980 = vlaneseq
        %v10981 = vshrl.u32 %v10980, 7
        %v10982 = vsub.s32 %v492, %v10981
        %v10983 = vrot.slane %v10886, %v10982
        %v10984 = vlaneseq
        %v10985 = vshrl.u32 %v10984, 7
        %v10986 = vsub.s32 %v2884, %v10985
        %v10987 = vrot.slane %v10889, %v10986
        %v10988 = vsel %vm2889, %v10987, %v10983
        %v10989 = vlaneseq
        %v10990 = vshrl.u32 %v10989, 7
        %v10991 = vsub.s32 %v492, %v10990
        %v10992 = vrot.slane %v10892, %v10991
        %v10993 = vlaneseq
        %v10994 = vshrl.u32 %v10993, 7
        %v10995 = vsub.s32 %v2884, %v10994
        %v10996 = vrot.slane %v10895, %v10995
        %v10997 = vsel %vm2889, %v10996, %v10992
        %v10998 = vlaneseq
        %v10999 = vshrl.u32 %v10998, 7
        %v11000 = vsub.s32 %v492, %v10999
        %v11001 = vrot.slane %v10898, %v11000
        %v11002 = vlaneseq
        %v11003 = vshrl.u32 %v11002, 7
        %v11004 = vsub.s32 %v2884, %v11003
        %v11005 = vrot.slane %v10901, %v11004
        %v11006 = vsel %vm2889, %v11005, %v11001
        %v11007 = vlaneseq
        %v11008 = vshrl.u32 %v11007, 7
        %v11009 = vsub.s32 %v492, %v11008
        %v11010 = vrot.slane %v10904, %v11009
        %v11011 = vlaneseq
        %v11012 = vshrl.u32 %v11011, 7
        %v11013 = vsub.s32 %v2884, %v11012
        %v11014 = vrot.slane %v10907, %v11013
        %v11015 = vsel %vm2889, %v11014, %v11010
        %v11016 = vlaneseq
        %v11017 = vshrl.u32 %v11016, 7
        %v11018 = vsub.s32 %v492, %v11017
        %v11019 = vrot.slane %v10910, %v11018
        %v11020 = vlaneseq
        %v11021 = vshrl.u32 %v11020, 7
        %v11022 = vsub.s32 %v2884, %v11021
        %v11023 = vrot.slane %v10913, %v11022
        %v11024 = vsel %vm2889, %v11023, %v11019
        %v11025 = vlaneseq
        %v11026 = vshrl.u32 %v11025, 7
        %v11027 = vsub.s32 %v492, %v11026
        %v11028 = vrot.slane %v10916, %v11027
        %v11029 = vlaneseq
        %v11030 = vshrl.u32 %v11029, 7
        %v11031 = vsub.s32 %v2884, %v11030
        %v11032 = vrot.slane %v10919, %v11031
        %v11033 = vsel %vm2889, %v11032, %v11028
        %v11034 = vlaneseq
        %v11035 = vshrl.u32 %v11034, 7
        %v11036 = vsub.s32 %v492, %v11035
        %v11037 = vrot.slane %v10922, %v11036
        %v11038 = vlaneseq
        %v11039 = vshrl.u32 %v11038, 7
        %v11040 = vsub.s32 %v2884, %v11039
        %v11041 = vrot.slane %v10925, %v11040
        %v11042 = vsel %vm2889, %v11041, %v11037
        %v11043 = vlaneseq
        %v11044 = vshrl.u32 %v11043, 7
        %v11045 = vsub.s32 %v492, %v11044
        %v11046 = vrot.slane %v10928, %v11045
        %v11047 = vlaneseq
        %v11048 = vshrl.u32 %v11047, 7
        %v11049 = vsub.s32 %v2884, %v11048
        %v11050 = vrot.slane %v10931, %v11049
        %v11051 = vsel %vm2889, %v11050, %v11046
        %v11052 = vlaneseq
        %v11053 = vshrl.u32 %v11052, 7
        %v11054 = vsub.s32 %v492, %v11053
        %v11055 = vrot.slane %v10934, %v11054
        %v11056 = vlaneseq
        %v11057 = vshrl.u32 %v11056, 7
        %v11058 = vsub.s32 %v2884, %v11057
        %v11059 = vrot.slane %v10937, %v11058
        %v11060 = vsel %vm2889, %v11059, %v11055
        %v11061 = vlaneseq
        %v11062 = vshrl.u32 %v11061, 7
        %v11063 = vsub.s32 %v492, %v11062
        %v11064 = vrot.slane %v10940, %v11063
        %v11065 = vlaneseq
        %v11066 = vshrl.u32 %v11065, 7
        %v11067 = vsub.s32 %v2884, %v11066
        %v11068 = vrot.slane %v10943, %v11067
        %v11069 = vsel %vm2889, %v11068, %v11064
        %v11070 = vlaneseq
        %v11071 = vshrl.u32 %v11070, 7
        %v11072 = vsub.s32 %v492, %v11071
        %v11073 = vrot.slane %v10946, %v11072
        %v11074 = vlaneseq
        %v11075 = vshrl.u32 %v11074, 7
        %v11076 = vsub.s32 %v2884, %v11075
        %v11077 = vrot.slane %v10949, %v11076
        %v11078 = vsel %vm2889, %v11077, %v11073
        %v11079 = vlaneseq
        %v11080 = vshrl.u32 %v11079, 7
        %v11081 = vsub.s32 %v492, %v11080
        %v11082 = vrot.slane %v10952, %v11081
        %v11083 = vlaneseq
        %v11084 = vshrl.u32 %v11083, 7
        %v11085 = vsub.s32 %v2884, %v11084
        %v11086 = vrot.slane %v10955, %v11085
        %v11087 = vsel %vm2889, %v11086, %v11082
        %v11088 = vlaneseq
        %v11089 = vshrl.u32 %v11088, 7
        %v11090 = vsub.s32 %v492, %v11089
        %v11091 = vrot.slane %v10958, %v11090
        %v11092 = vlaneseq
        %v11093 = vshrl.u32 %v11092, 7
        %v11094 = vsub.s32 %v2884, %v11093
        %v11095 = vrot.slane %v10961, %v11094
        %v11096 = vsel %vm2889, %v11095, %v11091
        %v11097 = vlaneseq
        %v11098 = vshrl.u32 %v11097, 7
        %v11099 = vsub.s32 %v492, %v11098
        %v11100 = vrot.slane %v10964, %v11099
        %v11101 = vlaneseq
        %v11102 = vshrl.u32 %v11101, 7
        %v11103 = vsub.s32 %v2884, %v11102
        %v11104 = vrot.slane %v10967, %v11103
        %v11105 = vsel %vm2889, %v11104, %v11100
        %v11106 = vlaneseq
        %v11107 = vshrl.u32 %v11106, 7
        %v11108 = vsub.s32 %v492, %v11107
        %v11109 = vrot.slane %v10970, %v11108
        %v11110 = vlaneseq
        %v11111 = vshrl.u32 %v11110, 7
        %v11112 = vsub.s32 %v2884, %v11111
        %v11113 = vrot.slane %v10973, %v11112
        %v11114 = vsel %vm2889, %v11113, %v11109
        %v11115 = vlaneseq
        %v11116 = vshrl.u32 %v11115, 7
        %v11117 = vsub.s32 %v492, %v11116
        %v11118 = vrot.slane %v10976, %v11117
        %v11119 = vlaneseq
        %v11120 = vshrl.u32 %v11119, 7
        %v11121 = vsub.s32 %v2884, %v11120
        %v11122 = vrot.slane %v10979, %v11121
        %v11123 = vsel %vm2889, %v11122, %v11118
        %v11124 = vsel %vm3026, %v10997, %v10988
        %v11125 = vsel %vm3028, %v11006, %v11124
        %v11126 = vsel %vm3030, %v11015, %v11125
        %v11127 = vsel %vm3032, %v11024, %v11126
        %v11128 = vsel %vm3034, %v11033, %v11127
        %v11129 = vsel %vm3036, %v11042, %v11128
        %v11130 = vsel %vm3038, %v11051, %v11129
        %v11131 = vsel %vm3026, %v11069, %v11060
        %v11132 = vsel %vm3028, %v11078, %v11131
        %v11133 = vsel %vm3030, %v11087, %v11132
        %v11134 = vsel %vm3032, %v11096, %v11133
        %v11135 = vsel %vm3034, %v11105, %v11134
        %v11136 = vsel %vm3036, %v11114, %v11135
        %v11137 = vsel %vm3038, %v11123, %v11136
        %v11140 = vsel %vm1521, %v11130, 0.0
        %11141 = vadd.xlane.f32.xlu0 %v11140
        %v11142 = vpop.xlane.xlu0 %11141
        %v11143 = vsel %vm1521, %v11137, 0.0
        %11144 = vadd.xlane.f32.xlu0 %v11143
        %v11145 = vpop.xlane.xlu0 %11144
        %v11146 = vrcp.pop %v11142
        %v11147 = vrcp.pop %v11145
        %v11150 = vlaneseq
        %v11151 = vshrl.u32 %v11150, 7
        %v11152 = vsub.s32 0, %v11151
        %v11153 = vrot.slane %v11146, %v11152
        %v11154 = vlaneseq
        %v11155 = vshrl.u32 %v11154, 7
        %v11156 = vsub.s32 1, %v11155
        %v11157 = vrot.slane %v11146, %v11156
        %v11158 = vlaneseq
        %v11159 = vshrl.u32 %v11158, 7
        %v11160 = vsub.s32 2, %v11159
        %v11161 = vrot.slane %v11146, %v11160
        %v11162 = vlaneseq
        %v11163 = vshrl.u32 %v11162, 7
        %v11164 = vsub.s32 3, %v11163
        %v11165 = vrot.slane %v11146, %v11164
        %v11166 = vlaneseq
        %v11167 = vshrl.u32 %v11166, 7
        %v11168 = vsub.s32 4, %v11167
        %v11169 = vrot.slane %v11146, %v11168
        %v11170 = vlaneseq
        %v11171 = vshrl.u32 %v11170, 7
        %v11172 = vsub.s32 5, %v11171
        %v11173 = vrot.slane %v11146, %v11172
        %v11174 = vlaneseq
        %v11175 = vshrl.u32 %v11174, 7
        %v11176 = vsub.s32 6, %v11175
        %v11177 = vrot.slane %v11146, %v11176
        %v11178 = vlaneseq
        %v11179 = vshrl.u32 %v11178, 7
        %v11180 = vsub.s32 7, %v11179
        %v11181 = vrot.slane %v11146, %v11180
        %v11182 = vlaneseq
        %v11183 = vshrl.u32 %v11182, 7
        %v11184 = vsub.s32 0, %v11183
        %v11185 = vrot.slane %v11147, %v11184
        %v11186 = vlaneseq
        %v11187 = vshrl.u32 %v11186, 7
        %v11188 = vsub.s32 1, %v11187
        %v11189 = vrot.slane %v11147, %v11188
        %v11190 = vlaneseq
        %v11191 = vshrl.u32 %v11190, 7
        %v11192 = vsub.s32 2, %v11191
        %v11193 = vrot.slane %v11147, %v11192
        %v11194 = vlaneseq
        %v11195 = vshrl.u32 %v11194, 7
        %v11196 = vsub.s32 3, %v11195
        %v11197 = vrot.slane %v11147, %v11196
        %v11198 = vlaneseq
        %v11199 = vshrl.u32 %v11198, 7
        %v11200 = vsub.s32 4, %v11199
        %v11201 = vrot.slane %v11147, %v11200
        %v11202 = vlaneseq
        %v11203 = vshrl.u32 %v11202, 7
        %v11204 = vsub.s32 5, %v11203
        %v11205 = vrot.slane %v11147, %v11204
        %v11206 = vlaneseq
        %v11207 = vshrl.u32 %v11206, 7
        %v11208 = vsub.s32 6, %v11207
        %v11209 = vrot.slane %v11147, %v11208
        %v11210 = vlaneseq
        %v11211 = vshrl.u32 %v11210, 7
        %v11212 = vsub.s32 7, %v11211
        %v11213 = vrot.slane %v11147, %v11212
        %v11230 = vmul.f32 %v10820, %v11153
        %v11231 = vmul.f32 %v10821, %v11153
        %v11232 = vmul.f32 %v10822, %v11157
        %v11233 = vmul.f32 %v10823, %v11157
        %v11234 = vmul.f32 %v10824, %v11161
        %v11235 = vmul.f32 %v10825, %v11161
        %v11236 = vmul.f32 %v10826, %v11165
        %v11237 = vmul.f32 %v10827, %v11165
        %v11238 = vmul.f32 %v10828, %v11169
        %v11239 = vmul.f32 %v10829, %v11169
        %v11240 = vmul.f32 %v10830, %v11173
        %v11241 = vmul.f32 %v10831, %v11173
        %v11242 = vmul.f32 %v10832, %v11177
        %v11243 = vmul.f32 %v10833, %v11177
        %v11244 = vmul.f32 %v10834, %v11181
        %v11245 = vmul.f32 %v10835, %v11181
        %v11246 = vmul.f32 %v10836, %v11185
        %v11247 = vmul.f32 %v10837, %v11185
        %v11248 = vmul.f32 %v10838, %v11189
        %v11249 = vmul.f32 %v10839, %v11189
        %v11250 = vmul.f32 %v10840, %v11193
        %v11251 = vmul.f32 %v10841, %v11193
        %v11252 = vmul.f32 %v10842, %v11197
        %v11253 = vmul.f32 %v10843, %v11197
        %v11254 = vmul.f32 %v10844, %v11201
        %v11255 = vmul.f32 %v10845, %v11201
        %v11256 = vmul.f32 %v10846, %v11205
        %v11257 = vmul.f32 %v10847, %v11205
        %v11258 = vmul.f32 %v10848, %v11209
        %v11259 = vmul.f32 %v10849, %v11209
        %v11260 = vmul.f32 %v10850, %v11213
        %v11261 = vmul.f32 %v10851, %v11213
        %11294 = vset.pattern.permute.xlu0 0
        %11295 = vperm.xlu0 %11294, %v10220
        %v11296 = vpop.permute.xlu0 %11295
        %11297 = vset.pattern.permute.xlu0 0
        %11298 = vperm.xlu0 %11297, %v10221
        %v11299 = vpop.permute.xlu0 %11298
        %11300 = vset.pattern.permute.xlu0 0
        %11301 = vperm.xlu0 %11300, %v10222
        %v11302 = vpop.permute.xlu0 %11301
        %11303 = vset.pattern.permute.xlu0 0
        %11304 = vperm.xlu0 %11303, %v10223
        %v11305 = vpop.permute.xlu0 %11304
        %11306 = vset.pattern.permute.xlu0 0
        %11307 = vperm.xlu0 %11306, %v10224
        %v11308 = vpop.permute.xlu0 %11307
        %11309 = vset.pattern.permute.xlu0 0
        %11310 = vperm.xlu0 %11309, %v10225
        %v11311 = vpop.permute.xlu0 %11310
        %11312 = vset.pattern.permute.xlu0 0
        %11313 = vperm.xlu0 %11312, %v10226
        %v11314 = vpop.permute.xlu0 %11313
        %11315 = vset.pattern.permute.xlu0 0
        %11316 = vperm.xlu0 %11315, %v10227
        %v11317 = vpop.permute.xlu0 %11316
        %11318 = vset.pattern.permute.xlu0 0
        %11319 = vperm.xlu0 %11318, %v10228
        %v11320 = vpop.permute.xlu0 %11319
        %11321 = vset.pattern.permute.xlu0 0
        %11322 = vperm.xlu0 %11321, %v10229
        %v11323 = vpop.permute.xlu0 %11322
        %11324 = vset.pattern.permute.xlu0 0
        %11325 = vperm.xlu0 %11324, %v10230
        %v11326 = vpop.permute.xlu0 %11325
        %11327 = vset.pattern.permute.xlu0 0
        %11328 = vperm.xlu0 %11327, %v10231
        %v11329 = vpop.permute.xlu0 %11328
        %11330 = vset.pattern.permute.xlu0 0
        %11331 = vperm.xlu0 %11330, %v10232
        %v11332 = vpop.permute.xlu0 %11331
        %11333 = vset.pattern.permute.xlu0 0
        %11334 = vperm.xlu0 %11333, %v10233
        %v11335 = vpop.permute.xlu0 %11334
        %11336 = vset.pattern.permute.xlu0 0
        %11337 = vperm.xlu0 %11336, %v10234
        %v11338 = vpop.permute.xlu0 %11337
        %11339 = vset.pattern.permute.xlu0 0
        %11340 = vperm.xlu0 %11339, %v10235
        %v11341 = vpop.permute.xlu0 %11340
        %11342 = vset.pattern.permute.xlu0 0
        %11343 = vperm.xlu0 %11342, %v10236
        %v11344 = vpop.permute.xlu0 %11343
        %11345 = vset.pattern.permute.xlu0 0
        %11346 = vperm.xlu0 %11345, %v10237
        %v11347 = vpop.permute.xlu0 %11346
        %11348 = vset.pattern.permute.xlu0 0
        %11349 = vperm.xlu0 %11348, %v10238
        %v11350 = vpop.permute.xlu0 %11349
        %11351 = vset.pattern.permute.xlu0 0
        %11352 = vperm.xlu0 %11351, %v10239
        %v11353 = vpop.permute.xlu0 %11352
        %11354 = vset.pattern.permute.xlu0 0
        %11355 = vperm.xlu0 %11354, %v10240
        %v11356 = vpop.permute.xlu0 %11355
        %11357 = vset.pattern.permute.xlu0 0
        %11358 = vperm.xlu0 %11357, %v10241
        %v11359 = vpop.permute.xlu0 %11358
        %11360 = vset.pattern.permute.xlu0 0
        %11361 = vperm.xlu0 %11360, %v10242
        %v11362 = vpop.permute.xlu0 %11361
        %11363 = vset.pattern.permute.xlu0 0
        %11364 = vperm.xlu0 %11363, %v10243
        %v11365 = vpop.permute.xlu0 %11364
        %11366 = vset.pattern.permute.xlu0 0
        %11367 = vperm.xlu0 %11366, %v10244
        %v11368 = vpop.permute.xlu0 %11367
        %11369 = vset.pattern.permute.xlu0 0
        %11370 = vperm.xlu0 %11369, %v10245
        %v11371 = vpop.permute.xlu0 %11370
        %11372 = vset.pattern.permute.xlu0 0
        %11373 = vperm.xlu0 %11372, %v10246
        %v11374 = vpop.permute.xlu0 %11373
        %11375 = vset.pattern.permute.xlu0 0
        %11376 = vperm.xlu0 %11375, %v10247
        %v11377 = vpop.permute.xlu0 %11376
        %11378 = vset.pattern.permute.xlu0 0
        %11379 = vperm.xlu0 %11378, %v10248
        %v11380 = vpop.permute.xlu0 %11379
        %11381 = vset.pattern.permute.xlu0 0
        %11382 = vperm.xlu0 %11381, %v10249
        %v11383 = vpop.permute.xlu0 %11382
        %11384 = vset.pattern.permute.xlu0 0
        %11385 = vperm.xlu0 %11384, %v10250
        %v11386 = vpop.permute.xlu0 %11385
        %11387 = vset.pattern.permute.xlu0 0
        %11388 = vperm.xlu0 %11387, %v10251
        %v11389 = vpop.permute.xlu0 %11388
        %v11390 = vlaneseq
        %v11391 = vshrl.u32 %v11390, 7
        %v11392 = vsub.s32 %v492, %v11391
        %v11393 = vrot.slane %v11296, %v11392
        %v11394 = vlaneseq
        %v11395 = vshrl.u32 %v11394, 7
        %v11396 = vsub.s32 %v2884, %v11395
        %v11397 = vrot.slane %v11299, %v11396
        %v11398 = vsel %vm2889, %v11397, %v11393
        %v11399 = vlaneseq
        %v11400 = vshrl.u32 %v11399, 7
        %v11401 = vsub.s32 %v492, %v11400
        %v11402 = vrot.slane %v11302, %v11401
        %v11403 = vlaneseq
        %v11404 = vshrl.u32 %v11403, 7
        %v11405 = vsub.s32 %v2884, %v11404
        %v11406 = vrot.slane %v11305, %v11405
        %v11407 = vsel %vm2889, %v11406, %v11402
        %v11408 = vlaneseq
        %v11409 = vshrl.u32 %v11408, 7
        %v11410 = vsub.s32 %v492, %v11409
        %v11411 = vrot.slane %v11308, %v11410
        %v11412 = vlaneseq
        %v11413 = vshrl.u32 %v11412, 7
        %v11414 = vsub.s32 %v2884, %v11413
        %v11415 = vrot.slane %v11311, %v11414
        %v11416 = vsel %vm2889, %v11415, %v11411
        %v11417 = vlaneseq
        %v11418 = vshrl.u32 %v11417, 7
        %v11419 = vsub.s32 %v492, %v11418
        %v11420 = vrot.slane %v11314, %v11419
        %v11421 = vlaneseq
        %v11422 = vshrl.u32 %v11421, 7
        %v11423 = vsub.s32 %v2884, %v11422
        %v11424 = vrot.slane %v11317, %v11423
        %v11425 = vsel %vm2889, %v11424, %v11420
        %v11426 = vlaneseq
        %v11427 = vshrl.u32 %v11426, 7
        %v11428 = vsub.s32 %v492, %v11427
        %v11429 = vrot.slane %v11320, %v11428
        %v11430 = vlaneseq
        %v11431 = vshrl.u32 %v11430, 7
        %v11432 = vsub.s32 %v2884, %v11431
        %v11433 = vrot.slane %v11323, %v11432
        %v11434 = vsel %vm2889, %v11433, %v11429
        %v11435 = vlaneseq
        %v11436 = vshrl.u32 %v11435, 7
        %v11437 = vsub.s32 %v492, %v11436
        %v11438 = vrot.slane %v11326, %v11437
        %v11439 = vlaneseq
        %v11440 = vshrl.u32 %v11439, 7
        %v11441 = vsub.s32 %v2884, %v11440
        %v11442 = vrot.slane %v11329, %v11441
        %v11443 = vsel %vm2889, %v11442, %v11438
        %v11444 = vlaneseq
        %v11445 = vshrl.u32 %v11444, 7
        %v11446 = vsub.s32 %v492, %v11445
        %v11447 = vrot.slane %v11332, %v11446
        %v11448 = vlaneseq
        %v11449 = vshrl.u32 %v11448, 7
        %v11450 = vsub.s32 %v2884, %v11449
        %v11451 = vrot.slane %v11335, %v11450
        %v11452 = vsel %vm2889, %v11451, %v11447
        %v11453 = vlaneseq
        %v11454 = vshrl.u32 %v11453, 7
        %v11455 = vsub.s32 %v492, %v11454
        %v11456 = vrot.slane %v11338, %v11455
        %v11457 = vlaneseq
        %v11458 = vshrl.u32 %v11457, 7
        %v11459 = vsub.s32 %v2884, %v11458
        %v11460 = vrot.slane %v11341, %v11459
        %v11461 = vsel %vm2889, %v11460, %v11456
        %v11462 = vlaneseq
        %v11463 = vshrl.u32 %v11462, 7
        %v11464 = vsub.s32 %v492, %v11463
        %v11465 = vrot.slane %v11344, %v11464
        %v11466 = vlaneseq
        %v11467 = vshrl.u32 %v11466, 7
        %v11468 = vsub.s32 %v2884, %v11467
        %v11469 = vrot.slane %v11347, %v11468
        %v11470 = vsel %vm2889, %v11469, %v11465
        %v11471 = vlaneseq
        %v11472 = vshrl.u32 %v11471, 7
        %v11473 = vsub.s32 %v492, %v11472
        %v11474 = vrot.slane %v11350, %v11473
        %v11475 = vlaneseq
        %v11476 = vshrl.u32 %v11475, 7
        %v11477 = vsub.s32 %v2884, %v11476
        %v11478 = vrot.slane %v11353, %v11477
        %v11479 = vsel %vm2889, %v11478, %v11474
        %v11480 = vlaneseq
        %v11481 = vshrl.u32 %v11480, 7
        %v11482 = vsub.s32 %v492, %v11481
        %v11483 = vrot.slane %v11356, %v11482
        %v11484 = vlaneseq
        %v11485 = vshrl.u32 %v11484, 7
        %v11486 = vsub.s32 %v2884, %v11485
        %v11487 = vrot.slane %v11359, %v11486
        %v11488 = vsel %vm2889, %v11487, %v11483
        %v11489 = vlaneseq
        %v11490 = vshrl.u32 %v11489, 7
        %v11491 = vsub.s32 %v492, %v11490
        %v11492 = vrot.slane %v11362, %v11491
        %v11493 = vlaneseq
        %v11494 = vshrl.u32 %v11493, 7
        %v11495 = vsub.s32 %v2884, %v11494
        %v11496 = vrot.slane %v11365, %v11495
        %v11497 = vsel %vm2889, %v11496, %v11492
        %v11498 = vlaneseq
        %v11499 = vshrl.u32 %v11498, 7
        %v11500 = vsub.s32 %v492, %v11499
        %v11501 = vrot.slane %v11368, %v11500
        %v11502 = vlaneseq
        %v11503 = vshrl.u32 %v11502, 7
        %v11504 = vsub.s32 %v2884, %v11503
        %v11505 = vrot.slane %v11371, %v11504
        %v11506 = vsel %vm2889, %v11505, %v11501
        %v11507 = vlaneseq
        %v11508 = vshrl.u32 %v11507, 7
        %v11509 = vsub.s32 %v492, %v11508
        %v11510 = vrot.slane %v11374, %v11509
        %v11511 = vlaneseq
        %v11512 = vshrl.u32 %v11511, 7
        %v11513 = vsub.s32 %v2884, %v11512
        %v11514 = vrot.slane %v11377, %v11513
        %v11515 = vsel %vm2889, %v11514, %v11510
        %v11516 = vlaneseq
        %v11517 = vshrl.u32 %v11516, 7
        %v11518 = vsub.s32 %v492, %v11517
        %v11519 = vrot.slane %v11380, %v11518
        %v11520 = vlaneseq
        %v11521 = vshrl.u32 %v11520, 7
        %v11522 = vsub.s32 %v2884, %v11521
        %v11523 = vrot.slane %v11383, %v11522
        %v11524 = vsel %vm2889, %v11523, %v11519
        %v11525 = vlaneseq
        %v11526 = vshrl.u32 %v11525, 7
        %v11527 = vsub.s32 %v492, %v11526
        %v11528 = vrot.slane %v11386, %v11527
        %v11529 = vlaneseq
        %v11530 = vshrl.u32 %v11529, 7
        %v11531 = vsub.s32 %v2884, %v11530
        %v11532 = vrot.slane %v11389, %v11531
        %v11533 = vsel %vm2889, %v11532, %v11528
        %v11534 = vsel %vm3026, %v11407, %v11398
        %v11535 = vsel %vm3028, %v11416, %v11534
        %v11536 = vsel %vm3030, %v11425, %v11535
        %v11537 = vsel %vm3032, %v11434, %v11536
        %v11538 = vsel %vm3034, %v11443, %v11537
        %v11539 = vsel %vm3036, %v11452, %v11538
        %v11540 = vsel %vm3038, %v11461, %v11539
        %v11541 = vsel %vm3026, %v11479, %v11470
        %v11542 = vsel %vm3028, %v11488, %v11541
        %v11543 = vsel %vm3030, %v11497, %v11542
        %v11544 = vsel %vm3032, %v11506, %v11543
        %v11545 = vsel %vm3034, %v11515, %v11544
        %v11546 = vsel %vm3036, %v11524, %v11545
        %v11547 = vsel %vm3038, %v11533, %v11546
        %11582 = vset.pattern.permute.xlu0 0
        %11583 = vperm.xlu0 %11582, %v11230
        %v11584 = vpop.permute.xlu0 %11583
        %11585 = vset.pattern.permute.xlu0 0
        %11586 = vperm.xlu0 %11585, %v11231
        %v11587 = vpop.permute.xlu0 %11586
        %11588 = vset.pattern.permute.xlu0 0
        %11589 = vperm.xlu0 %11588, %v11232
        %v11590 = vpop.permute.xlu0 %11589
        %11591 = vset.pattern.permute.xlu0 0
        %11592 = vperm.xlu0 %11591, %v11233
        %v11593 = vpop.permute.xlu0 %11592
        %11594 = vset.pattern.permute.xlu0 0
        %11595 = vperm.xlu0 %11594, %v11234
        %v11596 = vpop.permute.xlu0 %11595
        %11597 = vset.pattern.permute.xlu0 0
        %11598 = vperm.xlu0 %11597, %v11235
        %v11599 = vpop.permute.xlu0 %11598
        %11600 = vset.pattern.permute.xlu0 0
        %11601 = vperm.xlu0 %11600, %v11236
        %v11602 = vpop.permute.xlu0 %11601
        %11603 = vset.pattern.permute.xlu0 0
        %11604 = vperm.xlu0 %11603, %v11237
        %v11605 = vpop.permute.xlu0 %11604
        %11606 = vset.pattern.permute.xlu0 0
        %11607 = vperm.xlu0 %11606, %v11238
        %v11608 = vpop.permute.xlu0 %11607
        %11609 = vset.pattern.permute.xlu0 0
        %11610 = vperm.xlu0 %11609, %v11239
        %v11611 = vpop.permute.xlu0 %11610
        %11612 = vset.pattern.permute.xlu0 0
        %11613 = vperm.xlu0 %11612, %v11240
        %v11614 = vpop.permute.xlu0 %11613
        %11615 = vset.pattern.permute.xlu0 0
        %11616 = vperm.xlu0 %11615, %v11241
        %v11617 = vpop.permute.xlu0 %11616
        %11618 = vset.pattern.permute.xlu0 0
        %11619 = vperm.xlu0 %11618, %v11242
        %v11620 = vpop.permute.xlu0 %11619
        %11621 = vset.pattern.permute.xlu0 0
        %11622 = vperm.xlu0 %11621, %v11243
        %v11623 = vpop.permute.xlu0 %11622
        %11624 = vset.pattern.permute.xlu0 0
        %11625 = vperm.xlu0 %11624, %v11244
        %v11626 = vpop.permute.xlu0 %11625
        %11627 = vset.pattern.permute.xlu0 0
        %11628 = vperm.xlu0 %11627, %v11245
        %v11629 = vpop.permute.xlu0 %11628
        %11630 = vset.pattern.permute.xlu0 0
        %11631 = vperm.xlu0 %11630, %v11246
        %v11632 = vpop.permute.xlu0 %11631
        %11633 = vset.pattern.permute.xlu0 0
        %11634 = vperm.xlu0 %11633, %v11247
        %v11635 = vpop.permute.xlu0 %11634
        %11636 = vset.pattern.permute.xlu0 0
        %11637 = vperm.xlu0 %11636, %v11248
        %v11638 = vpop.permute.xlu0 %11637
        %11639 = vset.pattern.permute.xlu0 0
        %11640 = vperm.xlu0 %11639, %v11249
        %v11641 = vpop.permute.xlu0 %11640
        %11642 = vset.pattern.permute.xlu0 0
        %11643 = vperm.xlu0 %11642, %v11250
        %v11644 = vpop.permute.xlu0 %11643
        %11645 = vset.pattern.permute.xlu0 0
        %11646 = vperm.xlu0 %11645, %v11251
        %v11647 = vpop.permute.xlu0 %11646
        %11648 = vset.pattern.permute.xlu0 0
        %11649 = vperm.xlu0 %11648, %v11252
        %v11650 = vpop.permute.xlu0 %11649
        %11651 = vset.pattern.permute.xlu0 0
        %11652 = vperm.xlu0 %11651, %v11253
        %v11653 = vpop.permute.xlu0 %11652
        %11654 = vset.pattern.permute.xlu0 0
        %11655 = vperm.xlu0 %11654, %v11254
        %v11656 = vpop.permute.xlu0 %11655
        %11657 = vset.pattern.permute.xlu0 0
        %11658 = vperm.xlu0 %11657, %v11255
        %v11659 = vpop.permute.xlu0 %11658
        %11660 = vset.pattern.permute.xlu0 0
        %11661 = vperm.xlu0 %11660, %v11256
        %v11662 = vpop.permute.xlu0 %11661
        %11663 = vset.pattern.permute.xlu0 0
        %11664 = vperm.xlu0 %11663, %v11257
        %v11665 = vpop.permute.xlu0 %11664
        %11666 = vset.pattern.permute.xlu0 0
        %11667 = vperm.xlu0 %11666, %v11258
        %v11668 = vpop.permute.xlu0 %11667
        %11669 = vset.pattern.permute.xlu0 0
        %11670 = vperm.xlu0 %11669, %v11259
        %v11671 = vpop.permute.xlu0 %11670
        %11672 = vset.pattern.permute.xlu0 0
        %11673 = vperm.xlu0 %11672, %v11260
        %v11674 = vpop.permute.xlu0 %11673
        %11675 = vset.pattern.permute.xlu0 0
        %11676 = vperm.xlu0 %11675, %v11261
        %v11677 = vpop.permute.xlu0 %11676
        %v11678 = vlaneseq
        %v11679 = vshrl.u32 %v11678, 7
        %v11680 = vsub.s32 %v5311, %v11679
        %v11681 = vrot.slane %v11584, %v11680
        %v11682 = vlaneseq
        %v11683 = vshrl.u32 %v11682, 7
        %v11684 = vsub.s32 %v5316, %v11683
        %v11685 = vrot.slane %v11587, %v11684
        %v11686 = vsel %vm5321, %v11685, %v11681
        %v11687 = vlaneseq
        %v11688 = vshrl.u32 %v11687, 7
        %v11689 = vsub.s32 %v5311, %v11688
        %v11690 = vrot.slane %v11590, %v11689
        %v11691 = vlaneseq
        %v11692 = vshrl.u32 %v11691, 7
        %v11693 = vsub.s32 %v5316, %v11692
        %v11694 = vrot.slane %v11593, %v11693
        %v11695 = vsel %vm5321, %v11694, %v11690
        %v11696 = vlaneseq
        %v11697 = vshrl.u32 %v11696, 7
        %v11698 = vsub.s32 %v5311, %v11697
        %v11699 = vrot.slane %v11596, %v11698
        %v11700 = vlaneseq
        %v11701 = vshrl.u32 %v11700, 7
        %v11702 = vsub.s32 %v5316, %v11701
        %v11703 = vrot.slane %v11599, %v11702
        %v11704 = vsel %vm5321, %v11703, %v11699
        %v11705 = vlaneseq
        %v11706 = vshrl.u32 %v11705, 7
        %v11707 = vsub.s32 %v5311, %v11706
        %v11708 = vrot.slane %v11602, %v11707
        %v11709 = vlaneseq
        %v11710 = vshrl.u32 %v11709, 7
        %v11711 = vsub.s32 %v5316, %v11710
        %v11712 = vrot.slane %v11605, %v11711
        %v11713 = vsel %vm5321, %v11712, %v11708
        %v11714 = vlaneseq
        %v11715 = vshrl.u32 %v11714, 7
        %v11716 = vsub.s32 %v5311, %v11715
        %v11717 = vrot.slane %v11608, %v11716
        %v11718 = vlaneseq
        %v11719 = vshrl.u32 %v11718, 7
        %v11720 = vsub.s32 %v5316, %v11719
        %v11721 = vrot.slane %v11611, %v11720
        %v11722 = vsel %vm5321, %v11721, %v11717
        %v11723 = vlaneseq
        %v11724 = vshrl.u32 %v11723, 7
        %v11725 = vsub.s32 %v5311, %v11724
        %v11726 = vrot.slane %v11614, %v11725
        %v11727 = vlaneseq
        %v11728 = vshrl.u32 %v11727, 7
        %v11729 = vsub.s32 %v5316, %v11728
        %v11730 = vrot.slane %v11617, %v11729
        %v11731 = vsel %vm5321, %v11730, %v11726
        %v11732 = vlaneseq
        %v11733 = vshrl.u32 %v11732, 7
        %v11734 = vsub.s32 %v5311, %v11733
        %v11735 = vrot.slane %v11620, %v11734
        %v11736 = vlaneseq
        %v11737 = vshrl.u32 %v11736, 7
        %v11738 = vsub.s32 %v5316, %v11737
        %v11739 = vrot.slane %v11623, %v11738
        %v11740 = vsel %vm5321, %v11739, %v11735
        %v11741 = vlaneseq
        %v11742 = vshrl.u32 %v11741, 7
        %v11743 = vsub.s32 %v5311, %v11742
        %v11744 = vrot.slane %v11626, %v11743
        %v11745 = vlaneseq
        %v11746 = vshrl.u32 %v11745, 7
        %v11747 = vsub.s32 %v5316, %v11746
        %v11748 = vrot.slane %v11629, %v11747
        %v11749 = vsel %vm5321, %v11748, %v11744
        %v11750 = vlaneseq
        %v11751 = vshrl.u32 %v11750, 7
        %v11752 = vsub.s32 %v5311, %v11751
        %v11753 = vrot.slane %v11632, %v11752
        %v11754 = vlaneseq
        %v11755 = vshrl.u32 %v11754, 7
        %v11756 = vsub.s32 %v5316, %v11755
        %v11757 = vrot.slane %v11635, %v11756
        %v11758 = vsel %vm5321, %v11757, %v11753
        %v11759 = vlaneseq
        %v11760 = vshrl.u32 %v11759, 7
        %v11761 = vsub.s32 %v5311, %v11760
        %v11762 = vrot.slane %v11638, %v11761
        %v11763 = vlaneseq
        %v11764 = vshrl.u32 %v11763, 7
        %v11765 = vsub.s32 %v5316, %v11764
        %v11766 = vrot.slane %v11641, %v11765
        %v11767 = vsel %vm5321, %v11766, %v11762
        %v11768 = vlaneseq
        %v11769 = vshrl.u32 %v11768, 7
        %v11770 = vsub.s32 %v5311, %v11769
        %v11771 = vrot.slane %v11644, %v11770
        %v11772 = vlaneseq
        %v11773 = vshrl.u32 %v11772, 7
        %v11774 = vsub.s32 %v5316, %v11773
        %v11775 = vrot.slane %v11647, %v11774
        %v11776 = vsel %vm5321, %v11775, %v11771
        %v11777 = vlaneseq
        %v11778 = vshrl.u32 %v11777, 7
        %v11779 = vsub.s32 %v5311, %v11778
        %v11780 = vrot.slane %v11650, %v11779
        %v11781 = vlaneseq
        %v11782 = vshrl.u32 %v11781, 7
        %v11783 = vsub.s32 %v5316, %v11782
        %v11784 = vrot.slane %v11653, %v11783
        %v11785 = vsel %vm5321, %v11784, %v11780
        %v11786 = vlaneseq
        %v11787 = vshrl.u32 %v11786, 7
        %v11788 = vsub.s32 %v5311, %v11787
        %v11789 = vrot.slane %v11656, %v11788
        %v11790 = vlaneseq
        %v11791 = vshrl.u32 %v11790, 7
        %v11792 = vsub.s32 %v5316, %v11791
        %v11793 = vrot.slane %v11659, %v11792
        %v11794 = vsel %vm5321, %v11793, %v11789
        %v11795 = vlaneseq
        %v11796 = vshrl.u32 %v11795, 7
        %v11797 = vsub.s32 %v5311, %v11796
        %v11798 = vrot.slane %v11662, %v11797
        %v11799 = vlaneseq
        %v11800 = vshrl.u32 %v11799, 7
        %v11801 = vsub.s32 %v5316, %v11800
        %v11802 = vrot.slane %v11665, %v11801
        %v11803 = vsel %vm5321, %v11802, %v11798
        %v11804 = vlaneseq
        %v11805 = vshrl.u32 %v11804, 7
        %v11806 = vsub.s32 %v5311, %v11805
        %v11807 = vrot.slane %v11668, %v11806
        %v11808 = vlaneseq
        %v11809 = vshrl.u32 %v11808, 7
        %v11810 = vsub.s32 %v5316, %v11809
        %v11811 = vrot.slane %v11671, %v11810
        %v11812 = vsel %vm5321, %v11811, %v11807
        %v11813 = vlaneseq
        %v11814 = vshrl.u32 %v11813, 7
        %v11815 = vsub.s32 %v5311, %v11814
        %v11816 = vrot.slane %v11674, %v11815
        %v11817 = vlaneseq
        %v11818 = vshrl.u32 %v11817, 7
        %v11819 = vsub.s32 %v5316, %v11818
        %v11820 = vrot.slane %v11677, %v11819
        %v11821 = vsel %vm5321, %v11820, %v11816
        %v11822 = vsel %vm3026, %v11695, %v11686
        %v11823 = vsel %vm3028, %v11704, %v11822
        %v11824 = vsel %vm3030, %v11713, %v11823
        %v11825 = vsel %vm3032, %v11722, %v11824
        %v11826 = vsel %vm3034, %v11731, %v11825
        %v11827 = vsel %vm3036, %v11740, %v11826
        %v11828 = vsel %vm3038, %v11749, %v11827
        %v11829 = vsel %vm3026, %v11767, %v11758
        %v11830 = vsel %vm3028, %v11776, %v11829
        %v11831 = vsel %vm3030, %v11785, %v11830
        %v11832 = vsel %vm3032, %v11794, %v11831
        %v11833 = vsel %vm3034, %v11803, %v11832
        %v11834 = vsel %vm3036, %v11812, %v11833
        %v11835 = vsel %vm3038, %v11821, %v11834
        %v11838 = vsel %vm1521, %v11540, %v11828
        %v11839 = vsel %vm1521, %v11547, %v11835
        %11840 = vrot.lane.b32.xlu0 %v8824, 96
        %v11841 = vpop.permute.xlu0 %11840
        %11842 = vrot.lane.b32.xlu0 %v8829, 96
        %v11843 = vpop.permute.xlu0 %11842
        %v11847 = vsel %vm2033, %v11838, 0
        %v11850 = vsel %vm2033, %v11839, 0
        %11852 = vmatprep.subr.mxu0 0.0
        %11853 = vmatpush1.msra.mxu0 %v8824
        %11854 = vmatprep.subr.mxu0 0.0
        %11855 = vmatpush1.msra.mxu0 %v8829
        %11856 = vmatprep.subr.mxu0 0.0
        %11857 = vmatpush1.msra.mxu0 %v11841
        %11858 = vmatprep.subr.mxu0 0.0
        %11859 = vmatpush1.msra.mxu0 %v11843
        %11860 = vmatprep.subr.mxu0 0.0
        %11861 = vmatpush1.msra.mxu0 0.0
        %11862 = vmatprep.subr.mxu0 0.0
        %11863 = vmatpush1.msra.mxu0 0.0
        %11864 = vmatprep.subr.mxu0 0.0
        %11865 = vmatpush1.msra.mxu0 0.0
        %11866 = vmatprep.subr.mxu0 0.0
        %11867 = vmatpush1.msra.mxu0 0.0
        %11868 = vmatprep.subr.mxu0 0.0
        %11869 = vmatpush1.msra.mxu0 0.0
        %11870 = vmatprep.subr.mxu0 0.0
        %11871 = vmatpush1.msra.mxu0 0.0
        %11872 = vmatprep.subr.mxu0 0.0
        %11873 = vmatpush1.msra.mxu0 0.0
        %11874 = vmatprep.subr.mxu0 0.0
        %11875 = vmatpush1.msra.mxu0 0.0
        %11876 = vmatprep.subr.mxu0 0.0
        %11877 = vmatpush1.msra.mxu0 0.0
        %11878 = vmatprep.subr.mxu0 0.0
        %11879 = vmatpush1.msra.mxu0 0.0
        %11880 = vmatprep.subr.mxu0 0.0
        %11881 = vmatpush1.msra.mxu0 0.0
        %11882 = vmatprep.subr.mxu0 0.0
        %11883 = vmatpush1.msra.mxu0 0.0
        %11884 = vmatprep.subr.mxu0 0.0
        %11885 = vmatpush1.msra.mxu0 0.0
        %11886 = vmatprep.subr.mxu0 0.0
        %11887 = vmatpush1.msra.mxu0 0.0
        %11888 = vmatprep.subr.mxu0 0.0
        %11889 = vmatpush1.msra.mxu0 0.0
        %11890 = vmatprep.subr.mxu0 0.0
        %11891 = vmatpush1.msra.mxu0 0.0
        %11892 = vmatprep.subr.mxu0 0.0
        %11893 = vmatpush1.msra.mxu0 0.0
        %11894 = vmatprep.subr.mxu0 0.0
        %11895 = vmatpush1.msra.mxu0 0.0
        %11896 = vmatprep.subr.mxu0 0.0
        %11897 = vmatpush1.msra.mxu0 0.0
        %11898 = vmatprep.subr.mxu0 0.0
        %11899 = vmatpush1.msra.mxu0 0.0
        %11900 = vmatprep.subr.mxu0 0.0
        %11901 = vmatpush1.msra.mxu0 0.0
        %11902 = vmatprep.subr.mxu0 0.0
        %11903 = vmatpush1.msra.mxu0 0.0
        %11904 = vmatprep.subr.mxu0 0.0
        %11905 = vmatpush1.msra.mxu0 0.0
        %11906 = vmatprep.subr.mxu0 0.0
        %11907 = vmatpush1.msra.mxu0 0.0
        %11908 = vmatprep.subr.mxu0 0.0
        %11909 = vmatpush1.msra.mxu0 0.0
        %11910 = vmatprep.subr.mxu0 0.0
        %11911 = vmatpush1.msra.mxu0 0.0
        %11912 = vmatprep.subr.mxu0 0.0
        %11913 = vmatpush1.msra.mxu0 0.0
        %11914 = vmatprep.subr.mxu0 0.0
        %11915 = vmatpush1.msra.mxu0 0.0
        %11916 = vmatprep.mubr.f32.mxu0 0.0
        %11917 = vmatmul.mubr.f32.gmra.mrb[0].mxu0 %v11847
        %v11918 = vpop.f32.mrb[0].mxu0
        %v11919 = vadd.f32 0.0, %v11918
        %v11920 = vpop.f32.mrb[0].mxu0
        %11921 = vmatprep.mubr.f32.mxu0 0.0
        %11922 = vmatmul.mubr.f32.gmra.mrb[0].mxu0 %v11850
        %v11923 = vpop.f32.mrb[0].mxu0
        %v11924 = vadd.f32 0.0, %v11923
        %v11925 = vpop.f32.mrb[0].mxu0
        %11926 = vdwg.mxu0
        %v11927 = vmul.f32 %v11919, 0.5
        %v11928 = vmul.f32 %v11924, 0.5
        %v11929 = vadd.f32 %v11927, %v515
        %v11930 = vadd.f32 %v11928, %v515
        %v11931 = vmax.f32 %v11929, 0.0
        %v11932 = vmax.f32 %v11930, 0.0
        %11933 = vst.msk [vmem:[%s436] sm:$0xff] %vm2033, %v11931
        %11934 = vst.msk [vmem:[%s436 + $0x8] sm:$0xff] %vm2033, %v11932
        %s11935 = sand.u32 %s301, 1
        %s11936 = scalar_lea.sflag [#allocation3], %s11935
        %s11937 = sand.u32 %s301, 1
        %s11938 = smul.addr %s11937, 16
        %s11939 = scalar_lea.vmem [#allocation2], %s11938
        // Predicated region
        $region69: #{tpu_custom_call.1} parent=67 // pred_check
          %p11940 = pneg %p311
        $region70: #{tpu_custom_call.1} parent=67 // pred_check_branch
          %11942 = sbr.rel (%p11940) target = $region72
        $region71: #{tpu_custom_call.1} parent=67 // pred_region
          %s11944 = ssub.s32 256, 256
          %11945 = vsyncadd %s11936, %s11944
          %s11946 = smul.addr %s26, 2
          %s11947 = smul.addr %s11946, 128
          %s11948 = scalar_lea.hbm %s12, %s11947
          %s11949 = sshll.u32 %s11939, 4
          %s11950 = int_to_ptr.vmem [resolvable:$true] %s11949
          %11955 = dma.vmem_to_hbm [thread:$0]  %s11950, 256, %s11948, %s11936, 128, 128, 8
        $region72: #{tpu_custom_call.1} parent=67 // pred_fallthru
          _
      $region68: #{tpu_custom_call.1} parent=5 // pred_fallthru
        _
      %p11956 = scmp.le.s32.totalorder 2, %s21
      // Predicated region
      $region73: #{tpu_custom_call.1} parent=5 // pred_check
        %p11957 = pneg %p11956
      $region74: #{tpu_custom_call.1} parent=5 // pred_check_branch
        %11959 = sbr.rel (%p11957) target = $region76
      $region75: #{tpu_custom_call.1} parent=5 // pred_region
        %s11960 = ssub.s32 %s21, 2
        // Predicated region
        $region77: #{tpu_custom_call.1} parent=75 // pred_check
          %p11961 = pneg %p317
        $region78: #{tpu_custom_call.1} parent=75 // pred_check_branch
          %11963 = sbr.rel (%p11961) target = $region80
        $region79: #{tpu_custom_call.1} parent=75 // pred_region
          %s11964 = sand.u32 %s302, 1
          %s11965 = scalar_lea.sflag [#allocation3], %s11964
          %s11966 = sand.u32 %s302, 1
          %s11967 = smul.addr %s11966, 16
          %s11968 = scalar_lea.vmem [#allocation2], %s11967
          %11969 = dma.done %s11965, 256
        $region80: #{tpu_custom_call.1} parent=75 // pred_fallthru
          _
      $region76: #{tpu_custom_call.1} parent=5 // pred_fallthru
        _
    $region6: #{tpu_custom_call.1} parent=1 // loop_footer
      %s25 = sadd.s32 1, %s21
    $region7: #{tpu_custom_call.1} parent=1 // loop_footer_branch
      %20 = sbr.rel target = $region3
    $region8: #{tpu_custom_call.1} parent=1 // loop_exit
      _
    %11970 = vsyncpa [#allocation3], 1
    %s11971 = scalar_lea.sflag [#allocation3], 1
    %11972 = vsyncpa %s11971, 1

</llo_original>
